<compile_context>
chip_gen: v7x
topology: tpu7x:2x2x1
jax: 0.10.0
libtpu: 0.0.40
codegen_flags: <defaults>
</compile_context>

<pallas_src>
import functools

import jax
import jax.numpy as jnp
from jax.experimental import pallas as pl
from jax.experimental.pallas import tpu as pltpu


def _ceil_div(a, b):
    return -(-a // b)


def _round_up(a, b):
    return _ceil_div(a, b) * b


def _batch_block(B, cap=8):
    # >= 2 grid steps whenever B >= 2 (keeps both v7x TensorCores busy).
    return max(1, min(cap, _ceil_div(B, 2)))


# -----------------------------------------------------------------------------
# Kernel 1: conv3x3(pad=1) + BatchNorm(eval) + ReLU + fused 2x2 max-pool.
# -----------------------------------------------------------------------------
def _conv_bn_relu_pool_kernel(x_ref, w_ref, scale_ref, shift_ref, o_ref,
                              *, Bi, H, C, Cout, windows):
    # x_ref  : (Bi, Hx, Wx, Cx) bf16, W-parity-folded (and halo-padded) input
    # w_ref  : (len(windows)*Cx, 2*Cout) bf16 paired-pixel conv weight
    # scale/shift : (1, 2*Cout) f32 folded BatchNorm (conv bias included)
    # o_ref  : (Bi, H//2, C, Cout) bf16 pooled output   (C == W//2)
    x = x_ref[...]
    Cx = x.shape[-1]
    wins = [x[:, r:r + H, s:s + C, :] for (r, s) in windows]
    slab4 = wins[0] if len(wins) == 1 else jnp.concatenate(wins, axis=-1)
    slab = slab4.reshape(Bi * H * C, len(windows) * Cx).astype(jnp.bfloat16)

    # Single GEMM per step (im2col slab stays in VMEM).
    y = jnp.dot(slab, w_ref[...], preferred_element_type=jnp.float32)
    y = jnp.maximum(y * scale_ref[...] + shift_ref[...], 0.0)       # BN + ReLU

    # Fused 2x2 max-pool: vertical partners are row-pairs (major axis), the
    # horizontal partners already sit in the two N-halves of the paired GEMM.
    y = y.reshape(Bi, H // 2, 2, C, 2 * Cout)
    y = jnp.maximum(y[:, :, 0], y[:, :, 1])                          # H-direction
    y = jnp.maximum(y[..., :Cout], y[..., Cout:])                    # W-direction
    o_ref[...] = y.astype(o_ref.dtype)


def _expand_conv_weight(w):
    """torch (Cout, Cin, 3, 3) -> paired-pixel (12*Cin, 2*Cout) bf16 weight.

    Slab column j = ((kh*2 + dc2)*2 + q)*Cin + ci holds xpad[h+kh, 2c + 2*dc2 + q, ci];
    output column pw*Cout + co is the conv result for output pixel w = 2c + pw.
    """
    cout, cin = w.shape[0], w.shape[1]
    wexp = jnp.zeros((12 * cin, 2 * cout), jnp.float32)
    for kh in range(3):
        for dc2 in range(2):
            for q in range(2):
                d = 2 * dc2 + q
                j0 = ((kh * 2 + dc2) * 2 + q) * cin
                for pw in range(2):
                    kw = d - pw
                    if 0 <= kw <= 2:
                        wexp = wexp.at[j0:j0 + cin, pw * cout:(pw + 1) * cout].set(
                            jnp.transpose(w[:, :, kh, kw]))          # (Cin, Cout)
    return wexp.astype(jnp.bfloat16)


def _fold_bn(gamma, beta, mean, var, conv_bias):
    scale = gamma / jnp.sqrt(var + 1e-5)
    shift = beta + (conv_bias - mean) * scale
    scale2 = jnp.concatenate([scale, scale]).reshape(1, -1).astype(jnp.float32)
    shift2 = jnp.concatenate([shift, shift]).reshape(1, -1).astype(jnp.float32)
    return scale2, shift2


def conv_bn_relu_pool(xw, w_pair, scale2, shift2, *, H, C, Cout, windows):
    """xw: W-parity-folded input (B, Hx, Wx, Cx) bf16 -> pooled (B, H//2, C, Cout) bf16."""
    B, Hx, Wx, Cx = xw.shape
    Bi = _batch_block(B)
    Bp = _round_up(B, Bi)
    if Bp != B:
        xw = jnp.pad(xw, ((0, Bp - B), (0, 0), (0, 0), (0, 0)))
    K = len(windows) * Cx

    out = pl.pallas_call(
        functools.partial(_conv_bn_relu_pool_kernel,
                          Bi=Bi, H=H, C=C, Cout=Cout, windows=windows),
        out_shape=jax.ShapeDtypeStruct((Bp, H // 2, C, Cout), jnp.bfloat16),
        grid_spec=pltpu.PrefetchScalarGridSpec(
            num_scalar_prefetch=0,
            grid=(Bp // Bi,),
            in_specs=[
                pl.BlockSpec((Bi, Hx, Wx, Cx), lambda i: (i, 0, 0, 0)),
                pl.BlockSpec((K, 2 * Cout), lambda i: (0, 0)),
                pl.BlockSpec((1, 2 * Cout), lambda i: (0, 0)),
                pl.BlockSpec((1, 2 * Cout), lambda i: (0, 0)),
            ],
            out_specs=pl.BlockSpec((Bi, H // 2, C, Cout), lambda i: (i, 0, 0, 0)),
        ),
        compiler_params=pltpu.CompilerParams(dimension_semantics=("parallel",)),
    )(xw, w_pair, scale2, shift2)
    return out[:B]


def _fold_width_parity(act_nhwc):
    """Halo-pad (pad=1) and fold the W parity into channels: (B,H,W,Cin) bf16
    -> (B, H+2, (W+2)//2, 2*Cin); the reshape is a free row-major relabel."""
    B, H, W, Cin = act_nhwc.shape
    xp = jnp.pad(act_nhwc, ((0, 0), (1, 1), (1, 1), (0, 0)))
    return xp.reshape(B, H + 2, (W + 2) // 2, 2 * Cin)


_WINDOWS_3x3 = tuple((kh, d) for kh in range(3) for d in range(2))


# -----------------------------------------------------------------------------
# Kernel 2: self-attention (fused QKV 2-D GEMM + softmax + residual), batched.
# -----------------------------------------------------------------------------
def _attention_kernel(x_ref, wqkv_ref, bqkv_ref, o_ref, *, Cq):
    x = x_ref[...]                                            # (Bb, HW, C) bf16
    Bb, HW, Cc = x.shape
    D = 2 * Cq + Cc
    # One lane/M-dense QKV projection GEMM for the whole per-step batch.
    qkv = jnp.dot(x.reshape(Bb * HW, Cc), wqkv_ref[...],
                  preferred_element_type=jnp.float32) + bqkv_ref[...]
    qkv = qkv.reshape(Bb, HW, D)
    q = qkv[..., :Cq].astype(jnp.bfloat16)
    k = qkv[..., Cq:2 * Cq].astype(jnp.bfloat16)
    v = qkv[..., 2 * Cq:].astype(jnp.bfloat16)
    # energy[b,i,j] = sum_c q[b,i,c]*k[b,j,c]  (== torch.bmm(query^T, key))
    energy = jnp.einsum('bic,bjc->bij', q, k, preferred_element_type=jnp.float32)
    energy = energy - jnp.max(energy, axis=-1, keepdims=True)
    p = jnp.exp(energy)
    attn = p * pl.reciprocal(jnp.sum(p, axis=-1, keepdims=True), approx=True)
    # out[b,i,c] = sum_j attn[b,i,j]*v[b,j,c]  (== torch.bmm(value, attn^T))
    out = jnp.einsum('bij,bjc->bic', attn.astype(jnp.bfloat16), v,
                     preferred_element_type=jnp.float32)
    o_ref[...] = (out + x.astype(jnp.float32)).astype(o_ref.dtype)


def attention_block(x, wq, bq, wk, bk, wv, bv):
    """x: (B, HW, C) bf16 -> (B, HW, C) bf16 (plain residual, as in the spec)."""
    B, HW, Cc = x.shape
    Cq = wq.shape[0]
    D = 2 * Cq + Cc
    wqkv = jnp.concatenate(
        [wq.reshape(Cq, Cc).T, wk.reshape(Cq, Cc).T, wv.reshape(Cc, Cc).T],
        axis=1).astype(jnp.bfloat16)                          # (C, 2*Cq + C)
    bqkv = jnp.concatenate([bq, bk, bv]).reshape(1, D).astype(jnp.float32)

    Bb = _batch_block(B)
    Bp = _round_up(B, Bb)
    xq = x if Bp == B else jnp.pad(x, ((0, Bp - B), (0, 0), (0, 0)))

    out = pl.pallas_call(
        functools.partial(_attention_kernel, Cq=Cq),
        out_shape=jax.ShapeDtypeStruct((Bp, HW, Cc), jnp.bfloat16),
        grid_spec=pltpu.PrefetchScalarGridSpec(
            num_scalar_prefetch=0,
            grid=(Bp // Bb,),
            in_specs=[
                pl.BlockSpec((Bb, HW, Cc), lambda i: (i, 0, 0)),
                pl.BlockSpec((Cc, D), lambda i: (0, 0)),
                pl.BlockSpec((1, D), lambda i: (0, 0)),
            ],
            out_specs=pl.BlockSpec((Bb, HW, Cc), lambda i: (i, 0, 0)),
        ),
        compiler_params=pltpu.CompilerParams(dimension_semantics=("parallel",)),
    )(xq, wqkv, bqkv)
    return out[:B]


# -----------------------------------------------------------------------------
# Kernel 3: linear layer  y = relu_opt(x @ w^T + b)  (bf16 GEMM, f32 epilogue)
# -----------------------------------------------------------------------------
def _linear_kernel(x_ref, w_ref, b_ref, o_ref, *, relu):
    y = jnp.dot(x_ref[...], w_ref[...], preferred_element_type=jnp.float32)
    y = y + b_ref[...]
    if relu:
        y = jnp.maximum(y, 0.0)
    o_ref[...] = y.astype(o_ref.dtype)


def linear(x, w, b, *, relu, out_dtype):
    M, K = x.shape
    N = w.shape[0]
    x = x.astype(jnp.bfloat16)
    wt = jnp.transpose(w).astype(jnp.bfloat16)                # (K, N)
    bm = min(256, _round_up(_ceil_div(M, 2), 8))              # v5e-safe M tile, >=2 steps when big
    Mp = _round_up(M, bm)
    xp = x if Mp == M else jnp.pad(x, ((0, Mp - M), (0, 0)))

    out = pl.pallas_call(
        functools.partial(_linear_kernel, relu=relu),
        out_shape=jax.ShapeDtypeStruct((Mp, N), out_dtype),
        grid_spec=pltpu.PrefetchScalarGridSpec(
            num_scalar_prefetch=0,
            grid=(Mp // bm,),
            in_specs=[
                pl.BlockSpec((bm, K), lambda i: (i, 0)),
                pl.BlockSpec((K, N), lambda i: (0, 0)),
                pl.BlockSpec((1, N), lambda i: (0, 0)),
            ],
            out_specs=pl.BlockSpec((bm, N), lambda i: (i, 0)),
        ),
        compiler_params=pltpu.CompilerParams(dimension_semantics=("parallel",)),
    )(xp, wt, b.reshape(1, N).astype(jnp.float32))
    return out[:M]


# -----------------------------------------------------------------------------
# Full forward pass (matches CNNModel.forward, eval mode)
# -----------------------------------------------------------------------------
def cnn_forward(x_nchw, p):
    B = x_nchw.shape[0]

    # conv1 (Cin=1): prebuild the K=12 paired-pixel slab in XLA (a few tens of KB
    # per image) so the kernel sees a lane-dense operand instead of (H*W, 1).
    img = x_nchw[:, 0, :, :].astype(jnp.float32)                     # (B, 48, 48)
    xp1 = jnp.pad(img, ((0, 0), (1, 1), (1, 1))).reshape(B, 50, 25, 2)
    slab1 = jnp.concatenate(
        [xp1[:, kh:kh + 48, d:d + 24, :] for kh in range(3) for d in range(2)],
        axis=-1).astype(jnp.bfloat16)                                # (B, 48, 24, 12)
    s1, t1 = _fold_bn(p["bn1_gamma"], p["bn1_beta"], p["bn1_mean"], p["bn1_var"],
                      p["conv1_b"])
    a1 = conv_bn_relu_pool(slab1, _expand_conv_weight(p["conv1_w"]), s1, t1,
                           H=48, C=24, Cout=32, windows=((0, 0),))   # (B,24,24,32)

    s2, t2 = _fold_bn(p["bn2_gamma"], p["bn2_beta"], p["bn2_mean"], p["bn2_var"],
                      p["conv2_b"])
    a2 = conv_bn_relu_pool(_fold_width_parity(a1), _expand_conv_weight(p["conv2_w"]),
                           s2, t2, H=24, C=12, Cout=64,
                           windows=_WINDOWS_3x3)                     # (B,12,12,64)

    s3, t3 = _fold_bn(p["bn3_gamma"], p["bn3_beta"], p["bn3_mean"], p["bn3_var"],
                      p["conv3_b"])
    a3 = conv_bn_relu_pool(_fold_width_parity(a2), _expand_conv_weight(p["conv3_w"]),
                           s3, t3, H=12, C=6, Cout=128,
                           windows=_WINDOWS_3x3)                     # (B,6,6,128)

    att = attention_block(a3.reshape(B, 36, 128),
                          p["att_q_w"], p["att_q_b"],
                          p["att_k_w"], p["att_k_b"],
                          p["att_v_w"], p["att_v_b"])                # (B,36,128) bf16

    # torch flattens NCHW (C,H,W order); absorb that into a one-time permutation
    # of fc1's input-feature axis so the NHWC activation is fed directly.
    feat = att.reshape(B, 36 * 128)
    w_fc1 = p["fc1_w"].reshape(256, 128, 6, 6)
    w_fc1 = jnp.transpose(w_fc1, (0, 2, 3, 1)).reshape(256, 6 * 6 * 128)

    h1 = linear(feat, w_fc1, p["fc1_b"], relu=True, out_dtype=jnp.bfloat16)
    # TODO(synk): nn.Dropout(0.5) is identity here (inference/eval mode).
    logits = linear(h1, p["fc2_w"], p["fc2_b"], relu=False, out_dtype=jnp.float32)
    return logits


# -----------------------------------------------------------------------------
# Deterministic parameter initialization (shapes from CNNModel.__init__)
# -----------------------------------------------------------------------------
def init_params(key):
    counter = [0]

    def next_key():
        counter[0] += 1
        return jax.random.fold_in(key, counter[0])

    def normal(shape, scale=0.05):
        return scale * jax.random.normal(next_key(), shape, dtype=jnp.float32)

    def bn(c):
        return (1.0 + 0.1 * jax.random.normal(next_key(), (c,), jnp.float32),       # gamma
                0.1 * jax.random.normal(next_key(), (c,), jnp.float32),              # beta
                0.1 * jax.random.normal(next_key(), (c,), jnp.float32),              # running mean
                1.0 + 0.1 * jnp.abs(jax.random.normal(next_key(), (c,), jnp.float32)))  # running var

    p = {}
    p["conv1_w"], p["conv1_b"] = normal((32, 1, 3, 3)), normal((32,))
    p["bn1_gamma"], p["bn1_beta"], p["bn1_mean"], p["bn1_var"] = bn(32)
    p["conv2_w"], p["conv2_b"] = normal((64, 32, 3, 3)), normal((64,))
    p["bn2_gamma"], p["bn2_beta"], p["bn2_mean"], p["bn2_var"] = bn(64)
    p["conv3_w"], p["conv3_b"] = normal((128, 64, 3, 3)), normal((128,))
    p["bn3_gamma"], p["bn3_beta"], p["bn3_mean"], p["bn3_var"] = bn(128)
    # Attention(128): conv1/conv2 -> 16 channels, conv3 -> 128 channels (all 1x1)
    p["att_q_w"], p["att_q_b"] = normal((16, 128, 1, 1)), normal((16,))
    p["att_k_w"], p["att_k_b"] = normal((16, 128, 1, 1)), normal((16,))
    p["att_v_w"], p["att_v_b"] = normal((128, 128, 1, 1)), normal((128,))
    p["fc1_w"], p["fc1_b"] = normal((256, 128 * 6 * 6), 0.02), normal((256,))
    p["fc2_w"], p["fc2_b"] = normal((7, 256), 0.02), normal((7,))
    return p


if __name__ == "__main__":
    key = jax.random.PRNGKey(0)
    pkey, xkey = jax.random.split(key)
    params = init_params(pkey)
    # fc1 expects 128*6*6 features => 3 maxpools of /2 => input spatial 48x48.
    x = jax.random.normal(xkey, (2, 1, 48, 48), dtype=jnp.float32)

    logits = jax.jit(cnn_forward)(x, params)
    logits = jax.block_until_ready(logits)
    assert logits.shape == (2, 7), logits.shape
    assert bool(jnp.all(jnp.isfinite(logits)))
    print("KERNEL_OK")
</pallas_src>

<mosaic_0001>
module attributes {stable_mosaic.version = 11 : i64} {
  func.func @_conv_bn_relu_pool_kernel(%arg0: i32, %arg1: memref<1x48x24x12xbf16, #tpu.memory_space<vmem>>, %arg2: memref<12x64xbf16, #tpu.memory_space<vmem>>, %arg3: memref<1x64xf32, #tpu.memory_space<vmem>>, %arg4: memref<1x64xf32, #tpu.memory_space<vmem>>, %arg5: memref<1x24x24x32xbf16, #tpu.memory_space<vmem>>) attributes {dimension_semantics = [#tpu.dimension_semantics<parallel>], iteration_bounds = array<i64: 2>, scalar_prefetch = 0 : i64, scratch_operands = 0 : i64, tpu.core_type = #tpu.core_type<tc>, window_params = [{transform_indices = @transform_0, window_bounds = array<i64: 1, 48, 24, 12>}, {pipeline_mode = #tpu.pipeline_mode<synchronous>, transform_indices = @transform_1, window_bounds = array<i64: 12, 64>}, {pipeline_mode = #tpu.pipeline_mode<synchronous>, transform_indices = @transform_2, window_bounds = array<i64: 1, 64>}, {pipeline_mode = #tpu.pipeline_mode<synchronous>, transform_indices = @transform_3, window_bounds = array<i64: 1, 64>}, {transform_indices = @transform_4, window_bounds = array<i64: 1, 24, 24, 32>}]} {
    %c0 = arith.constant 0 : index
    %c0_0 = arith.constant 0 : index
    %c0_1 = arith.constant 0 : index
    %c0_2 = arith.constant 0 : index
    %0 = vector.load %arg1[%c0, %c0_0, %c0_1, %c0_2] : memref<1x48x24x12xbf16, #tpu.memory_space<vmem>>, vector<1x48x24x12xbf16>
    %1 = vector.shape_cast %0 : vector<1x48x24x12xbf16> to vector<1152x12xbf16>
    %c0_3 = arith.constant 0 : index
    %c0_4 = arith.constant 0 : index
    %2 = vector.load %arg2[%c0_3, %c0_4] : memref<12x64xbf16, #tpu.memory_space<vmem>>, vector<12x64xbf16>
    %cst = arith.constant dense<0.000000e+00> : vector<1152x64xf32>
    %3 = tpu.matmul %1, %2, %cst {dimension_numbers = #tpu.dot_dimension_numbers<[1], [0], [0], [1], [0, 0, 1, 1], [], []>} : vector<1152x12xbf16>, vector<12x64xbf16>, vector<1152x64xf32> -> vector<1152x64xf32>
    %c0_5 = arith.constant 0 : index
    %c0_6 = arith.constant 0 : index
    %4 = vector.load %arg3[%c0_5, %c0_6] : memref<1x64xf32, #tpu.memory_space<vmem>>, vector<1x64xf32>
    %5 = vector.broadcast %4 : vector<1x64xf32> to vector<1152x64xf32>
    %6 = arith.mulf %3, %5 : vector<1152x64xf32>
    %c0_7 = arith.constant 0 : index
    %c0_8 = arith.constant 0 : index
    %7 = vector.load %arg4[%c0_7, %c0_8] : memref<1x64xf32, #tpu.memory_space<vmem>>, vector<1x64xf32>
    %8 = vector.broadcast %7 : vector<1x64xf32> to vector<1152x64xf32>
    %9 = arith.addf %6, %8 : vector<1152x64xf32>
    %cst_9 = arith.constant 0.000000e+00 : f32
    %10 = vector.broadcast %cst_9 : f32 to vector<1152x64xf32>
    %11 = arith.maximumf %9, %10 : vector<1152x64xf32>
    %12 = vector.shape_cast %11 : vector<1152x64xf32> to vector<1x24x2x24x64xf32>
    %13 = vector.extract_strided_slice %12 {offsets = [0, 0, 0, 0, 0], sizes = [1, 24, 1, 24, 64], strides = [1, 1, 1, 1, 1]} : vector<1x24x2x24x64xf32> to vector<1x24x1x24x64xf32>
    %14 = vector.shape_cast %13 : vector<1x24x1x24x64xf32> to vector<1x24x24x64xf32>
    %15 = vector.extract_strided_slice %12 {offsets = [0, 0, 1, 0, 0], sizes = [1, 24, 1, 24, 64], strides = [1, 1, 1, 1, 1]} : vector<1x24x2x24x64xf32> to vector<1x24x1x24x64xf32>
    %16 = vector.shape_cast %15 : vector<1x24x1x24x64xf32> to vector<1x24x24x64xf32>
    %17 = arith.maximumf %14, %16 : vector<1x24x24x64xf32>
    %18 = vector.extract_strided_slice %17 {offsets = [0, 0, 0, 0], sizes = [1, 24, 24, 32], strides = [1, 1, 1, 1]} : vector<1x24x24x64xf32> to vector<1x24x24x32xf32>
    %19 = vector.extract_strided_slice %17 {offsets = [0, 0, 0, 32], sizes = [1, 24, 24, 32], strides = [1, 1, 1, 1]} : vector<1x24x24x64xf32> to vector<1x24x24x32xf32>
    %20 = arith.maximumf %18, %19 : vector<1x24x24x32xf32>
    %21 = arith.truncf %20 : vector<1x24x24x32xf32> to vector<1x24x24x32xbf16>
    %c0_10 = arith.constant 0 : index
    %c0_11 = arith.constant 0 : index
    %c0_12 = arith.constant 0 : index
    %c0_13 = arith.constant 0 : index
    %22 = vector.load %arg5[%c0_10, %c0_11, %c0_12, %c0_13] : memref<1x24x24x32xbf16, #tpu.memory_space<vmem>>, vector<1x24x24x32xbf16>
    tpu.vector_store %arg5[%c0_10, %c0_11, %c0_12, %c0_13], %21 {strides = array<i32>} : memref<1x24x24x32xbf16, #tpu.memory_space<vmem>>, vector<1x24x24x32xbf16>,
    return
  }
  func.func @transform_0(%arg0: i32) -> (i32, i32, i32, i32) {
    %c0_i32 = arith.constant 0 : i32
    %c0_i32_0 = arith.constant 0 : i32
    %c0_i32_1 = arith.constant 0 : i32
    %c0_i32_2 = arith.constant 0 : i32
    return %arg0, %c0_i32, %c0_i32_0, %c0_i32_1 : i32, i32, i32, i32
  }
  func.func @transform_1(%arg0: i32) -> (i32, i32) {
    %c0_i32 = arith.constant 0 : i32
    %c0_i32_0 = arith.constant 0 : i32
    %c0_i32_1 = arith.constant 0 : i32
    return %c0_i32, %c0_i32_0 : i32, i32
  }
  func.func @transform_2(%arg0: i32) -> (i32, i32) {
    %c0_i32 = arith.constant 0 : i32
    %c0_i32_0 = arith.constant 0 : i32
    %c0_i32_1 = arith.constant 0 : i32
    return %c0_i32, %c0_i32_0 : i32, i32
  }
  func.func @transform_3(%arg0: i32) -> (i32, i32) {
    %c0_i32 = arith.constant 0 : i32
    %c0_i32_0 = arith.constant 0 : i32
    %c0_i32_1 = arith.constant 0 : i32
    return %c0_i32, %c0_i32_0 : i32, i32
  }
  func.func @transform_4(%arg0: i32) -> (i32, i32, i32, i32) {
    %c0_i32 = arith.constant 0 : i32
    %c0_i32_0 = arith.constant 0 : i32
    %c0_i32_1 = arith.constant 0 : i32
    %c0_i32_2 = arith.constant 0 : i32
    return %arg0, %c0_i32, %c0_i32_0, %c0_i32_1 : i32, i32, i32, i32
  }
}

module attributes {stable_mosaic.version = 11 : i64} {
  func.func @_conv_bn_relu_pool_kernel(%arg0: i32, %arg1: memref<1x26x13x64xbf16, #tpu.memory_space<vmem>>, %arg2: memref<384x128xbf16, #tpu.memory_space<vmem>>, %arg3: memref<1x128xf32, #tpu.memory_space<vmem>>, %arg4: memref<1x128xf32, #tpu.memory_space<vmem>>, %arg5: memref<1x12x12x64xbf16, #tpu.memory_space<vmem>>) attributes {dimension_semantics = [#tpu.dimension_semantics<parallel>], iteration_bounds = array<i64: 2>, scalar_prefetch = 0 : i64, scratch_operands = 0 : i64, tpu.core_type = #tpu.core_type<tc>, window_params = [{transform_indices = @transform_0, window_bounds = array<i64: 1, 26, 13, 64>}, {pipeline_mode = #tpu.pipeline_mode<synchronous>, transform_indices = @transform_1, window_bounds = array<i64: 384, 128>}, {pipeline_mode = #tpu.pipeline_mode<synchronous>, transform_indices = @transform_2, window_bounds = array<i64: 1, 128>}, {pipeline_mode = #tpu.pipeline_mode<synchronous>, transform_indices = @transform_3, window_bounds = array<i64: 1, 128>}, {transform_indices = @transform_4, window_bounds = array<i64: 1, 12, 12, 64>}]} {
    %c0 = arith.constant 0 : index
    %c0_0 = arith.constant 0 : index
    %c0_1 = arith.constant 0 : index
    %c0_2 = arith.constant 0 : index
    %0 = vector.load %arg1[%c0, %c0_0, %c0_1, %c0_2] : memref<1x26x13x64xbf16, #tpu.memory_space<vmem>>, vector<1x26x13x64xbf16>
    %1 = vector.extract_strided_slice %0 {offsets = [0, 0, 0, 0], sizes = [1, 24, 12, 64], strides = [1, 1, 1, 1]} : vector<1x26x13x64xbf16> to vector<1x24x12x64xbf16>
    %2 = vector.extract_strided_slice %0 {offsets = [0, 0, 1, 0], sizes = [1, 24, 12, 64], strides = [1, 1, 1, 1]} : vector<1x26x13x64xbf16> to vector<1x24x12x64xbf16>
    %3 = vector.extract_strided_slice %0 {offsets = [0, 1, 0, 0], sizes = [1, 24, 12, 64], strides = [1, 1, 1, 1]} : vector<1x26x13x64xbf16> to vector<1x24x12x64xbf16>
    %4 = vector.extract_strided_slice %0 {offsets = [0, 1, 1, 0], sizes = [1, 24, 12, 64], strides = [1, 1, 1, 1]} : vector<1x26x13x64xbf16> to vector<1x24x12x64xbf16>
    %5 = vector.extract_strided_slice %0 {offsets = [0, 2, 0, 0], sizes = [1, 24, 12, 64], strides = [1, 1, 1, 1]} : vector<1x26x13x64xbf16> to vector<1x24x12x64xbf16>
    %6 = vector.extract_strided_slice %0 {offsets = [0, 2, 1, 0], sizes = [1, 24, 12, 64], strides = [1, 1, 1, 1]} : vector<1x26x13x64xbf16> to vector<1x24x12x64xbf16>
    %7 = tpu.concatenate %1, %2, %3, %4, %5, %6 in 3 : vector<1x24x12x64xbf16>, vector<1x24x12x64xbf16>, vector<1x24x12x64xbf16>, vector<1x24x12x64xbf16>, vector<1x24x12x64xbf16>, vector<1x24x12x64xbf16> -> vector<1x24x12x384xbf16>
    %8 = vector.shape_cast %7 : vector<1x24x12x384xbf16> to vector<288x384xbf16>
    %c0_3 = arith.constant 0 : index
    %c0_4 = arith.constant 0 : index
    %9 = vector.load %arg2[%c0_3, %c0_4] : memref<384x128xbf16, #tpu.memory_space<vmem>>, vector<384x128xbf16>
    %cst = arith.constant dense<0.000000e+00> : vector<288x128xf32>
    %10 = tpu.matmul %8, %9, %cst {dimension_numbers = #tpu.dot_dimension_numbers<[1], [0], [0], [1], [0, 0, 1, 1], [], []>} : vector<288x384xbf16>, vector<384x128xbf16>, vector<288x128xf32> -> vector<288x128xf32>
    %c0_5 = arith.constant 0 : index
    %c0_6 = arith.constant 0 : index
    %11 = vector.load %arg3[%c0_5, %c0_6] : memref<1x128xf32, #tpu.memory_space<vmem>>, vector<1x128xf32>
    %12 = vector.broadcast %11 : vector<1x128xf32> to vector<288x128xf32>
    %13 = arith.mulf %10, %12 : vector<288x128xf32>
    %c0_7 = arith.constant 0 : index
    %c0_8 = arith.constant 0 : index
    %14 = vector.load %arg4[%c0_7, %c0_8] : memref<1x128xf32, #tpu.memory_space<vmem>>, vector<1x128xf32>
    %15 = vector.broadcast %14 : vector<1x128xf32> to vector<288x128xf32>
    %16 = arith.addf %13, %15 : vector<288x128xf32>
    %cst_9 = arith.constant 0.000000e+00 : f32
    %17 = vector.broadcast %cst_9 : f32 to vector<288x128xf32>
    %18 = arith.maximumf %16, %17 : vector<288x128xf32>
    %19 = vector.shape_cast %18 : vector<288x128xf32> to vector<1x12x2x12x128xf32>
    %20 = vector.extract_strided_slice %19 {offsets = [0, 0, 0, 0, 0], sizes = [1, 12, 1, 12, 128], strides = [1, 1, 1, 1, 1]} : vector<1x12x2x12x128xf32> to vector<1x12x1x12x128xf32>
    %21 = vector.shape_cast %20 : vector<1x12x1x12x128xf32> to vector<1x12x12x128xf32>
    %22 = vector.extract_strided_slice %19 {offsets = [0, 0, 1, 0, 0], sizes = [1, 12, 1, 12, 128], strides = [1, 1, 1, 1, 1]} : vector<1x12x2x12x128xf32> to vector<1x12x1x12x128xf32>
    %23 = vector.shape_cast %22 : vector<1x12x1x12x128xf32> to vector<1x12x12x128xf32>
    %24 = arith.maximumf %21, %23 : vector<1x12x12x128xf32>
    %25 = vector.extract_strided_slice %24 {offsets = [0, 0, 0, 0], sizes = [1, 12, 12, 64], strides = [1, 1, 1, 1]} : vector<1x12x12x128xf32> to vector<1x12x12x64xf32>
    %26 = vector.extract_strided_slice %24 {offsets = [0, 0, 0, 64], sizes = [1, 12, 12, 64], strides = [1, 1, 1, 1]} : vector<1x12x12x128xf32> to vector<1x12x12x64xf32>
    %27 = arith.maximumf %25, %26 : vector<1x12x12x64xf32>
    %28 = arith.truncf %27 : vector<1x12x12x64xf32> to vector<1x12x12x64xbf16>
    %c0_10 = arith.constant 0 : index
    %c0_11 = arith.constant 0 : index
    %c0_12 = arith.constant 0 : index
    %c0_13 = arith.constant 0 : index
    %29 = vector.load %arg5[%c0_10, %c0_11, %c0_12, %c0_13] : memref<1x12x12x64xbf16, #tpu.memory_space<vmem>>, vector<1x12x12x64xbf16>
    tpu.vector_store %arg5[%c0_10, %c0_11, %c0_12, %c0_13], %28 {strides = array<i32>} : memref<1x12x12x64xbf16, #tpu.memory_space<vmem>>, vector<1x12x12x64xbf16>,
    return
  }
  func.func @transform_0(%arg0: i32) -> (i32, i32, i32, i32) {
    %c0_i32 = arith.constant 0 : i32
    %c0_i32_0 = arith.constant 0 : i32
    %c0_i32_1 = arith.constant 0 : i32
    %c0_i32_2 = arith.constant 0 : i32
    return %arg0, %c0_i32, %c0_i32_0, %c0_i32_1 : i32, i32, i32, i32
  }
  func.func @transform_1(%arg0: i32) -> (i32, i32) {
    %c0_i32 = arith.constant 0 : i32
    %c0_i32_0 = arith.constant 0 : i32
    %c0_i32_1 = arith.constant 0 : i32
    return %c0_i32, %c0_i32_0 : i32, i32
  }
  func.func @transform_2(%arg0: i32) -> (i32, i32) {
    %c0_i32 = arith.constant 0 : i32
    %c0_i32_0 = arith.constant 0 : i32
    %c0_i32_1 = arith.constant 0 : i32
    return %c0_i32, %c0_i32_0 : i32, i32
  }
  func.func @transform_3(%arg0: i32) -> (i32, i32) {
    %c0_i32 = arith.constant 0 : i32
    %c0_i32_0 = arith.constant 0 : i32
    %c0_i32_1 = arith.constant 0 : i32
    return %c0_i32, %c0_i32_0 : i32, i32
  }
  func.func @transform_4(%arg0: i32) -> (i32, i32, i32, i32) {
    %c0_i32 = arith.constant 0 : i32
    %c0_i32_0 = arith.constant 0 : i32
    %c0_i32_1 = arith.constant 0 : i32
    %c0_i32_2 = arith.constant 0 : i32
    return %arg0, %c0_i32, %c0_i32_0, %c0_i32_1 : i32, i32, i32, i32
  }
}

module attributes {stable_mosaic.version = 11 : i64} {
  func.func @_conv_bn_relu_pool_kernel(%arg0: i32, %arg1: memref<1x14x7x128xbf16, #tpu.memory_space<vmem>>, %arg2: memref<768x256xbf16, #tpu.memory_space<vmem>>, %arg3: memref<1x256xf32, #tpu.memory_space<vmem>>, %arg4: memref<1x256xf32, #tpu.memory_space<vmem>>, %arg5: memref<1x6x6x128xbf16, #tpu.memory_space<vmem>>) attributes {dimension_semantics = [#tpu.dimension_semantics<parallel>], iteration_bounds = array<i64: 2>, scalar_prefetch = 0 : i64, scratch_operands = 0 : i64, tpu.core_type = #tpu.core_type<tc>, window_params = [{transform_indices = @transform_0, window_bounds = array<i64: 1, 14, 7, 128>}, {pipeline_mode = #tpu.pipeline_mode<synchronous>, transform_indices = @transform_1, window_bounds = array<i64: 768, 256>}, {pipeline_mode = #tpu.pipeline_mode<synchronous>, transform_indices = @transform_2, window_bounds = array<i64: 1, 256>}, {pipeline_mode = #tpu.pipeline_mode<synchronous>, transform_indices = @transform_3, window_bounds = array<i64: 1, 256>}, {transform_indices = @transform_4, window_bounds = array<i64: 1, 6, 6, 128>}]} {
    %c0 = arith.constant 0 : index
    %c0_0 = arith.constant 0 : index
    %c0_1 = arith.constant 0 : index
    %c0_2 = arith.constant 0 : index
    %0 = vector.load %arg1[%c0, %c0_0, %c0_1, %c0_2] : memref<1x14x7x128xbf16, #tpu.memory_space<vmem>>, vector<1x14x7x128xbf16>
    %1 = vector.extract_strided_slice %0 {offsets = [0, 0, 0, 0], sizes = [1, 12, 6, 128], strides = [1, 1, 1, 1]} : vector<1x14x7x128xbf16> to vector<1x12x6x128xbf16>
    %2 = vector.extract_strided_slice %0 {offsets = [0, 0, 1, 0], sizes = [1, 12, 6, 128], strides = [1, 1, 1, 1]} : vector<1x14x7x128xbf16> to vector<1x12x6x128xbf16>
    %3 = vector.extract_strided_slice %0 {offsets = [0, 1, 0, 0], sizes = [1, 12, 6, 128], strides = [1, 1, 1, 1]} : vector<1x14x7x128xbf16> to vector<1x12x6x128xbf16>
    %4 = vector.extract_strided_slice %0 {offsets = [0, 1, 1, 0], sizes = [1, 12, 6, 128], strides = [1, 1, 1, 1]} : vector<1x14x7x128xbf16> to vector<1x12x6x128xbf16>
    %5 = vector.extract_strided_slice %0 {offsets = [0, 2, 0, 0], sizes = [1, 12, 6, 128], strides = [1, 1, 1, 1]} : vector<1x14x7x128xbf16> to vector<1x12x6x128xbf16>
    %6 = vector.extract_strided_slice %0 {offsets = [0, 2, 1, 0], sizes = [1, 12, 6, 128], strides = [1, 1, 1, 1]} : vector<1x14x7x128xbf16> to vector<1x12x6x128xbf16>
    %7 = tpu.concatenate %1, %2, %3, %4, %5, %6 in 3 : vector<1x12x6x128xbf16>, vector<1x12x6x128xbf16>, vector<1x12x6x128xbf16>, vector<1x12x6x128xbf16>, vector<1x12x6x128xbf16>, vector<1x12x6x128xbf16> -> vector<1x12x6x768xbf16>
    %8 = vector.shape_cast %7 : vector<1x12x6x768xbf16> to vector<72x768xbf16>
    %c0_3 = arith.constant 0 : index
    %c0_4 = arith.constant 0 : index
    %9 = vector.load %arg2[%c0_3, %c0_4] : memref<768x256xbf16, #tpu.memory_space<vmem>>, vector<768x256xbf16>
    %cst = arith.constant dense<0.000000e+00> : vector<72x256xf32>
    %10 = tpu.matmul %8, %9, %cst {dimension_numbers = #tpu.dot_dimension_numbers<[1], [0], [0], [1], [0, 0, 1, 1], [], []>} : vector<72x768xbf16>, vector<768x256xbf16>, vector<72x256xf32> -> vector<72x256xf32>
    %c0_5 = arith.constant 0 : index
    %c0_6 = arith.constant 0 : index
    %11 = vector.load %arg3[%c0_5, %c0_6] : memref<1x256xf32, #tpu.memory_space<vmem>>, vector<1x256xf32>
    %12 = vector.broadcast %11 : vector<1x256xf32> to vector<72x256xf32>
    %13 = arith.mulf %10, %12 : vector<72x256xf32>
    %c0_7 = arith.constant 0 : index
    %c0_8 = arith.constant 0 : index
    %14 = vector.load %arg4[%c0_7, %c0_8] : memref<1x256xf32, #tpu.memory_space<vmem>>, vector<1x256xf32>
    %15 = vector.broadcast %14 : vector<1x256xf32> to vector<72x256xf32>
    %16 = arith.addf %13, %15 : vector<72x256xf32>
    %cst_9 = arith.constant 0.000000e+00 : f32
    %17 = vector.broadcast %cst_9 : f32 to vector<72x256xf32>
    %18 = arith.maximumf %16, %17 : vector<72x256xf32>
    %19 = vector.shape_cast %18 : vector<72x256xf32> to vector<1x6x2x6x256xf32>
    %20 = vector.extract_strided_slice %19 {offsets = [0, 0, 0, 0, 0], sizes = [1, 6, 1, 6, 256], strides = [1, 1, 1, 1, 1]} : vector<1x6x2x6x256xf32> to vector<1x6x1x6x256xf32>
    %21 = vector.shape_cast %20 : vector<1x6x1x6x256xf32> to vector<1x6x6x256xf32>
    %22 = vector.extract_strided_slice %19 {offsets = [0, 0, 1, 0, 0], sizes = [1, 6, 1, 6, 256], strides = [1, 1, 1, 1, 1]} : vector<1x6x2x6x256xf32> to vector<1x6x1x6x256xf32>
    %23 = vector.shape_cast %22 : vector<1x6x1x6x256xf32> to vector<1x6x6x256xf32>
    %24 = arith.maximumf %21, %23 : vector<1x6x6x256xf32>
    %25 = vector.extract_strided_slice %24 {offsets = [0, 0, 0, 0], sizes = [1, 6, 6, 128], strides = [1, 1, 1, 1]} : vector<1x6x6x256xf32> to vector<1x6x6x128xf32>
    %26 = vector.extract_strided_slice %24 {offsets = [0, 0, 0, 128], sizes = [1, 6, 6, 128], strides = [1, 1, 1, 1]} : vector<1x6x6x256xf32> to vector<1x6x6x128xf32>
    %27 = arith.maximumf %25, %26 : vector<1x6x6x128xf32>
    %28 = arith.truncf %27 : vector<1x6x6x128xf32> to vector<1x6x6x128xbf16>
    %c0_10 = arith.constant 0 : index
    %c0_11 = arith.constant 0 : index
    %c0_12 = arith.constant 0 : index
    %c0_13 = arith.constant 0 : index
    %29 = vector.load %arg5[%c0_10, %c0_11, %c0_12, %c0_13] : memref<1x6x6x128xbf16, #tpu.memory_space<vmem>>, vector<1x6x6x128xbf16>
    tpu.vector_store %arg5[%c0_10, %c0_11, %c0_12, %c0_13], %28 {strides = array<i32>} : memref<1x6x6x128xbf16, #tpu.memory_space<vmem>>, vector<1x6x6x128xbf16>,
    return
  }
  func.func @transform_0(%arg0: i32) -> (i32, i32, i32, i32) {
    %c0_i32 = arith.constant 0 : i32
    %c0_i32_0 = arith.constant 0 : i32
    %c0_i32_1 = arith.constant 0 : i32
    %c0_i32_2 = arith.constant 0 : i32
    return %arg0, %c0_i32, %c0_i32_0, %c0_i32_1 : i32, i32, i32, i32
  }
  func.func @transform_1(%arg0: i32) -> (i32, i32) {
    %c0_i32 = arith.constant 0 : i32
    %c0_i32_0 = arith.constant 0 : i32
    %c0_i32_1 = arith.constant 0 : i32
    return %c0_i32, %c0_i32_0 : i32, i32
  }
  func.func @transform_2(%arg0: i32) -> (i32, i32) {
    %c0_i32 = arith.constant 0 : i32
    %c0_i32_0 = arith.constant 0 : i32
    %c0_i32_1 = arith.constant 0 : i32
    return %c0_i32, %c0_i32_0 : i32, i32
  }
  func.func @transform_3(%arg0: i32) -> (i32, i32) {
    %c0_i32 = arith.constant 0 : i32
    %c0_i32_0 = arith.constant 0 : i32
    %c0_i32_1 = arith.constant 0 : i32
    return %c0_i32, %c0_i32_0 : i32, i32
  }
  func.func @transform_4(%arg0: i32) -> (i32, i32, i32, i32) {
    %c0_i32 = arith.constant 0 : i32
    %c0_i32_0 = arith.constant 0 : i32
    %c0_i32_1 = arith.constant 0 : i32
    %c0_i32_2 = arith.constant 0 : i32
    return %arg0, %c0_i32, %c0_i32_0, %c0_i32_1 : i32, i32, i32, i32
  }
}

module attributes {stable_mosaic.version = 11 : i64} {
  func.func @_attention_kernel(%arg0: i32, %arg1: memref<1x36x128xbf16, #tpu.memory_space<vmem>>, %arg2: memref<128x160xbf16, #tpu.memory_space<vmem>>, %arg3: memref<1x160xf32, #tpu.memory_space<vmem>>, %arg4: memref<1x36x128xbf16, #tpu.memory_space<vmem>>) attributes {dimension_semantics = [#tpu.dimension_semantics<parallel>], iteration_bounds = array<i64: 2>, scalar_prefetch = 0 : i64, scratch_operands = 0 : i64, tpu.core_type = #tpu.core_type<tc>, window_params = [{transform_indices = @transform_0, window_bounds = array<i64: 1, 36, 128>}, {pipeline_mode = #tpu.pipeline_mode<synchronous>, transform_indices = @transform_1, window_bounds = array<i64: 128, 160>}, {pipeline_mode = #tpu.pipeline_mode<synchronous>, transform_indices = @transform_2, window_bounds = array<i64: 1, 160>}, {transform_indices = @transform_3, window_bounds = array<i64: 1, 36, 128>}]} {
    %c0 = arith.constant 0 : index
    %c0_0 = arith.constant 0 : index
    %c0_1 = arith.constant 0 : index
    %0 = vector.load %arg1[%c0, %c0_0, %c0_1] : memref<1x36x128xbf16, #tpu.memory_space<vmem>>, vector<1x36x128xbf16>
    %1 = vector.shape_cast %0 : vector<1x36x128xbf16> to vector<36x128xbf16>
    %c0_2 = arith.constant 0 : index
    %c0_3 = arith.constant 0 : index
    %2 = vector.load %arg2[%c0_2, %c0_3] : memref<128x160xbf16, #tpu.memory_space<vmem>>, vector<128x160xbf16>
    %cst = arith.constant dense<0.000000e+00> : vector<36x160xf32>
    %3 = tpu.matmul %1, %2, %cst {dimension_numbers = #tpu.dot_dimension_numbers<[1], [0], [0], [1], [0, 0, 1, 1], [], []>} : vector<36x128xbf16>, vector<128x160xbf16>, vector<36x160xf32> -> vector<36x160xf32>
    %c0_4 = arith.constant 0 : index
    %c0_5 = arith.constant 0 : index
    %4 = vector.load %arg3[%c0_4, %c0_5] : memref<1x160xf32, #tpu.memory_space<vmem>>, vector<1x160xf32>
    %5 = vector.broadcast %4 : vector<1x160xf32> to vector<36x160xf32>
    %6 = arith.addf %3, %5 : vector<36x160xf32>
    %7 = vector.shape_cast %6 : vector<36x160xf32> to vector<1x36x160xf32>
    %8 = vector.extract_strided_slice %7 {offsets = [0, 0, 0], sizes = [1, 36, 16], strides = [1, 1, 1]} : vector<1x36x160xf32> to vector<1x36x16xf32>
    %9 = arith.truncf %8 : vector<1x36x16xf32> to vector<1x36x16xbf16>
    %10 = vector.extract_strided_slice %7 {offsets = [0, 0, 16], sizes = [1, 36, 16], strides = [1, 1, 1]} : vector<1x36x160xf32> to vector<1x36x16xf32>
    %11 = arith.truncf %10 : vector<1x36x16xf32> to vector<1x36x16xbf16>
    %12 = vector.extract_strided_slice %7 {offsets = [0, 0, 32], sizes = [1, 36, 128], strides = [1, 1, 1]} : vector<1x36x160xf32> to vector<1x36x128xf32>
    %13 = arith.truncf %12 : vector<1x36x128xf32> to vector<1x36x128xbf16>
    "tpu.trace_start"() <{level = 10 : i32, message = "bic,bjc->bij"}> : () -> ()
    %cst_6 = arith.constant dense<0.000000e+00> : vector<1x36x36xf32>
    %14 = tpu.matmul %9, %11, %cst_6 {dimension_numbers = #tpu.dot_dimension_numbers<[2], [2], [1], [1], [0, 0, 0, 1, 1, 1], [0], [0]>} : vector<1x36x16xbf16>, vector<1x36x16xbf16>, vector<1x36x36xf32> -> vector<1x36x36xf32>
    "tpu.trace_stop"() : () -> ()
    %cst_7 = arith.constant dense<0xFF800000> : vector<1x36xf32>
    %15 = vector.multi_reduction <maximumf>, %14, %cst_7 [2] : vector<1x36x36xf32> to vector<1x36xf32>
    %16 = vector.shape_cast %15 : vector<1x36xf32> to vector<1x36x1xf32>
    %17 = vector.broadcast %16 : vector<1x36x1xf32> to vector<1x36x36xf32>
    %18 = arith.subf %14, %17 : vector<1x36x36xf32>
    %19 = math.exp %18 : vector<1x36x36xf32>
    %cst_8 = arith.constant dense<0.000000e+00> : vector<1x36xf32>
    %20 = vector.multi_reduction <add>, %19, %cst_8 [2] : vector<1x36x36xf32> to vector<1x36xf32>
    %21 = vector.shape_cast %20 : vector<1x36xf32> to vector<1x36x1xf32>
    %22 = tpu.reciprocal %21 {approx = true} : vector<1x36x1xf32> -> vector<1x36x1xf32>
    %23 = vector.broadcast %22 : vector<1x36x1xf32> to vector<1x36x36xf32>
    %24 = arith.mulf %19, %23 : vector<1x36x36xf32>
    %25 = arith.truncf %24 : vector<1x36x36xf32> to vector<1x36x36xbf16>
    "tpu.trace_start"() <{level = 10 : i32, message = "bij,bjc->bic"}> : () -> ()
    %cst_9 = arith.constant dense<0.000000e+00> : vector<1x36x128xf32>
    %26 = tpu.matmul %25, %13, %cst_9 {dimension_numbers = #tpu.dot_dimension_numbers<[2], [1], [1], [2], [0, 0, 0, 1, 1, 2], [0], [0]>} : vector<1x36x36xbf16>, vector<1x36x128xbf16>, vector<1x36x128xf32> -> vector<1x36x128xf32>
    "tpu.trace_stop"() : () -> ()
    %27 = arith.extf %0 : vector<1x36x128xbf16> to vector<1x36x128xf32>
    %28 = arith.addf %26, %27 : vector<1x36x128xf32>
    %29 = arith.truncf %28 : vector<1x36x128xf32> to vector<1x36x128xbf16>
    %c0_10 = arith.constant 0 : index
    %c0_11 = arith.constant 0 : index
    %c0_12 = arith.constant 0 : index
    %30 = vector.load %arg4[%c0_10, %c0_11, %c0_12] : memref<1x36x128xbf16, #tpu.memory_space<vmem>>, vector<1x36x128xbf16>
    tpu.vector_store %arg4[%c0_10, %c0_11, %c0_12], %29 {strides = array<i32>} : memref<1x36x128xbf16, #tpu.memory_space<vmem>>, vector<1x36x128xbf16>,
    return
  }
  func.func @transform_0(%arg0: i32) -> (i32, i32, i32) {
    %c0_i32 = arith.constant 0 : i32
    %c0_i32_0 = arith.constant 0 : i32
    %c0_i32_1 = arith.constant 0 : i32
    return %arg0, %c0_i32, %c0_i32_0 : i32, i32, i32
  }
  func.func @transform_1(%arg0: i32) -> (i32, i32) {
    %c0_i32 = arith.constant 0 : i32
    %c0_i32_0 = arith.constant 0 : i32
    %c0_i32_1 = arith.constant 0 : i32
    return %c0_i32, %c0_i32_0 : i32, i32
  }
  func.func @transform_2(%arg0: i32) -> (i32, i32) {
    %c0_i32 = arith.constant 0 : i32
    %c0_i32_0 = arith.constant 0 : i32
    %c0_i32_1 = arith.constant 0 : i32
    return %c0_i32, %c0_i32_0 : i32, i32
  }
  func.func @transform_3(%arg0: i32) -> (i32, i32, i32) {
    %c0_i32 = arith.constant 0 : i32
    %c0_i32_0 = arith.constant 0 : i32
    %c0_i32_1 = arith.constant 0 : i32
    return %arg0, %c0_i32, %c0_i32_0 : i32, i32, i32
  }
}

module attributes {stable_mosaic.version = 11 : i64} {
  func.func @_linear_kernel(%arg0: i32, %arg1: memref<8x4608xbf16, #tpu.memory_space<vmem>>, %arg2: memref<4608x256xbf16, #tpu.memory_space<vmem>>, %arg3: memref<1x256xf32, #tpu.memory_space<vmem>>, %arg4: memref<8x256xbf16, #tpu.memory_space<vmem>>) attributes {dimension_semantics = [#tpu.dimension_semantics<parallel>], iteration_bounds = array<i64: 1>, scalar_prefetch = 0 : i64, scratch_operands = 0 : i64, tpu.core_type = #tpu.core_type<tc>, window_params = [{transform_indices = @transform_0, window_bounds = array<i64: 8, 4608>}, {pipeline_mode = #tpu.pipeline_mode<synchronous>, transform_indices = @transform_1, window_bounds = array<i64: 4608, 256>}, {pipeline_mode = #tpu.pipeline_mode<synchronous>, transform_indices = @transform_2, window_bounds = array<i64: 1, 256>}, {transform_indices = @transform_3, window_bounds = array<i64: 8, 256>}]} {
    %c0 = arith.constant 0 : index
    %c0_0 = arith.constant 0 : index
    %0 = vector.load %arg1[%c0, %c0_0] : memref<8x4608xbf16, #tpu.memory_space<vmem>>, vector<8x4608xbf16>
    %c0_1 = arith.constant 0 : index
    %c0_2 = arith.constant 0 : index
    %1 = vector.load %arg2[%c0_1, %c0_2] : memref<4608x256xbf16, #tpu.memory_space<vmem>>, vector<4608x256xbf16>
    %cst = arith.constant dense<0.000000e+00> : vector<8x256xf32>
    %2 = tpu.matmul %0, %1, %cst {dimension_numbers = #tpu.dot_dimension_numbers<[1], [0], [0], [1], [0, 0, 1, 1], [], []>} : vector<8x4608xbf16>, vector<4608x256xbf16>, vector<8x256xf32> -> vector<8x256xf32>
    %c0_3 = arith.constant 0 : index
    %c0_4 = arith.constant 0 : index
    %3 = vector.load %arg3[%c0_3, %c0_4] : memref<1x256xf32, #tpu.memory_space<vmem>>, vector<1x256xf32>
    %4 = vector.broadcast %3 : vector<1x256xf32> to vector<8x256xf32>
    %5 = arith.addf %2, %4 : vector<8x256xf32>
    %cst_5 = arith.constant 0.000000e+00 : f32
    %6 = vector.broadcast %cst_5 : f32 to vector<8x256xf32>
    %7 = arith.maximumf %5, %6 : vector<8x256xf32>
    %8 = arith.truncf %7 : vector<8x256xf32> to vector<8x256xbf16>
    %c0_6 = arith.constant 0 : index
    %c0_7 = arith.constant 0 : index
    %9 = vector.load %arg4[%c0_6, %c0_7] : memref<8x256xbf16, #tpu.memory_space<vmem>>, vector<8x256xbf16>
    tpu.vector_store %arg4[%c0_6, %c0_7], %8 {strides = array<i32>} : memref<8x256xbf16, #tpu.memory_space<vmem>>, vector<8x256xbf16>,
    return
  }
  func.func @transform_0(%arg0: i32) -> (i32, i32) {
    %c0_i32 = arith.constant 0 : i32
    %c0_i32_0 = arith.constant 0 : i32
    return %arg0, %c0_i32 : i32, i32
  }
  func.func @transform_1(%arg0: i32) -> (i32, i32) {
    %c0_i32 = arith.constant 0 : i32
    %c0_i32_0 = arith.constant 0 : i32
    %c0_i32_1 = arith.constant 0 : i32
    return %c0_i32, %c0_i32_0 : i32, i32
  }
  func.func @transform_2(%arg0: i32) -> (i32, i32) {
    %c0_i32 = arith.constant 0 : i32
    %c0_i32_0 = arith.constant 0 : i32
    %c0_i32_1 = arith.constant 0 : i32
    return %c0_i32, %c0_i32_0 : i32, i32
  }
  func.func @transform_3(%arg0: i32) -> (i32, i32) {
    %c0_i32 = arith.constant 0 : i32
    %c0_i32_0 = arith.constant 0 : i32
    return %arg0, %c0_i32 : i32, i32
  }
}

module attributes {stable_mosaic.version = 11 : i64} {
  func.func @_linear_kernel(%arg0: i32, %arg1: memref<8x256xbf16, #tpu.memory_space<vmem>>, %arg2: memref<256x7xbf16, #tpu.memory_space<vmem>>, %arg3: memref<1x7xf32, #tpu.memory_space<vmem>>, %arg4: memref<8x7xf32, #tpu.memory_space<vmem>>) attributes {dimension_semantics = [#tpu.dimension_semantics<parallel>], iteration_bounds = array<i64: 1>, scalar_prefetch = 0 : i64, scratch_operands = 0 : i64, tpu.core_type = #tpu.core_type<tc>, window_params = [{transform_indices = @transform_0, window_bounds = array<i64: 8, 256>}, {pipeline_mode = #tpu.pipeline_mode<synchronous>, transform_indices = @transform_1, window_bounds = array<i64: 256, 7>}, {pipeline_mode = #tpu.pipeline_mode<synchronous>, transform_indices = @transform_2, window_bounds = array<i64: 1, 7>}, {transform_indices = @transform_3, window_bounds = array<i64: 8, 7>}]} {
    %c0 = arith.constant 0 : index
    %c0_0 = arith.constant 0 : index
    %0 = vector.load %arg1[%c0, %c0_0] : memref<8x256xbf16, #tpu.memory_space<vmem>>, vector<8x256xbf16>
    %c0_1 = arith.constant 0 : index
    %c0_2 = arith.constant 0 : index
    %1 = vector.load %arg2[%c0_1, %c0_2] : memref<256x7xbf16, #tpu.memory_space<vmem>>, vector<256x7xbf16>
    %cst = arith.constant dense<0.000000e+00> : vector<8x7xf32>
    %2 = tpu.matmul %0, %1, %cst {dimension_numbers = #tpu.dot_dimension_numbers<[1], [0], [0], [1], [0, 0, 1, 1], [], []>} : vector<8x256xbf16>, vector<256x7xbf16>, vector<8x7xf32> -> vector<8x7xf32>
    %c0_3 = arith.constant 0 : index
    %c0_4 = arith.constant 0 : index
    %3 = vector.load %arg3[%c0_3, %c0_4] : memref<1x7xf32, #tpu.memory_space<vmem>>, vector<1x7xf32>
    %4 = vector.broadcast %3 : vector<1x7xf32> to vector<8x7xf32>
    %5 = arith.addf %2, %4 : vector<8x7xf32>
    %c0_5 = arith.constant 0 : index
    %c0_6 = arith.constant 0 : index
    %6 = vector.load %arg4[%c0_5, %c0_6] : memref<8x7xf32, #tpu.memory_space<vmem>>, vector<8x7xf32>
    tpu.vector_store %arg4[%c0_5, %c0_6], %5 {strides = array<i32>} : memref<8x7xf32, #tpu.memory_space<vmem>>, vector<8x7xf32>,
    return
  }
  func.func @transform_0(%arg0: i32) -> (i32, i32) {
    %c0_i32 = arith.constant 0 : i32
    %c0_i32_0 = arith.constant 0 : i32
    return %arg0, %c0_i32 : i32, i32
  }
  func.func @transform_1(%arg0: i32) -> (i32, i32) {
    %c0_i32 = arith.constant 0 : i32
    %c0_i32_0 = arith.constant 0 : i32
    %c0_i32_1 = arith.constant 0 : i32
    return %c0_i32, %c0_i32_0 : i32, i32
  }
  func.func @transform_2(%arg0: i32) -> (i32, i32) {
    %c0_i32 = arith.constant 0 : i32
    %c0_i32_0 = arith.constant 0 : i32
    %c0_i32_1 = arith.constant 0 : i32
    return %c0_i32, %c0_i32_0 : i32, i32
  }
  func.func @transform_3(%arg0: i32) -> (i32, i32) {
    %c0_i32 = arith.constant 0 : i32
    %c0_i32_0 = arith.constant 0 : i32
    return %arg0, %c0_i32 : i32, i32
  }
}

</mosaic_0001>

<llo_original>
// kernel: cnn_forward.6
$region0: #{cnn_forward.6}
  #allocation0 [shape = 'u32[]', space=smem, size = 0x4, offset = 0x4, fixed_abs, tag = 'smem constant byte address 0x4 - core index']
  #allocation1 [shape = 'u32[144,128]{1,0:T(1,128)}', space=vmem, size = 0x12000, scoped, tag = 'internal scratch']
  %s0 = inlined_call_operand.vmem [shape: bf16[2,48,24,12], index: 0, kind: input, shape index: {}]
  %s1 = inlined_call_operand.vmem [shape: bf16[12,64], index: 1, kind: input, shape index: {}]
  %s2 = inlined_call_operand.vmem [shape: f32[1,64], index: 2, kind: input, shape index: {}]
  %s3 = inlined_call_operand.vmem [shape: f32[1,64], index: 3, kind: input, shape index: {}]
  %s4 = inlined_call_operand.vmem [shape: bf16[2,24,24,32], index: 4, kind: output, shape index: {}]
  %s5 = sld [smem:[#allocation0]]
  $region49: #{cnn_forward.6} parent=0
    _
  %s7 = ssub.s32 1, %s5
  %s8 = scalar_select 0, %s7, %s5
  loop: start=0, step=1, limit=4
  $region2: #{cnn_forward.6} parent=0 // loop_pre_header
    _
  $region3: #{cnn_forward.6} parent=0 // loop_header
    %s10 = sphi 0, %s14
    %p11 = scmp.ge.s32.totalorder %s10, 4
    %s20 = sphi 0, %s22
    %s23 = sphi 0, %s20
    %s24 = sphi 0, %s23
    %s40 = sphi 0, %s24
    %s44 = sphi 0, %s44
    %s46 = sphi 0, %s44
    %s47 = sphi 0, %s46
    %s61 = sphi 0, %s47
    %s65 = sphi 0, %s65
    %s67 = sphi 0, %s65
    %s68 = sphi 0, %s67
    %s82 = sphi 0, %s68
    %s86 = sphi 0, %s86
    %s88 = sphi 0, %s86
    %s89 = sphi 0, %s88
    %s103 = sphi 0, %s89
    %s109 = sphi 0, %s111
    %s112 = sphi 0, %s109
    %s113 = sphi 0, %s112
    %s129 = sphi 0, %s113
  $region4: #{cnn_forward.6} parent=0 // loop_header_branch
    %13 = sbr.rel (%p11) target = $region8
  $region5: #{cnn_forward.6} parent=0 // loop_body
    %s15 = ssub.s32 %s10, 1
    %s16 = ssub.s32 %s10, 2
    %s17 = sadd.s32 %s10, 1
    %s18 = ssub.s32 %s10, %s17
    %p19 = scmp.eq.s32.totalorder %s18, 0
    %s21 = sadd.s32 %s20, 1
    %s22 = scalar_select %p19, %s20, %s21
    %p25 = pneg %p19
    %p26 = scmp.eq.s32.totalorder %s10, 1
    %p27 = por %p25, %p26
    %p28 = scmp.ne.s32.totalorder %s20, %s23
    %p29 = scmp.eq.s32.totalorder %s10, 0
    %p30 = por %p28, %p29
    %p31 = scmp.ne.s32.totalorder %s20, %s23
    %p32 = scmp.eq.s32.totalorder %s15, 1
    %p33 = por %p31, %p32
    %p34 = scmp.ne.s32.totalorder %s23, %s24
    %p35 = scmp.eq.s32.totalorder %s15, 0
    %p36 = por %p34, %p35
    %p37 = scmp.ne.s32.totalorder %s23, %s24
    %p38 = scmp.eq.s32.totalorder %s16, 1
    %p39 = por %p37, %p38
    %p41 = scmp.ne.s32.totalorder %s24, %s40
    %p42 = scmp.eq.s32.totalorder %s16, 0
    %p43 = por %p41, %p42
    %s45 = sadd.s32 %s44, 1
    %p48 = scmp.eq.s32.totalorder %s10, 1
    %p49 = scmp.ne.s32.totalorder %s44, %s46
    %p50 = scmp.eq.s32.totalorder %s10, 0
    %p51 = por %p49, %p50
    %p52 = scmp.ne.s32.totalorder %s44, %s46
    %p53 = scmp.eq.s32.totalorder %s15, 1
    %p54 = por %p52, %p53
    %p55 = scmp.ne.s32.totalorder %s46, %s47
    %p56 = scmp.eq.s32.totalorder %s15, 0
    %p57 = por %p55, %p56
    %p58 = scmp.ne.s32.totalorder %s46, %s47
    %p59 = scmp.eq.s32.totalorder %s16, 1
    %p60 = por %p58, %p59
    %p62 = scmp.ne.s32.totalorder %s47, %s61
    %p63 = scmp.eq.s32.totalorder %s16, 0
    %p64 = por %p62, %p63
    %s66 = sadd.s32 %s65, 1
    %p69 = scmp.eq.s32.totalorder %s10, 1
    %p70 = scmp.ne.s32.totalorder %s65, %s67
    %p71 = scmp.eq.s32.totalorder %s10, 0
    %p72 = por %p70, %p71
    %p73 = scmp.ne.s32.totalorder %s65, %s67
    %p74 = scmp.eq.s32.totalorder %s15, 1
    %p75 = por %p73, %p74
    %p76 = scmp.ne.s32.totalorder %s67, %s68
    %p77 = scmp.eq.s32.totalorder %s15, 0
    %p78 = por %p76, %p77
    %p79 = scmp.ne.s32.totalorder %s67, %s68
    %p80 = scmp.eq.s32.totalorder %s16, 1
    %p81 = por %p79, %p80
    %p83 = scmp.ne.s32.totalorder %s68, %s82
    %p84 = scmp.eq.s32.totalorder %s16, 0
    %p85 = por %p83, %p84
    %s87 = sadd.s32 %s86, 1
    %p90 = scmp.eq.s32.totalorder %s10, 1
    %p91 = scmp.ne.s32.totalorder %s86, %s88
    %p92 = scmp.eq.s32.totalorder %s10, 0
    %p93 = por %p91, %p92
    %p94 = scmp.ne.s32.totalorder %s86, %s88
    %p95 = scmp.eq.s32.totalorder %s15, 1
    %p96 = por %p94, %p95
    %p97 = scmp.ne.s32.totalorder %s88, %s89
    %p98 = scmp.eq.s32.totalorder %s15, 0
    %p99 = por %p97, %p98
    %p100 = scmp.ne.s32.totalorder %s88, %s89
    %p101 = scmp.eq.s32.totalorder %s16, 1
    %p102 = por %p100, %p101
    %p104 = scmp.ne.s32.totalorder %s89, %s103
    %p105 = scmp.eq.s32.totalorder %s16, 0
    %p106 = por %p104, %p105
    %s107 = ssub.s32 %s10, %s17
    %p108 = scmp.eq.s32.totalorder %s107, 0
    %s110 = sadd.s32 %s109, 1
    %s111 = scalar_select %p108, %s109, %s110
    %p114 = pneg %p108
    %p115 = scmp.eq.s32.totalorder %s10, 1
    %p116 = por %p114, %p115
    %p117 = scmp.ne.s32.totalorder %s109, %s112
    %p118 = scmp.eq.s32.totalorder %s10, 0
    %p119 = por %p117, %p118
    %p120 = scmp.ne.s32.totalorder %s109, %s112
    %p121 = scmp.eq.s32.totalorder %s15, 1
    %p122 = por %p120, %p121
    %p123 = scmp.ne.s32.totalorder %s112, %s113
    %p124 = scmp.eq.s32.totalorder %s15, 0
    %p125 = por %p123, %p124
    %p126 = scmp.ne.s32.totalorder %s112, %s113
    %p127 = scmp.eq.s32.totalorder %s16, 1
    %p128 = por %p126, %p127
    %p130 = scmp.ne.s32.totalorder %s113, %s129
    %p131 = scmp.eq.s32.totalorder %s16, 0
    %p132 = por %p130, %p131
    %p133 = scmp.le.s32.totalorder 1, %s10
    %p134 = scmp.lt.s32.totalorder %s10, 3
    %p135 = pnand %p133, %p134
    %p136 = pneg %p135
    // Predicated region
    $region9: #{cnn_forward.6} parent=5 // pred_check
      _
    $region10: #{cnn_forward.6} parent=5 // pred_check_branch
      %138 = sbr.rel (%p135) target = $region12
    $region11: #{cnn_forward.6} parent=5 // pred_region
      %s139 = ssub.s32 %s10, 1
      // Predicated region
      $region13: #{cnn_forward.6} parent=11 // pred_check
        %p140 = pneg %p57
      $region14: #{cnn_forward.6} parent=11 // pred_check_branch
        %142 = sbr.rel (%p140) target = $region16
      $region15: #{cnn_forward.6} parent=11 // pred_region
        _
      $region16: #{cnn_forward.6} parent=11 // pred_fallthru
        _
      // Predicated region
      $region17: #{cnn_forward.6} parent=11 // pred_check
        %p143 = pneg %p78
      $region18: #{cnn_forward.6} parent=11 // pred_check_branch
        %145 = sbr.rel (%p143) target = $region20
      $region19: #{cnn_forward.6} parent=11 // pred_region
        _
      $region20: #{cnn_forward.6} parent=11 // pred_fallthru
        _
      // Predicated region
      $region21: #{cnn_forward.6} parent=11 // pred_check
        %p146 = pneg %p99
      $region22: #{cnn_forward.6} parent=11 // pred_check_branch
        %148 = sbr.rel (%p146) target = $region24
      $region23: #{cnn_forward.6} parent=11 // pred_region
        _
      $region24: #{cnn_forward.6} parent=11 // pred_fallthru
        _
    $region12: #{cnn_forward.6} parent=5 // pred_fallthru
      _
    %p149 = scmp.lt.s32.totalorder %s10, 2
    // Predicated region
    $region25: #{cnn_forward.6} parent=5 // pred_check
      %p150 = pneg %p149
    $region26: #{cnn_forward.6} parent=5 // pred_check_branch
      %152 = sbr.rel (%p150) target = $region28
    $region27: #{cnn_forward.6} parent=5 // pred_region
      // Predicated region
      $region29: #{cnn_forward.6} parent=27 // pred_check
        %p153 = pneg %p30
      $region30: #{cnn_forward.6} parent=27 // pred_check_branch
        %155 = sbr.rel (%p153) target = $region32
      $region31: #{cnn_forward.6} parent=27 // pred_region
        %p156 = scmp.lt.s32.totalorder %s10, 1
        %s157 = scalar_select %p156, %s10, 1
        %s158 = smul.addr %s157, 144
        %s159 = smul.addr %s158, 4
        %s160 = scalar_lea.vmem %s0, %s159
      $region32: #{cnn_forward.6} parent=27 // pred_fallthru
        _
    $region28: #{cnn_forward.6} parent=5 // pred_fallthru
      _
    %p161 = scmp.le.s32.totalorder 1, %s10
    %p162 = scmp.lt.s32.totalorder %s10, 3
    %p163 = pnand %p161, %p162
    %p164 = pneg %p163
    // Predicated region
    $region33: #{cnn_forward.6} parent=5 // pred_check
      _
    $region34: #{cnn_forward.6} parent=5 // pred_check_branch
      %166 = sbr.rel (%p163) target = $region36
    $region35: #{cnn_forward.6} parent=5 // pred_region
      %s167 = ssub.s32 %s10, 1
      %p168 = scmp.lt.s32.totalorder %s15, 1
      %s169 = scalar_select %p168, %s15, 1
      %s170 = smul.addr %s169, 144
      %s171 = smul.addr %s170, 4
      %s172 = scalar_lea.vmem %s0, %s171
      %p173 = pneg %p36
      %p174 = pneg %p33
      %p175 = pneg %p57
      %p176 = pneg %p54
      %p177 = pneg %p78
      %p178 = pneg %p75
      %p179 = pneg %p99
      %p180 = pneg %p96
      %p181 = pneg %p125
      %p182 = pneg %p122
      %p183 = scmp.lt.s32.totalorder %s15, 1
      %s184 = scalar_select %p183, %s15, 1
      %s185 = smul.addr %s184, 72
      %s186 = smul.addr %s185, 4
      %s187 = scalar_lea.vmem %s4, %s186
      %p188 = scmp.lt.s32.totalorder %s15, 1
      %s189 = scalar_select %p188, %s15, 1
      %s190 = smul.addr %s189, 144
      %s191 = smul.addr %s190, 4
      %s192 = scalar_lea.vmem %s0, %s191
      %p193 = scmp.lt.s32.totalorder %s15, 1
      %s194 = scalar_select %p193, %s15, 1
      %s195 = smul.addr %s194, 72
      %s196 = smul.addr %s195, 4
      %s197 = scalar_lea.vmem %s4, %s196
      %v199 = vld [vmem:[%s192] sm:$0xf]
      %v200 = vld [vmem:[%s192 + $0x4] sm:$0xf]
      %v201 = vld [vmem:[%s192 + $0x8] sm:$0xf]
      %v202 = vld [vmem:[%s192 + $0xc] sm:$0xf]
      %v203 = vld [vmem:[%s192 + $0x10] sm:$0xf]
      %v204 = vld [vmem:[%s192 + $0x14] sm:$0xf]
      %v205 = vld [vmem:[%s192 + $0x18] sm:$0xf]
      %v206 = vld [vmem:[%s192 + $0x1c] sm:$0xf]
      %v207 = vld [vmem:[%s192 + $0x20] sm:$0xf]
      %v208 = vld [vmem:[%s192 + $0x24] sm:$0xf]
      %v209 = vld [vmem:[%s192 + $0x28] sm:$0xf]
      %v210 = vld [vmem:[%s192 + $0x2c] sm:$0xf]
      %v211 = vld [vmem:[%s192 + $0x30] sm:$0xf]
      %v212 = vld [vmem:[%s192 + $0x34] sm:$0xf]
      %v213 = vld [vmem:[%s192 + $0x38] sm:$0xf]
      %v214 = vld [vmem:[%s192 + $0x3c] sm:$0xf]
      %v215 = vld [vmem:[%s192 + $0x40] sm:$0xf]
      %v216 = vld [vmem:[%s192 + $0x44] sm:$0xf]
      %v217 = vld [vmem:[%s192 + $0x48] sm:$0xf]
      %v218 = vld [vmem:[%s192 + $0x4c] sm:$0xf]
      %v219 = vld [vmem:[%s192 + $0x50] sm:$0xf]
      %v220 = vld [vmem:[%s192 + $0x54] sm:$0xf]
      %v221 = vld [vmem:[%s192 + $0x58] sm:$0xf]
      %v222 = vld [vmem:[%s192 + $0x5c] sm:$0xf]
      %v223 = vld [vmem:[%s192 + $0x60] sm:$0xf]
      %v224 = vld [vmem:[%s192 + $0x64] sm:$0xf]
      %v225 = vld [vmem:[%s192 + $0x68] sm:$0xf]
      %v226 = vld [vmem:[%s192 + $0x6c] sm:$0xf]
      %v227 = vld [vmem:[%s192 + $0x70] sm:$0xf]
      %v228 = vld [vmem:[%s192 + $0x74] sm:$0xf]
      %v229 = vld [vmem:[%s192 + $0x78] sm:$0xf]
      %v230 = vld [vmem:[%s192 + $0x7c] sm:$0xf]
      %v231 = vld [vmem:[%s192 + $0x80] sm:$0xf]
      %v232 = vld [vmem:[%s192 + $0x84] sm:$0xf]
      %v233 = vld [vmem:[%s192 + $0x88] sm:$0xf]
      %v234 = vld [vmem:[%s192 + $0x8c] sm:$0xf]
      %v235 = vld [vmem:[%s192 + $0x90] sm:$0xf]
      %v236 = vld [vmem:[%s192 + $0x94] sm:$0xf]
      %v237 = vld [vmem:[%s192 + $0x98] sm:$0xf]
      %v238 = vld [vmem:[%s192 + $0x9c] sm:$0xf]
      %v239 = vld [vmem:[%s192 + $0xa0] sm:$0xf]
      %v240 = vld [vmem:[%s192 + $0xa4] sm:$0xf]
      %v241 = vld [vmem:[%s192 + $0xa8] sm:$0xf]
      %v242 = vld [vmem:[%s192 + $0xac] sm:$0xf]
      %v243 = vld [vmem:[%s192 + $0xb0] sm:$0xf]
      %v244 = vld [vmem:[%s192 + $0xb4] sm:$0xf]
      %v245 = vld [vmem:[%s192 + $0xb8] sm:$0xf]
      %v246 = vld [vmem:[%s192 + $0xbc] sm:$0xf]
      %v247 = vld [vmem:[%s192 + $0xc0] sm:$0xf]
      %v248 = vld [vmem:[%s192 + $0xc4] sm:$0xf]
      %v249 = vld [vmem:[%s192 + $0xc8] sm:$0xf]
      %v250 = vld [vmem:[%s192 + $0xcc] sm:$0xf]
      %v251 = vld [vmem:[%s192 + $0xd0] sm:$0xf]
      %v252 = vld [vmem:[%s192 + $0xd4] sm:$0xf]
      %v253 = vld [vmem:[%s192 + $0xd8] sm:$0xf]
      %v254 = vld [vmem:[%s192 + $0xdc] sm:$0xf]
      %v255 = vld [vmem:[%s192 + $0xe0] sm:$0xf]
      %v256 = vld [vmem:[%s192 + $0xe4] sm:$0xf]
      %v257 = vld [vmem:[%s192 + $0xe8] sm:$0xf]
      %v258 = vld [vmem:[%s192 + $0xec] sm:$0xf]
      %v259 = vld [vmem:[%s192 + $0xf0] sm:$0xf]
      %v260 = vld [vmem:[%s192 + $0xf4] sm:$0xf]
      %v261 = vld [vmem:[%s192 + $0xf8] sm:$0xf]
      %v262 = vld [vmem:[%s192 + $0xfc] sm:$0xf]
      %v263 = vld [vmem:[%s192 + $0x100] sm:$0xf]
      %v264 = vld [vmem:[%s192 + $0x104] sm:$0xf]
      %v265 = vld [vmem:[%s192 + $0x108] sm:$0xf]
      %v266 = vld [vmem:[%s192 + $0x10c] sm:$0xf]
      %v267 = vld [vmem:[%s192 + $0x110] sm:$0xf]
      %v268 = vld [vmem:[%s192 + $0x114] sm:$0xf]
      %v269 = vld [vmem:[%s192 + $0x118] sm:$0xf]
      %v270 = vld [vmem:[%s192 + $0x11c] sm:$0xf]
      %v271 = vld [vmem:[%s192 + $0x120] sm:$0xf]
      %v272 = vld [vmem:[%s192 + $0x124] sm:$0xf]
      %v273 = vld [vmem:[%s192 + $0x128] sm:$0xf]
      %v274 = vld [vmem:[%s192 + $0x12c] sm:$0xf]
      %v275 = vld [vmem:[%s192 + $0x130] sm:$0xf]
      %v276 = vld [vmem:[%s192 + $0x134] sm:$0xf]
      %v277 = vld [vmem:[%s192 + $0x138] sm:$0xf]
      %v278 = vld [vmem:[%s192 + $0x13c] sm:$0xf]
      %v279 = vld [vmem:[%s192 + $0x140] sm:$0xf]
      %v280 = vld [vmem:[%s192 + $0x144] sm:$0xf]
      %v281 = vld [vmem:[%s192 + $0x148] sm:$0xf]
      %v282 = vld [vmem:[%s192 + $0x14c] sm:$0xf]
      %v283 = vld [vmem:[%s192 + $0x150] sm:$0xf]
      %v284 = vld [vmem:[%s192 + $0x154] sm:$0xf]
      %v285 = vld [vmem:[%s192 + $0x158] sm:$0xf]
      %v286 = vld [vmem:[%s192 + $0x15c] sm:$0xf]
      %v287 = vld [vmem:[%s192 + $0x160] sm:$0xf]
      %v288 = vld [vmem:[%s192 + $0x164] sm:$0xf]
      %v289 = vld [vmem:[%s192 + $0x168] sm:$0xf]
      %v290 = vld [vmem:[%s192 + $0x16c] sm:$0xf]
      %v291 = vld [vmem:[%s192 + $0x170] sm:$0xf]
      %v292 = vld [vmem:[%s192 + $0x174] sm:$0xf]
      %v293 = vld [vmem:[%s192 + $0x178] sm:$0xf]
      %v294 = vld [vmem:[%s192 + $0x17c] sm:$0xf]
      %v295 = vld [vmem:[%s192 + $0x180] sm:$0xf]
      %v296 = vld [vmem:[%s192 + $0x184] sm:$0xf]
      %v297 = vld [vmem:[%s192 + $0x188] sm:$0xf]
      %v298 = vld [vmem:[%s192 + $0x18c] sm:$0xf]
      %v299 = vld [vmem:[%s192 + $0x190] sm:$0xf]
      %v300 = vld [vmem:[%s192 + $0x194] sm:$0xf]
      %v301 = vld [vmem:[%s192 + $0x198] sm:$0xf]
      %v302 = vld [vmem:[%s192 + $0x19c] sm:$0xf]
      %v303 = vld [vmem:[%s192 + $0x1a0] sm:$0xf]
      %v304 = vld [vmem:[%s192 + $0x1a4] sm:$0xf]
      %v305 = vld [vmem:[%s192 + $0x1a8] sm:$0xf]
      %v306 = vld [vmem:[%s192 + $0x1ac] sm:$0xf]
      %v307 = vld [vmem:[%s192 + $0x1b0] sm:$0xf]
      %v308 = vld [vmem:[%s192 + $0x1b4] sm:$0xf]
      %v309 = vld [vmem:[%s192 + $0x1b8] sm:$0xf]
      %v310 = vld [vmem:[%s192 + $0x1bc] sm:$0xf]
      %v311 = vld [vmem:[%s192 + $0x1c0] sm:$0xf]
      %v312 = vld [vmem:[%s192 + $0x1c4] sm:$0xf]
      %v313 = vld [vmem:[%s192 + $0x1c8] sm:$0xf]
      %v314 = vld [vmem:[%s192 + $0x1cc] sm:$0xf]
      %v315 = vld [vmem:[%s192 + $0x1d0] sm:$0xf]
      %v316 = vld [vmem:[%s192 + $0x1d4] sm:$0xf]
      %v317 = vld [vmem:[%s192 + $0x1d8] sm:$0xf]
      %v318 = vld [vmem:[%s192 + $0x1dc] sm:$0xf]
      %v319 = vld [vmem:[%s192 + $0x1e0] sm:$0xf]
      %v320 = vld [vmem:[%s192 + $0x1e4] sm:$0xf]
      %v321 = vld [vmem:[%s192 + $0x1e8] sm:$0xf]
      %v322 = vld [vmem:[%s192 + $0x1ec] sm:$0xf]
      %v323 = vld [vmem:[%s192 + $0x1f0] sm:$0xf]
      %v324 = vld [vmem:[%s192 + $0x1f4] sm:$0xf]
      %v325 = vld [vmem:[%s192 + $0x1f8] sm:$0xf]
      %v326 = vld [vmem:[%s192 + $0x1fc] sm:$0xf]
      %v327 = vld [vmem:[%s192 + $0x200] sm:$0xf]
      %v328 = vld [vmem:[%s192 + $0x204] sm:$0xf]
      %v329 = vld [vmem:[%s192 + $0x208] sm:$0xf]
      %v330 = vld [vmem:[%s192 + $0x20c] sm:$0xf]
      %v331 = vld [vmem:[%s192 + $0x210] sm:$0xf]
      %v332 = vld [vmem:[%s192 + $0x214] sm:$0xf]
      %v333 = vld [vmem:[%s192 + $0x218] sm:$0xf]
      %v334 = vld [vmem:[%s192 + $0x21c] sm:$0xf]
      %v335 = vld [vmem:[%s192 + $0x220] sm:$0xf]
      %v336 = vld [vmem:[%s192 + $0x224] sm:$0xf]
      %v337 = vld [vmem:[%s192 + $0x228] sm:$0xf]
      %v338 = vld [vmem:[%s192 + $0x22c] sm:$0xf]
      %v339 = vld [vmem:[%s192 + $0x230] sm:$0xf]
      %v340 = vld [vmem:[%s192 + $0x234] sm:$0xf]
      %v341 = vld [vmem:[%s192 + $0x238] sm:$0xf]
      %v342 = vld [vmem:[%s192 + $0x23c] sm:$0xf]
      %v343 = vld [vmem:[%s1] sm:$0xf]
      %v344 = vld [vmem:[%s1 + $0x4] sm:$0x3]
      %v489 = vunpack.c.l.b16 %v199
      %v490 = vunpack.c.l.b16 %v200
      %v491 = vunpack.c.l.b16 %v201
      %v492 = vunpack.c.l.b16 %v202
      %v493 = vunpack.c.l.b16 %v203
      %v494 = vunpack.c.l.b16 %v204
      %v495 = vunpack.c.l.b16 %v205
      %v496 = vunpack.c.l.b16 %v206
      %v497 = vunpack.c.l.b16 %v207
      %v498 = vunpack.c.l.b16 %v208
      %v499 = vunpack.c.l.b16 %v209
      %v500 = vunpack.c.l.b16 %v210
      %v501 = vunpack.c.l.b16 %v211
      %v502 = vunpack.c.l.b16 %v212
      %v503 = vunpack.c.l.b16 %v213
      %v504 = vunpack.c.l.b16 %v214
      %v505 = vunpack.c.l.b16 %v215
      %v506 = vunpack.c.l.b16 %v216
      %v507 = vunpack.c.l.b16 %v217
      %v508 = vunpack.c.l.b16 %v218
      %v509 = vunpack.c.l.b16 %v219
      %v510 = vunpack.c.l.b16 %v220
      %v511 = vunpack.c.l.b16 %v221
      %v512 = vunpack.c.l.b16 %v222
      %v513 = vunpack.c.l.b16 %v223
      %v514 = vunpack.c.l.b16 %v224
      %v515 = vunpack.c.l.b16 %v225
      %v516 = vunpack.c.l.b16 %v226
      %v517 = vunpack.c.l.b16 %v227
      %v518 = vunpack.c.l.b16 %v228
      %v519 = vunpack.c.l.b16 %v229
      %v520 = vunpack.c.l.b16 %v230
      %v521 = vunpack.c.l.b16 %v231
      %v522 = vunpack.c.l.b16 %v232
      %v523 = vunpack.c.l.b16 %v233
      %v524 = vunpack.c.l.b16 %v234
      %v525 = vunpack.c.l.b16 %v235
      %v526 = vunpack.c.l.b16 %v236
      %v527 = vunpack.c.l.b16 %v237
      %v528 = vunpack.c.l.b16 %v238
      %v529 = vunpack.c.l.b16 %v239
      %v530 = vunpack.c.l.b16 %v240
      %v531 = vunpack.c.l.b16 %v241
      %v532 = vunpack.c.l.b16 %v242
      %v533 = vunpack.c.l.b16 %v243
      %v534 = vunpack.c.l.b16 %v244
      %v535 = vunpack.c.l.b16 %v245
      %v536 = vunpack.c.l.b16 %v246
      %v537 = vunpack.c.l.b16 %v247
      %v538 = vunpack.c.l.b16 %v248
      %v539 = vunpack.c.l.b16 %v249
      %v540 = vunpack.c.l.b16 %v250
      %v541 = vunpack.c.l.b16 %v251
      %v542 = vunpack.c.l.b16 %v252
      %v543 = vunpack.c.l.b16 %v253
      %v544 = vunpack.c.l.b16 %v254
      %v545 = vunpack.c.l.b16 %v255
      %v546 = vunpack.c.l.b16 %v256
      %v547 = vunpack.c.l.b16 %v257
      %v548 = vunpack.c.l.b16 %v258
      %v549 = vunpack.c.l.b16 %v259
      %v550 = vunpack.c.l.b16 %v260
      %v551 = vunpack.c.l.b16 %v261
      %v552 = vunpack.c.l.b16 %v262
      %v553 = vunpack.c.l.b16 %v263
      %v554 = vunpack.c.l.b16 %v264
      %v555 = vunpack.c.l.b16 %v265
      %v556 = vunpack.c.l.b16 %v266
      %v557 = vunpack.c.l.b16 %v267
      %v558 = vunpack.c.l.b16 %v268
      %v559 = vunpack.c.l.b16 %v269
      %v560 = vunpack.c.l.b16 %v270
      %v561 = vunpack.c.l.b16 %v271
      %v562 = vunpack.c.l.b16 %v272
      %v563 = vunpack.c.l.b16 %v273
      %v564 = vunpack.c.l.b16 %v274
      %v565 = vunpack.c.l.b16 %v275
      %v566 = vunpack.c.l.b16 %v276
      %v567 = vunpack.c.l.b16 %v277
      %v568 = vunpack.c.l.b16 %v278
      %v569 = vunpack.c.l.b16 %v279
      %v570 = vunpack.c.l.b16 %v280
      %v571 = vunpack.c.l.b16 %v281
      %v572 = vunpack.c.l.b16 %v282
      %v573 = vunpack.c.l.b16 %v283
      %v574 = vunpack.c.l.b16 %v284
      %v575 = vunpack.c.l.b16 %v285
      %v576 = vunpack.c.l.b16 %v286
      %v577 = vunpack.c.l.b16 %v287
      %v578 = vunpack.c.l.b16 %v288
      %v579 = vunpack.c.l.b16 %v289
      %v580 = vunpack.c.l.b16 %v290
      %v581 = vunpack.c.l.b16 %v291
      %v582 = vunpack.c.l.b16 %v292
      %v583 = vunpack.c.l.b16 %v293
      %v584 = vunpack.c.l.b16 %v294
      %v585 = vunpack.c.l.b16 %v295
      %v586 = vunpack.c.l.b16 %v296
      %v587 = vunpack.c.l.b16 %v297
      %v588 = vunpack.c.l.b16 %v298
      %v589 = vunpack.c.l.b16 %v299
      %v590 = vunpack.c.l.b16 %v300
      %v591 = vunpack.c.l.b16 %v301
      %v592 = vunpack.c.l.b16 %v302
      %v593 = vunpack.c.l.b16 %v303
      %v594 = vunpack.c.l.b16 %v304
      %v595 = vunpack.c.l.b16 %v305
      %v596 = vunpack.c.l.b16 %v306
      %v597 = vunpack.c.l.b16 %v307
      %v598 = vunpack.c.l.b16 %v308
      %v599 = vunpack.c.l.b16 %v309
      %v600 = vunpack.c.l.b16 %v310
      %v601 = vunpack.c.l.b16 %v311
      %v602 = vunpack.c.l.b16 %v312
      %v603 = vunpack.c.l.b16 %v313
      %v604 = vunpack.c.l.b16 %v314
      %v605 = vunpack.c.l.b16 %v315
      %v606 = vunpack.c.l.b16 %v316
      %v607 = vunpack.c.l.b16 %v317
      %v608 = vunpack.c.l.b16 %v318
      %v609 = vunpack.c.l.b16 %v319
      %v610 = vunpack.c.l.b16 %v320
      %v611 = vunpack.c.l.b16 %v321
      %v612 = vunpack.c.l.b16 %v322
      %v613 = vunpack.c.l.b16 %v323
      %v614 = vunpack.c.l.b16 %v324
      %v615 = vunpack.c.l.b16 %v325
      %v616 = vunpack.c.l.b16 %v326
      %v617 = vunpack.c.l.b16 %v327
      %v618 = vunpack.c.l.b16 %v328
      %v619 = vunpack.c.l.b16 %v329
      %v620 = vunpack.c.l.b16 %v330
      %v621 = vunpack.c.l.b16 %v331
      %v622 = vunpack.c.l.b16 %v332
      %v623 = vunpack.c.l.b16 %v333
      %v624 = vunpack.c.l.b16 %v334
      %v625 = vunpack.c.l.b16 %v335
      %v626 = vunpack.c.l.b16 %v336
      %v627 = vunpack.c.l.b16 %v337
      %v628 = vunpack.c.l.b16 %v338
      %v629 = vunpack.c.l.b16 %v339
      %v630 = vunpack.c.l.b16 %v340
      %v631 = vunpack.c.l.b16 %v341
      %v632 = vunpack.c.l.b16 %v342
      %v633 = vpack.c.b16 %v490, %v489
      %v634 = vpack.c.b16 %v492, %v491
      %v635 = vpack.c.b16 %v494, %v493
      %v636 = vpack.c.b16 %v496, %v495
      %v637 = vpack.c.b16 %v498, %v497
      %v638 = vpack.c.b16 %v500, %v499
      %v639 = vpack.c.b16 %v502, %v501
      %v640 = vpack.c.b16 %v504, %v503
      %v641 = vpack.c.b16 %v506, %v505
      %v642 = vpack.c.b16 %v508, %v507
      %v643 = vpack.c.b16 %v510, %v509
      %v644 = vpack.c.b16 %v512, %v511
      %v645 = vpack.c.b16 %v514, %v513
      %v646 = vpack.c.b16 %v516, %v515
      %v647 = vpack.c.b16 %v518, %v517
      %v648 = vpack.c.b16 %v520, %v519
      %v649 = vpack.c.b16 %v522, %v521
      %v650 = vpack.c.b16 %v524, %v523
      %v651 = vpack.c.b16 %v526, %v525
      %v652 = vpack.c.b16 %v528, %v527
      %v653 = vpack.c.b16 %v530, %v529
      %v654 = vpack.c.b16 %v532, %v531
      %v655 = vpack.c.b16 %v534, %v533
      %v656 = vpack.c.b16 %v536, %v535
      %v657 = vpack.c.b16 %v538, %v537
      %v658 = vpack.c.b16 %v540, %v539
      %v659 = vpack.c.b16 %v542, %v541
      %v660 = vpack.c.b16 %v544, %v543
      %v661 = vpack.c.b16 %v546, %v545
      %v662 = vpack.c.b16 %v548, %v547
      %v663 = vpack.c.b16 %v550, %v549
      %v664 = vpack.c.b16 %v552, %v551
      %v665 = vpack.c.b16 %v554, %v553
      %v666 = vpack.c.b16 %v556, %v555
      %v667 = vpack.c.b16 %v558, %v557
      %v668 = vpack.c.b16 %v560, %v559
      %v669 = vpack.c.b16 %v562, %v561
      %v670 = vpack.c.b16 %v564, %v563
      %v671 = vpack.c.b16 %v566, %v565
      %v672 = vpack.c.b16 %v568, %v567
      %v673 = vpack.c.b16 %v570, %v569
      %v674 = vpack.c.b16 %v572, %v571
      %v675 = vpack.c.b16 %v574, %v573
      %v676 = vpack.c.b16 %v576, %v575
      %v677 = vpack.c.b16 %v578, %v577
      %v678 = vpack.c.b16 %v580, %v579
      %v679 = vpack.c.b16 %v582, %v581
      %v680 = vpack.c.b16 %v584, %v583
      %v681 = vpack.c.b16 %v586, %v585
      %v682 = vpack.c.b16 %v588, %v587
      %v683 = vpack.c.b16 %v590, %v589
      %v684 = vpack.c.b16 %v592, %v591
      %v685 = vpack.c.b16 %v594, %v593
      %v686 = vpack.c.b16 %v596, %v595
      %v687 = vpack.c.b16 %v598, %v597
      %v688 = vpack.c.b16 %v600, %v599
      %v689 = vpack.c.b16 %v602, %v601
      %v690 = vpack.c.b16 %v604, %v603
      %v691 = vpack.c.b16 %v606, %v605
      %v692 = vpack.c.b16 %v608, %v607
      %v693 = vpack.c.b16 %v610, %v609
      %v694 = vpack.c.b16 %v612, %v611
      %v695 = vpack.c.b16 %v614, %v613
      %v696 = vpack.c.b16 %v616, %v615
      %v697 = vpack.c.b16 %v618, %v617
      %v698 = vpack.c.b16 %v620, %v619
      %v699 = vpack.c.b16 %v622, %v621
      %v700 = vpack.c.b16 %v624, %v623
      %v701 = vpack.c.b16 %v626, %v625
      %v702 = vpack.c.b16 %v628, %v627
      %v703 = vpack.c.b16 %v630, %v629
      %v704 = vpack.c.b16 %v632, %v631
      %v707 = vunpack.c.l.b16 %v343
      %v708 = vunpack.c.l.b16 %v344
      %v709 = vpack.c.b16 %v708, %v707
      %vm710 = vcmask 97280
      %v712 = vsel %vm710, %v633, 0
      %v715 = vsel %vm710, %v634, 0
      %v718 = vsel %vm710, %v635, 0
      %v721 = vsel %vm710, %v636, 0
      %v724 = vsel %vm710, %v637, 0
      %v727 = vsel %vm710, %v638, 0
      %v730 = vsel %vm710, %v639, 0
      %v733 = vsel %vm710, %v640, 0
      %v736 = vsel %vm710, %v641, 0
      %v739 = vsel %vm710, %v642, 0
      %v742 = vsel %vm710, %v643, 0
      %v745 = vsel %vm710, %v644, 0
      %v748 = vsel %vm710, %v645, 0
      %v751 = vsel %vm710, %v646, 0
      %v754 = vsel %vm710, %v647, 0
      %v757 = vsel %vm710, %v648, 0
      %v760 = vsel %vm710, %v649, 0
      %v763 = vsel %vm710, %v650, 0
      %v766 = vsel %vm710, %v651, 0
      %v769 = vsel %vm710, %v652, 0
      %v772 = vsel %vm710, %v653, 0
      %v775 = vsel %vm710, %v654, 0
      %v778 = vsel %vm710, %v655, 0
      %v781 = vsel %vm710, %v656, 0
      %v784 = vsel %vm710, %v657, 0
      %v787 = vsel %vm710, %v658, 0
      %v790 = vsel %vm710, %v659, 0
      %v793 = vsel %vm710, %v660, 0
      %v796 = vsel %vm710, %v661, 0
      %v799 = vsel %vm710, %v662, 0
      %v802 = vsel %vm710, %v663, 0
      %v805 = vsel %vm710, %v664, 0
      %v808 = vsel %vm710, %v665, 0
      %v811 = vsel %vm710, %v666, 0
      %v814 = vsel %vm710, %v667, 0
      %v817 = vsel %vm710, %v668, 0
      %v820 = vsel %vm710, %v669, 0
      %v823 = vsel %vm710, %v670, 0
      %v826 = vsel %vm710, %v671, 0
      %v829 = vsel %vm710, %v672, 0
      %v832 = vsel %vm710, %v673, 0
      %v835 = vsel %vm710, %v674, 0
      %v838 = vsel %vm710, %v675, 0
      %v841 = vsel %vm710, %v676, 0
      %v844 = vsel %vm710, %v677, 0
      %v847 = vsel %vm710, %v678, 0
      %v850 = vsel %vm710, %v679, 0
      %v853 = vsel %vm710, %v680, 0
      %v856 = vsel %vm710, %v681, 0
      %v859 = vsel %vm710, %v682, 0
      %v862 = vsel %vm710, %v683, 0
      %v865 = vsel %vm710, %v684, 0
      %v868 = vsel %vm710, %v685, 0
      %v871 = vsel %vm710, %v686, 0
      %v874 = vsel %vm710, %v687, 0
      %v877 = vsel %vm710, %v688, 0
      %v880 = vsel %vm710, %v689, 0
      %v883 = vsel %vm710, %v690, 0
      %v886 = vsel %vm710, %v691, 0
      %v889 = vsel %vm710, %v692, 0
      %v892 = vsel %vm710, %v693, 0
      %v895 = vsel %vm710, %v694, 0
      %v898 = vsel %vm710, %v695, 0
      %v901 = vsel %vm710, %v696, 0
      %v904 = vsel %vm710, %v697, 0
      %v907 = vsel %vm710, %v698, 0
      %v910 = vsel %vm710, %v699, 0
      %v913 = vsel %vm710, %v700, 0
      %v916 = vsel %vm710, %v701, 0
      %v919 = vsel %vm710, %v702, 0
      %v922 = vsel %vm710, %v703, 0
      %v925 = vsel %vm710, %v704, 0
      %vm927 = vcmask 1045504
      %v929 = vsel %vm927, %v709, 0
      %931 = vmatprep.subr.bf16.mxu0 0
      %932 = vmatpush1.bf16.msra.mxu0 %v929
      %933 = vmatprep.subr.bf16.mxu0 0
      %934 = vmatpush1.bf16.msra.mxu0 0
      %935 = vmatprep.subr.bf16.mxu0 0
      %936 = vmatpush1.bf16.msra.mxu0 0
      %937 = vmatprep.subr.bf16.mxu0 0
      %938 = vmatpush1.bf16.msra.mxu0 0
      %939 = vmatprep.subr.bf16.mxu0 0
      %940 = vmatpush1.bf16.msra.mxu0 0
      %941 = vmatprep.subr.bf16.mxu0 0
      %942 = vmatpush1.bf16.msra.mxu0 0
      %943 = vmatprep.subr.bf16.mxu0 0
      %944 = vmatpush1.bf16.msra.mxu0 0
      %945 = vmatprep.subr.bf16.mxu0 0
      %946 = vmatpush1.bf16.msra.mxu0 0
      %947 = vmatprep.subr.bf16.mxu0 0
      %948 = vmatpush1.bf16.msra.mxu0 0
      %949 = vmatprep.subr.bf16.mxu0 0
      %950 = vmatpush1.bf16.msra.mxu0 0
      %951 = vmatprep.subr.bf16.mxu0 0
      %952 = vmatpush1.bf16.msra.mxu0 0
      %953 = vmatprep.subr.bf16.mxu0 0
      %954 = vmatpush1.bf16.msra.mxu0 0
      %955 = vmatprep.subr.bf16.mxu0 0
      %956 = vmatpush1.bf16.msra.mxu0 0
      %957 = vmatprep.subr.bf16.mxu0 0
      %958 = vmatpush1.bf16.msra.mxu0 0
      %959 = vmatprep.subr.bf16.mxu0 0
      %960 = vmatpush1.bf16.msra.mxu0 0
      %961 = vmatprep.subr.bf16.mxu0 0
      %962 = vmatpush1.bf16.msra.mxu0 0
      %963 = vmatprep.mubr.bf16.mxu0 0
      %964 = vmatmul.mubr.bf16.gmra.mrb[0].mxu0 %v712
      %v965 = vpop.f32.mrb[0].mxu0
      %v966 = vadd.f32 0.0, %v965
      %v967 = vpop.f32.mrb[0].mxu0
      %v968 = vpop.f32.mrb[0].mxu0
      %v969 = vadd.f32 0.0, %v968
      %v970 = vpop.f32.mrb[0].mxu0
      %971 = vmatprep.mubr.bf16.mxu0 0
      %972 = vmatmul.mubr.bf16.gmra.mrb[0].mxu0 %v715
      %v973 = vpop.f32.mrb[0].mxu0
      %v974 = vadd.f32 0.0, %v973
      %v975 = vpop.f32.mrb[0].mxu0
      %v976 = vpop.f32.mrb[0].mxu0
      %v977 = vadd.f32 0.0, %v976
      %v978 = vpop.f32.mrb[0].mxu0
      %979 = vmatprep.mubr.bf16.mxu0 0
      %980 = vmatmul.mubr.bf16.gmra.mrb[0].mxu0 %v718
      %v981 = vpop.f32.mrb[0].mxu0
      %v982 = vadd.f32 0.0, %v981
      %v983 = vpop.f32.mrb[0].mxu0
      %v984 = vpop.f32.mrb[0].mxu0
      %v985 = vadd.f32 0.0, %v984
      %v986 = vpop.f32.mrb[0].mxu0
      %987 = vmatprep.mubr.bf16.mxu0 0
      %988 = vmatmul.mubr.bf16.gmra.mrb[0].mxu0 %v721
      %v989 = vpop.f32.mrb[0].mxu0
      %v990 = vadd.f32 0.0, %v989
      %v991 = vpop.f32.mrb[0].mxu0
      %v992 = vpop.f32.mrb[0].mxu0
      %v993 = vadd.f32 0.0, %v992
      %v994 = vpop.f32.mrb[0].mxu0
      %995 = vmatprep.mubr.bf16.mxu0 0
      %996 = vmatmul.mubr.bf16.gmra.mrb[0].mxu0 %v724
      %v997 = vpop.f32.mrb[0].mxu0
      %v998 = vadd.f32 0.0, %v997
      %v999 = vpop.f32.mrb[0].mxu0
      %v1000 = vpop.f32.mrb[0].mxu0
      %v1001 = vadd.f32 0.0, %v1000
      %v1002 = vpop.f32.mrb[0].mxu0
      %1003 = vmatprep.mubr.bf16.mxu0 0
      %1004 = vmatmul.mubr.bf16.gmra.mrb[0].mxu0 %v727
      %v1005 = vpop.f32.mrb[0].mxu0
      %v1006 = vadd.f32 0.0, %v1005
      %v1007 = vpop.f32.mrb[0].mxu0
      %v1008 = vpop.f32.mrb[0].mxu0
      %v1009 = vadd.f32 0.0, %v1008
      %v1010 = vpop.f32.mrb[0].mxu0
      %1011 = vmatprep.mubr.bf16.mxu0 0
      %1012 = vmatmul.mubr.bf16.gmra.mrb[0].mxu0 %v730
      %v1013 = vpop.f32.mrb[0].mxu0
      %v1014 = vadd.f32 0.0, %v1013
      %v1015 = vpop.f32.mrb[0].mxu0
      %v1016 = vpop.f32.mrb[0].mxu0
      %v1017 = vadd.f32 0.0, %v1016
      %v1018 = vpop.f32.mrb[0].mxu0
      %1019 = vmatprep.mubr.bf16.mxu0 0
      %1020 = vmatmul.mubr.bf16.gmra.mrb[0].mxu0 %v733
      %v1021 = vpop.f32.mrb[0].mxu0
      %v1022 = vadd.f32 0.0, %v1021
      %v1023 = vpop.f32.mrb[0].mxu0
      %v1024 = vpop.f32.mrb[0].mxu0
      %v1025 = vadd.f32 0.0, %v1024
      %v1026 = vpop.f32.mrb[0].mxu0
      %1027 = vmatprep.mubr.bf16.mxu0 0
      %1028 = vmatmul.mubr.bf16.gmra.mrb[0].mxu0 %v736
      %v1029 = vpop.f32.mrb[0].mxu0
      %v1030 = vadd.f32 0.0, %v1029
      %v1031 = vpop.f32.mrb[0].mxu0
      %v1032 = vpop.f32.mrb[0].mxu0
      %v1033 = vadd.f32 0.0, %v1032
      %v1034 = vpop.f32.mrb[0].mxu0
      %1035 = vmatprep.mubr.bf16.mxu0 0
      %1036 = vmatmul.mubr.bf16.gmra.mrb[0].mxu0 %v739
      %v1037 = vpop.f32.mrb[0].mxu0
      %v1038 = vadd.f32 0.0, %v1037
      %v1039 = vpop.f32.mrb[0].mxu0
      %v1040 = vpop.f32.mrb[0].mxu0
      %v1041 = vadd.f32 0.0, %v1040
      %v1042 = vpop.f32.mrb[0].mxu0
      %1043 = vmatprep.mubr.bf16.mxu0 0
      %1044 = vmatmul.mubr.bf16.gmra.mrb[0].mxu0 %v742
      %v1045 = vpop.f32.mrb[0].mxu0
      %v1046 = vadd.f32 0.0, %v1045
      %v1047 = vpop.f32.mrb[0].mxu0
      %v1048 = vpop.f32.mrb[0].mxu0
      %v1049 = vadd.f32 0.0, %v1048
      %v1050 = vpop.f32.mrb[0].mxu0
      %1051 = vmatprep.mubr.bf16.mxu0 0
      %1052 = vmatmul.mubr.bf16.gmra.mrb[0].mxu0 %v745
      %v1053 = vpop.f32.mrb[0].mxu0
      %v1054 = vadd.f32 0.0, %v1053
      %v1055 = vpop.f32.mrb[0].mxu0
      %v1056 = vpop.f32.mrb[0].mxu0
      %v1057 = vadd.f32 0.0, %v1056
      %v1058 = vpop.f32.mrb[0].mxu0
      %1059 = vmatprep.mubr.bf16.mxu0 0
      %1060 = vmatmul.mubr.bf16.gmra.mrb[0].mxu0 %v748
      %v1061 = vpop.f32.mrb[0].mxu0
      %v1062 = vadd.f32 0.0, %v1061
      %v1063 = vpop.f32.mrb[0].mxu0
      %v1064 = vpop.f32.mrb[0].mxu0
      %v1065 = vadd.f32 0.0, %v1064
      %v1066 = vpop.f32.mrb[0].mxu0
      %1067 = vmatprep.mubr.bf16.mxu0 0
      %1068 = vmatmul.mubr.bf16.gmra.mrb[0].mxu0 %v751
      %v1069 = vpop.f32.mrb[0].mxu0
      %v1070 = vadd.f32 0.0, %v1069
      %v1071 = vpop.f32.mrb[0].mxu0
      %v1072 = vpop.f32.mrb[0].mxu0
      %v1073 = vadd.f32 0.0, %v1072
      %v1074 = vpop.f32.mrb[0].mxu0
      %1075 = vmatprep.mubr.bf16.mxu0 0
      %1076 = vmatmul.mubr.bf16.gmra.mrb[0].mxu0 %v754
      %v1077 = vpop.f32.mrb[0].mxu0
      %v1078 = vadd.f32 0.0, %v1077
      %v1079 = vpop.f32.mrb[0].mxu0
      %v1080 = vpop.f32.mrb[0].mxu0
      %v1081 = vadd.f32 0.0, %v1080
      %v1082 = vpop.f32.mrb[0].mxu0
      %1083 = vmatprep.mubr.bf16.mxu0 0
      %1084 = vmatmul.mubr.bf16.gmra.mrb[0].mxu0 %v757
      %v1085 = vpop.f32.mrb[0].mxu0
      %v1086 = vadd.f32 0.0, %v1085
      %v1087 = vpop.f32.mrb[0].mxu0
      %v1088 = vpop.f32.mrb[0].mxu0
      %v1089 = vadd.f32 0.0, %v1088
      %v1090 = vpop.f32.mrb[0].mxu0
      %1091 = vmatprep.mubr.bf16.mxu0 0
      %1092 = vmatmul.mubr.bf16.gmra.mrb[0].mxu0 %v760
      %v1093 = vpop.f32.mrb[0].mxu0
      %v1094 = vadd.f32 0.0, %v1093
      %v1095 = vpop.f32.mrb[0].mxu0
      %v1096 = vpop.f32.mrb[0].mxu0
      %v1097 = vadd.f32 0.0, %v1096
      %v1098 = vpop.f32.mrb[0].mxu0
      %1099 = vmatprep.mubr.bf16.mxu0 0
      %1100 = vmatmul.mubr.bf16.gmra.mrb[0].mxu0 %v763
      %v1101 = vpop.f32.mrb[0].mxu0
      %v1102 = vadd.f32 0.0, %v1101
      %v1103 = vpop.f32.mrb[0].mxu0
      %v1104 = vpop.f32.mrb[0].mxu0
      %v1105 = vadd.f32 0.0, %v1104
      %v1106 = vpop.f32.mrb[0].mxu0
      %1107 = vmatprep.mubr.bf16.mxu0 0
      %1108 = vmatmul.mubr.bf16.gmra.mrb[0].mxu0 %v766
      %v1109 = vpop.f32.mrb[0].mxu0
      %v1110 = vadd.f32 0.0, %v1109
      %v1111 = vpop.f32.mrb[0].mxu0
      %v1112 = vpop.f32.mrb[0].mxu0
      %v1113 = vadd.f32 0.0, %v1112
      %v1114 = vpop.f32.mrb[0].mxu0
      %1115 = vmatprep.mubr.bf16.mxu0 0
      %1116 = vmatmul.mubr.bf16.gmra.mrb[0].mxu0 %v769
      %v1117 = vpop.f32.mrb[0].mxu0
      %v1118 = vadd.f32 0.0, %v1117
      %v1119 = vpop.f32.mrb[0].mxu0
      %v1120 = vpop.f32.mrb[0].mxu0
      %v1121 = vadd.f32 0.0, %v1120
      %v1122 = vpop.f32.mrb[0].mxu0
      %1123 = vmatprep.mubr.bf16.mxu0 0
      %1124 = vmatmul.mubr.bf16.gmra.mrb[0].mxu0 %v772
      %v1125 = vpop.f32.mrb[0].mxu0
      %v1126 = vadd.f32 0.0, %v1125
      %v1127 = vpop.f32.mrb[0].mxu0
      %v1128 = vpop.f32.mrb[0].mxu0
      %v1129 = vadd.f32 0.0, %v1128
      %v1130 = vpop.f32.mrb[0].mxu0
      %1131 = vmatprep.mubr.bf16.mxu0 0
      %1132 = vmatmul.mubr.bf16.gmra.mrb[0].mxu0 %v775
      %v1133 = vpop.f32.mrb[0].mxu0
      %v1134 = vadd.f32 0.0, %v1133
      %v1135 = vpop.f32.mrb[0].mxu0
      %v1136 = vpop.f32.mrb[0].mxu0
      %v1137 = vadd.f32 0.0, %v1136
      %v1138 = vpop.f32.mrb[0].mxu0
      %1139 = vmatprep.mubr.bf16.mxu0 0
      %1140 = vmatmul.mubr.bf16.gmra.mrb[0].mxu0 %v778
      %v1141 = vpop.f32.mrb[0].mxu0
      %v1142 = vadd.f32 0.0, %v1141
      %v1143 = vpop.f32.mrb[0].mxu0
      %v1144 = vpop.f32.mrb[0].mxu0
      %v1145 = vadd.f32 0.0, %v1144
      %v1146 = vpop.f32.mrb[0].mxu0
      %1147 = vmatprep.mubr.bf16.mxu0 0
      %1148 = vmatmul.mubr.bf16.gmra.mrb[0].mxu0 %v781
      %v1149 = vpop.f32.mrb[0].mxu0
      %v1150 = vadd.f32 0.0, %v1149
      %v1151 = vpop.f32.mrb[0].mxu0
      %v1152 = vpop.f32.mrb[0].mxu0
      %v1153 = vadd.f32 0.0, %v1152
      %v1154 = vpop.f32.mrb[0].mxu0
      %1155 = vmatprep.mubr.bf16.mxu0 0
      %1156 = vmatmul.mubr.bf16.gmra.mrb[0].mxu0 %v784
      %v1157 = vpop.f32.mrb[0].mxu0
      %v1158 = vadd.f32 0.0, %v1157
      %v1159 = vpop.f32.mrb[0].mxu0
      %v1160 = vpop.f32.mrb[0].mxu0
      %v1161 = vadd.f32 0.0, %v1160
      %v1162 = vpop.f32.mrb[0].mxu0
      %1163 = vmatprep.mubr.bf16.mxu0 0
      %1164 = vmatmul.mubr.bf16.gmra.mrb[0].mxu0 %v787
      %v1165 = vpop.f32.mrb[0].mxu0
      %v1166 = vadd.f32 0.0, %v1165
      %v1167 = vpop.f32.mrb[0].mxu0
      %v1168 = vpop.f32.mrb[0].mxu0
      %v1169 = vadd.f32 0.0, %v1168
      %v1170 = vpop.f32.mrb[0].mxu0
      %1171 = vmatprep.mubr.bf16.mxu0 0
      %1172 = vmatmul.mubr.bf16.gmra.mrb[0].mxu0 %v790
      %v1173 = vpop.f32.mrb[0].mxu0
      %v1174 = vadd.f32 0.0, %v1173
      %v1175 = vpop.f32.mrb[0].mxu0
      %v1176 = vpop.f32.mrb[0].mxu0
      %v1177 = vadd.f32 0.0, %v1176
      %v1178 = vpop.f32.mrb[0].mxu0
      %1179 = vmatprep.mubr.bf16.mxu0 0
      %1180 = vmatmul.mubr.bf16.gmra.mrb[0].mxu0 %v793
      %v1181 = vpop.f32.mrb[0].mxu0
      %v1182 = vadd.f32 0.0, %v1181
      %v1183 = vpop.f32.mrb[0].mxu0
      %v1184 = vpop.f32.mrb[0].mxu0
      %v1185 = vadd.f32 0.0, %v1184
      %v1186 = vpop.f32.mrb[0].mxu0
      %1187 = vmatprep.mubr.bf16.mxu0 0
      %1188 = vmatmul.mubr.bf16.gmra.mrb[0].mxu0 %v796
      %v1189 = vpop.f32.mrb[0].mxu0
      %v1190 = vadd.f32 0.0, %v1189
      %v1191 = vpop.f32.mrb[0].mxu0
      %v1192 = vpop.f32.mrb[0].mxu0
      %v1193 = vadd.f32 0.0, %v1192
      %v1194 = vpop.f32.mrb[0].mxu0
      %1195 = vmatprep.mubr.bf16.mxu0 0
      %1196 = vmatmul.mubr.bf16.gmra.mrb[0].mxu0 %v799
      %v1197 = vpop.f32.mrb[0].mxu0
      %v1198 = vadd.f32 0.0, %v1197
      %v1199 = vpop.f32.mrb[0].mxu0
      %v1200 = vpop.f32.mrb[0].mxu0
      %v1201 = vadd.f32 0.0, %v1200
      %v1202 = vpop.f32.mrb[0].mxu0
      %1203 = vmatprep.mubr.bf16.mxu0 0
      %1204 = vmatmul.mubr.bf16.gmra.mrb[0].mxu0 %v802
      %v1205 = vpop.f32.mrb[0].mxu0
      %v1206 = vadd.f32 0.0, %v1205
      %v1207 = vpop.f32.mrb[0].mxu0
      %v1208 = vpop.f32.mrb[0].mxu0
      %v1209 = vadd.f32 0.0, %v1208
      %v1210 = vpop.f32.mrb[0].mxu0
      %1211 = vmatprep.mubr.bf16.mxu0 0
      %1212 = vmatmul.mubr.bf16.gmra.mrb[0].mxu0 %v805
      %v1213 = vpop.f32.mrb[0].mxu0
      %v1214 = vadd.f32 0.0, %v1213
      %v1215 = vpop.f32.mrb[0].mxu0
      %v1216 = vpop.f32.mrb[0].mxu0
      %v1217 = vadd.f32 0.0, %v1216
      %v1218 = vpop.f32.mrb[0].mxu0
      %1219 = vmatprep.mubr.bf16.mxu0 0
      %1220 = vmatmul.mubr.bf16.gmra.mrb[0].mxu0 %v808
      %v1221 = vpop.f32.mrb[0].mxu0
      %v1222 = vadd.f32 0.0, %v1221
      %v1223 = vpop.f32.mrb[0].mxu0
      %v1224 = vpop.f32.mrb[0].mxu0
      %v1225 = vadd.f32 0.0, %v1224
      %v1226 = vpop.f32.mrb[0].mxu0
      %1227 = vmatprep.mubr.bf16.mxu0 0
      %1228 = vmatmul.mubr.bf16.gmra.mrb[0].mxu0 %v811
      %v1229 = vpop.f32.mrb[0].mxu0
      %v1230 = vadd.f32 0.0, %v1229
      %v1231 = vpop.f32.mrb[0].mxu0
      %v1232 = vpop.f32.mrb[0].mxu0
      %v1233 = vadd.f32 0.0, %v1232
      %v1234 = vpop.f32.mrb[0].mxu0
      %1235 = vmatprep.mubr.bf16.mxu0 0
      %1236 = vmatmul.mubr.bf16.gmra.mrb[0].mxu0 %v814
      %v1237 = vpop.f32.mrb[0].mxu0
      %v1238 = vadd.f32 0.0, %v1237
      %v1239 = vpop.f32.mrb[0].mxu0
      %v1240 = vpop.f32.mrb[0].mxu0
      %v1241 = vadd.f32 0.0, %v1240
      %v1242 = vpop.f32.mrb[0].mxu0
      %1243 = vmatprep.mubr.bf16.mxu0 0
      %1244 = vmatmul.mubr.bf16.gmra.mrb[0].mxu0 %v817
      %v1245 = vpop.f32.mrb[0].mxu0
      %v1246 = vadd.f32 0.0, %v1245
      %v1247 = vpop.f32.mrb[0].mxu0
      %v1248 = vpop.f32.mrb[0].mxu0
      %v1249 = vadd.f32 0.0, %v1248
      %v1250 = vpop.f32.mrb[0].mxu0
      %1251 = vmatprep.mubr.bf16.mxu0 0
      %1252 = vmatmul.mubr.bf16.gmra.mrb[0].mxu0 %v820
      %v1253 = vpop.f32.mrb[0].mxu0
      %v1254 = vadd.f32 0.0, %v1253
      %v1255 = vpop.f32.mrb[0].mxu0
      %v1256 = vpop.f32.mrb[0].mxu0
      %v1257 = vadd.f32 0.0, %v1256
      %v1258 = vpop.f32.mrb[0].mxu0
      %1259 = vmatprep.mubr.bf16.mxu0 0
      %1260 = vmatmul.mubr.bf16.gmra.mrb[0].mxu0 %v823
      %v1261 = vpop.f32.mrb[0].mxu0
      %v1262 = vadd.f32 0.0, %v1261
      %v1263 = vpop.f32.mrb[0].mxu0
      %v1264 = vpop.f32.mrb[0].mxu0
      %v1265 = vadd.f32 0.0, %v1264
      %v1266 = vpop.f32.mrb[0].mxu0
      %1267 = vmatprep.mubr.bf16.mxu0 0
      %1268 = vmatmul.mubr.bf16.gmra.mrb[0].mxu0 %v826
      %v1269 = vpop.f32.mrb[0].mxu0
      %v1270 = vadd.f32 0.0, %v1269
      %v1271 = vpop.f32.mrb[0].mxu0
      %v1272 = vpop.f32.mrb[0].mxu0
      %v1273 = vadd.f32 0.0, %v1272
      %v1274 = vpop.f32.mrb[0].mxu0
      %1275 = vmatprep.mubr.bf16.mxu0 0
      %1276 = vmatmul.mubr.bf16.gmra.mrb[0].mxu0 %v829
      %v1277 = vpop.f32.mrb[0].mxu0
      %v1278 = vadd.f32 0.0, %v1277
      %v1279 = vpop.f32.mrb[0].mxu0
      %v1280 = vpop.f32.mrb[0].mxu0
      %v1281 = vadd.f32 0.0, %v1280
      %v1282 = vpop.f32.mrb[0].mxu0
      %1283 = vmatprep.mubr.bf16.mxu0 0
      %1284 = vmatmul.mubr.bf16.gmra.mrb[0].mxu0 %v832
      %v1285 = vpop.f32.mrb[0].mxu0
      %v1286 = vadd.f32 0.0, %v1285
      %v1287 = vpop.f32.mrb[0].mxu0
      %v1288 = vpop.f32.mrb[0].mxu0
      %v1289 = vadd.f32 0.0, %v1288
      %v1290 = vpop.f32.mrb[0].mxu0
      %1291 = vmatprep.mubr.bf16.mxu0 0
      %1292 = vmatmul.mubr.bf16.gmra.mrb[0].mxu0 %v835
      %v1293 = vpop.f32.mrb[0].mxu0
      %v1294 = vadd.f32 0.0, %v1293
      %v1295 = vpop.f32.mrb[0].mxu0
      %v1296 = vpop.f32.mrb[0].mxu0
      %v1297 = vadd.f32 0.0, %v1296
      %v1298 = vpop.f32.mrb[0].mxu0
      %1299 = vmatprep.mubr.bf16.mxu0 0
      %1300 = vmatmul.mubr.bf16.gmra.mrb[0].mxu0 %v838
      %v1301 = vpop.f32.mrb[0].mxu0
      %v1302 = vadd.f32 0.0, %v1301
      %v1303 = vpop.f32.mrb[0].mxu0
      %v1304 = vpop.f32.mrb[0].mxu0
      %v1305 = vadd.f32 0.0, %v1304
      %v1306 = vpop.f32.mrb[0].mxu0
      %1307 = vmatprep.mubr.bf16.mxu0 0
      %1308 = vmatmul.mubr.bf16.gmra.mrb[0].mxu0 %v841
      %v1309 = vpop.f32.mrb[0].mxu0
      %v1310 = vadd.f32 0.0, %v1309
      %v1311 = vpop.f32.mrb[0].mxu0
      %v1312 = vpop.f32.mrb[0].mxu0
      %v1313 = vadd.f32 0.0, %v1312
      %v1314 = vpop.f32.mrb[0].mxu0
      %1315 = vmatprep.mubr.bf16.mxu0 0
      %1316 = vmatmul.mubr.bf16.gmra.mrb[0].mxu0 %v844
      %v1317 = vpop.f32.mrb[0].mxu0
      %v1318 = vadd.f32 0.0, %v1317
      %v1319 = vpop.f32.mrb[0].mxu0
      %v1320 = vpop.f32.mrb[0].mxu0
      %v1321 = vadd.f32 0.0, %v1320
      %v1322 = vpop.f32.mrb[0].mxu0
      %1323 = vmatprep.mubr.bf16.mxu0 0
      %1324 = vmatmul.mubr.bf16.gmra.mrb[0].mxu0 %v847
      %v1325 = vpop.f32.mrb[0].mxu0
      %v1326 = vadd.f32 0.0, %v1325
      %v1327 = vpop.f32.mrb[0].mxu0
      %v1328 = vpop.f32.mrb[0].mxu0
      %v1329 = vadd.f32 0.0, %v1328
      %v1330 = vpop.f32.mrb[0].mxu0
      %1331 = vmatprep.mubr.bf16.mxu0 0
      %1332 = vmatmul.mubr.bf16.gmra.mrb[0].mxu0 %v850
      %v1333 = vpop.f32.mrb[0].mxu0
      %v1334 = vadd.f32 0.0, %v1333
      %v1335 = vpop.f32.mrb[0].mxu0
      %v1336 = vpop.f32.mrb[0].mxu0
      %v1337 = vadd.f32 0.0, %v1336
      %v1338 = vpop.f32.mrb[0].mxu0
      %1339 = vmatprep.mubr.bf16.mxu0 0
      %1340 = vmatmul.mubr.bf16.gmra.mrb[0].mxu0 %v853
      %v1341 = vpop.f32.mrb[0].mxu0
      %v1342 = vadd.f32 0.0, %v1341
      %v1343 = vpop.f32.mrb[0].mxu0
      %v1344 = vpop.f32.mrb[0].mxu0
      %v1345 = vadd.f32 0.0, %v1344
      %v1346 = vpop.f32.mrb[0].mxu0
      %1347 = vmatprep.mubr.bf16.mxu0 0
      %1348 = vmatmul.mubr.bf16.gmra.mrb[0].mxu0 %v856
      %v1349 = vpop.f32.mrb[0].mxu0
      %v1350 = vadd.f32 0.0, %v1349
      %v1351 = vpop.f32.mrb[0].mxu0
      %v1352 = vpop.f32.mrb[0].mxu0
      %v1353 = vadd.f32 0.0, %v1352
      %v1354 = vpop.f32.mrb[0].mxu0
      %1355 = vmatprep.mubr.bf16.mxu0 0
      %1356 = vmatmul.mubr.bf16.gmra.mrb[0].mxu0 %v859
      %v1357 = vpop.f32.mrb[0].mxu0
      %v1358 = vadd.f32 0.0, %v1357
      %v1359 = vpop.f32.mrb[0].mxu0
      %v1360 = vpop.f32.mrb[0].mxu0
      %v1361 = vadd.f32 0.0, %v1360
      %v1362 = vpop.f32.mrb[0].mxu0
      %1363 = vmatprep.mubr.bf16.mxu0 0
      %1364 = vmatmul.mubr.bf16.gmra.mrb[0].mxu0 %v862
      %v1365 = vpop.f32.mrb[0].mxu0
      %v1366 = vadd.f32 0.0, %v1365
      %v1367 = vpop.f32.mrb[0].mxu0
      %v1368 = vpop.f32.mrb[0].mxu0
      %v1369 = vadd.f32 0.0, %v1368
      %v1370 = vpop.f32.mrb[0].mxu0
      %1371 = vmatprep.mubr.bf16.mxu0 0
      %1372 = vmatmul.mubr.bf16.gmra.mrb[0].mxu0 %v865
      %v1373 = vpop.f32.mrb[0].mxu0
      %v1374 = vadd.f32 0.0, %v1373
      %v1375 = vpop.f32.mrb[0].mxu0
      %v1376 = vpop.f32.mrb[0].mxu0
      %v1377 = vadd.f32 0.0, %v1376
      %v1378 = vpop.f32.mrb[0].mxu0
      %1379 = vmatprep.mubr.bf16.mxu0 0
      %1380 = vmatmul.mubr.bf16.gmra.mrb[0].mxu0 %v868
      %v1381 = vpop.f32.mrb[0].mxu0
      %v1382 = vadd.f32 0.0, %v1381
      %v1383 = vpop.f32.mrb[0].mxu0
      %v1384 = vpop.f32.mrb[0].mxu0
      %v1385 = vadd.f32 0.0, %v1384
      %v1386 = vpop.f32.mrb[0].mxu0
      %1387 = vmatprep.mubr.bf16.mxu0 0
      %1388 = vmatmul.mubr.bf16.gmra.mrb[0].mxu0 %v871
      %v1389 = vpop.f32.mrb[0].mxu0
      %v1390 = vadd.f32 0.0, %v1389
      %v1391 = vpop.f32.mrb[0].mxu0
      %v1392 = vpop.f32.mrb[0].mxu0
      %v1393 = vadd.f32 0.0, %v1392
      %v1394 = vpop.f32.mrb[0].mxu0
      %1395 = vmatprep.mubr.bf16.mxu0 0
      %1396 = vmatmul.mubr.bf16.gmra.mrb[0].mxu0 %v874
      %v1397 = vpop.f32.mrb[0].mxu0
      %v1398 = vadd.f32 0.0, %v1397
      %v1399 = vpop.f32.mrb[0].mxu0
      %v1400 = vpop.f32.mrb[0].mxu0
      %v1401 = vadd.f32 0.0, %v1400
      %v1402 = vpop.f32.mrb[0].mxu0
      %1403 = vmatprep.mubr.bf16.mxu0 0
      %1404 = vmatmul.mubr.bf16.gmra.mrb[0].mxu0 %v877
      %v1405 = vpop.f32.mrb[0].mxu0
      %v1406 = vadd.f32 0.0, %v1405
      %v1407 = vpop.f32.mrb[0].mxu0
      %v1408 = vpop.f32.mrb[0].mxu0
      %v1409 = vadd.f32 0.0, %v1408
      %v1410 = vpop.f32.mrb[0].mxu0
      %1411 = vmatprep.mubr.bf16.mxu0 0
      %1412 = vmatmul.mubr.bf16.gmra.mrb[0].mxu0 %v880
      %v1413 = vpop.f32.mrb[0].mxu0
      %v1414 = vadd.f32 0.0, %v1413
      %v1415 = vpop.f32.mrb[0].mxu0
      %v1416 = vpop.f32.mrb[0].mxu0
      %v1417 = vadd.f32 0.0, %v1416
      %v1418 = vpop.f32.mrb[0].mxu0
      %1419 = vmatprep.mubr.bf16.mxu0 0
      %1420 = vmatmul.mubr.bf16.gmra.mrb[0].mxu0 %v883
      %v1421 = vpop.f32.mrb[0].mxu0
      %v1422 = vadd.f32 0.0, %v1421
      %v1423 = vpop.f32.mrb[0].mxu0
      %v1424 = vpop.f32.mrb[0].mxu0
      %v1425 = vadd.f32 0.0, %v1424
      %v1426 = vpop.f32.mrb[0].mxu0
      %1427 = vmatprep.mubr.bf16.mxu0 0
      %1428 = vmatmul.mubr.bf16.gmra.mrb[0].mxu0 %v886
      %v1429 = vpop.f32.mrb[0].mxu0
      %v1430 = vadd.f32 0.0, %v1429
      %v1431 = vpop.f32.mrb[0].mxu0
      %v1432 = vpop.f32.mrb[0].mxu0
      %v1433 = vadd.f32 0.0, %v1432
      %v1434 = vpop.f32.mrb[0].mxu0
      %1435 = vmatprep.mubr.bf16.mxu0 0
      %1436 = vmatmul.mubr.bf16.gmra.mrb[0].mxu0 %v889
      %v1437 = vpop.f32.mrb[0].mxu0
      %v1438 = vadd.f32 0.0, %v1437
      %v1439 = vpop.f32.mrb[0].mxu0
      %v1440 = vpop.f32.mrb[0].mxu0
      %v1441 = vadd.f32 0.0, %v1440
      %v1442 = vpop.f32.mrb[0].mxu0
      %1443 = vmatprep.mubr.bf16.mxu0 0
      %1444 = vmatmul.mubr.bf16.gmra.mrb[0].mxu0 %v892
      %v1445 = vpop.f32.mrb[0].mxu0
      %v1446 = vadd.f32 0.0, %v1445
      %v1447 = vpop.f32.mrb[0].mxu0
      %v1448 = vpop.f32.mrb[0].mxu0
      %v1449 = vadd.f32 0.0, %v1448
      %v1450 = vpop.f32.mrb[0].mxu0
      %1451 = vmatprep.mubr.bf16.mxu0 0
      %1452 = vmatmul.mubr.bf16.gmra.mrb[0].mxu0 %v895
      %v1453 = vpop.f32.mrb[0].mxu0
      %v1454 = vadd.f32 0.0, %v1453
      %v1455 = vpop.f32.mrb[0].mxu0
      %v1456 = vpop.f32.mrb[0].mxu0
      %v1457 = vadd.f32 0.0, %v1456
      %v1458 = vpop.f32.mrb[0].mxu0
      %1459 = vmatprep.mubr.bf16.mxu0 0
      %1460 = vmatmul.mubr.bf16.gmra.mrb[0].mxu0 %v898
      %v1461 = vpop.f32.mrb[0].mxu0
      %v1462 = vadd.f32 0.0, %v1461
      %v1463 = vpop.f32.mrb[0].mxu0
      %v1464 = vpop.f32.mrb[0].mxu0
      %v1465 = vadd.f32 0.0, %v1464
      %v1466 = vpop.f32.mrb[0].mxu0
      %1467 = vmatprep.mubr.bf16.mxu0 0
      %1468 = vmatmul.mubr.bf16.gmra.mrb[0].mxu0 %v901
      %v1469 = vpop.f32.mrb[0].mxu0
      %v1470 = vadd.f32 0.0, %v1469
      %v1471 = vpop.f32.mrb[0].mxu0
      %v1472 = vpop.f32.mrb[0].mxu0
      %v1473 = vadd.f32 0.0, %v1472
      %v1474 = vpop.f32.mrb[0].mxu0
      %1475 = vmatprep.mubr.bf16.mxu0 0
      %1476 = vmatmul.mubr.bf16.gmra.mrb[0].mxu0 %v904
      %v1477 = vpop.f32.mrb[0].mxu0
      %v1478 = vadd.f32 0.0, %v1477
      %v1479 = vpop.f32.mrb[0].mxu0
      %v1480 = vpop.f32.mrb[0].mxu0
      %v1481 = vadd.f32 0.0, %v1480
      %v1482 = vpop.f32.mrb[0].mxu0
      %1483 = vmatprep.mubr.bf16.mxu0 0
      %1484 = vmatmul.mubr.bf16.gmra.mrb[0].mxu0 %v907
      %v1485 = vpop.f32.mrb[0].mxu0
      %v1486 = vadd.f32 0.0, %v1485
      %v1487 = vpop.f32.mrb[0].mxu0
      %v1488 = vpop.f32.mrb[0].mxu0
      %v1489 = vadd.f32 0.0, %v1488
      %v1490 = vpop.f32.mrb[0].mxu0
      %1491 = vmatprep.mubr.bf16.mxu0 0
      %1492 = vmatmul.mubr.bf16.gmra.mrb[0].mxu0 %v910
      %v1493 = vpop.f32.mrb[0].mxu0
      %v1494 = vadd.f32 0.0, %v1493
      %v1495 = vpop.f32.mrb[0].mxu0
      %v1496 = vpop.f32.mrb[0].mxu0
      %v1497 = vadd.f32 0.0, %v1496
      %v1498 = vpop.f32.mrb[0].mxu0
      %1499 = vmatprep.mubr.bf16.mxu0 0
      %1500 = vmatmul.mubr.bf16.gmra.mrb[0].mxu0 %v913
      %v1501 = vpop.f32.mrb[0].mxu0
      %v1502 = vadd.f32 0.0, %v1501
      %v1503 = vpop.f32.mrb[0].mxu0
      %v1504 = vpop.f32.mrb[0].mxu0
      %v1505 = vadd.f32 0.0, %v1504
      %v1506 = vpop.f32.mrb[0].mxu0
      %1507 = vmatprep.mubr.bf16.mxu0 0
      %1508 = vmatmul.mubr.bf16.gmra.mrb[0].mxu0 %v916
      %v1509 = vpop.f32.mrb[0].mxu0
      %v1510 = vadd.f32 0.0, %v1509
      %v1511 = vpop.f32.mrb[0].mxu0
      %v1512 = vpop.f32.mrb[0].mxu0
      %v1513 = vadd.f32 0.0, %v1512
      %v1514 = vpop.f32.mrb[0].mxu0
      %1515 = vmatprep.mubr.bf16.mxu0 0
      %1516 = vmatmul.mubr.bf16.gmra.mrb[0].mxu0 %v919
      %v1517 = vpop.f32.mrb[0].mxu0
      %v1518 = vadd.f32 0.0, %v1517
      %v1519 = vpop.f32.mrb[0].mxu0
      %v1520 = vpop.f32.mrb[0].mxu0
      %v1521 = vadd.f32 0.0, %v1520
      %v1522 = vpop.f32.mrb[0].mxu0
      %1523 = vmatprep.mubr.bf16.mxu0 0
      %1524 = vmatmul.mubr.bf16.gmra.mrb[0].mxu0 %v922
      %v1525 = vpop.f32.mrb[0].mxu0
      %v1526 = vadd.f32 0.0, %v1525
      %v1527 = vpop.f32.mrb[0].mxu0
      %v1528 = vpop.f32.mrb[0].mxu0
      %v1529 = vadd.f32 0.0, %v1528
      %v1530 = vpop.f32.mrb[0].mxu0
      %1531 = vmatprep.mubr.bf16.mxu0 0
      %1532 = vmatmul.mubr.bf16.gmra.mrb[0].mxu0 %v925
      %v1533 = vpop.f32.mrb[0].mxu0
      %v1534 = vadd.f32 0.0, %v1533
      %v1535 = vpop.f32.mrb[0].mxu0
      %v1536 = vpop.f32.mrb[0].mxu0
      %v1537 = vadd.f32 0.0, %v1536
      %v1538 = vpop.f32.mrb[0].mxu0
      %1539 = vdwg.mxu0
      %v1540 = vld [vmem:[%s2] sm:$0x1]
      %v1542 = vlaneseq
      %v1543 = vshrl.u32 %v1542, 7
      %v1544 = vsub.s32 0, %v1543
      %v1545 = vrot.slane %v1540, %v1544
      %v1547 = vmul.f32 %v966, %v1545
      %v1548 = vmul.f32 %v969, %v1545
      %v1549 = vmul.f32 %v974, %v1545
      %v1550 = vmul.f32 %v977, %v1545
      %v1551 = vmul.f32 %v982, %v1545
      %v1552 = vmul.f32 %v985, %v1545
      %v1553 = vmul.f32 %v990, %v1545
      %v1554 = vmul.f32 %v993, %v1545
      %v1555 = vmul.f32 %v998, %v1545
      %v1556 = vmul.f32 %v1001, %v1545
      %v1557 = vmul.f32 %v1006, %v1545
      %v1558 = vmul.f32 %v1009, %v1545
      %v1559 = vmul.f32 %v1014, %v1545
      %v1560 = vmul.f32 %v1017, %v1545
      %v1561 = vmul.f32 %v1022, %v1545
      %v1562 = vmul.f32 %v1025, %v1545
      %v1563 = vmul.f32 %v1030, %v1545
      %v1564 = vmul.f32 %v1033, %v1545
      %v1565 = vmul.f32 %v1038, %v1545
      %v1566 = vmul.f32 %v1041, %v1545
      %v1567 = vmul.f32 %v1046, %v1545
      %v1568 = vmul.f32 %v1049, %v1545
      %v1569 = vmul.f32 %v1054, %v1545
      %v1570 = vmul.f32 %v1057, %v1545
      %v1571 = vmul.f32 %v1062, %v1545
      %v1572 = vmul.f32 %v1065, %v1545
      %v1573 = vmul.f32 %v1070, %v1545
      %v1574 = vmul.f32 %v1073, %v1545
      %v1575 = vmul.f32 %v1078, %v1545
      %v1576 = vmul.f32 %v1081, %v1545
      %v1577 = vmul.f32 %v1086, %v1545
      %v1578 = vmul.f32 %v1089, %v1545
      %v1579 = vmul.f32 %v1094, %v1545
      %v1580 = vmul.f32 %v1097, %v1545
      %v1581 = vmul.f32 %v1102, %v1545
      %v1582 = vmul.f32 %v1105, %v1545
      %v1583 = vmul.f32 %v1110, %v1545
      %v1584 = vmul.f32 %v1113, %v1545
      %v1585 = vmul.f32 %v1118, %v1545
      %v1586 = vmul.f32 %v1121, %v1545
      %v1587 = vmul.f32 %v1126, %v1545
      %v1588 = vmul.f32 %v1129, %v1545
      %v1589 = vmul.f32 %v1134, %v1545
      %v1590 = vmul.f32 %v1137, %v1545
      %v1591 = vmul.f32 %v1142, %v1545
      %v1592 = vmul.f32 %v1145, %v1545
      %v1593 = vmul.f32 %v1150, %v1545
      %v1594 = vmul.f32 %v1153, %v1545
      %v1595 = vmul.f32 %v1158, %v1545
      %v1596 = vmul.f32 %v1161, %v1545
      %v1597 = vmul.f32 %v1166, %v1545
      %v1598 = vmul.f32 %v1169, %v1545
      %v1599 = vmul.f32 %v1174, %v1545
      %v1600 = vmul.f32 %v1177, %v1545
      %v1601 = vmul.f32 %v1182, %v1545
      %v1602 = vmul.f32 %v1185, %v1545
      %v1603 = vmul.f32 %v1190, %v1545
      %v1604 = vmul.f32 %v1193, %v1545
      %v1605 = vmul.f32 %v1198, %v1545
      %v1606 = vmul.f32 %v1201, %v1545
      %v1607 = vmul.f32 %v1206, %v1545
      %v1608 = vmul.f32 %v1209, %v1545
      %v1609 = vmul.f32 %v1214, %v1545
      %v1610 = vmul.f32 %v1217, %v1545
      %v1611 = vmul.f32 %v1222, %v1545
      %v1612 = vmul.f32 %v1225, %v1545
      %v1613 = vmul.f32 %v1230, %v1545
      %v1614 = vmul.f32 %v1233, %v1545
      %v1615 = vmul.f32 %v1238, %v1545
      %v1616 = vmul.f32 %v1241, %v1545
      %v1617 = vmul.f32 %v1246, %v1545
      %v1618 = vmul.f32 %v1249, %v1545
      %v1619 = vmul.f32 %v1254, %v1545
      %v1620 = vmul.f32 %v1257, %v1545
      %v1621 = vmul.f32 %v1262, %v1545
      %v1622 = vmul.f32 %v1265, %v1545
      %v1623 = vmul.f32 %v1270, %v1545
      %v1624 = vmul.f32 %v1273, %v1545
      %v1625 = vmul.f32 %v1278, %v1545
      %v1626 = vmul.f32 %v1281, %v1545
      %v1627 = vmul.f32 %v1286, %v1545
      %v1628 = vmul.f32 %v1289, %v1545
      %v1629 = vmul.f32 %v1294, %v1545
      %v1630 = vmul.f32 %v1297, %v1545
      %v1631 = vmul.f32 %v1302, %v1545
      %v1632 = vmul.f32 %v1305, %v1545
      %v1633 = vmul.f32 %v1310, %v1545
      %v1634 = vmul.f32 %v1313, %v1545
      %v1635 = vmul.f32 %v1318, %v1545
      %v1636 = vmul.f32 %v1321, %v1545
      %v1637 = vmul.f32 %v1326, %v1545
      %v1638 = vmul.f32 %v1329, %v1545
      %v1639 = vmul.f32 %v1334, %v1545
      %v1640 = vmul.f32 %v1337, %v1545
      %v1641 = vmul.f32 %v1342, %v1545
      %v1642 = vmul.f32 %v1345, %v1545
      %v1643 = vmul.f32 %v1350, %v1545
      %v1644 = vmul.f32 %v1353, %v1545
      %v1645 = vmul.f32 %v1358, %v1545
      %v1646 = vmul.f32 %v1361, %v1545
      %v1647 = vmul.f32 %v1366, %v1545
      %v1648 = vmul.f32 %v1369, %v1545
      %v1649 = vmul.f32 %v1374, %v1545
      %v1650 = vmul.f32 %v1377, %v1545
      %v1651 = vmul.f32 %v1382, %v1545
      %v1652 = vmul.f32 %v1385, %v1545
      %v1653 = vmul.f32 %v1390, %v1545
      %v1654 = vmul.f32 %v1393, %v1545
      %v1655 = vmul.f32 %v1398, %v1545
      %v1656 = vmul.f32 %v1401, %v1545
      %v1657 = vmul.f32 %v1406, %v1545
      %v1658 = vmul.f32 %v1409, %v1545
      %v1659 = vmul.f32 %v1414, %v1545
      %v1660 = vmul.f32 %v1417, %v1545
      %v1661 = vmul.f32 %v1422, %v1545
      %v1662 = vmul.f32 %v1425, %v1545
      %v1663 = vmul.f32 %v1430, %v1545
      %v1664 = vmul.f32 %v1433, %v1545
      %v1665 = vmul.f32 %v1438, %v1545
      %v1666 = vmul.f32 %v1441, %v1545
      %v1667 = vmul.f32 %v1446, %v1545
      %v1668 = vmul.f32 %v1449, %v1545
      %v1669 = vmul.f32 %v1454, %v1545
      %v1670 = vmul.f32 %v1457, %v1545
      %v1671 = vmul.f32 %v1462, %v1545
      %v1672 = vmul.f32 %v1465, %v1545
      %v1673 = vmul.f32 %v1470, %v1545
      %v1674 = vmul.f32 %v1473, %v1545
      %v1675 = vmul.f32 %v1478, %v1545
      %v1676 = vmul.f32 %v1481, %v1545
      %v1677 = vmul.f32 %v1486, %v1545
      %v1678 = vmul.f32 %v1489, %v1545
      %v1679 = vmul.f32 %v1494, %v1545
      %v1680 = vmul.f32 %v1497, %v1545
      %v1681 = vmul.f32 %v1502, %v1545
      %v1682 = vmul.f32 %v1505, %v1545
      %v1683 = vmul.f32 %v1510, %v1545
      %v1684 = vmul.f32 %v1513, %v1545
      %v1685 = vmul.f32 %v1518, %v1545
      %v1686 = vmul.f32 %v1521, %v1545
      %v1687 = vmul.f32 %v1526, %v1545
      %v1688 = vmul.f32 %v1529, %v1545
      %v1689 = vmul.f32 %v1534, %v1545
      %v1690 = vmul.f32 %v1537, %v1545
      %v1691 = vld [vmem:[%s3] sm:$0x1]
      %v1693 = vlaneseq
      %v1694 = vshrl.u32 %v1693, 7
      %v1695 = vsub.s32 0, %v1694
      %v1696 = vrot.slane %v1691, %v1695
      %v1698 = vadd.f32 %v1547, %v1696
      %v1699 = vadd.f32 %v1548, %v1696
      %v1700 = vadd.f32 %v1549, %v1696
      %v1701 = vadd.f32 %v1550, %v1696
      %v1702 = vadd.f32 %v1551, %v1696
      %v1703 = vadd.f32 %v1552, %v1696
      %v1704 = vadd.f32 %v1553, %v1696
      %v1705 = vadd.f32 %v1554, %v1696
      %v1706 = vadd.f32 %v1555, %v1696
      %v1707 = vadd.f32 %v1556, %v1696
      %v1708 = vadd.f32 %v1557, %v1696
      %v1709 = vadd.f32 %v1558, %v1696
      %v1710 = vadd.f32 %v1559, %v1696
      %v1711 = vadd.f32 %v1560, %v1696
      %v1712 = vadd.f32 %v1561, %v1696
      %v1713 = vadd.f32 %v1562, %v1696
      %v1714 = vadd.f32 %v1563, %v1696
      %v1715 = vadd.f32 %v1564, %v1696
      %v1716 = vadd.f32 %v1565, %v1696
      %v1717 = vadd.f32 %v1566, %v1696
      %v1718 = vadd.f32 %v1567, %v1696
      %v1719 = vadd.f32 %v1568, %v1696
      %v1720 = vadd.f32 %v1569, %v1696
      %v1721 = vadd.f32 %v1570, %v1696
      %v1722 = vadd.f32 %v1571, %v1696
      %v1723 = vadd.f32 %v1572, %v1696
      %v1724 = vadd.f32 %v1573, %v1696
      %v1725 = vadd.f32 %v1574, %v1696
      %v1726 = vadd.f32 %v1575, %v1696
      %v1727 = vadd.f32 %v1576, %v1696
      %v1728 = vadd.f32 %v1577, %v1696
      %v1729 = vadd.f32 %v1578, %v1696
      %v1730 = vadd.f32 %v1579, %v1696
      %v1731 = vadd.f32 %v1580, %v1696
      %v1732 = vadd.f32 %v1581, %v1696
      %v1733 = vadd.f32 %v1582, %v1696
      %v1734 = vadd.f32 %v1583, %v1696
      %v1735 = vadd.f32 %v1584, %v1696
      %v1736 = vadd.f32 %v1585, %v1696
      %v1737 = vadd.f32 %v1586, %v1696
      %v1738 = vadd.f32 %v1587, %v1696
      %v1739 = vadd.f32 %v1588, %v1696
      %v1740 = vadd.f32 %v1589, %v1696
      %v1741 = vadd.f32 %v1590, %v1696
      %v1742 = vadd.f32 %v1591, %v1696
      %v1743 = vadd.f32 %v1592, %v1696
      %v1744 = vadd.f32 %v1593, %v1696
      %v1745 = vadd.f32 %v1594, %v1696
      %v1746 = vadd.f32 %v1595, %v1696
      %v1747 = vadd.f32 %v1596, %v1696
      %v1748 = vadd.f32 %v1597, %v1696
      %v1749 = vadd.f32 %v1598, %v1696
      %v1750 = vadd.f32 %v1599, %v1696
      %v1751 = vadd.f32 %v1600, %v1696
      %v1752 = vadd.f32 %v1601, %v1696
      %v1753 = vadd.f32 %v1602, %v1696
      %v1754 = vadd.f32 %v1603, %v1696
      %v1755 = vadd.f32 %v1604, %v1696
      %v1756 = vadd.f32 %v1605, %v1696
      %v1757 = vadd.f32 %v1606, %v1696
      %v1758 = vadd.f32 %v1607, %v1696
      %v1759 = vadd.f32 %v1608, %v1696
      %v1760 = vadd.f32 %v1609, %v1696
      %v1761 = vadd.f32 %v1610, %v1696
      %v1762 = vadd.f32 %v1611, %v1696
      %v1763 = vadd.f32 %v1612, %v1696
      %v1764 = vadd.f32 %v1613, %v1696
      %v1765 = vadd.f32 %v1614, %v1696
      %v1766 = vadd.f32 %v1615, %v1696
      %v1767 = vadd.f32 %v1616, %v1696
      %v1768 = vadd.f32 %v1617, %v1696
      %v1769 = vadd.f32 %v1618, %v1696
      %v1770 = vadd.f32 %v1619, %v1696
      %v1771 = vadd.f32 %v1620, %v1696
      %v1772 = vadd.f32 %v1621, %v1696
      %v1773 = vadd.f32 %v1622, %v1696
      %v1774 = vadd.f32 %v1623, %v1696
      %v1775 = vadd.f32 %v1624, %v1696
      %v1776 = vadd.f32 %v1625, %v1696
      %v1777 = vadd.f32 %v1626, %v1696
      %v1778 = vadd.f32 %v1627, %v1696
      %v1779 = vadd.f32 %v1628, %v1696
      %v1780 = vadd.f32 %v1629, %v1696
      %v1781 = vadd.f32 %v1630, %v1696
      %v1782 = vadd.f32 %v1631, %v1696
      %v1783 = vadd.f32 %v1632, %v1696
      %v1784 = vadd.f32 %v1633, %v1696
      %v1785 = vadd.f32 %v1634, %v1696
      %v1786 = vadd.f32 %v1635, %v1696
      %v1787 = vadd.f32 %v1636, %v1696
      %v1788 = vadd.f32 %v1637, %v1696
      %v1789 = vadd.f32 %v1638, %v1696
      %v1790 = vadd.f32 %v1639, %v1696
      %v1791 = vadd.f32 %v1640, %v1696
      %v1792 = vadd.f32 %v1641, %v1696
      %v1793 = vadd.f32 %v1642, %v1696
      %v1794 = vadd.f32 %v1643, %v1696
      %v1795 = vadd.f32 %v1644, %v1696
      %v1796 = vadd.f32 %v1645, %v1696
      %v1797 = vadd.f32 %v1646, %v1696
      %v1798 = vadd.f32 %v1647, %v1696
      %v1799 = vadd.f32 %v1648, %v1696
      %v1800 = vadd.f32 %v1649, %v1696
      %v1801 = vadd.f32 %v1650, %v1696
      %v1802 = vadd.f32 %v1651, %v1696
      %v1803 = vadd.f32 %v1652, %v1696
      %v1804 = vadd.f32 %v1653, %v1696
      %v1805 = vadd.f32 %v1654, %v1696
      %v1806 = vadd.f32 %v1655, %v1696
      %v1807 = vadd.f32 %v1656, %v1696
      %v1808 = vadd.f32 %v1657, %v1696
      %v1809 = vadd.f32 %v1658, %v1696
      %v1810 = vadd.f32 %v1659, %v1696
      %v1811 = vadd.f32 %v1660, %v1696
      %v1812 = vadd.f32 %v1661, %v1696
      %v1813 = vadd.f32 %v1662, %v1696
      %v1814 = vadd.f32 %v1663, %v1696
      %v1815 = vadd.f32 %v1664, %v1696
      %v1816 = vadd.f32 %v1665, %v1696
      %v1817 = vadd.f32 %v1666, %v1696
      %v1818 = vadd.f32 %v1667, %v1696
      %v1819 = vadd.f32 %v1668, %v1696
      %v1820 = vadd.f32 %v1669, %v1696
      %v1821 = vadd.f32 %v1670, %v1696
      %v1822 = vadd.f32 %v1671, %v1696
      %v1823 = vadd.f32 %v1672, %v1696
      %v1824 = vadd.f32 %v1673, %v1696
      %v1825 = vadd.f32 %v1674, %v1696
      %v1826 = vadd.f32 %v1675, %v1696
      %v1827 = vadd.f32 %v1676, %v1696
      %v1828 = vadd.f32 %v1677, %v1696
      %v1829 = vadd.f32 %v1678, %v1696
      %v1830 = vadd.f32 %v1679, %v1696
      %v1831 = vadd.f32 %v1680, %v1696
      %v1832 = vadd.f32 %v1681, %v1696
      %v1833 = vadd.f32 %v1682, %v1696
      %v1834 = vadd.f32 %v1683, %v1696
      %v1835 = vadd.f32 %v1684, %v1696
      %v1836 = vadd.f32 %v1685, %v1696
      %v1837 = vadd.f32 %v1686, %v1696
      %v1838 = vadd.f32 %v1687, %v1696
      %v1839 = vadd.f32 %v1688, %v1696
      %v1840 = vadd.f32 %v1689, %v1696
      %v1841 = vadd.f32 %v1690, %v1696
      %v1842 = vmax.f32 %v1698, 0.0
      %v1843 = vmax.f32 %v1699, 0.0
      %v1844 = vmax.f32 %v1700, 0.0
      %v1845 = vmax.f32 %v1701, 0.0
      %v1846 = vmax.f32 %v1702, 0.0
      %v1847 = vmax.f32 %v1703, 0.0
      %v1848 = vmax.f32 %v1704, 0.0
      %v1849 = vmax.f32 %v1705, 0.0
      %v1850 = vmax.f32 %v1706, 0.0
      %v1851 = vmax.f32 %v1707, 0.0
      %v1852 = vmax.f32 %v1708, 0.0
      %v1853 = vmax.f32 %v1709, 0.0
      %v1854 = vmax.f32 %v1710, 0.0
      %v1855 = vmax.f32 %v1711, 0.0
      %v1856 = vmax.f32 %v1712, 0.0
      %v1857 = vmax.f32 %v1713, 0.0
      %v1858 = vmax.f32 %v1714, 0.0
      %v1859 = vmax.f32 %v1715, 0.0
      %v1860 = vmax.f32 %v1716, 0.0
      %v1861 = vmax.f32 %v1717, 0.0
      %v1862 = vmax.f32 %v1718, 0.0
      %v1863 = vmax.f32 %v1719, 0.0
      %v1864 = vmax.f32 %v1720, 0.0
      %v1865 = vmax.f32 %v1721, 0.0
      %v1866 = vmax.f32 %v1722, 0.0
      %v1867 = vmax.f32 %v1723, 0.0
      %v1868 = vmax.f32 %v1724, 0.0
      %v1869 = vmax.f32 %v1725, 0.0
      %v1870 = vmax.f32 %v1726, 0.0
      %v1871 = vmax.f32 %v1727, 0.0
      %v1872 = vmax.f32 %v1728, 0.0
      %v1873 = vmax.f32 %v1729, 0.0
      %v1874 = vmax.f32 %v1730, 0.0
      %v1875 = vmax.f32 %v1731, 0.0
      %v1876 = vmax.f32 %v1732, 0.0
      %v1877 = vmax.f32 %v1733, 0.0
      %v1878 = vmax.f32 %v1734, 0.0
      %v1879 = vmax.f32 %v1735, 0.0
      %v1880 = vmax.f32 %v1736, 0.0
      %v1881 = vmax.f32 %v1737, 0.0
      %v1882 = vmax.f32 %v1738, 0.0
      %v1883 = vmax.f32 %v1739, 0.0
      %v1884 = vmax.f32 %v1740, 0.0
      %v1885 = vmax.f32 %v1741, 0.0
      %v1886 = vmax.f32 %v1742, 0.0
      %v1887 = vmax.f32 %v1743, 0.0
      %v1888 = vmax.f32 %v1744, 0.0
      %v1889 = vmax.f32 %v1745, 0.0
      %v1890 = vmax.f32 %v1746, 0.0
      %v1891 = vmax.f32 %v1747, 0.0
      %v1892 = vmax.f32 %v1748, 0.0
      %v1893 = vmax.f32 %v1749, 0.0
      %v1894 = vmax.f32 %v1750, 0.0
      %v1895 = vmax.f32 %v1751, 0.0
      %v1896 = vmax.f32 %v1752, 0.0
      %v1897 = vmax.f32 %v1753, 0.0
      %v1898 = vmax.f32 %v1754, 0.0
      %v1899 = vmax.f32 %v1755, 0.0
      %v1900 = vmax.f32 %v1756, 0.0
      %v1901 = vmax.f32 %v1757, 0.0
      %v1902 = vmax.f32 %v1758, 0.0
      %v1903 = vmax.f32 %v1759, 0.0
      %v1904 = vmax.f32 %v1760, 0.0
      %v1905 = vmax.f32 %v1761, 0.0
      %v1906 = vmax.f32 %v1762, 0.0
      %v1907 = vmax.f32 %v1763, 0.0
      %v1908 = vmax.f32 %v1764, 0.0
      %v1909 = vmax.f32 %v1765, 0.0
      %v1910 = vmax.f32 %v1766, 0.0
      %v1911 = vmax.f32 %v1767, 0.0
      %v1912 = vmax.f32 %v1768, 0.0
      %v1913 = vmax.f32 %v1769, 0.0
      %v1914 = vmax.f32 %v1770, 0.0
      %v1915 = vmax.f32 %v1771, 0.0
      %v1916 = vmax.f32 %v1772, 0.0
      %v1917 = vmax.f32 %v1773, 0.0
      %v1918 = vmax.f32 %v1774, 0.0
      %v1919 = vmax.f32 %v1775, 0.0
      %v1920 = vmax.f32 %v1776, 0.0
      %v1921 = vmax.f32 %v1777, 0.0
      %v1922 = vmax.f32 %v1778, 0.0
      %v1923 = vmax.f32 %v1779, 0.0
      %v1924 = vmax.f32 %v1780, 0.0
      %v1925 = vmax.f32 %v1781, 0.0
      %v1926 = vmax.f32 %v1782, 0.0
      %v1927 = vmax.f32 %v1783, 0.0
      %v1928 = vmax.f32 %v1784, 0.0
      %v1929 = vmax.f32 %v1785, 0.0
      %v1930 = vmax.f32 %v1786, 0.0
      %v1931 = vmax.f32 %v1787, 0.0
      %v1932 = vmax.f32 %v1788, 0.0
      %v1933 = vmax.f32 %v1789, 0.0
      %v1934 = vmax.f32 %v1790, 0.0
      %v1935 = vmax.f32 %v1791, 0.0
      %v1936 = vmax.f32 %v1792, 0.0
      %v1937 = vmax.f32 %v1793, 0.0
      %v1938 = vmax.f32 %v1794, 0.0
      %v1939 = vmax.f32 %v1795, 0.0
      %v1940 = vmax.f32 %v1796, 0.0
      %v1941 = vmax.f32 %v1797, 0.0
      %v1942 = vmax.f32 %v1798, 0.0
      %v1943 = vmax.f32 %v1799, 0.0
      %v1944 = vmax.f32 %v1800, 0.0
      %v1945 = vmax.f32 %v1801, 0.0
      %v1946 = vmax.f32 %v1802, 0.0
      %v1947 = vmax.f32 %v1803, 0.0
      %v1948 = vmax.f32 %v1804, 0.0
      %v1949 = vmax.f32 %v1805, 0.0
      %v1950 = vmax.f32 %v1806, 0.0
      %v1951 = vmax.f32 %v1807, 0.0
      %v1952 = vmax.f32 %v1808, 0.0
      %v1953 = vmax.f32 %v1809, 0.0
      %v1954 = vmax.f32 %v1810, 0.0
      %v1955 = vmax.f32 %v1811, 0.0
      %v1956 = vmax.f32 %v1812, 0.0
      %v1957 = vmax.f32 %v1813, 0.0
      %v1958 = vmax.f32 %v1814, 0.0
      %v1959 = vmax.f32 %v1815, 0.0
      %v1960 = vmax.f32 %v1816, 0.0
      %v1961 = vmax.f32 %v1817, 0.0
      %v1962 = vmax.f32 %v1818, 0.0
      %v1963 = vmax.f32 %v1819, 0.0
      %v1964 = vmax.f32 %v1820, 0.0
      %v1965 = vmax.f32 %v1821, 0.0
      %v1966 = vmax.f32 %v1822, 0.0
      %v1967 = vmax.f32 %v1823, 0.0
      %v1968 = vmax.f32 %v1824, 0.0
      %v1969 = vmax.f32 %v1825, 0.0
      %v1970 = vmax.f32 %v1826, 0.0
      %v1971 = vmax.f32 %v1827, 0.0
      %v1972 = vmax.f32 %v1828, 0.0
      %v1973 = vmax.f32 %v1829, 0.0
      %v1974 = vmax.f32 %v1830, 0.0
      %v1975 = vmax.f32 %v1831, 0.0
      %v1976 = vmax.f32 %v1832, 0.0
      %v1977 = vmax.f32 %v1833, 0.0
      %v1978 = vmax.f32 %v1834, 0.0
      %v1979 = vmax.f32 %v1835, 0.0
      %v1980 = vmax.f32 %v1836, 0.0
      %v1981 = vmax.f32 %v1837, 0.0
      %v1982 = vmax.f32 %v1838, 0.0
      %v1983 = vmax.f32 %v1839, 0.0
      %v1984 = vmax.f32 %v1840, 0.0
      %v1985 = vmax.f32 %v1841, 0.0
      %v1986 = vmax.f32 %v1842, %v1845
      %v1987 = vmax.f32 %v1843, %v1846
      %v1988 = vmax.f32 %v1844, %v1847
      %v1989 = vmax.f32 %v1848, %v1851
      %v1990 = vmax.f32 %v1849, %v1852
      %v1991 = vmax.f32 %v1850, %v1853
      %v1992 = vmax.f32 %v1854, %v1857
      %v1993 = vmax.f32 %v1855, %v1858
      %v1994 = vmax.f32 %v1856, %v1859
      %v1995 = vmax.f32 %v1860, %v1863
      %v1996 = vmax.f32 %v1861, %v1864
      %v1997 = vmax.f32 %v1862, %v1865
      %v1998 = vmax.f32 %v1866, %v1869
      %v1999 = vmax.f32 %v1867, %v1870
      %v2000 = vmax.f32 %v1868, %v1871
      %v2001 = vmax.f32 %v1872, %v1875
      %v2002 = vmax.f32 %v1873, %v1876
      %v2003 = vmax.f32 %v1874, %v1877
      %v2004 = vmax.f32 %v1878, %v1881
      %v2005 = vmax.f32 %v1879, %v1882
      %v2006 = vmax.f32 %v1880, %v1883
      %v2007 = vmax.f32 %v1884, %v1887
      %v2008 = vmax.f32 %v1885, %v1888
      %v2009 = vmax.f32 %v1886, %v1889
      %v2010 = vmax.f32 %v1890, %v1893
      %v2011 = vmax.f32 %v1891, %v1894
      %v2012 = vmax.f32 %v1892, %v1895
      %v2013 = vmax.f32 %v1896, %v1899
      %v2014 = vmax.f32 %v1897, %v1900
      %v2015 = vmax.f32 %v1898, %v1901
      %v2016 = vmax.f32 %v1902, %v1905
      %v2017 = vmax.f32 %v1903, %v1906
      %v2018 = vmax.f32 %v1904, %v1907
      %v2019 = vmax.f32 %v1908, %v1911
      %v2020 = vmax.f32 %v1909, %v1912
      %v2021 = vmax.f32 %v1910, %v1913
      %v2022 = vmax.f32 %v1914, %v1917
      %v2023 = vmax.f32 %v1915, %v1918
      %v2024 = vmax.f32 %v1916, %v1919
      %v2025 = vmax.f32 %v1920, %v1923
      %v2026 = vmax.f32 %v1921, %v1924
      %v2027 = vmax.f32 %v1922, %v1925
      %v2028 = vmax.f32 %v1926, %v1929
      %v2029 = vmax.f32 %v1927, %v1930
      %v2030 = vmax.f32 %v1928, %v1931
      %v2031 = vmax.f32 %v1932, %v1935
      %v2032 = vmax.f32 %v1933, %v1936
      %v2033 = vmax.f32 %v1934, %v1937
      %v2034 = vmax.f32 %v1938, %v1941
      %v2035 = vmax.f32 %v1939, %v1942
      %v2036 = vmax.f32 %v1940, %v1943
      %v2037 = vmax.f32 %v1944, %v1947
      %v2038 = vmax.f32 %v1945, %v1948
      %v2039 = vmax.f32 %v1946, %v1949
      %v2040 = vmax.f32 %v1950, %v1953
      %v2041 = vmax.f32 %v1951, %v1954
      %v2042 = vmax.f32 %v1952, %v1955
      %v2043 = vmax.f32 %v1956, %v1959
      %v2044 = vmax.f32 %v1957, %v1960
      %v2045 = vmax.f32 %v1958, %v1961
      %v2046 = vmax.f32 %v1962, %v1965
      %v2047 = vmax.f32 %v1963, %v1966
      %v2048 = vmax.f32 %v1964, %v1967
      %v2049 = vmax.f32 %v1968, %v1971
      %v2050 = vmax.f32 %v1969, %v1972
      %v2051 = vmax.f32 %v1970, %v1973
      %v2052 = vmax.f32 %v1974, %v1977
      %v2053 = vmax.f32 %v1975, %v1978
      %v2054 = vmax.f32 %v1976, %v1979
      %v2055 = vmax.f32 %v1980, %v1983
      %v2056 = vmax.f32 %v1981, %v1984
      %v2057 = vmax.f32 %v1982, %v1985
      %2130 = vrot.lane.b32.xlu0 %v1986, 96
      %v2131 = vpop.permute.xlu0 %2130
      %2132 = vrot.lane.b32.xlu0 %v1987, 96
      %v2133 = vpop.permute.xlu0 %2132
      %2134 = vrot.lane.b32.xlu0 %v1988, 96
      %v2135 = vpop.permute.xlu0 %2134
      %2136 = vrot.lane.b32.xlu0 %v1989, 96
      %v2137 = vpop.permute.xlu0 %2136
      %2138 = vrot.lane.b32.xlu0 %v1990, 96
      %v2139 = vpop.permute.xlu0 %2138
      %2140 = vrot.lane.b32.xlu0 %v1991, 96
      %v2141 = vpop.permute.xlu0 %2140
      %2142 = vrot.lane.b32.xlu0 %v1992, 96
      %v2143 = vpop.permute.xlu0 %2142
      %2144 = vrot.lane.b32.xlu0 %v1993, 96
      %v2145 = vpop.permute.xlu0 %2144
      %2146 = vrot.lane.b32.xlu0 %v1994, 96
      %v2147 = vpop.permute.xlu0 %2146
      %2148 = vrot.lane.b32.xlu0 %v1995, 96
      %v2149 = vpop.permute.xlu0 %2148
      %2150 = vrot.lane.b32.xlu0 %v1996, 96
      %v2151 = vpop.permute.xlu0 %2150
      %2152 = vrot.lane.b32.xlu0 %v1997, 96
      %v2153 = vpop.permute.xlu0 %2152
      %2154 = vrot.lane.b32.xlu0 %v1998, 96
      %v2155 = vpop.permute.xlu0 %2154
      %2156 = vrot.lane.b32.xlu0 %v1999, 96
      %v2157 = vpop.permute.xlu0 %2156
      %2158 = vrot.lane.b32.xlu0 %v2000, 96
      %v2159 = vpop.permute.xlu0 %2158
      %2160 = vrot.lane.b32.xlu0 %v2001, 96
      %v2161 = vpop.permute.xlu0 %2160
      %2162 = vrot.lane.b32.xlu0 %v2002, 96
      %v2163 = vpop.permute.xlu0 %2162
      %2164 = vrot.lane.b32.xlu0 %v2003, 96
      %v2165 = vpop.permute.xlu0 %2164
      %2166 = vrot.lane.b32.xlu0 %v2004, 96
      %v2167 = vpop.permute.xlu0 %2166
      %2168 = vrot.lane.b32.xlu0 %v2005, 96
      %v2169 = vpop.permute.xlu0 %2168
      %2170 = vrot.lane.b32.xlu0 %v2006, 96
      %v2171 = vpop.permute.xlu0 %2170
      %2172 = vrot.lane.b32.xlu0 %v2007, 96
      %v2173 = vpop.permute.xlu0 %2172
      %2174 = vrot.lane.b32.xlu0 %v2008, 96
      %v2175 = vpop.permute.xlu0 %2174
      %2176 = vrot.lane.b32.xlu0 %v2009, 96
      %v2177 = vpop.permute.xlu0 %2176
      %2178 = vrot.lane.b32.xlu0 %v2010, 96
      %v2179 = vpop.permute.xlu0 %2178
      %2180 = vrot.lane.b32.xlu0 %v2011, 96
      %v2181 = vpop.permute.xlu0 %2180
      %2182 = vrot.lane.b32.xlu0 %v2012, 96
      %v2183 = vpop.permute.xlu0 %2182
      %2184 = vrot.lane.b32.xlu0 %v2013, 96
      %v2185 = vpop.permute.xlu0 %2184
      %2186 = vrot.lane.b32.xlu0 %v2014, 96
      %v2187 = vpop.permute.xlu0 %2186
      %2188 = vrot.lane.b32.xlu0 %v2015, 96
      %v2189 = vpop.permute.xlu0 %2188
      %2190 = vrot.lane.b32.xlu0 %v2016, 96
      %v2191 = vpop.permute.xlu0 %2190
      %2192 = vrot.lane.b32.xlu0 %v2017, 96
      %v2193 = vpop.permute.xlu0 %2192
      %2194 = vrot.lane.b32.xlu0 %v2018, 96
      %v2195 = vpop.permute.xlu0 %2194
      %2196 = vrot.lane.b32.xlu0 %v2019, 96
      %v2197 = vpop.permute.xlu0 %2196
      %2198 = vrot.lane.b32.xlu0 %v2020, 96
      %v2199 = vpop.permute.xlu0 %2198
      %2200 = vrot.lane.b32.xlu0 %v2021, 96
      %v2201 = vpop.permute.xlu0 %2200
      %2202 = vrot.lane.b32.xlu0 %v2022, 96
      %v2203 = vpop.permute.xlu0 %2202
      %2204 = vrot.lane.b32.xlu0 %v2023, 96
      %v2205 = vpop.permute.xlu0 %2204
      %2206 = vrot.lane.b32.xlu0 %v2024, 96
      %v2207 = vpop.permute.xlu0 %2206
      %2208 = vrot.lane.b32.xlu0 %v2025, 96
      %v2209 = vpop.permute.xlu0 %2208
      %2210 = vrot.lane.b32.xlu0 %v2026, 96
      %v2211 = vpop.permute.xlu0 %2210
      %2212 = vrot.lane.b32.xlu0 %v2027, 96
      %v2213 = vpop.permute.xlu0 %2212
      %2214 = vrot.lane.b32.xlu0 %v2028, 96
      %v2215 = vpop.permute.xlu0 %2214
      %2216 = vrot.lane.b32.xlu0 %v2029, 96
      %v2217 = vpop.permute.xlu0 %2216
      %2218 = vrot.lane.b32.xlu0 %v2030, 96
      %v2219 = vpop.permute.xlu0 %2218
      %2220 = vrot.lane.b32.xlu0 %v2031, 96
      %v2221 = vpop.permute.xlu0 %2220
      %2222 = vrot.lane.b32.xlu0 %v2032, 96
      %v2223 = vpop.permute.xlu0 %2222
      %2224 = vrot.lane.b32.xlu0 %v2033, 96
      %v2225 = vpop.permute.xlu0 %2224
      %2226 = vrot.lane.b32.xlu0 %v2034, 96
      %v2227 = vpop.permute.xlu0 %2226
      %2228 = vrot.lane.b32.xlu0 %v2035, 96
      %v2229 = vpop.permute.xlu0 %2228
      %2230 = vrot.lane.b32.xlu0 %v2036, 96
      %v2231 = vpop.permute.xlu0 %2230
      %2232 = vrot.lane.b32.xlu0 %v2037, 96
      %v2233 = vpop.permute.xlu0 %2232
      %2234 = vrot.lane.b32.xlu0 %v2038, 96
      %v2235 = vpop.permute.xlu0 %2234
      %2236 = vrot.lane.b32.xlu0 %v2039, 96
      %v2237 = vpop.permute.xlu0 %2236
      %2238 = vrot.lane.b32.xlu0 %v2040, 96
      %v2239 = vpop.permute.xlu0 %2238
      %2240 = vrot.lane.b32.xlu0 %v2041, 96
      %v2241 = vpop.permute.xlu0 %2240
      %2242 = vrot.lane.b32.xlu0 %v2042, 96
      %v2243 = vpop.permute.xlu0 %2242
      %2244 = vrot.lane.b32.xlu0 %v2043, 96
      %v2245 = vpop.permute.xlu0 %2244
      %2246 = vrot.lane.b32.xlu0 %v2044, 96
      %v2247 = vpop.permute.xlu0 %2246
      %2248 = vrot.lane.b32.xlu0 %v2045, 96
      %v2249 = vpop.permute.xlu0 %2248
      %2250 = vrot.lane.b32.xlu0 %v2046, 96
      %v2251 = vpop.permute.xlu0 %2250
      %2252 = vrot.lane.b32.xlu0 %v2047, 96
      %v2253 = vpop.permute.xlu0 %2252
      %2254 = vrot.lane.b32.xlu0 %v2048, 96
      %v2255 = vpop.permute.xlu0 %2254
      %2256 = vrot.lane.b32.xlu0 %v2049, 96
      %v2257 = vpop.permute.xlu0 %2256
      %2258 = vrot.lane.b32.xlu0 %v2050, 96
      %v2259 = vpop.permute.xlu0 %2258
      %2260 = vrot.lane.b32.xlu0 %v2051, 96
      %v2261 = vpop.permute.xlu0 %2260
      %2262 = vrot.lane.b32.xlu0 %v2052, 96
      %v2263 = vpop.permute.xlu0 %2262
      %2264 = vrot.lane.b32.xlu0 %v2053, 96
      %v2265 = vpop.permute.xlu0 %2264
      %2266 = vrot.lane.b32.xlu0 %v2054, 96
      %v2267 = vpop.permute.xlu0 %2266
      %2268 = vrot.lane.b32.xlu0 %v2055, 96
      %v2269 = vpop.permute.xlu0 %2268
      %2270 = vrot.lane.b32.xlu0 %v2056, 96
      %v2271 = vpop.permute.xlu0 %2270
      %2272 = vrot.lane.b32.xlu0 %v2057, 96
      %v2273 = vpop.permute.xlu0 %2272
      %v2346 = vmax.f32 %v1986, %v2131
      %v2347 = vmax.f32 %v1987, %v2133
      %v2348 = vmax.f32 %v1988, %v2135
      %v2349 = vmax.f32 %v1989, %v2137
      %v2350 = vmax.f32 %v1990, %v2139
      %v2351 = vmax.f32 %v1991, %v2141
      %v2352 = vmax.f32 %v1992, %v2143
      %v2353 = vmax.f32 %v1993, %v2145
      %v2354 = vmax.f32 %v1994, %v2147
      %v2355 = vmax.f32 %v1995, %v2149
      %v2356 = vmax.f32 %v1996, %v2151
      %v2357 = vmax.f32 %v1997, %v2153
      %v2358 = vmax.f32 %v1998, %v2155
      %v2359 = vmax.f32 %v1999, %v2157
      %v2360 = vmax.f32 %v2000, %v2159
      %v2361 = vmax.f32 %v2001, %v2161
      %v2362 = vmax.f32 %v2002, %v2163
      %v2363 = vmax.f32 %v2003, %v2165
      %v2364 = vmax.f32 %v2004, %v2167
      %v2365 = vmax.f32 %v2005, %v2169
      %v2366 = vmax.f32 %v2006, %v2171
      %v2367 = vmax.f32 %v2007, %v2173
      %v2368 = vmax.f32 %v2008, %v2175
      %v2369 = vmax.f32 %v2009, %v2177
      %v2370 = vmax.f32 %v2010, %v2179
      %v2371 = vmax.f32 %v2011, %v2181
      %v2372 = vmax.f32 %v2012, %v2183
      %v2373 = vmax.f32 %v2013, %v2185
      %v2374 = vmax.f32 %v2014, %v2187
      %v2375 = vmax.f32 %v2015, %v2189
      %v2376 = vmax.f32 %v2016, %v2191
      %v2377 = vmax.f32 %v2017, %v2193
      %v2378 = vmax.f32 %v2018, %v2195
      %v2379 = vmax.f32 %v2019, %v2197
      %v2380 = vmax.f32 %v2020, %v2199
      %v2381 = vmax.f32 %v2021, %v2201
      %v2382 = vmax.f32 %v2022, %v2203
      %v2383 = vmax.f32 %v2023, %v2205
      %v2384 = vmax.f32 %v2024, %v2207
      %v2385 = vmax.f32 %v2025, %v2209
      %v2386 = vmax.f32 %v2026, %v2211
      %v2387 = vmax.f32 %v2027, %v2213
      %v2388 = vmax.f32 %v2028, %v2215
      %v2389 = vmax.f32 %v2029, %v2217
      %v2390 = vmax.f32 %v2030, %v2219
      %v2391 = vmax.f32 %v2031, %v2221
      %v2392 = vmax.f32 %v2032, %v2223
      %v2393 = vmax.f32 %v2033, %v2225
      %v2394 = vmax.f32 %v2034, %v2227
      %v2395 = vmax.f32 %v2035, %v2229
      %v2396 = vmax.f32 %v2036, %v2231
      %v2397 = vmax.f32 %v2037, %v2233
      %v2398 = vmax.f32 %v2038, %v2235
      %v2399 = vmax.f32 %v2039, %v2237
      %v2400 = vmax.f32 %v2040, %v2239
      %v2401 = vmax.f32 %v2041, %v2241
      %v2402 = vmax.f32 %v2042, %v2243
      %v2403 = vmax.f32 %v2043, %v2245
      %v2404 = vmax.f32 %v2044, %v2247
      %v2405 = vmax.f32 %v2045, %v2249
      %v2406 = vmax.f32 %v2046, %v2251
      %v2407 = vmax.f32 %v2047, %v2253
      %v2408 = vmax.f32 %v2048, %v2255
      %v2409 = vmax.f32 %v2049, %v2257
      %v2410 = vmax.f32 %v2050, %v2259
      %v2411 = vmax.f32 %v2051, %v2261
      %v2412 = vmax.f32 %v2052, %v2263
      %v2413 = vmax.f32 %v2053, %v2265
      %v2414 = vmax.f32 %v2054, %v2267
      %v2415 = vmax.f32 %v2055, %v2269
      %v2416 = vmax.f32 %v2056, %v2271
      %v2417 = vmax.f32 %v2057, %v2273
      %v2418 = vpack.c.bf16 %v2347, %v2346
      %v2419 = vpack.c.bf16 %v2348, %v2348
      %v2420 = vpack.c.bf16 %v2350, %v2349
      %v2421 = vpack.c.bf16 %v2351, %v2351
      %v2422 = vpack.c.bf16 %v2353, %v2352
      %v2423 = vpack.c.bf16 %v2354, %v2354
      %v2424 = vpack.c.bf16 %v2356, %v2355
      %v2425 = vpack.c.bf16 %v2357, %v2357
      %v2426 = vpack.c.bf16 %v2359, %v2358
      %v2427 = vpack.c.bf16 %v2360, %v2360
      %v2428 = vpack.c.bf16 %v2362, %v2361
      %v2429 = vpack.c.bf16 %v2363, %v2363
      %v2430 = vpack.c.bf16 %v2365, %v2364
      %v2431 = vpack.c.bf16 %v2366, %v2366
      %v2432 = vpack.c.bf16 %v2368, %v2367
      %v2433 = vpack.c.bf16 %v2369, %v2369
      %v2434 = vpack.c.bf16 %v2371, %v2370
      %v2435 = vpack.c.bf16 %v2372, %v2372
      %v2436 = vpack.c.bf16 %v2374, %v2373
      %v2437 = vpack.c.bf16 %v2375, %v2375
      %v2438 = vpack.c.bf16 %v2377, %v2376
      %v2439 = vpack.c.bf16 %v2378, %v2378
      %v2440 = vpack.c.bf16 %v2380, %v2379
      %v2441 = vpack.c.bf16 %v2381, %v2381
      %v2442 = vpack.c.bf16 %v2383, %v2382
      %v2443 = vpack.c.bf16 %v2384, %v2384
      %v2444 = vpack.c.bf16 %v2386, %v2385
      %v2445 = vpack.c.bf16 %v2387, %v2387
      %v2446 = vpack.c.bf16 %v2389, %v2388
      %v2447 = vpack.c.bf16 %v2390, %v2390
      %v2448 = vpack.c.bf16 %v2392, %v2391
      %v2449 = vpack.c.bf16 %v2393, %v2393
      %v2450 = vpack.c.bf16 %v2395, %v2394
      %v2451 = vpack.c.bf16 %v2396, %v2396
      %v2452 = vpack.c.bf16 %v2398, %v2397
      %v2453 = vpack.c.bf16 %v2399, %v2399
      %v2454 = vpack.c.bf16 %v2401, %v2400
      %v2455 = vpack.c.bf16 %v2402, %v2402
      %v2456 = vpack.c.bf16 %v2404, %v2403
      %v2457 = vpack.c.bf16 %v2405, %v2405
      %v2458 = vpack.c.bf16 %v2407, %v2406
      %v2459 = vpack.c.bf16 %v2408, %v2408
      %v2460 = vpack.c.bf16 %v2410, %v2409
      %v2461 = vpack.c.bf16 %v2411, %v2411
      %v2462 = vpack.c.bf16 %v2413, %v2412
      %v2463 = vpack.c.bf16 %v2414, %v2414
      %v2464 = vpack.c.bf16 %v2416, %v2415
      %v2465 = vpack.c.bf16 %v2417, %v2417
      %v2514 = vunpack.c.l.b16 %v2418
      %v2515 = vunpack.c.h.b16 %v2418
      %v2516 = vunpack.c.l.b16 %v2419
      %v2517 = vunpack.c.l.b16 %v2420
      %v2518 = vunpack.c.h.b16 %v2420
      %v2519 = vunpack.c.l.b16 %v2421
      %v2520 = vunpack.c.l.b16 %v2422
      %v2521 = vunpack.c.h.b16 %v2422
      %v2522 = vunpack.c.l.b16 %v2423
      %v2523 = vunpack.c.l.b16 %v2424
      %v2524 = vunpack.c.h.b16 %v2424
      %v2525 = vunpack.c.l.b16 %v2425
      %v2526 = vunpack.c.l.b16 %v2426
      %v2527 = vunpack.c.h.b16 %v2426
      %v2528 = vunpack.c.l.b16 %v2427
      %v2529 = vunpack.c.l.b16 %v2428
      %v2530 = vunpack.c.h.b16 %v2428
      %v2531 = vunpack.c.l.b16 %v2429
      %v2532 = vunpack.c.l.b16 %v2430
      %v2533 = vunpack.c.h.b16 %v2430
      %v2534 = vunpack.c.l.b16 %v2431
      %v2535 = vunpack.c.l.b16 %v2432
      %v2536 = vunpack.c.h.b16 %v2432
      %v2537 = vunpack.c.l.b16 %v2433
      %v2538 = vunpack.c.l.b16 %v2434
      %v2539 = vunpack.c.h.b16 %v2434
      %v2540 = vunpack.c.l.b16 %v2435
      %v2541 = vunpack.c.l.b16 %v2436
      %v2542 = vunpack.c.h.b16 %v2436
      %v2543 = vunpack.c.l.b16 %v2437
      %v2544 = vunpack.c.l.b16 %v2438
      %v2545 = vunpack.c.h.b16 %v2438
      %v2546 = vunpack.c.l.b16 %v2439
      %v2547 = vunpack.c.l.b16 %v2440
      %v2548 = vunpack.c.h.b16 %v2440
      %v2549 = vunpack.c.l.b16 %v2441
      %v2550 = vunpack.c.l.b16 %v2442
      %v2551 = vunpack.c.h.b16 %v2442
      %v2552 = vunpack.c.l.b16 %v2443
      %v2553 = vunpack.c.l.b16 %v2444
      %v2554 = vunpack.c.h.b16 %v2444
      %v2555 = vunpack.c.l.b16 %v2445
      %v2556 = vunpack.c.l.b16 %v2446
      %v2557 = vunpack.c.h.b16 %v2446
      %v2558 = vunpack.c.l.b16 %v2447
      %v2559 = vunpack.c.l.b16 %v2448
      %v2560 = vunpack.c.h.b16 %v2448
      %v2561 = vunpack.c.l.b16 %v2449
      %v2562 = vunpack.c.l.b16 %v2450
      %v2563 = vunpack.c.h.b16 %v2450
      %v2564 = vunpack.c.l.b16 %v2451
      %v2565 = vunpack.c.l.b16 %v2452
      %v2566 = vunpack.c.h.b16 %v2452
      %v2567 = vunpack.c.l.b16 %v2453
      %v2568 = vunpack.c.l.b16 %v2454
      %v2569 = vunpack.c.h.b16 %v2454
      %v2570 = vunpack.c.l.b16 %v2455
      %v2571 = vunpack.c.l.b16 %v2456
      %v2572 = vunpack.c.h.b16 %v2456
      %v2573 = vunpack.c.l.b16 %v2457
      %v2574 = vunpack.c.l.b16 %v2458
      %v2575 = vunpack.c.h.b16 %v2458
      %v2576 = vunpack.c.l.b16 %v2459
      %v2577 = vunpack.c.l.b16 %v2460
      %v2578 = vunpack.c.h.b16 %v2460
      %v2579 = vunpack.c.l.b16 %v2461
      %v2580 = vunpack.c.l.b16 %v2462
      %v2581 = vunpack.c.h.b16 %v2462
      %v2582 = vunpack.c.l.b16 %v2463
      %v2583 = vunpack.c.l.b16 %v2464
      %v2584 = vunpack.c.h.b16 %v2464
      %v2585 = vunpack.c.l.b16 %v2465
      %v2586 = vpack.c.b16 %v2514, %v2514
      %v2587 = vpack.c.b16 %v2515, %v2515
      %v2588 = vpack.c.b16 %v2516, %v2516
      %v2589 = vpack.c.b16 %v2517, %v2517
      %v2590 = vpack.c.b16 %v2518, %v2518
      %v2591 = vpack.c.b16 %v2519, %v2519
      %v2592 = vpack.c.b16 %v2520, %v2520
      %v2593 = vpack.c.b16 %v2521, %v2521
      %v2594 = vpack.c.b16 %v2522, %v2522
      %v2595 = vpack.c.b16 %v2523, %v2523
      %v2596 = vpack.c.b16 %v2524, %v2524
      %v2597 = vpack.c.b16 %v2525, %v2525
      %v2598 = vpack.c.b16 %v2526, %v2526
      %v2599 = vpack.c.b16 %v2527, %v2527
      %v2600 = vpack.c.b16 %v2528, %v2528
      %v2601 = vpack.c.b16 %v2529, %v2529
      %v2602 = vpack.c.b16 %v2530, %v2530
      %v2603 = vpack.c.b16 %v2531, %v2531
      %v2604 = vpack.c.b16 %v2532, %v2532
      %v2605 = vpack.c.b16 %v2533, %v2533
      %v2606 = vpack.c.b16 %v2534, %v2534
      %v2607 = vpack.c.b16 %v2535, %v2535
      %v2608 = vpack.c.b16 %v2536, %v2536
      %v2609 = vpack.c.b16 %v2537, %v2537
      %v2610 = vpack.c.b16 %v2538, %v2538
      %v2611 = vpack.c.b16 %v2539, %v2539
      %v2612 = vpack.c.b16 %v2540, %v2540
      %v2613 = vpack.c.b16 %v2541, %v2541
      %v2614 = vpack.c.b16 %v2542, %v2542
      %v2615 = vpack.c.b16 %v2543, %v2543
      %v2616 = vpack.c.b16 %v2544, %v2544
      %v2617 = vpack.c.b16 %v2545, %v2545
      %v2618 = vpack.c.b16 %v2546, %v2546
      %v2619 = vpack.c.b16 %v2547, %v2547
      %v2620 = vpack.c.b16 %v2548, %v2548
      %v2621 = vpack.c.b16 %v2549, %v2549
      %v2622 = vpack.c.b16 %v2550, %v2550
      %v2623 = vpack.c.b16 %v2551, %v2551
      %v2624 = vpack.c.b16 %v2552, %v2552
      %v2625 = vpack.c.b16 %v2553, %v2553
      %v2626 = vpack.c.b16 %v2554, %v2554
      %v2627 = vpack.c.b16 %v2555, %v2555
      %v2628 = vpack.c.b16 %v2556, %v2556
      %v2629 = vpack.c.b16 %v2557, %v2557
      %v2630 = vpack.c.b16 %v2558, %v2558
      %v2631 = vpack.c.b16 %v2559, %v2559
      %v2632 = vpack.c.b16 %v2560, %v2560
      %v2633 = vpack.c.b16 %v2561, %v2561
      %v2634 = vpack.c.b16 %v2562, %v2562
      %v2635 = vpack.c.b16 %v2563, %v2563
      %v2636 = vpack.c.b16 %v2564, %v2564
      %v2637 = vpack.c.b16 %v2565, %v2565
      %v2638 = vpack.c.b16 %v2566, %v2566
      %v2639 = vpack.c.b16 %v2567, %v2567
      %v2640 = vpack.c.b16 %v2568, %v2568
      %v2641 = vpack.c.b16 %v2569, %v2569
      %v2642 = vpack.c.b16 %v2570, %v2570
      %v2643 = vpack.c.b16 %v2571, %v2571
      %v2644 = vpack.c.b16 %v2572, %v2572
      %v2645 = vpack.c.b16 %v2573, %v2573
      %v2646 = vpack.c.b16 %v2574, %v2574
      %v2647 = vpack.c.b16 %v2575, %v2575
      %v2648 = vpack.c.b16 %v2576, %v2576
      %v2649 = vpack.c.b16 %v2577, %v2577
      %v2650 = vpack.c.b16 %v2578, %v2578
      %v2651 = vpack.c.b16 %v2579, %v2579
      %v2652 = vpack.c.b16 %v2580, %v2580
      %v2653 = vpack.c.b16 %v2581, %v2581
      %v2654 = vpack.c.b16 %v2582, %v2582
      %v2655 = vpack.c.b16 %v2583, %v2583
      %v2656 = vpack.c.b16 %v2584, %v2584
      %v2657 = vpack.c.b16 %v2585, %v2585
      %vm2730 = vcmask 257024
      %2731 = vst.msk [vmem:[%s197] sm:$0xf] %vm2730, %v2586
      %2732 = vst.msk [vmem:[%s197 + $0x4] sm:$0xf] %vm2730, %v2587
      %2733 = vst.msk [vmem:[%s197 + $0x8] sm:$0xf] %vm2730, %v2588
      %2734 = vst.msk [vmem:[%s197 + $0xc] sm:$0xf] %vm2730, %v2589
      %2735 = vst.msk [vmem:[%s197 + $0x10] sm:$0xf] %vm2730, %v2590
      %2736 = vst.msk [vmem:[%s197 + $0x14] sm:$0xf] %vm2730, %v2591
      %2737 = vst.msk [vmem:[%s197 + $0x18] sm:$0xf] %vm2730, %v2592
      %2738 = vst.msk [vmem:[%s197 + $0x1c] sm:$0xf] %vm2730, %v2593
      %2739 = vst.msk [vmem:[%s197 + $0x20] sm:$0xf] %vm2730, %v2594
      %2740 = vst.msk [vmem:[%s197 + $0x24] sm:$0xf] %vm2730, %v2595
      %2741 = vst.msk [vmem:[%s197 + $0x28] sm:$0xf] %vm2730, %v2596
      %2742 = vst.msk [vmem:[%s197 + $0x2c] sm:$0xf] %vm2730, %v2597
      %2743 = vst.msk [vmem:[%s197 + $0x30] sm:$0xf] %vm2730, %v2598
      %2744 = vst.msk [vmem:[%s197 + $0x34] sm:$0xf] %vm2730, %v2599
      %2745 = vst.msk [vmem:[%s197 + $0x38] sm:$0xf] %vm2730, %v2600
      %2746 = vst.msk [vmem:[%s197 + $0x3c] sm:$0xf] %vm2730, %v2601
      %2747 = vst.msk [vmem:[%s197 + $0x40] sm:$0xf] %vm2730, %v2602
      %2748 = vst.msk [vmem:[%s197 + $0x44] sm:$0xf] %vm2730, %v2603
      %2749 = vst.msk [vmem:[%s197 + $0x48] sm:$0xf] %vm2730, %v2604
      %2750 = vst.msk [vmem:[%s197 + $0x4c] sm:$0xf] %vm2730, %v2605
      %2751 = vst.msk [vmem:[%s197 + $0x50] sm:$0xf] %vm2730, %v2606
      %2752 = vst.msk [vmem:[%s197 + $0x54] sm:$0xf] %vm2730, %v2607
      %2753 = vst.msk [vmem:[%s197 + $0x58] sm:$0xf] %vm2730, %v2608
      %2754 = vst.msk [vmem:[%s197 + $0x5c] sm:$0xf] %vm2730, %v2609
      %2755 = vst.msk [vmem:[%s197 + $0x60] sm:$0xf] %vm2730, %v2610
      %2756 = vst.msk [vmem:[%s197 + $0x64] sm:$0xf] %vm2730, %v2611
      %2757 = vst.msk [vmem:[%s197 + $0x68] sm:$0xf] %vm2730, %v2612
      %2758 = vst.msk [vmem:[%s197 + $0x6c] sm:$0xf] %vm2730, %v2613
      %2759 = vst.msk [vmem:[%s197 + $0x70] sm:$0xf] %vm2730, %v2614
      %2760 = vst.msk [vmem:[%s197 + $0x74] sm:$0xf] %vm2730, %v2615
      %2761 = vst.msk [vmem:[%s197 + $0x78] sm:$0xf] %vm2730, %v2616
      %2762 = vst.msk [vmem:[%s197 + $0x7c] sm:$0xf] %vm2730, %v2617
      %2763 = vst.msk [vmem:[%s197 + $0x80] sm:$0xf] %vm2730, %v2618
      %2764 = vst.msk [vmem:[%s197 + $0x84] sm:$0xf] %vm2730, %v2619
      %2765 = vst.msk [vmem:[%s197 + $0x88] sm:$0xf] %vm2730, %v2620
      %2766 = vst.msk [vmem:[%s197 + $0x8c] sm:$0xf] %vm2730, %v2621
      %2767 = vst.msk [vmem:[%s197 + $0x90] sm:$0xf] %vm2730, %v2622
      %2768 = vst.msk [vmem:[%s197 + $0x94] sm:$0xf] %vm2730, %v2623
      %2769 = vst.msk [vmem:[%s197 + $0x98] sm:$0xf] %vm2730, %v2624
      %2770 = vst.msk [vmem:[%s197 + $0x9c] sm:$0xf] %vm2730, %v2625
      %2771 = vst.msk [vmem:[%s197 + $0xa0] sm:$0xf] %vm2730, %v2626
      %2772 = vst.msk [vmem:[%s197 + $0xa4] sm:$0xf] %vm2730, %v2627
      %2773 = vst.msk [vmem:[%s197 + $0xa8] sm:$0xf] %vm2730, %v2628
      %2774 = vst.msk [vmem:[%s197 + $0xac] sm:$0xf] %vm2730, %v2629
      %2775 = vst.msk [vmem:[%s197 + $0xb0] sm:$0xf] %vm2730, %v2630
      %2776 = vst.msk [vmem:[%s197 + $0xb4] sm:$0xf] %vm2730, %v2631
      %2777 = vst.msk [vmem:[%s197 + $0xb8] sm:$0xf] %vm2730, %v2632
      %2778 = vst.msk [vmem:[%s197 + $0xbc] sm:$0xf] %vm2730, %v2633
      %2779 = vst.msk [vmem:[%s197 + $0xc0] sm:$0xf] %vm2730, %v2634
      %2780 = vst.msk [vmem:[%s197 + $0xc4] sm:$0xf] %vm2730, %v2635
      %2781 = vst.msk [vmem:[%s197 + $0xc8] sm:$0xf] %vm2730, %v2636
      %2782 = vst.msk [vmem:[%s197 + $0xcc] sm:$0xf] %vm2730, %v2637
      %2783 = vst.msk [vmem:[%s197 + $0xd0] sm:$0xf] %vm2730, %v2638
      %2784 = vst.msk [vmem:[%s197 + $0xd4] sm:$0xf] %vm2730, %v2639
      %2785 = vst.msk [vmem:[%s197 + $0xd8] sm:$0xf] %vm2730, %v2640
      %2786 = vst.msk [vmem:[%s197 + $0xdc] sm:$0xf] %vm2730, %v2641
      %2787 = vst.msk [vmem:[%s197 + $0xe0] sm:$0xf] %vm2730, %v2642
      %2788 = vst.msk [vmem:[%s197 + $0xe4] sm:$0xf] %vm2730, %v2643
      %2789 = vst.msk [vmem:[%s197 + $0xe8] sm:$0xf] %vm2730, %v2644
      %2790 = vst.msk [vmem:[%s197 + $0xec] sm:$0xf] %vm2730, %v2645
      %2791 = vst.msk [vmem:[%s197 + $0xf0] sm:$0xf] %vm2730, %v2646
      %2792 = vst.msk [vmem:[%s197 + $0xf4] sm:$0xf] %vm2730, %v2647
      %2793 = vst.msk [vmem:[%s197 + $0xf8] sm:$0xf] %vm2730, %v2648
      %2794 = vst.msk [vmem:[%s197 + $0xfc] sm:$0xf] %vm2730, %v2649
      %2795 = vst.msk [vmem:[%s197 + $0x100] sm:$0xf] %vm2730, %v2650
      %2796 = vst.msk [vmem:[%s197 + $0x104] sm:$0xf] %vm2730, %v2651
      %2797 = vst.msk [vmem:[%s197 + $0x108] sm:$0xf] %vm2730, %v2652
      %2798 = vst.msk [vmem:[%s197 + $0x10c] sm:$0xf] %vm2730, %v2653
      %2799 = vst.msk [vmem:[%s197 + $0x110] sm:$0xf] %vm2730, %v2654
      %2800 = vst.msk [vmem:[%s197 + $0x114] sm:$0xf] %vm2730, %v2655
      %2801 = vst.msk [vmem:[%s197 + $0x118] sm:$0xf] %vm2730, %v2656
      %2802 = vst.msk [vmem:[%s197 + $0x11c] sm:$0xf] %vm2730, %v2657
      %p2803 = scmp.lt.s32.totalorder %s15, 1
      %s2804 = scalar_select %p2803, %s15, 1
      %s2805 = smul.addr %s2804, 72
      %s2806 = smul.addr %s2805, 4
      %s2807 = scalar_lea.vmem %s4, %s2806
      // Predicated region
      $region37: #{cnn_forward.6} parent=35 // pred_check
        %p2808 = pneg %p122
      $region38: #{cnn_forward.6} parent=35 // pred_check_branch
        %2810 = sbr.rel (%p2808) target = $region40
      $region39: #{cnn_forward.6} parent=35 // pred_region
        _
      $region40: #{cnn_forward.6} parent=35 // pred_fallthru
        _
    $region36: #{cnn_forward.6} parent=5 // pred_fallthru
      _
    %p2811 = scmp.le.s32.totalorder 2, %s10
    // Predicated region
    $region41: #{cnn_forward.6} parent=5 // pred_check
      %p2812 = pneg %p2811
    $region42: #{cnn_forward.6} parent=5 // pred_check_branch
      %2814 = sbr.rel (%p2812) target = $region44
    $region43: #{cnn_forward.6} parent=5 // pred_region
      %s2815 = ssub.s32 %s10, 2
      // Predicated region
      $region45: #{cnn_forward.6} parent=43 // pred_check
        %p2816 = pneg %p128
      $region46: #{cnn_forward.6} parent=43 // pred_check_branch
        %2818 = sbr.rel (%p2816) target = $region48
      $region47: #{cnn_forward.6} parent=43 // pred_region
        %p2819 = scmp.lt.s32.totalorder %s16, 1
        %s2820 = scalar_select %p2819, %s16, 1
        %s2821 = smul.addr %s2820, 72
        %s2822 = smul.addr %s2821, 4
        %s2823 = scalar_lea.vmem %s4, %s2822
      $region48: #{cnn_forward.6} parent=43 // pred_fallthru
        _
    $region44: #{cnn_forward.6} parent=5 // pred_fallthru
      _
  $region6: #{cnn_forward.6} parent=0 // loop_footer
    %s14 = sadd.s32 1, %s10
  $region7: #{cnn_forward.6} parent=0 // loop_footer_branch
    %9 = sbr.rel target = $region3
  $region8: #{cnn_forward.6} parent=0 // loop_exit
    _

// kernel: cnn_forward.7
$region0: #{cnn_forward.7}
  #allocation0 [shape = 'u32[]', space=smem, size = 0x4, offset = 0x4, fixed_abs, tag = 'smem constant byte address 0x4 - core index']
  #allocation1 [shape = 'u32[144,128]{1,0:T(1,128)}', space=vmem, size = 0x12000, scoped, tag = 'internal scratch']
  %s0 = inlined_call_operand.vmem [shape: bf16[2,26,13,64], index: 0, kind: input, shape index: {}]
  %s1 = inlined_call_operand.vmem [shape: bf16[384,128], index: 1, kind: input, shape index: {}]
  %s2 = inlined_call_operand.vmem [shape: f32[1,128], index: 2, kind: input, shape index: {}]
  %s3 = inlined_call_operand.vmem [shape: f32[1,128], index: 3, kind: input, shape index: {}]
  %s4 = inlined_call_operand.vmem [shape: bf16[2,12,12,64], index: 4, kind: output, shape index: {}]
  %s5 = sld [smem:[#allocation0]]
  $region49: #{cnn_forward.7} parent=0
    _
  %s7 = ssub.s32 1, %s5
  %s8 = scalar_select 0, %s7, %s5
  loop: start=0, step=1, limit=4
  $region2: #{cnn_forward.7} parent=0 // loop_pre_header
    _
  $region3: #{cnn_forward.7} parent=0 // loop_header
    %s10 = sphi 0, %s14
    %p11 = scmp.ge.s32.totalorder %s10, 4
    %s20 = sphi 0, %s22
    %s23 = sphi 0, %s20
    %s24 = sphi 0, %s23
    %s40 = sphi 0, %s24
    %s44 = sphi 0, %s44
    %s46 = sphi 0, %s44
    %s47 = sphi 0, %s46
    %s61 = sphi 0, %s47
    %s65 = sphi 0, %s65
    %s67 = sphi 0, %s65
    %s68 = sphi 0, %s67
    %s82 = sphi 0, %s68
    %s86 = sphi 0, %s86
    %s88 = sphi 0, %s86
    %s89 = sphi 0, %s88
    %s103 = sphi 0, %s89
    %s109 = sphi 0, %s111
    %s112 = sphi 0, %s109
    %s113 = sphi 0, %s112
    %s129 = sphi 0, %s113
  $region4: #{cnn_forward.7} parent=0 // loop_header_branch
    %13 = sbr.rel (%p11) target = $region8
  $region5: #{cnn_forward.7} parent=0 // loop_body
    %s15 = ssub.s32 %s10, 1
    %s16 = ssub.s32 %s10, 2
    %s17 = sadd.s32 %s10, 1
    %s18 = ssub.s32 %s10, %s17
    %p19 = scmp.eq.s32.totalorder %s18, 0
    %s21 = sadd.s32 %s20, 1
    %s22 = scalar_select %p19, %s20, %s21
    %p25 = pneg %p19
    %p26 = scmp.eq.s32.totalorder %s10, 1
    %p27 = por %p25, %p26
    %p28 = scmp.ne.s32.totalorder %s20, %s23
    %p29 = scmp.eq.s32.totalorder %s10, 0
    %p30 = por %p28, %p29
    %p31 = scmp.ne.s32.totalorder %s20, %s23
    %p32 = scmp.eq.s32.totalorder %s15, 1
    %p33 = por %p31, %p32
    %p34 = scmp.ne.s32.totalorder %s23, %s24
    %p35 = scmp.eq.s32.totalorder %s15, 0
    %p36 = por %p34, %p35
    %p37 = scmp.ne.s32.totalorder %s23, %s24
    %p38 = scmp.eq.s32.totalorder %s16, 1
    %p39 = por %p37, %p38
    %p41 = scmp.ne.s32.totalorder %s24, %s40
    %p42 = scmp.eq.s32.totalorder %s16, 0
    %p43 = por %p41, %p42
    %s45 = sadd.s32 %s44, 1
    %p48 = scmp.eq.s32.totalorder %s10, 1
    %p49 = scmp.ne.s32.totalorder %s44, %s46
    %p50 = scmp.eq.s32.totalorder %s10, 0
    %p51 = por %p49, %p50
    %p52 = scmp.ne.s32.totalorder %s44, %s46
    %p53 = scmp.eq.s32.totalorder %s15, 1
    %p54 = por %p52, %p53
    %p55 = scmp.ne.s32.totalorder %s46, %s47
    %p56 = scmp.eq.s32.totalorder %s15, 0
    %p57 = por %p55, %p56
    %p58 = scmp.ne.s32.totalorder %s46, %s47
    %p59 = scmp.eq.s32.totalorder %s16, 1
    %p60 = por %p58, %p59
    %p62 = scmp.ne.s32.totalorder %s47, %s61
    %p63 = scmp.eq.s32.totalorder %s16, 0
    %p64 = por %p62, %p63
    %s66 = sadd.s32 %s65, 1
    %p69 = scmp.eq.s32.totalorder %s10, 1
    %p70 = scmp.ne.s32.totalorder %s65, %s67
    %p71 = scmp.eq.s32.totalorder %s10, 0
    %p72 = por %p70, %p71
    %p73 = scmp.ne.s32.totalorder %s65, %s67
    %p74 = scmp.eq.s32.totalorder %s15, 1
    %p75 = por %p73, %p74
    %p76 = scmp.ne.s32.totalorder %s67, %s68
    %p77 = scmp.eq.s32.totalorder %s15, 0
    %p78 = por %p76, %p77
    %p79 = scmp.ne.s32.totalorder %s67, %s68
    %p80 = scmp.eq.s32.totalorder %s16, 1
    %p81 = por %p79, %p80
    %p83 = scmp.ne.s32.totalorder %s68, %s82
    %p84 = scmp.eq.s32.totalorder %s16, 0
    %p85 = por %p83, %p84
    %s87 = sadd.s32 %s86, 1
    %p90 = scmp.eq.s32.totalorder %s10, 1
    %p91 = scmp.ne.s32.totalorder %s86, %s88
    %p92 = scmp.eq.s32.totalorder %s10, 0
    %p93 = por %p91, %p92
    %p94 = scmp.ne.s32.totalorder %s86, %s88
    %p95 = scmp.eq.s32.totalorder %s15, 1
    %p96 = por %p94, %p95
    %p97 = scmp.ne.s32.totalorder %s88, %s89
    %p98 = scmp.eq.s32.totalorder %s15, 0
    %p99 = por %p97, %p98
    %p100 = scmp.ne.s32.totalorder %s88, %s89
    %p101 = scmp.eq.s32.totalorder %s16, 1
    %p102 = por %p100, %p101
    %p104 = scmp.ne.s32.totalorder %s89, %s103
    %p105 = scmp.eq.s32.totalorder %s16, 0
    %p106 = por %p104, %p105
    %s107 = ssub.s32 %s10, %s17
    %p108 = scmp.eq.s32.totalorder %s107, 0
    %s110 = sadd.s32 %s109, 1
    %s111 = scalar_select %p108, %s109, %s110
    %p114 = pneg %p108
    %p115 = scmp.eq.s32.totalorder %s10, 1
    %p116 = por %p114, %p115
    %p117 = scmp.ne.s32.totalorder %s109, %s112
    %p118 = scmp.eq.s32.totalorder %s10, 0
    %p119 = por %p117, %p118
    %p120 = scmp.ne.s32.totalorder %s109, %s112
    %p121 = scmp.eq.s32.totalorder %s15, 1
    %p122 = por %p120, %p121
    %p123 = scmp.ne.s32.totalorder %s112, %s113
    %p124 = scmp.eq.s32.totalorder %s15, 0
    %p125 = por %p123, %p124
    %p126 = scmp.ne.s32.totalorder %s112, %s113
    %p127 = scmp.eq.s32.totalorder %s16, 1
    %p128 = por %p126, %p127
    %p130 = scmp.ne.s32.totalorder %s113, %s129
    %p131 = scmp.eq.s32.totalorder %s16, 0
    %p132 = por %p130, %p131
    %p133 = scmp.le.s32.totalorder 1, %s10
    %p134 = scmp.lt.s32.totalorder %s10, 3
    %p135 = pnand %p133, %p134
    %p136 = pneg %p135
    // Predicated region
    $region9: #{cnn_forward.7} parent=5 // pred_check
      _
    $region10: #{cnn_forward.7} parent=5 // pred_check_branch
      %138 = sbr.rel (%p135) target = $region12
    $region11: #{cnn_forward.7} parent=5 // pred_region
      %s139 = ssub.s32 %s10, 1
      // Predicated region
      $region13: #{cnn_forward.7} parent=11 // pred_check
        %p140 = pneg %p57
      $region14: #{cnn_forward.7} parent=11 // pred_check_branch
        %142 = sbr.rel (%p140) target = $region16
      $region15: #{cnn_forward.7} parent=11 // pred_region
        _
      $region16: #{cnn_forward.7} parent=11 // pred_fallthru
        _
      // Predicated region
      $region17: #{cnn_forward.7} parent=11 // pred_check
        %p143 = pneg %p78
      $region18: #{cnn_forward.7} parent=11 // pred_check_branch
        %145 = sbr.rel (%p143) target = $region20
      $region19: #{cnn_forward.7} parent=11 // pred_region
        _
      $region20: #{cnn_forward.7} parent=11 // pred_fallthru
        _
      // Predicated region
      $region21: #{cnn_forward.7} parent=11 // pred_check
        %p146 = pneg %p99
      $region22: #{cnn_forward.7} parent=11 // pred_check_branch
        %148 = sbr.rel (%p146) target = $region24
      $region23: #{cnn_forward.7} parent=11 // pred_region
        _
      $region24: #{cnn_forward.7} parent=11 // pred_fallthru
        _
    $region12: #{cnn_forward.7} parent=5 // pred_fallthru
      _
    %p149 = scmp.lt.s32.totalorder %s10, 2
    // Predicated region
    $region25: #{cnn_forward.7} parent=5 // pred_check
      %p150 = pneg %p149
    $region26: #{cnn_forward.7} parent=5 // pred_check_branch
      %152 = sbr.rel (%p150) target = $region28
    $region27: #{cnn_forward.7} parent=5 // pred_region
      // Predicated region
      $region29: #{cnn_forward.7} parent=27 // pred_check
        %p153 = pneg %p30
      $region30: #{cnn_forward.7} parent=27 // pred_check_branch
        %155 = sbr.rel (%p153) target = $region32
      $region31: #{cnn_forward.7} parent=27 // pred_region
        %p156 = scmp.lt.s32.totalorder %s10, 1
        %s157 = scalar_select %p156, %s10, 1
        %s158 = smul.addr %s157, 52
        %s159 = smul.addr %s158, 4
        %s160 = scalar_lea.vmem %s0, %s159
      $region32: #{cnn_forward.7} parent=27 // pred_fallthru
        _
    $region28: #{cnn_forward.7} parent=5 // pred_fallthru
      _
    %p161 = scmp.le.s32.totalorder 1, %s10
    %p162 = scmp.lt.s32.totalorder %s10, 3
    %p163 = pnand %p161, %p162
    %p164 = pneg %p163
    // Predicated region
    $region33: #{cnn_forward.7} parent=5 // pred_check
      _
    $region34: #{cnn_forward.7} parent=5 // pred_check_branch
      %166 = sbr.rel (%p163) target = $region36
    $region35: #{cnn_forward.7} parent=5 // pred_region
      %s167 = ssub.s32 %s10, 1
      %p168 = scmp.lt.s32.totalorder %s15, 1
      %s169 = scalar_select %p168, %s15, 1
      %s170 = smul.addr %s169, 52
      %s171 = smul.addr %s170, 4
      %s172 = scalar_lea.vmem %s0, %s171
      %p173 = pneg %p36
      %p174 = pneg %p33
      %p175 = pneg %p57
      %p176 = pneg %p54
      %p177 = pneg %p78
      %p178 = pneg %p75
      %p179 = pneg %p99
      %p180 = pneg %p96
      %p181 = pneg %p125
      %p182 = pneg %p122
      %p183 = scmp.lt.s32.totalorder %s15, 1
      %s184 = scalar_select %p183, %s15, 1
      %s185 = smul.addr %s184, 24
      %s186 = smul.addr %s185, 4
      %s187 = scalar_lea.vmem %s4, %s186
      %p188 = scmp.lt.s32.totalorder %s15, 1
      %s189 = scalar_select %p188, %s15, 1
      %s190 = smul.addr %s189, 52
      %s191 = smul.addr %s190, 4
      %s192 = scalar_lea.vmem %s0, %s191
      %p193 = scmp.lt.s32.totalorder %s15, 1
      %s194 = scalar_select %p193, %s15, 1
      %s195 = smul.addr %s194, 24
      %s196 = smul.addr %s195, 4
      %s197 = scalar_lea.vmem %s4, %s196
      %v199 = vld [vmem:[%s192] sm:$0xf]
      %v200 = vld [vmem:[%s192 + $0x4] sm:$0x7]
      %v201 = vld [vmem:[%s192 + $0x8] sm:$0xf]
      %v202 = vld [vmem:[%s192 + $0xc] sm:$0x7]
      %v203 = vld [vmem:[%s192 + $0x10] sm:$0xf]
      %v204 = vld [vmem:[%s192 + $0x14] sm:$0x7]
      %v205 = vld [vmem:[%s192 + $0x18] sm:$0xf]
      %v206 = vld [vmem:[%s192 + $0x1c] sm:$0x7]
      %v207 = vld [vmem:[%s192 + $0x20] sm:$0xf]
      %v208 = vld [vmem:[%s192 + $0x24] sm:$0x7]
      %v209 = vld [vmem:[%s192 + $0x28] sm:$0xf]
      %v210 = vld [vmem:[%s192 + $0x2c] sm:$0x7]
      %v211 = vld [vmem:[%s192 + $0x30] sm:$0xf]
      %v212 = vld [vmem:[%s192 + $0x34] sm:$0x7]
      %v213 = vld [vmem:[%s192 + $0x38] sm:$0xf]
      %v214 = vld [vmem:[%s192 + $0x3c] sm:$0x7]
      %v215 = vld [vmem:[%s192 + $0x40] sm:$0xf]
      %v216 = vld [vmem:[%s192 + $0x44] sm:$0x7]
      %v217 = vld [vmem:[%s192 + $0x48] sm:$0xf]
      %v218 = vld [vmem:[%s192 + $0x4c] sm:$0x7]
      %v219 = vld [vmem:[%s192 + $0x50] sm:$0xf]
      %v220 = vld [vmem:[%s192 + $0x54] sm:$0x7]
      %v221 = vld [vmem:[%s192 + $0x58] sm:$0xf]
      %v222 = vld [vmem:[%s192 + $0x5c] sm:$0x7]
      %v223 = vld [vmem:[%s192 + $0x60] sm:$0xf]
      %v224 = vld [vmem:[%s192 + $0x64] sm:$0x7]
      %v225 = vld [vmem:[%s192 + $0x68] sm:$0xf]
      %v226 = vld [vmem:[%s192 + $0x6c] sm:$0x7]
      %v227 = vld [vmem:[%s192 + $0x70] sm:$0xf]
      %v228 = vld [vmem:[%s192 + $0x74] sm:$0x7]
      %v229 = vld [vmem:[%s192 + $0x78] sm:$0xf]
      %v230 = vld [vmem:[%s192 + $0x7c] sm:$0x7]
      %v231 = vld [vmem:[%s192 + $0x80] sm:$0xf]
      %v232 = vld [vmem:[%s192 + $0x84] sm:$0x7]
      %v233 = vld [vmem:[%s192 + $0x88] sm:$0xf]
      %v234 = vld [vmem:[%s192 + $0x8c] sm:$0x7]
      %v235 = vld [vmem:[%s192 + $0x90] sm:$0xf]
      %v236 = vld [vmem:[%s192 + $0x94] sm:$0x7]
      %v237 = vld [vmem:[%s192 + $0x98] sm:$0xf]
      %v238 = vld [vmem:[%s192 + $0x9c] sm:$0x7]
      %v239 = vld [vmem:[%s192 + $0xa0] sm:$0xf]
      %v240 = vld [vmem:[%s192 + $0xa4] sm:$0x7]
      %v241 = vld [vmem:[%s192 + $0xa8] sm:$0xf]
      %v242 = vld [vmem:[%s192 + $0xac] sm:$0x7]
      %v243 = vld [vmem:[%s192 + $0xb0] sm:$0xf]
      %v244 = vld [vmem:[%s192 + $0xb4] sm:$0x7]
      %v245 = vld [vmem:[%s192 + $0xb8] sm:$0xf]
      %v246 = vld [vmem:[%s192 + $0xbc] sm:$0x7]
      %v247 = vld [vmem:[%s192 + $0xc0] sm:$0xf]
      %v248 = vld [vmem:[%s192 + $0xc4] sm:$0x7]
      %v249 = vld [vmem:[%s192 + $0xc8] sm:$0xf]
      %v250 = vld [vmem:[%s192 + $0xcc] sm:$0x7]
      %v299 = vunpack.c.l.b16 %v199
      %v300 = vunpack.c.l.b16 %v200
      %v301 = vunpack.c.l.b16 %v201
      %v302 = vunpack.c.l.b16 %v202
      %v303 = vunpack.c.l.b16 %v203
      %v304 = vunpack.c.l.b16 %v204
      %v305 = vunpack.c.l.b16 %v205
      %v306 = vunpack.c.l.b16 %v206
      %v307 = vunpack.c.l.b16 %v207
      %v308 = vunpack.c.l.b16 %v208
      %v309 = vunpack.c.l.b16 %v209
      %v310 = vunpack.c.l.b16 %v210
      %v311 = vunpack.c.l.b16 %v211
      %v312 = vunpack.c.l.b16 %v212
      %v313 = vunpack.c.l.b16 %v213
      %v314 = vunpack.c.l.b16 %v214
      %v315 = vunpack.c.l.b16 %v215
      %v316 = vunpack.c.l.b16 %v216
      %v317 = vunpack.c.l.b16 %v217
      %v318 = vunpack.c.l.b16 %v218
      %v319 = vunpack.c.l.b16 %v219
      %v320 = vunpack.c.l.b16 %v220
      %v321 = vunpack.c.l.b16 %v221
      %v322 = vunpack.c.l.b16 %v222
      %v323 = vunpack.c.l.b16 %v223
      %v324 = vunpack.c.l.b16 %v224
      %v325 = vunpack.c.l.b16 %v225
      %v326 = vunpack.c.l.b16 %v226
      %v327 = vunpack.c.l.b16 %v227
      %v328 = vunpack.c.l.b16 %v228
      %v329 = vunpack.c.l.b16 %v229
      %v330 = vunpack.c.l.b16 %v230
      %v331 = vunpack.c.l.b16 %v231
      %v332 = vunpack.c.l.b16 %v232
      %v333 = vunpack.c.l.b16 %v233
      %v334 = vunpack.c.l.b16 %v234
      %v335 = vunpack.c.l.b16 %v235
      %v336 = vunpack.c.l.b16 %v236
      %v337 = vunpack.c.l.b16 %v237
      %v338 = vunpack.c.l.b16 %v238
      %v339 = vunpack.c.l.b16 %v239
      %v340 = vunpack.c.l.b16 %v240
      %v341 = vunpack.c.l.b16 %v241
      %v342 = vunpack.c.l.b16 %v242
      %v343 = vunpack.c.l.b16 %v243
      %v344 = vunpack.c.l.b16 %v244
      %v345 = vunpack.c.l.b16 %v245
      %v346 = vunpack.c.l.b16 %v246
      %v347 = vpack.c.b16 %v300, %v299
      %v348 = vpack.c.b16 %v302, %v301
      %v349 = vpack.c.b16 %v304, %v303
      %v350 = vpack.c.b16 %v306, %v305
      %v351 = vpack.c.b16 %v308, %v307
      %v352 = vpack.c.b16 %v310, %v309
      %v353 = vpack.c.b16 %v312, %v311
      %v354 = vpack.c.b16 %v314, %v313
      %v355 = vpack.c.b16 %v316, %v315
      %v356 = vpack.c.b16 %v318, %v317
      %v357 = vpack.c.b16 %v320, %v319
      %v358 = vpack.c.b16 %v322, %v321
      %v359 = vpack.c.b16 %v324, %v323
      %v360 = vpack.c.b16 %v326, %v325
      %v361 = vpack.c.b16 %v328, %v327
      %v362 = vpack.c.b16 %v330, %v329
      %v363 = vpack.c.b16 %v332, %v331
      %v364 = vpack.c.b16 %v334, %v333
      %v365 = vpack.c.b16 %v336, %v335
      %v366 = vpack.c.b16 %v338, %v337
      %v367 = vpack.c.b16 %v340, %v339
      %v368 = vpack.c.b16 %v342, %v341
      %v369 = vpack.c.b16 %v344, %v343
      %v370 = vpack.c.b16 %v346, %v345
      %v372 = vshrl.u32 %v347, 16
      %v374 = vshll.u32 %v347, 16
      %v376 = vrot.slane %v374, 1
      %v377 = vor.u32 %v372, %v376
      %v379 = vshrl.u32 %v348, 16
      %v381 = vshll.u32 %v348, 16
      %v383 = vrot.slane %v381, 1
      %v384 = vor.u32 %v379, %v383
      %v386 = vshrl.u32 %v349, 16
      %v388 = vshll.u32 %v349, 16
      %v390 = vrot.slane %v388, 1
      %v391 = vor.u32 %v386, %v390
      %v393 = vshrl.u32 %v350, 16
      %v395 = vshll.u32 %v350, 16
      %v397 = vrot.slane %v395, 1
      %v398 = vor.u32 %v393, %v397
      %v400 = vshrl.u32 %v351, 16
      %v402 = vshll.u32 %v351, 16
      %v404 = vrot.slane %v402, 1
      %v405 = vor.u32 %v400, %v404
      %v407 = vshrl.u32 %v352, 16
      %v409 = vshll.u32 %v352, 16
      %v411 = vrot.slane %v409, 1
      %v412 = vor.u32 %v407, %v411
      %v414 = vshrl.u32 %v353, 16
      %v416 = vshll.u32 %v353, 16
      %v418 = vrot.slane %v416, 1
      %v419 = vor.u32 %v414, %v418
      %v421 = vshrl.u32 %v354, 16
      %v423 = vshll.u32 %v354, 16
      %v425 = vrot.slane %v423, 1
      %v426 = vor.u32 %v421, %v425
      %v428 = vshrl.u32 %v355, 16
      %v430 = vshll.u32 %v355, 16
      %v432 = vrot.slane %v430, 1
      %v433 = vor.u32 %v428, %v432
      %v435 = vshrl.u32 %v356, 16
      %v437 = vshll.u32 %v356, 16
      %v439 = vrot.slane %v437, 1
      %v440 = vor.u32 %v435, %v439
      %v442 = vshrl.u32 %v357, 16
      %v444 = vshll.u32 %v357, 16
      %v446 = vrot.slane %v444, 1
      %v447 = vor.u32 %v442, %v446
      %v449 = vshrl.u32 %v358, 16
      %v451 = vshll.u32 %v358, 16
      %v453 = vrot.slane %v451, 1
      %v454 = vor.u32 %v449, %v453
      %v456 = vshrl.u32 %v359, 16
      %v458 = vshll.u32 %v359, 16
      %v460 = vrot.slane %v458, 1
      %v461 = vor.u32 %v456, %v460
      %v463 = vshrl.u32 %v360, 16
      %v465 = vshll.u32 %v360, 16
      %v467 = vrot.slane %v465, 1
      %v468 = vor.u32 %v463, %v467
      %v470 = vshrl.u32 %v361, 16
      %v472 = vshll.u32 %v361, 16
      %v474 = vrot.slane %v472, 1
      %v475 = vor.u32 %v470, %v474
      %v477 = vshrl.u32 %v362, 16
      %v479 = vshll.u32 %v362, 16
      %v481 = vrot.slane %v479, 1
      %v482 = vor.u32 %v477, %v481
      %v484 = vshrl.u32 %v363, 16
      %v486 = vshll.u32 %v363, 16
      %v488 = vrot.slane %v486, 1
      %v489 = vor.u32 %v484, %v488
      %v491 = vshrl.u32 %v364, 16
      %v493 = vshll.u32 %v364, 16
      %v495 = vrot.slane %v493, 1
      %v496 = vor.u32 %v491, %v495
      %v498 = vshrl.u32 %v365, 16
      %v500 = vshll.u32 %v365, 16
      %v502 = vrot.slane %v500, 1
      %v503 = vor.u32 %v498, %v502
      %v505 = vshrl.u32 %v366, 16
      %v507 = vshll.u32 %v366, 16
      %v509 = vrot.slane %v507, 1
      %v510 = vor.u32 %v505, %v509
      %v512 = vshrl.u32 %v367, 16
      %v514 = vshll.u32 %v367, 16
      %v516 = vrot.slane %v514, 1
      %v517 = vor.u32 %v512, %v516
      %v519 = vshrl.u32 %v368, 16
      %v521 = vshll.u32 %v368, 16
      %v523 = vrot.slane %v521, 1
      %v524 = vor.u32 %v519, %v523
      %v526 = vshrl.u32 %v369, 16
      %v528 = vshll.u32 %v369, 16
      %v530 = vrot.slane %v528, 1
      %v531 = vor.u32 %v526, %v530
      %v533 = vshrl.u32 %v370, 16
      %v535 = vshll.u32 %v370, 16
      %v537 = vrot.slane %v535, 1
      %v538 = vor.u32 %v533, %v537
      %539 = vrot.lane.b32.xlu0 %v377, 64
      %v540 = vpop.permute.xlu0 %539
      %541 = vrot.lane.b32.xlu0 %v384, 64
      %v542 = vpop.permute.xlu0 %541
      %543 = vrot.lane.b32.xlu0 %v391, 64
      %v544 = vpop.permute.xlu0 %543
      %545 = vrot.lane.b32.xlu0 %v398, 64
      %v546 = vpop.permute.xlu0 %545
      %547 = vrot.lane.b32.xlu0 %v405, 64
      %v548 = vpop.permute.xlu0 %547
      %549 = vrot.lane.b32.xlu0 %v412, 64
      %v550 = vpop.permute.xlu0 %549
      %551 = vrot.lane.b32.xlu0 %v419, 64
      %v552 = vpop.permute.xlu0 %551
      %553 = vrot.lane.b32.xlu0 %v426, 64
      %v554 = vpop.permute.xlu0 %553
      %555 = vrot.lane.b32.xlu0 %v433, 64
      %v556 = vpop.permute.xlu0 %555
      %557 = vrot.lane.b32.xlu0 %v440, 64
      %v558 = vpop.permute.xlu0 %557
      %559 = vrot.lane.b32.xlu0 %v447, 64
      %v560 = vpop.permute.xlu0 %559
      %561 = vrot.lane.b32.xlu0 %v454, 64
      %v562 = vpop.permute.xlu0 %561
      %563 = vrot.lane.b32.xlu0 %v461, 64
      %v564 = vpop.permute.xlu0 %563
      %565 = vrot.lane.b32.xlu0 %v468, 64
      %v566 = vpop.permute.xlu0 %565
      %567 = vrot.lane.b32.xlu0 %v475, 64
      %v568 = vpop.permute.xlu0 %567
      %569 = vrot.lane.b32.xlu0 %v482, 64
      %v570 = vpop.permute.xlu0 %569
      %571 = vrot.lane.b32.xlu0 %v489, 64
      %v572 = vpop.permute.xlu0 %571
      %573 = vrot.lane.b32.xlu0 %v496, 64
      %v574 = vpop.permute.xlu0 %573
      %575 = vrot.lane.b32.xlu0 %v503, 64
      %v576 = vpop.permute.xlu0 %575
      %577 = vrot.lane.b32.xlu0 %v510, 64
      %v578 = vpop.permute.xlu0 %577
      %579 = vrot.lane.b32.xlu0 %v517, 64
      %v580 = vpop.permute.xlu0 %579
      %581 = vrot.lane.b32.xlu0 %v524, 64
      %v582 = vpop.permute.xlu0 %581
      %583 = vrot.lane.b32.xlu0 %v531, 64
      %v584 = vpop.permute.xlu0 %583
      %585 = vrot.lane.b32.xlu0 %v538, 64
      %v586 = vpop.permute.xlu0 %585
      %v589 = vunpack.c.l.b16 %v247
      %v590 = vunpack.c.l.b16 %v248
      %v591 = vpack.c.b16 %v590, %v589
      %v593 = vshrl.u32 %v591, 16
      %v595 = vshll.u32 %v591, 16
      %v597 = vrot.slane %v595, 1
      %v598 = vor.u32 %v593, %v597
      %599 = vrot.lane.b32.xlu0 %v598, 64
      %v600 = vpop.permute.xlu0 %599
      %v603 = vunpack.c.l.b16 %v249
      %v604 = vunpack.c.l.b16 %v250
      %v605 = vpack.c.b16 %v604, %v603
      %v607 = vshrl.u32 %v605, 16
      %v609 = vshll.u32 %v605, 16
      %v611 = vrot.slane %v609, 1
      %v612 = vor.u32 %v607, %v611
      %613 = vrot.lane.b32.xlu0 %v612, 64
      %v614 = vpop.permute.xlu0 %613
      %vm615 = vcmask 523264
      %v617 = vsel %vm615, %v347, %v540
      %v619 = vsel %vm615, %v348, %v542
      %v621 = vsel %vm615, %v349, %v544
      %v623 = vsel %vm615, %v350, %v546
      %v625 = vsel %vm615, %v351, %v548
      %v627 = vsel %vm615, %v352, %v550
      %v629 = vsel %vm615, %v353, %v552
      %v631 = vsel %vm615, %v354, %v554
      %v633 = vsel %vm615, %v355, %v556
      %v635 = vsel %vm615, %v356, %v558
      %v637 = vsel %vm615, %v357, %v560
      %v639 = vsel %vm615, %v358, %v562
      %v641 = vsel %vm615, %v359, %v564
      %v643 = vsel %vm615, %v360, %v566
      %v645 = vsel %vm615, %v361, %v568
      %v647 = vsel %vm615, %v362, %v570
      %v649 = vsel %vm615, %v363, %v572
      %v651 = vsel %vm615, %v364, %v574
      %v653 = vsel %vm615, %v365, %v576
      %v655 = vsel %vm615, %v366, %v578
      %v657 = vsel %vm615, %v367, %v580
      %v659 = vsel %vm615, %v368, %v582
      %v661 = vsel %vm615, %v369, %v584
      %v663 = vsel %vm615, %v370, %v586
      %v665 = vsel %vm615, %v591, %v600
      %v667 = vsel %vm615, %v605, %v614
      %v694 = vcombine.low %v617, %v619
      %v695 = vcombine.high %v617, %v619
      %v696 = vcombine.high %v621, %v621
      %v698 = vunpack.c.l.s4 1983009808
      %v699 = vunpack.c.0.s8 %v698
      %v700 = vlaneseq
      %v701 = vshrl.u32 %v700, 7
      %v702 = vsub.s32 %v699, %v701
      %v703 = vrot.slane %v694, %v702
      %v705 = vunpack.c.l.s4 1983009808
      %v706 = vunpack.c.0.s8 %v705
      %v707 = vlaneseq
      %v708 = vshrl.u32 %v707, 7
      %v709 = vsub.s32 %v706, %v708
      %v710 = vrot.slane %v695, %v709
      %v712 = vunpack.c.l.s4 1983009808
      %v713 = vunpack.c.0.s8 %v712
      %v714 = vlaneseq
      %v715 = vshrl.u32 %v714, 7
      %v716 = vsub.s32 %v713, %v715
      %v717 = vrot.slane %v621, %v716
      %v719 = vunpack.c.l.s4 1983009808
      %v720 = vunpack.c.0.s8 %v719
      %v721 = vlaneseq
      %v722 = vshrl.u32 %v721, 7
      %v723 = vsub.s32 %v720, %v722
      %v724 = vrot.slane %v696, %v723
      %v725 = vcombine.low %v703, %v717
      %v726 = vcombine.high %v703, %v717
      %v727 = vcombine.low %v710, %v724
      %v728 = vcombine.low %v619, %v621
      %v729 = vcombine.high %v619, %v621
      %v730 = vcombine.high %v623, %v623
      %v732 = vunpack.c.l.s4 1983009808
      %v733 = vunpack.c.0.s8 %v732
      %v734 = vlaneseq
      %v735 = vshrl.u32 %v734, 7
      %v736 = vsub.s32 %v733, %v735
      %v737 = vrot.slane %v728, %v736
      %v739 = vunpack.c.l.s4 1983009808
      %v740 = vunpack.c.0.s8 %v739
      %v741 = vlaneseq
      %v742 = vshrl.u32 %v741, 7
      %v743 = vsub.s32 %v740, %v742
      %v744 = vrot.slane %v729, %v743
      %v746 = vunpack.c.l.s4 1983009808
      %v747 = vunpack.c.0.s8 %v746
      %v748 = vlaneseq
      %v749 = vshrl.u32 %v748, 7
      %v750 = vsub.s32 %v747, %v749
      %v751 = vrot.slane %v623, %v750
      %v753 = vunpack.c.l.s4 1983009808
      %v754 = vunpack.c.0.s8 %v753
      %v755 = vlaneseq
      %v756 = vshrl.u32 %v755, 7
      %v757 = vsub.s32 %v754, %v756
      %v758 = vrot.slane %v730, %v757
      %v759 = vcombine.low %v737, %v751
      %v760 = vcombine.high %v737, %v751
      %v761 = vcombine.low %v744, %v758
      %v762 = vcombine.low %v621, %v623
      %v763 = vcombine.high %v621, %v623
      %v764 = vcombine.high %v625, %v625
      %v766 = vunpack.c.l.s4 1983009808
      %v767 = vunpack.c.0.s8 %v766
      %v768 = vlaneseq
      %v769 = vshrl.u32 %v768, 7
      %v770 = vsub.s32 %v767, %v769
      %v771 = vrot.slane %v762, %v770
      %v773 = vunpack.c.l.s4 1983009808
      %v774 = vunpack.c.0.s8 %v773
      %v775 = vlaneseq
      %v776 = vshrl.u32 %v775, 7
      %v777 = vsub.s32 %v774, %v776
      %v778 = vrot.slane %v763, %v777
      %v780 = vunpack.c.l.s4 1983009808
      %v781 = vunpack.c.0.s8 %v780
      %v782 = vlaneseq
      %v783 = vshrl.u32 %v782, 7
      %v784 = vsub.s32 %v781, %v783
      %v785 = vrot.slane %v625, %v784
      %v787 = vunpack.c.l.s4 1983009808
      %v788 = vunpack.c.0.s8 %v787
      %v789 = vlaneseq
      %v790 = vshrl.u32 %v789, 7
      %v791 = vsub.s32 %v788, %v790
      %v792 = vrot.slane %v764, %v791
      %v793 = vcombine.low %v771, %v785
      %v794 = vcombine.high %v771, %v785
      %v795 = vcombine.low %v778, %v792
      %v796 = vcombine.low %v623, %v625
      %v797 = vcombine.high %v623, %v625
      %v798 = vcombine.high %v627, %v627
      %v800 = vunpack.c.l.s4 1983009808
      %v801 = vunpack.c.0.s8 %v800
      %v802 = vlaneseq
      %v803 = vshrl.u32 %v802, 7
      %v804 = vsub.s32 %v801, %v803
      %v805 = vrot.slane %v796, %v804
      %v807 = vunpack.c.l.s4 1983009808
      %v808 = vunpack.c.0.s8 %v807
      %v809 = vlaneseq
      %v810 = vshrl.u32 %v809, 7
      %v811 = vsub.s32 %v808, %v810
      %v812 = vrot.slane %v797, %v811
      %v814 = vunpack.c.l.s4 1983009808
      %v815 = vunpack.c.0.s8 %v814
      %v816 = vlaneseq
      %v817 = vshrl.u32 %v816, 7
      %v818 = vsub.s32 %v815, %v817
      %v819 = vrot.slane %v627, %v818
      %v821 = vunpack.c.l.s4 1983009808
      %v822 = vunpack.c.0.s8 %v821
      %v823 = vlaneseq
      %v824 = vshrl.u32 %v823, 7
      %v825 = vsub.s32 %v822, %v824
      %v826 = vrot.slane %v798, %v825
      %v827 = vcombine.low %v805, %v819
      %v828 = vcombine.high %v805, %v819
      %v829 = vcombine.low %v812, %v826
      %v830 = vcombine.low %v625, %v627
      %v831 = vcombine.high %v625, %v627
      %v832 = vcombine.high %v629, %v629
      %v834 = vunpack.c.l.s4 1983009808
      %v835 = vunpack.c.0.s8 %v834
      %v836 = vlaneseq
      %v837 = vshrl.u32 %v836, 7
      %v838 = vsub.s32 %v835, %v837
      %v839 = vrot.slane %v830, %v838
      %v841 = vunpack.c.l.s4 1983009808
      %v842 = vunpack.c.0.s8 %v841
      %v843 = vlaneseq
      %v844 = vshrl.u32 %v843, 7
      %v845 = vsub.s32 %v842, %v844
      %v846 = vrot.slane %v831, %v845
      %v848 = vunpack.c.l.s4 1983009808
      %v849 = vunpack.c.0.s8 %v848
      %v850 = vlaneseq
      %v851 = vshrl.u32 %v850, 7
      %v852 = vsub.s32 %v849, %v851
      %v853 = vrot.slane %v629, %v852
      %v855 = vunpack.c.l.s4 1983009808
      %v856 = vunpack.c.0.s8 %v855
      %v857 = vlaneseq
      %v858 = vshrl.u32 %v857, 7
      %v859 = vsub.s32 %v856, %v858
      %v860 = vrot.slane %v832, %v859
      %v861 = vcombine.low %v839, %v853
      %v862 = vcombine.high %v839, %v853
      %v863 = vcombine.low %v846, %v860
      %v864 = vcombine.low %v627, %v629
      %v865 = vcombine.high %v627, %v629
      %v866 = vcombine.high %v631, %v631
      %v868 = vunpack.c.l.s4 1983009808
      %v869 = vunpack.c.0.s8 %v868
      %v870 = vlaneseq
      %v871 = vshrl.u32 %v870, 7
      %v872 = vsub.s32 %v869, %v871
      %v873 = vrot.slane %v864, %v872
      %v875 = vunpack.c.l.s4 1983009808
      %v876 = vunpack.c.0.s8 %v875
      %v877 = vlaneseq
      %v878 = vshrl.u32 %v877, 7
      %v879 = vsub.s32 %v876, %v878
      %v880 = vrot.slane %v865, %v879
      %v882 = vunpack.c.l.s4 1983009808
      %v883 = vunpack.c.0.s8 %v882
      %v884 = vlaneseq
      %v885 = vshrl.u32 %v884, 7
      %v886 = vsub.s32 %v883, %v885
      %v887 = vrot.slane %v631, %v886
      %v889 = vunpack.c.l.s4 1983009808
      %v890 = vunpack.c.0.s8 %v889
      %v891 = vlaneseq
      %v892 = vshrl.u32 %v891, 7
      %v893 = vsub.s32 %v890, %v892
      %v894 = vrot.slane %v866, %v893
      %v895 = vcombine.low %v873, %v887
      %v896 = vcombine.high %v873, %v887
      %v897 = vcombine.low %v880, %v894
      %v898 = vcombine.low %v629, %v631
      %v899 = vcombine.high %v629, %v631
      %v900 = vcombine.high %v633, %v633
      %v902 = vunpack.c.l.s4 1983009808
      %v903 = vunpack.c.0.s8 %v902
      %v904 = vlaneseq
      %v905 = vshrl.u32 %v904, 7
      %v906 = vsub.s32 %v903, %v905
      %v907 = vrot.slane %v898, %v906
      %v909 = vunpack.c.l.s4 1983009808
      %v910 = vunpack.c.0.s8 %v909
      %v911 = vlaneseq
      %v912 = vshrl.u32 %v911, 7
      %v913 = vsub.s32 %v910, %v912
      %v914 = vrot.slane %v899, %v913
      %v916 = vunpack.c.l.s4 1983009808
      %v917 = vunpack.c.0.s8 %v916
      %v918 = vlaneseq
      %v919 = vshrl.u32 %v918, 7
      %v920 = vsub.s32 %v917, %v919
      %v921 = vrot.slane %v633, %v920
      %v923 = vunpack.c.l.s4 1983009808
      %v924 = vunpack.c.0.s8 %v923
      %v925 = vlaneseq
      %v926 = vshrl.u32 %v925, 7
      %v927 = vsub.s32 %v924, %v926
      %v928 = vrot.slane %v900, %v927
      %v929 = vcombine.low %v907, %v921
      %v930 = vcombine.high %v907, %v921
      %v931 = vcombine.low %v914, %v928
      %v932 = vcombine.low %v631, %v633
      %v933 = vcombine.high %v631, %v633
      %v934 = vcombine.high %v635, %v635
      %v936 = vunpack.c.l.s4 1983009808
      %v937 = vunpack.c.0.s8 %v936
      %v938 = vlaneseq
      %v939 = vshrl.u32 %v938, 7
      %v940 = vsub.s32 %v937, %v939
      %v941 = vrot.slane %v932, %v940
      %v943 = vunpack.c.l.s4 1983009808
      %v944 = vunpack.c.0.s8 %v943
      %v945 = vlaneseq
      %v946 = vshrl.u32 %v945, 7
      %v947 = vsub.s32 %v944, %v946
      %v948 = vrot.slane %v933, %v947
      %v950 = vunpack.c.l.s4 1983009808
      %v951 = vunpack.c.0.s8 %v950
      %v952 = vlaneseq
      %v953 = vshrl.u32 %v952, 7
      %v954 = vsub.s32 %v951, %v953
      %v955 = vrot.slane %v635, %v954
      %v957 = vunpack.c.l.s4 1983009808
      %v958 = vunpack.c.0.s8 %v957
      %v959 = vlaneseq
      %v960 = vshrl.u32 %v959, 7
      %v961 = vsub.s32 %v958, %v960
      %v962 = vrot.slane %v934, %v961
      %v963 = vcombine.low %v941, %v955
      %v964 = vcombine.high %v941, %v955
      %v965 = vcombine.low %v948, %v962
      %v966 = vcombine.low %v633, %v635
      %v967 = vcombine.high %v633, %v635
      %v968 = vcombine.high %v637, %v637
      %v970 = vunpack.c.l.s4 1983009808
      %v971 = vunpack.c.0.s8 %v970
      %v972 = vlaneseq
      %v973 = vshrl.u32 %v972, 7
      %v974 = vsub.s32 %v971, %v973
      %v975 = vrot.slane %v966, %v974
      %v977 = vunpack.c.l.s4 1983009808
      %v978 = vunpack.c.0.s8 %v977
      %v979 = vlaneseq
      %v980 = vshrl.u32 %v979, 7
      %v981 = vsub.s32 %v978, %v980
      %v982 = vrot.slane %v967, %v981
      %v984 = vunpack.c.l.s4 1983009808
      %v985 = vunpack.c.0.s8 %v984
      %v986 = vlaneseq
      %v987 = vshrl.u32 %v986, 7
      %v988 = vsub.s32 %v985, %v987
      %v989 = vrot.slane %v637, %v988
      %v991 = vunpack.c.l.s4 1983009808
      %v992 = vunpack.c.0.s8 %v991
      %v993 = vlaneseq
      %v994 = vshrl.u32 %v993, 7
      %v995 = vsub.s32 %v992, %v994
      %v996 = vrot.slane %v968, %v995
      %v997 = vcombine.low %v975, %v989
      %v998 = vcombine.high %v975, %v989
      %v999 = vcombine.low %v982, %v996
      %v1000 = vcombine.low %v635, %v637
      %v1001 = vcombine.high %v635, %v637
      %v1002 = vcombine.high %v639, %v639
      %v1004 = vunpack.c.l.s4 1983009808
      %v1005 = vunpack.c.0.s8 %v1004
      %v1006 = vlaneseq
      %v1007 = vshrl.u32 %v1006, 7
      %v1008 = vsub.s32 %v1005, %v1007
      %v1009 = vrot.slane %v1000, %v1008
      %v1011 = vunpack.c.l.s4 1983009808
      %v1012 = vunpack.c.0.s8 %v1011
      %v1013 = vlaneseq
      %v1014 = vshrl.u32 %v1013, 7
      %v1015 = vsub.s32 %v1012, %v1014
      %v1016 = vrot.slane %v1001, %v1015
      %v1018 = vunpack.c.l.s4 1983009808
      %v1019 = vunpack.c.0.s8 %v1018
      %v1020 = vlaneseq
      %v1021 = vshrl.u32 %v1020, 7
      %v1022 = vsub.s32 %v1019, %v1021
      %v1023 = vrot.slane %v639, %v1022
      %v1025 = vunpack.c.l.s4 1983009808
      %v1026 = vunpack.c.0.s8 %v1025
      %v1027 = vlaneseq
      %v1028 = vshrl.u32 %v1027, 7
      %v1029 = vsub.s32 %v1026, %v1028
      %v1030 = vrot.slane %v1002, %v1029
      %v1031 = vcombine.low %v1009, %v1023
      %v1032 = vcombine.high %v1009, %v1023
      %v1033 = vcombine.low %v1016, %v1030
      %v1034 = vcombine.low %v637, %v639
      %v1035 = vcombine.high %v637, %v639
      %v1036 = vcombine.high %v641, %v641
      %v1038 = vunpack.c.l.s4 1983009808
      %v1039 = vunpack.c.0.s8 %v1038
      %v1040 = vlaneseq
      %v1041 = vshrl.u32 %v1040, 7
      %v1042 = vsub.s32 %v1039, %v1041
      %v1043 = vrot.slane %v1034, %v1042
      %v1045 = vunpack.c.l.s4 1983009808
      %v1046 = vunpack.c.0.s8 %v1045
      %v1047 = vlaneseq
      %v1048 = vshrl.u32 %v1047, 7
      %v1049 = vsub.s32 %v1046, %v1048
      %v1050 = vrot.slane %v1035, %v1049
      %v1052 = vunpack.c.l.s4 1983009808
      %v1053 = vunpack.c.0.s8 %v1052
      %v1054 = vlaneseq
      %v1055 = vshrl.u32 %v1054, 7
      %v1056 = vsub.s32 %v1053, %v1055
      %v1057 = vrot.slane %v641, %v1056
      %v1059 = vunpack.c.l.s4 1983009808
      %v1060 = vunpack.c.0.s8 %v1059
      %v1061 = vlaneseq
      %v1062 = vshrl.u32 %v1061, 7
      %v1063 = vsub.s32 %v1060, %v1062
      %v1064 = vrot.slane %v1036, %v1063
      %v1065 = vcombine.low %v1043, %v1057
      %v1066 = vcombine.high %v1043, %v1057
      %v1067 = vcombine.low %v1050, %v1064
      %v1068 = vcombine.low %v639, %v641
      %v1069 = vcombine.high %v639, %v641
      %v1070 = vcombine.high %v643, %v643
      %v1072 = vunpack.c.l.s4 1983009808
      %v1073 = vunpack.c.0.s8 %v1072
      %v1074 = vlaneseq
      %v1075 = vshrl.u32 %v1074, 7
      %v1076 = vsub.s32 %v1073, %v1075
      %v1077 = vrot.slane %v1068, %v1076
      %v1079 = vunpack.c.l.s4 1983009808
      %v1080 = vunpack.c.0.s8 %v1079
      %v1081 = vlaneseq
      %v1082 = vshrl.u32 %v1081, 7
      %v1083 = vsub.s32 %v1080, %v1082
      %v1084 = vrot.slane %v1069, %v1083
      %v1086 = vunpack.c.l.s4 1983009808
      %v1087 = vunpack.c.0.s8 %v1086
      %v1088 = vlaneseq
      %v1089 = vshrl.u32 %v1088, 7
      %v1090 = vsub.s32 %v1087, %v1089
      %v1091 = vrot.slane %v643, %v1090
      %v1093 = vunpack.c.l.s4 1983009808
      %v1094 = vunpack.c.0.s8 %v1093
      %v1095 = vlaneseq
      %v1096 = vshrl.u32 %v1095, 7
      %v1097 = vsub.s32 %v1094, %v1096
      %v1098 = vrot.slane %v1070, %v1097
      %v1099 = vcombine.low %v1077, %v1091
      %v1100 = vcombine.high %v1077, %v1091
      %v1101 = vcombine.low %v1084, %v1098
      %v1102 = vcombine.low %v641, %v643
      %v1103 = vcombine.high %v641, %v643
      %v1104 = vcombine.high %v645, %v645
      %v1106 = vunpack.c.l.s4 1983009808
      %v1107 = vunpack.c.0.s8 %v1106
      %v1108 = vlaneseq
      %v1109 = vshrl.u32 %v1108, 7
      %v1110 = vsub.s32 %v1107, %v1109
      %v1111 = vrot.slane %v1102, %v1110
      %v1113 = vunpack.c.l.s4 1983009808
      %v1114 = vunpack.c.0.s8 %v1113
      %v1115 = vlaneseq
      %v1116 = vshrl.u32 %v1115, 7
      %v1117 = vsub.s32 %v1114, %v1116
      %v1118 = vrot.slane %v1103, %v1117
      %v1120 = vunpack.c.l.s4 1983009808
      %v1121 = vunpack.c.0.s8 %v1120
      %v1122 = vlaneseq
      %v1123 = vshrl.u32 %v1122, 7
      %v1124 = vsub.s32 %v1121, %v1123
      %v1125 = vrot.slane %v645, %v1124
      %v1127 = vunpack.c.l.s4 1983009808
      %v1128 = vunpack.c.0.s8 %v1127
      %v1129 = vlaneseq
      %v1130 = vshrl.u32 %v1129, 7
      %v1131 = vsub.s32 %v1128, %v1130
      %v1132 = vrot.slane %v1104, %v1131
      %v1133 = vcombine.low %v1111, %v1125
      %v1134 = vcombine.high %v1111, %v1125
      %v1135 = vcombine.low %v1118, %v1132
      %v1136 = vcombine.low %v643, %v645
      %v1137 = vcombine.high %v643, %v645
      %v1138 = vcombine.high %v647, %v647
      %v1140 = vunpack.c.l.s4 1983009808
      %v1141 = vunpack.c.0.s8 %v1140
      %v1142 = vlaneseq
      %v1143 = vshrl.u32 %v1142, 7
      %v1144 = vsub.s32 %v1141, %v1143
      %v1145 = vrot.slane %v1136, %v1144
      %v1147 = vunpack.c.l.s4 1983009808
      %v1148 = vunpack.c.0.s8 %v1147
      %v1149 = vlaneseq
      %v1150 = vshrl.u32 %v1149, 7
      %v1151 = vsub.s32 %v1148, %v1150
      %v1152 = vrot.slane %v1137, %v1151
      %v1154 = vunpack.c.l.s4 1983009808
      %v1155 = vunpack.c.0.s8 %v1154
      %v1156 = vlaneseq
      %v1157 = vshrl.u32 %v1156, 7
      %v1158 = vsub.s32 %v1155, %v1157
      %v1159 = vrot.slane %v647, %v1158
      %v1161 = vunpack.c.l.s4 1983009808
      %v1162 = vunpack.c.0.s8 %v1161
      %v1163 = vlaneseq
      %v1164 = vshrl.u32 %v1163, 7
      %v1165 = vsub.s32 %v1162, %v1164
      %v1166 = vrot.slane %v1138, %v1165
      %v1167 = vcombine.low %v1145, %v1159
      %v1168 = vcombine.high %v1145, %v1159
      %v1169 = vcombine.low %v1152, %v1166
      %v1170 = vcombine.low %v645, %v647
      %v1171 = vcombine.high %v645, %v647
      %v1172 = vcombine.high %v649, %v649
      %v1174 = vunpack.c.l.s4 1983009808
      %v1175 = vunpack.c.0.s8 %v1174
      %v1176 = vlaneseq
      %v1177 = vshrl.u32 %v1176, 7
      %v1178 = vsub.s32 %v1175, %v1177
      %v1179 = vrot.slane %v1170, %v1178
      %v1181 = vunpack.c.l.s4 1983009808
      %v1182 = vunpack.c.0.s8 %v1181
      %v1183 = vlaneseq
      %v1184 = vshrl.u32 %v1183, 7
      %v1185 = vsub.s32 %v1182, %v1184
      %v1186 = vrot.slane %v1171, %v1185
      %v1188 = vunpack.c.l.s4 1983009808
      %v1189 = vunpack.c.0.s8 %v1188
      %v1190 = vlaneseq
      %v1191 = vshrl.u32 %v1190, 7
      %v1192 = vsub.s32 %v1189, %v1191
      %v1193 = vrot.slane %v649, %v1192
      %v1195 = vunpack.c.l.s4 1983009808
      %v1196 = vunpack.c.0.s8 %v1195
      %v1197 = vlaneseq
      %v1198 = vshrl.u32 %v1197, 7
      %v1199 = vsub.s32 %v1196, %v1198
      %v1200 = vrot.slane %v1172, %v1199
      %v1201 = vcombine.low %v1179, %v1193
      %v1202 = vcombine.high %v1179, %v1193
      %v1203 = vcombine.low %v1186, %v1200
      %v1204 = vcombine.low %v647, %v649
      %v1205 = vcombine.high %v647, %v649
      %v1206 = vcombine.high %v651, %v651
      %v1208 = vunpack.c.l.s4 1983009808
      %v1209 = vunpack.c.0.s8 %v1208
      %v1210 = vlaneseq
      %v1211 = vshrl.u32 %v1210, 7
      %v1212 = vsub.s32 %v1209, %v1211
      %v1213 = vrot.slane %v1204, %v1212
      %v1215 = vunpack.c.l.s4 1983009808
      %v1216 = vunpack.c.0.s8 %v1215
      %v1217 = vlaneseq
      %v1218 = vshrl.u32 %v1217, 7
      %v1219 = vsub.s32 %v1216, %v1218
      %v1220 = vrot.slane %v1205, %v1219
      %v1222 = vunpack.c.l.s4 1983009808
      %v1223 = vunpack.c.0.s8 %v1222
      %v1224 = vlaneseq
      %v1225 = vshrl.u32 %v1224, 7
      %v1226 = vsub.s32 %v1223, %v1225
      %v1227 = vrot.slane %v651, %v1226
      %v1229 = vunpack.c.l.s4 1983009808
      %v1230 = vunpack.c.0.s8 %v1229
      %v1231 = vlaneseq
      %v1232 = vshrl.u32 %v1231, 7
      %v1233 = vsub.s32 %v1230, %v1232
      %v1234 = vrot.slane %v1206, %v1233
      %v1235 = vcombine.low %v1213, %v1227
      %v1236 = vcombine.high %v1213, %v1227
      %v1237 = vcombine.low %v1220, %v1234
      %v1238 = vcombine.low %v649, %v651
      %v1239 = vcombine.high %v649, %v651
      %v1240 = vcombine.high %v653, %v653
      %v1242 = vunpack.c.l.s4 1983009808
      %v1243 = vunpack.c.0.s8 %v1242
      %v1244 = vlaneseq
      %v1245 = vshrl.u32 %v1244, 7
      %v1246 = vsub.s32 %v1243, %v1245
      %v1247 = vrot.slane %v1238, %v1246
      %v1249 = vunpack.c.l.s4 1983009808
      %v1250 = vunpack.c.0.s8 %v1249
      %v1251 = vlaneseq
      %v1252 = vshrl.u32 %v1251, 7
      %v1253 = vsub.s32 %v1250, %v1252
      %v1254 = vrot.slane %v1239, %v1253
      %v1256 = vunpack.c.l.s4 1983009808
      %v1257 = vunpack.c.0.s8 %v1256
      %v1258 = vlaneseq
      %v1259 = vshrl.u32 %v1258, 7
      %v1260 = vsub.s32 %v1257, %v1259
      %v1261 = vrot.slane %v653, %v1260
      %v1263 = vunpack.c.l.s4 1983009808
      %v1264 = vunpack.c.0.s8 %v1263
      %v1265 = vlaneseq
      %v1266 = vshrl.u32 %v1265, 7
      %v1267 = vsub.s32 %v1264, %v1266
      %v1268 = vrot.slane %v1240, %v1267
      %v1269 = vcombine.low %v1247, %v1261
      %v1270 = vcombine.high %v1247, %v1261
      %v1271 = vcombine.low %v1254, %v1268
      %v1272 = vcombine.low %v651, %v653
      %v1273 = vcombine.high %v651, %v653
      %v1274 = vcombine.high %v655, %v655
      %v1276 = vunpack.c.l.s4 1983009808
      %v1277 = vunpack.c.0.s8 %v1276
      %v1278 = vlaneseq
      %v1279 = vshrl.u32 %v1278, 7
      %v1280 = vsub.s32 %v1277, %v1279
      %v1281 = vrot.slane %v1272, %v1280
      %v1283 = vunpack.c.l.s4 1983009808
      %v1284 = vunpack.c.0.s8 %v1283
      %v1285 = vlaneseq
      %v1286 = vshrl.u32 %v1285, 7
      %v1287 = vsub.s32 %v1284, %v1286
      %v1288 = vrot.slane %v1273, %v1287
      %v1290 = vunpack.c.l.s4 1983009808
      %v1291 = vunpack.c.0.s8 %v1290
      %v1292 = vlaneseq
      %v1293 = vshrl.u32 %v1292, 7
      %v1294 = vsub.s32 %v1291, %v1293
      %v1295 = vrot.slane %v655, %v1294
      %v1297 = vunpack.c.l.s4 1983009808
      %v1298 = vunpack.c.0.s8 %v1297
      %v1299 = vlaneseq
      %v1300 = vshrl.u32 %v1299, 7
      %v1301 = vsub.s32 %v1298, %v1300
      %v1302 = vrot.slane %v1274, %v1301
      %v1303 = vcombine.low %v1281, %v1295
      %v1304 = vcombine.high %v1281, %v1295
      %v1305 = vcombine.low %v1288, %v1302
      %v1306 = vcombine.low %v653, %v655
      %v1307 = vcombine.high %v653, %v655
      %v1308 = vcombine.high %v657, %v657
      %v1310 = vunpack.c.l.s4 1983009808
      %v1311 = vunpack.c.0.s8 %v1310
      %v1312 = vlaneseq
      %v1313 = vshrl.u32 %v1312, 7
      %v1314 = vsub.s32 %v1311, %v1313
      %v1315 = vrot.slane %v1306, %v1314
      %v1317 = vunpack.c.l.s4 1983009808
      %v1318 = vunpack.c.0.s8 %v1317
      %v1319 = vlaneseq
      %v1320 = vshrl.u32 %v1319, 7
      %v1321 = vsub.s32 %v1318, %v1320
      %v1322 = vrot.slane %v1307, %v1321
      %v1324 = vunpack.c.l.s4 1983009808
      %v1325 = vunpack.c.0.s8 %v1324
      %v1326 = vlaneseq
      %v1327 = vshrl.u32 %v1326, 7
      %v1328 = vsub.s32 %v1325, %v1327
      %v1329 = vrot.slane %v657, %v1328
      %v1331 = vunpack.c.l.s4 1983009808
      %v1332 = vunpack.c.0.s8 %v1331
      %v1333 = vlaneseq
      %v1334 = vshrl.u32 %v1333, 7
      %v1335 = vsub.s32 %v1332, %v1334
      %v1336 = vrot.slane %v1308, %v1335
      %v1337 = vcombine.low %v1315, %v1329
      %v1338 = vcombine.high %v1315, %v1329
      %v1339 = vcombine.low %v1322, %v1336
      %v1340 = vcombine.low %v655, %v657
      %v1341 = vcombine.high %v655, %v657
      %v1342 = vcombine.high %v659, %v659
      %v1344 = vunpack.c.l.s4 1983009808
      %v1345 = vunpack.c.0.s8 %v1344
      %v1346 = vlaneseq
      %v1347 = vshrl.u32 %v1346, 7
      %v1348 = vsub.s32 %v1345, %v1347
      %v1349 = vrot.slane %v1340, %v1348
      %v1351 = vunpack.c.l.s4 1983009808
      %v1352 = vunpack.c.0.s8 %v1351
      %v1353 = vlaneseq
      %v1354 = vshrl.u32 %v1353, 7
      %v1355 = vsub.s32 %v1352, %v1354
      %v1356 = vrot.slane %v1341, %v1355
      %v1358 = vunpack.c.l.s4 1983009808
      %v1359 = vunpack.c.0.s8 %v1358
      %v1360 = vlaneseq
      %v1361 = vshrl.u32 %v1360, 7
      %v1362 = vsub.s32 %v1359, %v1361
      %v1363 = vrot.slane %v659, %v1362
      %v1365 = vunpack.c.l.s4 1983009808
      %v1366 = vunpack.c.0.s8 %v1365
      %v1367 = vlaneseq
      %v1368 = vshrl.u32 %v1367, 7
      %v1369 = vsub.s32 %v1366, %v1368
      %v1370 = vrot.slane %v1342, %v1369
      %v1371 = vcombine.low %v1349, %v1363
      %v1372 = vcombine.high %v1349, %v1363
      %v1373 = vcombine.low %v1356, %v1370
      %v1374 = vcombine.low %v657, %v659
      %v1375 = vcombine.high %v657, %v659
      %v1376 = vcombine.high %v661, %v661
      %v1378 = vunpack.c.l.s4 1983009808
      %v1379 = vunpack.c.0.s8 %v1378
      %v1380 = vlaneseq
      %v1381 = vshrl.u32 %v1380, 7
      %v1382 = vsub.s32 %v1379, %v1381
      %v1383 = vrot.slane %v1374, %v1382
      %v1385 = vunpack.c.l.s4 1983009808
      %v1386 = vunpack.c.0.s8 %v1385
      %v1387 = vlaneseq
      %v1388 = vshrl.u32 %v1387, 7
      %v1389 = vsub.s32 %v1386, %v1388
      %v1390 = vrot.slane %v1375, %v1389
      %v1392 = vunpack.c.l.s4 1983009808
      %v1393 = vunpack.c.0.s8 %v1392
      %v1394 = vlaneseq
      %v1395 = vshrl.u32 %v1394, 7
      %v1396 = vsub.s32 %v1393, %v1395
      %v1397 = vrot.slane %v661, %v1396
      %v1399 = vunpack.c.l.s4 1983009808
      %v1400 = vunpack.c.0.s8 %v1399
      %v1401 = vlaneseq
      %v1402 = vshrl.u32 %v1401, 7
      %v1403 = vsub.s32 %v1400, %v1402
      %v1404 = vrot.slane %v1376, %v1403
      %v1405 = vcombine.low %v1383, %v1397
      %v1406 = vcombine.high %v1383, %v1397
      %v1407 = vcombine.low %v1390, %v1404
      %v1408 = vcombine.low %v659, %v661
      %v1409 = vcombine.high %v659, %v661
      %v1410 = vcombine.high %v663, %v663
      %v1412 = vunpack.c.l.s4 1983009808
      %v1413 = vunpack.c.0.s8 %v1412
      %v1414 = vlaneseq
      %v1415 = vshrl.u32 %v1414, 7
      %v1416 = vsub.s32 %v1413, %v1415
      %v1417 = vrot.slane %v1408, %v1416
      %v1419 = vunpack.c.l.s4 1983009808
      %v1420 = vunpack.c.0.s8 %v1419
      %v1421 = vlaneseq
      %v1422 = vshrl.u32 %v1421, 7
      %v1423 = vsub.s32 %v1420, %v1422
      %v1424 = vrot.slane %v1409, %v1423
      %v1426 = vunpack.c.l.s4 1983009808
      %v1427 = vunpack.c.0.s8 %v1426
      %v1428 = vlaneseq
      %v1429 = vshrl.u32 %v1428, 7
      %v1430 = vsub.s32 %v1427, %v1429
      %v1431 = vrot.slane %v663, %v1430
      %v1433 = vunpack.c.l.s4 1983009808
      %v1434 = vunpack.c.0.s8 %v1433
      %v1435 = vlaneseq
      %v1436 = vshrl.u32 %v1435, 7
      %v1437 = vsub.s32 %v1434, %v1436
      %v1438 = vrot.slane %v1410, %v1437
      %v1439 = vcombine.low %v1417, %v1431
      %v1440 = vcombine.high %v1417, %v1431
      %v1441 = vcombine.low %v1424, %v1438
      %v1442 = vcombine.low %v661, %v663
      %v1443 = vcombine.high %v661, %v663
      %v1444 = vcombine.high %v665, %v665
      %v1446 = vunpack.c.l.s4 1983009808
      %v1447 = vunpack.c.0.s8 %v1446
      %v1448 = vlaneseq
      %v1449 = vshrl.u32 %v1448, 7
      %v1450 = vsub.s32 %v1447, %v1449
      %v1451 = vrot.slane %v1442, %v1450
      %v1453 = vunpack.c.l.s4 1983009808
      %v1454 = vunpack.c.0.s8 %v1453
      %v1455 = vlaneseq
      %v1456 = vshrl.u32 %v1455, 7
      %v1457 = vsub.s32 %v1454, %v1456
      %v1458 = vrot.slane %v1443, %v1457
      %v1460 = vunpack.c.l.s4 1983009808
      %v1461 = vunpack.c.0.s8 %v1460
      %v1462 = vlaneseq
      %v1463 = vshrl.u32 %v1462, 7
      %v1464 = vsub.s32 %v1461, %v1463
      %v1465 = vrot.slane %v665, %v1464
      %v1467 = vunpack.c.l.s4 1983009808
      %v1468 = vunpack.c.0.s8 %v1467
      %v1469 = vlaneseq
      %v1470 = vshrl.u32 %v1469, 7
      %v1471 = vsub.s32 %v1468, %v1470
      %v1472 = vrot.slane %v1444, %v1471
      %v1473 = vcombine.low %v1451, %v1465
      %v1474 = vcombine.high %v1451, %v1465
      %v1475 = vcombine.low %v1458, %v1472
      %v1476 = vcombine.low %v663, %v665
      %v1477 = vcombine.high %v663, %v665
      %v1478 = vcombine.high %v667, %v667
      %v1480 = vunpack.c.l.s4 1983009808
      %v1481 = vunpack.c.0.s8 %v1480
      %v1482 = vlaneseq
      %v1483 = vshrl.u32 %v1482, 7
      %v1484 = vsub.s32 %v1481, %v1483
      %v1485 = vrot.slane %v1476, %v1484
      %v1487 = vunpack.c.l.s4 1983009808
      %v1488 = vunpack.c.0.s8 %v1487
      %v1489 = vlaneseq
      %v1490 = vshrl.u32 %v1489, 7
      %v1491 = vsub.s32 %v1488, %v1490
      %v1492 = vrot.slane %v1477, %v1491
      %v1494 = vunpack.c.l.s4 1983009808
      %v1495 = vunpack.c.0.s8 %v1494
      %v1496 = vlaneseq
      %v1497 = vshrl.u32 %v1496, 7
      %v1498 = vsub.s32 %v1495, %v1497
      %v1499 = vrot.slane %v667, %v1498
      %v1501 = vunpack.c.l.s4 1983009808
      %v1502 = vunpack.c.0.s8 %v1501
      %v1503 = vlaneseq
      %v1504 = vshrl.u32 %v1503, 7
      %v1505 = vsub.s32 %v1502, %v1504
      %v1506 = vrot.slane %v1478, %v1505
      %v1507 = vcombine.low %v1485, %v1499
      %v1508 = vcombine.high %v1485, %v1499
      %v1509 = vcombine.low %v1492, %v1506
      %v1510 = vld [vmem:[%s1] sm:$0xf]
      %v1511 = vld [vmem:[%s1 + $0x4] sm:$0xf]
      %v1512 = vld [vmem:[%s1 + $0x8] sm:$0xf]
      %v1513 = vld [vmem:[%s1 + $0xc] sm:$0xf]
      %v1514 = vld [vmem:[%s1 + $0x10] sm:$0xf]
      %v1515 = vld [vmem:[%s1 + $0x14] sm:$0xf]
      %v1516 = vld [vmem:[%s1 + $0x18] sm:$0xf]
      %v1517 = vld [vmem:[%s1 + $0x1c] sm:$0xf]
      %v1518 = vld [vmem:[%s1 + $0x20] sm:$0xf]
      %v1519 = vld [vmem:[%s1 + $0x24] sm:$0xf]
      %v1520 = vld [vmem:[%s1 + $0x28] sm:$0xf]
      %v1521 = vld [vmem:[%s1 + $0x2c] sm:$0xf]
      %v1522 = vld [vmem:[%s1 + $0x30] sm:$0xf]
      %v1523 = vld [vmem:[%s1 + $0x34] sm:$0xf]
      %v1524 = vld [vmem:[%s1 + $0x38] sm:$0xf]
      %v1525 = vld [vmem:[%s1 + $0x3c] sm:$0xf]
      %v1526 = vld [vmem:[%s1 + $0x40] sm:$0xf]
      %v1527 = vld [vmem:[%s1 + $0x44] sm:$0xf]
      %v1528 = vld [vmem:[%s1 + $0x48] sm:$0xf]
      %v1529 = vld [vmem:[%s1 + $0x4c] sm:$0xf]
      %v1530 = vld [vmem:[%s1 + $0x50] sm:$0xf]
      %v1531 = vld [vmem:[%s1 + $0x54] sm:$0xf]
      %v1532 = vld [vmem:[%s1 + $0x58] sm:$0xf]
      %v1533 = vld [vmem:[%s1 + $0x5c] sm:$0xf]
      %v1534 = vld [vmem:[%s1 + $0x60] sm:$0xf]
      %v1535 = vld [vmem:[%s1 + $0x64] sm:$0xf]
      %v1536 = vld [vmem:[%s1 + $0x68] sm:$0xf]
      %v1537 = vld [vmem:[%s1 + $0x6c] sm:$0xf]
      %v1538 = vld [vmem:[%s1 + $0x70] sm:$0xf]
      %v1539 = vld [vmem:[%s1 + $0x74] sm:$0xf]
      %v1540 = vld [vmem:[%s1 + $0x78] sm:$0xf]
      %v1541 = vld [vmem:[%s1 + $0x7c] sm:$0xf]
      %v1542 = vld [vmem:[%s1 + $0x80] sm:$0xf]
      %v1543 = vld [vmem:[%s1 + $0x84] sm:$0xf]
      %v1544 = vld [vmem:[%s1 + $0x88] sm:$0xf]
      %v1545 = vld [vmem:[%s1 + $0x8c] sm:$0xf]
      %v1546 = vld [vmem:[%s1 + $0x90] sm:$0xf]
      %v1547 = vld [vmem:[%s1 + $0x94] sm:$0xf]
      %v1548 = vld [vmem:[%s1 + $0x98] sm:$0xf]
      %v1549 = vld [vmem:[%s1 + $0x9c] sm:$0xf]
      %v1550 = vld [vmem:[%s1 + $0xa0] sm:$0xf]
      %v1551 = vld [vmem:[%s1 + $0xa4] sm:$0xf]
      %v1552 = vld [vmem:[%s1 + $0xa8] sm:$0xf]
      %v1553 = vld [vmem:[%s1 + $0xac] sm:$0xf]
      %v1554 = vld [vmem:[%s1 + $0xb0] sm:$0xf]
      %v1555 = vld [vmem:[%s1 + $0xb4] sm:$0xf]
      %v1556 = vld [vmem:[%s1 + $0xb8] sm:$0xf]
      %v1557 = vld [vmem:[%s1 + $0xbc] sm:$0xf]
      %v1558 = vcombine.low %v725, %v726
      %v1559 = vcombine.high %v725, %v726
      %v1560 = vcombine.low %v727, %v759
      %v1561 = vcombine.high %v727, %v759
      %v1563 = vunpack.c.l.s4 1983009808
      %v1564 = vunpack.c.0.s8 %v1563
      %v1565 = vlaneseq
      %v1566 = vshrl.u32 %v1565, 7
      %v1567 = vsub.s32 %v1564, %v1566
      %v1568 = vrot.slane %v1558, %v1567
      %v1570 = vunpack.c.l.s4 1983009808
      %v1571 = vunpack.c.0.s8 %v1570
      %v1572 = vlaneseq
      %v1573 = vshrl.u32 %v1572, 7
      %v1574 = vsub.s32 %v1571, %v1573
      %v1575 = vrot.slane %v1559, %v1574
      %v1577 = vunpack.c.l.s4 1983009808
      %v1578 = vunpack.c.0.s8 %v1577
      %v1579 = vlaneseq
      %v1580 = vshrl.u32 %v1579, 7
      %v1581 = vsub.s32 %v1578, %v1580
      %v1582 = vrot.slane %v1560, %v1581
      %v1584 = vunpack.c.l.s4 1983009808
      %v1585 = vunpack.c.0.s8 %v1584
      %v1586 = vlaneseq
      %v1587 = vshrl.u32 %v1586, 7
      %v1588 = vsub.s32 %v1585, %v1587
      %v1589 = vrot.slane %v1561, %v1588
      %v1590 = vcombine.low %v1568, %v1582
      %v1591 = vcombine.high %v1568, %v1582
      %v1592 = vcombine.low %v1575, %v1589
      %v1593 = vcombine.low %v760, %v761
      %v1594 = vcombine.high %v760, %v761
      %v1595 = vcombine.low %v793, %v794
      %v1596 = vcombine.high %v793, %v794
      %v1598 = vunpack.c.l.s4 1983009808
      %v1599 = vunpack.c.0.s8 %v1598
      %v1600 = vlaneseq
      %v1601 = vshrl.u32 %v1600, 7
      %v1602 = vsub.s32 %v1599, %v1601
      %v1603 = vrot.slane %v1593, %v1602
      %v1605 = vunpack.c.l.s4 1983009808
      %v1606 = vunpack.c.0.s8 %v1605
      %v1607 = vlaneseq
      %v1608 = vshrl.u32 %v1607, 7
      %v1609 = vsub.s32 %v1606, %v1608
      %v1610 = vrot.slane %v1594, %v1609
      %v1612 = vunpack.c.l.s4 1983009808
      %v1613 = vunpack.c.0.s8 %v1612
      %v1614 = vlaneseq
      %v1615 = vshrl.u32 %v1614, 7
      %v1616 = vsub.s32 %v1613, %v1615
      %v1617 = vrot.slane %v1595, %v1616
      %v1619 = vunpack.c.l.s4 1983009808
      %v1620 = vunpack.c.0.s8 %v1619
      %v1621 = vlaneseq
      %v1622 = vshrl.u32 %v1621, 7
      %v1623 = vsub.s32 %v1620, %v1622
      %v1624 = vrot.slane %v1596, %v1623
      %v1625 = vcombine.low %v1603, %v1617
      %v1626 = vcombine.high %v1603, %v1617
      %v1627 = vcombine.low %v1610, %v1624
      %v1628 = vcombine.low %v795, %v827
      %v1629 = vcombine.high %v795, %v827
      %v1630 = vcombine.low %v828, %v829
      %v1631 = vcombine.high %v828, %v829
      %v1633 = vunpack.c.l.s4 1983009808
      %v1634 = vunpack.c.0.s8 %v1633
      %v1635 = vlaneseq
      %v1636 = vshrl.u32 %v1635, 7
      %v1637 = vsub.s32 %v1634, %v1636
      %v1638 = vrot.slane %v1628, %v1637
      %v1640 = vunpack.c.l.s4 1983009808
      %v1641 = vunpack.c.0.s8 %v1640
      %v1642 = vlaneseq
      %v1643 = vshrl.u32 %v1642, 7
      %v1644 = vsub.s32 %v1641, %v1643
      %v1645 = vrot.slane %v1629, %v1644
      %v1647 = vunpack.c.l.s4 1983009808
      %v1648 = vunpack.c.0.s8 %v1647
      %v1649 = vlaneseq
      %v1650 = vshrl.u32 %v1649, 7
      %v1651 = vsub.s32 %v1648, %v1650
      %v1652 = vrot.slane %v1630, %v1651
      %v1654 = vunpack.c.l.s4 1983009808
      %v1655 = vunpack.c.0.s8 %v1654
      %v1656 = vlaneseq
      %v1657 = vshrl.u32 %v1656, 7
      %v1658 = vsub.s32 %v1655, %v1657
      %v1659 = vrot.slane %v1631, %v1658
      %v1660 = vcombine.low %v1638, %v1652
      %v1661 = vcombine.high %v1638, %v1652
      %v1662 = vcombine.low %v1645, %v1659
      %v1663 = vcombine.low %v861, %v862
      %v1664 = vcombine.high %v861, %v862
      %v1665 = vcombine.low %v863, %v895
      %v1666 = vcombine.high %v863, %v895
      %v1668 = vunpack.c.l.s4 1983009808
      %v1669 = vunpack.c.0.s8 %v1668
      %v1670 = vlaneseq
      %v1671 = vshrl.u32 %v1670, 7
      %v1672 = vsub.s32 %v1669, %v1671
      %v1673 = vrot.slane %v1663, %v1672
      %v1675 = vunpack.c.l.s4 1983009808
      %v1676 = vunpack.c.0.s8 %v1675
      %v1677 = vlaneseq
      %v1678 = vshrl.u32 %v1677, 7
      %v1679 = vsub.s32 %v1676, %v1678
      %v1680 = vrot.slane %v1664, %v1679
      %v1682 = vunpack.c.l.s4 1983009808
      %v1683 = vunpack.c.0.s8 %v1682
      %v1684 = vlaneseq
      %v1685 = vshrl.u32 %v1684, 7
      %v1686 = vsub.s32 %v1683, %v1685
      %v1687 = vrot.slane %v1665, %v1686
      %v1689 = vunpack.c.l.s4 1983009808
      %v1690 = vunpack.c.0.s8 %v1689
      %v1691 = vlaneseq
      %v1692 = vshrl.u32 %v1691, 7
      %v1693 = vsub.s32 %v1690, %v1692
      %v1694 = vrot.slane %v1666, %v1693
      %v1695 = vcombine.low %v1673, %v1687
      %v1696 = vcombine.high %v1673, %v1687
      %v1697 = vcombine.low %v1680, %v1694
      %v1698 = vcombine.low %v896, %v897
      %v1699 = vcombine.high %v896, %v897
      %v1700 = vcombine.low %v929, %v930
      %v1701 = vcombine.high %v929, %v930
      %v1703 = vunpack.c.l.s4 1983009808
      %v1704 = vunpack.c.0.s8 %v1703
      %v1705 = vlaneseq
      %v1706 = vshrl.u32 %v1705, 7
      %v1707 = vsub.s32 %v1704, %v1706
      %v1708 = vrot.slane %v1698, %v1707
      %v1710 = vunpack.c.l.s4 1983009808
      %v1711 = vunpack.c.0.s8 %v1710
      %v1712 = vlaneseq
      %v1713 = vshrl.u32 %v1712, 7
      %v1714 = vsub.s32 %v1711, %v1713
      %v1715 = vrot.slane %v1699, %v1714
      %v1717 = vunpack.c.l.s4 1983009808
      %v1718 = vunpack.c.0.s8 %v1717
      %v1719 = vlaneseq
      %v1720 = vshrl.u32 %v1719, 7
      %v1721 = vsub.s32 %v1718, %v1720
      %v1722 = vrot.slane %v1700, %v1721
      %v1724 = vunpack.c.l.s4 1983009808
      %v1725 = vunpack.c.0.s8 %v1724
      %v1726 = vlaneseq
      %v1727 = vshrl.u32 %v1726, 7
      %v1728 = vsub.s32 %v1725, %v1727
      %v1729 = vrot.slane %v1701, %v1728
      %v1730 = vcombine.low %v1708, %v1722
      %v1731 = vcombine.high %v1708, %v1722
      %v1732 = vcombine.low %v1715, %v1729
      %v1733 = vcombine.low %v931, %v963
      %v1734 = vcombine.high %v931, %v963
      %v1735 = vcombine.low %v964, %v965
      %v1736 = vcombine.high %v964, %v965
      %v1738 = vunpack.c.l.s4 1983009808
      %v1739 = vunpack.c.0.s8 %v1738
      %v1740 = vlaneseq
      %v1741 = vshrl.u32 %v1740, 7
      %v1742 = vsub.s32 %v1739, %v1741
      %v1743 = vrot.slane %v1733, %v1742
      %v1745 = vunpack.c.l.s4 1983009808
      %v1746 = vunpack.c.0.s8 %v1745
      %v1747 = vlaneseq
      %v1748 = vshrl.u32 %v1747, 7
      %v1749 = vsub.s32 %v1746, %v1748
      %v1750 = vrot.slane %v1734, %v1749
      %v1752 = vunpack.c.l.s4 1983009808
      %v1753 = vunpack.c.0.s8 %v1752
      %v1754 = vlaneseq
      %v1755 = vshrl.u32 %v1754, 7
      %v1756 = vsub.s32 %v1753, %v1755
      %v1757 = vrot.slane %v1735, %v1756
      %v1759 = vunpack.c.l.s4 1983009808
      %v1760 = vunpack.c.0.s8 %v1759
      %v1761 = vlaneseq
      %v1762 = vshrl.u32 %v1761, 7
      %v1763 = vsub.s32 %v1760, %v1762
      %v1764 = vrot.slane %v1736, %v1763
      %v1765 = vcombine.low %v1743, %v1757
      %v1766 = vcombine.high %v1743, %v1757
      %v1767 = vcombine.low %v1750, %v1764
      %v1768 = vcombine.low %v997, %v998
      %v1769 = vcombine.high %v997, %v998
      %v1770 = vcombine.low %v999, %v1031
      %v1771 = vcombine.high %v999, %v1031
      %v1773 = vunpack.c.l.s4 1983009808
      %v1774 = vunpack.c.0.s8 %v1773
      %v1775 = vlaneseq
      %v1776 = vshrl.u32 %v1775, 7
      %v1777 = vsub.s32 %v1774, %v1776
      %v1778 = vrot.slane %v1768, %v1777
      %v1780 = vunpack.c.l.s4 1983009808
      %v1781 = vunpack.c.0.s8 %v1780
      %v1782 = vlaneseq
      %v1783 = vshrl.u32 %v1782, 7
      %v1784 = vsub.s32 %v1781, %v1783
      %v1785 = vrot.slane %v1769, %v1784
      %v1787 = vunpack.c.l.s4 1983009808
      %v1788 = vunpack.c.0.s8 %v1787
      %v1789 = vlaneseq
      %v1790 = vshrl.u32 %v1789, 7
      %v1791 = vsub.s32 %v1788, %v1790
      %v1792 = vrot.slane %v1770, %v1791
      %v1794 = vunpack.c.l.s4 1983009808
      %v1795 = vunpack.c.0.s8 %v1794
      %v1796 = vlaneseq
      %v1797 = vshrl.u32 %v1796, 7
      %v1798 = vsub.s32 %v1795, %v1797
      %v1799 = vrot.slane %v1771, %v1798
      %v1800 = vcombine.low %v1778, %v1792
      %v1801 = vcombine.high %v1778, %v1792
      %v1802 = vcombine.low %v1785, %v1799
      %v1803 = vcombine.low %v1032, %v1033
      %v1804 = vcombine.high %v1032, %v1033
      %v1805 = vcombine.low %v1065, %v1066
      %v1806 = vcombine.high %v1065, %v1066
      %v1808 = vunpack.c.l.s4 1983009808
      %v1809 = vunpack.c.0.s8 %v1808
      %v1810 = vlaneseq
      %v1811 = vshrl.u32 %v1810, 7
      %v1812 = vsub.s32 %v1809, %v1811
      %v1813 = vrot.slane %v1803, %v1812
      %v1815 = vunpack.c.l.s4 1983009808
      %v1816 = vunpack.c.0.s8 %v1815
      %v1817 = vlaneseq
      %v1818 = vshrl.u32 %v1817, 7
      %v1819 = vsub.s32 %v1816, %v1818
      %v1820 = vrot.slane %v1804, %v1819
      %v1822 = vunpack.c.l.s4 1983009808
      %v1823 = vunpack.c.0.s8 %v1822
      %v1824 = vlaneseq
      %v1825 = vshrl.u32 %v1824, 7
      %v1826 = vsub.s32 %v1823, %v1825
      %v1827 = vrot.slane %v1805, %v1826
      %v1829 = vunpack.c.l.s4 1983009808
      %v1830 = vunpack.c.0.s8 %v1829
      %v1831 = vlaneseq
      %v1832 = vshrl.u32 %v1831, 7
      %v1833 = vsub.s32 %v1830, %v1832
      %v1834 = vrot.slane %v1806, %v1833
      %v1835 = vcombine.low %v1813, %v1827
      %v1836 = vcombine.high %v1813, %v1827
      %v1837 = vcombine.low %v1820, %v1834
      %v1838 = vcombine.low %v1067, %v1099
      %v1839 = vcombine.high %v1067, %v1099
      %v1840 = vcombine.low %v1100, %v1101
      %v1841 = vcombine.high %v1100, %v1101
      %v1843 = vunpack.c.l.s4 1983009808
      %v1844 = vunpack.c.0.s8 %v1843
      %v1845 = vlaneseq
      %v1846 = vshrl.u32 %v1845, 7
      %v1847 = vsub.s32 %v1844, %v1846
      %v1848 = vrot.slane %v1838, %v1847
      %v1850 = vunpack.c.l.s4 1983009808
      %v1851 = vunpack.c.0.s8 %v1850
      %v1852 = vlaneseq
      %v1853 = vshrl.u32 %v1852, 7
      %v1854 = vsub.s32 %v1851, %v1853
      %v1855 = vrot.slane %v1839, %v1854
      %v1857 = vunpack.c.l.s4 1983009808
      %v1858 = vunpack.c.0.s8 %v1857
      %v1859 = vlaneseq
      %v1860 = vshrl.u32 %v1859, 7
      %v1861 = vsub.s32 %v1858, %v1860
      %v1862 = vrot.slane %v1840, %v1861
      %v1864 = vunpack.c.l.s4 1983009808
      %v1865 = vunpack.c.0.s8 %v1864
      %v1866 = vlaneseq
      %v1867 = vshrl.u32 %v1866, 7
      %v1868 = vsub.s32 %v1865, %v1867
      %v1869 = vrot.slane %v1841, %v1868
      %v1870 = vcombine.low %v1848, %v1862
      %v1871 = vcombine.high %v1848, %v1862
      %v1872 = vcombine.low %v1855, %v1869
      %v1873 = vcombine.low %v1133, %v1134
      %v1874 = vcombine.high %v1133, %v1134
      %v1875 = vcombine.low %v1135, %v1167
      %v1876 = vcombine.high %v1135, %v1167
      %v1878 = vunpack.c.l.s4 1983009808
      %v1879 = vunpack.c.0.s8 %v1878
      %v1880 = vlaneseq
      %v1881 = vshrl.u32 %v1880, 7
      %v1882 = vsub.s32 %v1879, %v1881
      %v1883 = vrot.slane %v1873, %v1882
      %v1885 = vunpack.c.l.s4 1983009808
      %v1886 = vunpack.c.0.s8 %v1885
      %v1887 = vlaneseq
      %v1888 = vshrl.u32 %v1887, 7
      %v1889 = vsub.s32 %v1886, %v1888
      %v1890 = vrot.slane %v1874, %v1889
      %v1892 = vunpack.c.l.s4 1983009808
      %v1893 = vunpack.c.0.s8 %v1892
      %v1894 = vlaneseq
      %v1895 = vshrl.u32 %v1894, 7
      %v1896 = vsub.s32 %v1893, %v1895
      %v1897 = vrot.slane %v1875, %v1896
      %v1899 = vunpack.c.l.s4 1983009808
      %v1900 = vunpack.c.0.s8 %v1899
      %v1901 = vlaneseq
      %v1902 = vshrl.u32 %v1901, 7
      %v1903 = vsub.s32 %v1900, %v1902
      %v1904 = vrot.slane %v1876, %v1903
      %v1905 = vcombine.low %v1883, %v1897
      %v1906 = vcombine.high %v1883, %v1897
      %v1907 = vcombine.low %v1890, %v1904
      %v1908 = vcombine.low %v1168, %v1169
      %v1909 = vcombine.high %v1168, %v1169
      %v1910 = vcombine.low %v1201, %v1202
      %v1911 = vcombine.high %v1201, %v1202
      %v1913 = vunpack.c.l.s4 1983009808
      %v1914 = vunpack.c.0.s8 %v1913
      %v1915 = vlaneseq
      %v1916 = vshrl.u32 %v1915, 7
      %v1917 = vsub.s32 %v1914, %v1916
      %v1918 = vrot.slane %v1908, %v1917
      %v1920 = vunpack.c.l.s4 1983009808
      %v1921 = vunpack.c.0.s8 %v1920
      %v1922 = vlaneseq
      %v1923 = vshrl.u32 %v1922, 7
      %v1924 = vsub.s32 %v1921, %v1923
      %v1925 = vrot.slane %v1909, %v1924
      %v1927 = vunpack.c.l.s4 1983009808
      %v1928 = vunpack.c.0.s8 %v1927
      %v1929 = vlaneseq
      %v1930 = vshrl.u32 %v1929, 7
      %v1931 = vsub.s32 %v1928, %v1930
      %v1932 = vrot.slane %v1910, %v1931
      %v1934 = vunpack.c.l.s4 1983009808
      %v1935 = vunpack.c.0.s8 %v1934
      %v1936 = vlaneseq
      %v1937 = vshrl.u32 %v1936, 7
      %v1938 = vsub.s32 %v1935, %v1937
      %v1939 = vrot.slane %v1911, %v1938
      %v1940 = vcombine.low %v1918, %v1932
      %v1941 = vcombine.high %v1918, %v1932
      %v1942 = vcombine.low %v1925, %v1939
      %v1943 = vcombine.low %v1203, %v1235
      %v1944 = vcombine.high %v1203, %v1235
      %v1945 = vcombine.low %v1236, %v1237
      %v1946 = vcombine.high %v1236, %v1237
      %v1948 = vunpack.c.l.s4 1983009808
      %v1949 = vunpack.c.0.s8 %v1948
      %v1950 = vlaneseq
      %v1951 = vshrl.u32 %v1950, 7
      %v1952 = vsub.s32 %v1949, %v1951
      %v1953 = vrot.slane %v1943, %v1952
      %v1955 = vunpack.c.l.s4 1983009808
      %v1956 = vunpack.c.0.s8 %v1955
      %v1957 = vlaneseq
      %v1958 = vshrl.u32 %v1957, 7
      %v1959 = vsub.s32 %v1956, %v1958
      %v1960 = vrot.slane %v1944, %v1959
      %v1962 = vunpack.c.l.s4 1983009808
      %v1963 = vunpack.c.0.s8 %v1962
      %v1964 = vlaneseq
      %v1965 = vshrl.u32 %v1964, 7
      %v1966 = vsub.s32 %v1963, %v1965
      %v1967 = vrot.slane %v1945, %v1966
      %v1969 = vunpack.c.l.s4 1983009808
      %v1970 = vunpack.c.0.s8 %v1969
      %v1971 = vlaneseq
      %v1972 = vshrl.u32 %v1971, 7
      %v1973 = vsub.s32 %v1970, %v1972
      %v1974 = vrot.slane %v1946, %v1973
      %v1975 = vcombine.low %v1953, %v1967
      %v1976 = vcombine.high %v1953, %v1967
      %v1977 = vcombine.low %v1960, %v1974
      %v1978 = vcombine.low %v1269, %v1270
      %v1979 = vcombine.high %v1269, %v1270
      %v1980 = vcombine.low %v1271, %v1303
      %v1981 = vcombine.high %v1271, %v1303
      %v1983 = vunpack.c.l.s4 1983009808
      %v1984 = vunpack.c.0.s8 %v1983
      %v1985 = vlaneseq
      %v1986 = vshrl.u32 %v1985, 7
      %v1987 = vsub.s32 %v1984, %v1986
      %v1988 = vrot.slane %v1978, %v1987
      %v1990 = vunpack.c.l.s4 1983009808
      %v1991 = vunpack.c.0.s8 %v1990
      %v1992 = vlaneseq
      %v1993 = vshrl.u32 %v1992, 7
      %v1994 = vsub.s32 %v1991, %v1993
      %v1995 = vrot.slane %v1979, %v1994
      %v1997 = vunpack.c.l.s4 1983009808
      %v1998 = vunpack.c.0.s8 %v1997
      %v1999 = vlaneseq
      %v2000 = vshrl.u32 %v1999, 7
      %v2001 = vsub.s32 %v1998, %v2000
      %v2002 = vrot.slane %v1980, %v2001
      %v2004 = vunpack.c.l.s4 1983009808
      %v2005 = vunpack.c.0.s8 %v2004
      %v2006 = vlaneseq
      %v2007 = vshrl.u32 %v2006, 7
      %v2008 = vsub.s32 %v2005, %v2007
      %v2009 = vrot.slane %v1981, %v2008
      %v2010 = vcombine.low %v1988, %v2002
      %v2011 = vcombine.high %v1988, %v2002
      %v2012 = vcombine.low %v1995, %v2009
      %v2013 = vcombine.low %v1304, %v1305
      %v2014 = vcombine.high %v1304, %v1305
      %v2015 = vcombine.low %v1337, %v1338
      %v2016 = vcombine.high %v1337, %v1338
      %v2018 = vunpack.c.l.s4 1983009808
      %v2019 = vunpack.c.0.s8 %v2018
      %v2020 = vlaneseq
      %v2021 = vshrl.u32 %v2020, 7
      %v2022 = vsub.s32 %v2019, %v2021
      %v2023 = vrot.slane %v2013, %v2022
      %v2025 = vunpack.c.l.s4 1983009808
      %v2026 = vunpack.c.0.s8 %v2025
      %v2027 = vlaneseq
      %v2028 = vshrl.u32 %v2027, 7
      %v2029 = vsub.s32 %v2026, %v2028
      %v2030 = vrot.slane %v2014, %v2029
      %v2032 = vunpack.c.l.s4 1983009808
      %v2033 = vunpack.c.0.s8 %v2032
      %v2034 = vlaneseq
      %v2035 = vshrl.u32 %v2034, 7
      %v2036 = vsub.s32 %v2033, %v2035
      %v2037 = vrot.slane %v2015, %v2036
      %v2039 = vunpack.c.l.s4 1983009808
      %v2040 = vunpack.c.0.s8 %v2039
      %v2041 = vlaneseq
      %v2042 = vshrl.u32 %v2041, 7
      %v2043 = vsub.s32 %v2040, %v2042
      %v2044 = vrot.slane %v2016, %v2043
      %v2045 = vcombine.low %v2023, %v2037
      %v2046 = vcombine.high %v2023, %v2037
      %v2047 = vcombine.low %v2030, %v2044
      %v2048 = vcombine.low %v1339, %v1371
      %v2049 = vcombine.high %v1339, %v1371
      %v2050 = vcombine.low %v1372, %v1373
      %v2051 = vcombine.high %v1372, %v1373
      %v2053 = vunpack.c.l.s4 1983009808
      %v2054 = vunpack.c.0.s8 %v2053
      %v2055 = vlaneseq
      %v2056 = vshrl.u32 %v2055, 7
      %v2057 = vsub.s32 %v2054, %v2056
      %v2058 = vrot.slane %v2048, %v2057
      %v2060 = vunpack.c.l.s4 1983009808
      %v2061 = vunpack.c.0.s8 %v2060
      %v2062 = vlaneseq
      %v2063 = vshrl.u32 %v2062, 7
      %v2064 = vsub.s32 %v2061, %v2063
      %v2065 = vrot.slane %v2049, %v2064
      %v2067 = vunpack.c.l.s4 1983009808
      %v2068 = vunpack.c.0.s8 %v2067
      %v2069 = vlaneseq
      %v2070 = vshrl.u32 %v2069, 7
      %v2071 = vsub.s32 %v2068, %v2070
      %v2072 = vrot.slane %v2050, %v2071
      %v2074 = vunpack.c.l.s4 1983009808
      %v2075 = vunpack.c.0.s8 %v2074
      %v2076 = vlaneseq
      %v2077 = vshrl.u32 %v2076, 7
      %v2078 = vsub.s32 %v2075, %v2077
      %v2079 = vrot.slane %v2051, %v2078
      %v2080 = vcombine.low %v2058, %v2072
      %v2081 = vcombine.high %v2058, %v2072
      %v2082 = vcombine.low %v2065, %v2079
      %v2083 = vcombine.low %v1405, %v1406
      %v2084 = vcombine.high %v1405, %v1406
      %v2085 = vcombine.low %v1407, %v1439
      %v2086 = vcombine.high %v1407, %v1439
      %v2088 = vunpack.c.l.s4 1983009808
      %v2089 = vunpack.c.0.s8 %v2088
      %v2090 = vlaneseq
      %v2091 = vshrl.u32 %v2090, 7
      %v2092 = vsub.s32 %v2089, %v2091
      %v2093 = vrot.slane %v2083, %v2092
      %v2095 = vunpack.c.l.s4 1983009808
      %v2096 = vunpack.c.0.s8 %v2095
      %v2097 = vlaneseq
      %v2098 = vshrl.u32 %v2097, 7
      %v2099 = vsub.s32 %v2096, %v2098
      %v2100 = vrot.slane %v2084, %v2099
      %v2102 = vunpack.c.l.s4 1983009808
      %v2103 = vunpack.c.0.s8 %v2102
      %v2104 = vlaneseq
      %v2105 = vshrl.u32 %v2104, 7
      %v2106 = vsub.s32 %v2103, %v2105
      %v2107 = vrot.slane %v2085, %v2106
      %v2109 = vunpack.c.l.s4 1983009808
      %v2110 = vunpack.c.0.s8 %v2109
      %v2111 = vlaneseq
      %v2112 = vshrl.u32 %v2111, 7
      %v2113 = vsub.s32 %v2110, %v2112
      %v2114 = vrot.slane %v2086, %v2113
      %v2115 = vcombine.low %v2093, %v2107
      %v2116 = vcombine.high %v2093, %v2107
      %v2117 = vcombine.low %v2100, %v2114
      %v2118 = vcombine.low %v1440, %v1441
      %v2119 = vcombine.high %v1440, %v1441
      %v2120 = vcombine.low %v1473, %v1474
      %v2121 = vcombine.high %v1473, %v1474
      %v2123 = vunpack.c.l.s4 1983009808
      %v2124 = vunpack.c.0.s8 %v2123
      %v2125 = vlaneseq
      %v2126 = vshrl.u32 %v2125, 7
      %v2127 = vsub.s32 %v2124, %v2126
      %v2128 = vrot.slane %v2118, %v2127
      %v2130 = vunpack.c.l.s4 1983009808
      %v2131 = vunpack.c.0.s8 %v2130
      %v2132 = vlaneseq
      %v2133 = vshrl.u32 %v2132, 7
      %v2134 = vsub.s32 %v2131, %v2133
      %v2135 = vrot.slane %v2119, %v2134
      %v2137 = vunpack.c.l.s4 1983009808
      %v2138 = vunpack.c.0.s8 %v2137
      %v2139 = vlaneseq
      %v2140 = vshrl.u32 %v2139, 7
      %v2141 = vsub.s32 %v2138, %v2140
      %v2142 = vrot.slane %v2120, %v2141
      %v2144 = vunpack.c.l.s4 1983009808
      %v2145 = vunpack.c.0.s8 %v2144
      %v2146 = vlaneseq
      %v2147 = vshrl.u32 %v2146, 7
      %v2148 = vsub.s32 %v2145, %v2147
      %v2149 = vrot.slane %v2121, %v2148
      %v2150 = vcombine.low %v2128, %v2142
      %v2151 = vcombine.high %v2128, %v2142
      %v2152 = vcombine.low %v2135, %v2149
      %v2153 = vcombine.low %v1475, %v1507
      %v2154 = vcombine.high %v1475, %v1507
      %v2155 = vcombine.low %v1508, %v1509
      %v2156 = vcombine.high %v1508, %v1509
      %v2158 = vunpack.c.l.s4 1983009808
      %v2159 = vunpack.c.0.s8 %v2158
      %v2160 = vlaneseq
      %v2161 = vshrl.u32 %v2160, 7
      %v2162 = vsub.s32 %v2159, %v2161
      %v2163 = vrot.slane %v2153, %v2162
      %v2165 = vunpack.c.l.s4 1983009808
      %v2166 = vunpack.c.0.s8 %v2165
      %v2167 = vlaneseq
      %v2168 = vshrl.u32 %v2167, 7
      %v2169 = vsub.s32 %v2166, %v2168
      %v2170 = vrot.slane %v2154, %v2169
      %v2172 = vunpack.c.l.s4 1983009808
      %v2173 = vunpack.c.0.s8 %v2172
      %v2174 = vlaneseq
      %v2175 = vshrl.u32 %v2174, 7
      %v2176 = vsub.s32 %v2173, %v2175
      %v2177 = vrot.slane %v2155, %v2176
      %v2179 = vunpack.c.l.s4 1983009808
      %v2180 = vunpack.c.0.s8 %v2179
      %v2181 = vlaneseq
      %v2182 = vshrl.u32 %v2181, 7
      %v2183 = vsub.s32 %v2180, %v2182
      %v2184 = vrot.slane %v2156, %v2183
      %v2185 = vcombine.low %v2163, %v2177
      %v2186 = vcombine.high %v2163, %v2177
      %v2187 = vcombine.low %v2170, %v2184
      %v2290 = vunpack.c.l.b16 %v1510
      %v2291 = vunpack.c.l.b16 %v1511
      %v2292 = vunpack.c.l.b16 %v1512
      %v2293 = vunpack.c.l.b16 %v1513
      %v2294 = vunpack.c.l.b16 %v1514
      %v2295 = vunpack.c.l.b16 %v1515
      %v2296 = vunpack.c.l.b16 %v1516
      %v2297 = vunpack.c.l.b16 %v1517
      %v2298 = vunpack.c.l.b16 %v1518
      %v2299 = vunpack.c.l.b16 %v1519
      %v2300 = vunpack.c.l.b16 %v1520
      %v2301 = vunpack.c.l.b16 %v1521
      %v2302 = vunpack.c.l.b16 %v1522
      %v2303 = vunpack.c.l.b16 %v1523
      %v2304 = vunpack.c.l.b16 %v1524
      %v2305 = vunpack.c.l.b16 %v1525
      %v2306 = vunpack.c.l.b16 %v1526
      %v2307 = vunpack.c.l.b16 %v1527
      %v2308 = vunpack.c.l.b16 %v1528
      %v2309 = vunpack.c.l.b16 %v1529
      %v2310 = vunpack.c.l.b16 %v1530
      %v2311 = vunpack.c.l.b16 %v1531
      %v2312 = vunpack.c.l.b16 %v1532
      %v2313 = vunpack.c.l.b16 %v1533
      %v2314 = vunpack.c.l.b16 %v1534
      %v2315 = vunpack.c.l.b16 %v1535
      %v2316 = vunpack.c.l.b16 %v1536
      %v2317 = vunpack.c.l.b16 %v1537
      %v2318 = vunpack.c.l.b16 %v1538
      %v2319 = vunpack.c.l.b16 %v1539
      %v2320 = vunpack.c.l.b16 %v1540
      %v2321 = vunpack.c.l.b16 %v1541
      %v2322 = vunpack.c.l.b16 %v1542
      %v2323 = vunpack.c.l.b16 %v1543
      %v2324 = vunpack.c.l.b16 %v1544
      %v2325 = vunpack.c.l.b16 %v1545
      %v2326 = vunpack.c.l.b16 %v1546
      %v2327 = vunpack.c.l.b16 %v1547
      %v2328 = vunpack.c.l.b16 %v1548
      %v2329 = vunpack.c.l.b16 %v1549
      %v2330 = vunpack.c.l.b16 %v1550
      %v2331 = vunpack.c.l.b16 %v1551
      %v2332 = vunpack.c.l.b16 %v1552
      %v2333 = vunpack.c.l.b16 %v1553
      %v2334 = vunpack.c.l.b16 %v1554
      %v2335 = vunpack.c.l.b16 %v1555
      %v2336 = vunpack.c.l.b16 %v1556
      %v2337 = vunpack.c.l.b16 %v1557
      %v2338 = vpack.c.b16 %v2291, %v2290
      %v2339 = vpack.c.b16 %v2293, %v2292
      %v2340 = vpack.c.b16 %v2295, %v2294
      %v2341 = vpack.c.b16 %v2297, %v2296
      %v2342 = vpack.c.b16 %v2299, %v2298
      %v2343 = vpack.c.b16 %v2301, %v2300
      %v2344 = vpack.c.b16 %v2303, %v2302
      %v2345 = vpack.c.b16 %v2305, %v2304
      %v2346 = vpack.c.b16 %v2307, %v2306
      %v2347 = vpack.c.b16 %v2309, %v2308
      %v2348 = vpack.c.b16 %v2311, %v2310
      %v2349 = vpack.c.b16 %v2313, %v2312
      %v2350 = vpack.c.b16 %v2315, %v2314
      %v2351 = vpack.c.b16 %v2317, %v2316
      %v2352 = vpack.c.b16 %v2319, %v2318
      %v2353 = vpack.c.b16 %v2321, %v2320
      %v2354 = vpack.c.b16 %v2323, %v2322
      %v2355 = vpack.c.b16 %v2325, %v2324
      %v2356 = vpack.c.b16 %v2327, %v2326
      %v2357 = vpack.c.b16 %v2329, %v2328
      %v2358 = vpack.c.b16 %v2331, %v2330
      %v2359 = vpack.c.b16 %v2333, %v2332
      %v2360 = vpack.c.b16 %v2335, %v2334
      %v2361 = vpack.c.b16 %v2337, %v2336
      %2386 = vmatprep.subr.bf16.mxu0 0
      %2387 = vmatpush1.bf16.msra.mxu0 %v2338
      %2388 = vmatprep.subr.bf16.mxu0 0
      %2389 = vmatpush1.bf16.msra.mxu0 %v2339
      %2390 = vmatprep.subr.bf16.mxu0 0
      %2391 = vmatpush1.bf16.msra.mxu0 %v2340
      %2392 = vmatprep.subr.bf16.mxu0 0
      %2393 = vmatpush1.bf16.msra.mxu0 %v2341
      %2394 = vmatprep.subr.bf16.mxu0 0
      %2395 = vmatpush1.bf16.msra.mxu0 %v2342
      %2396 = vmatprep.subr.bf16.mxu0 0
      %2397 = vmatpush1.bf16.msra.mxu0 %v2343
      %2398 = vmatprep.subr.bf16.mxu0 0
      %2399 = vmatpush1.bf16.msra.mxu0 %v2344
      %2400 = vmatprep.subr.bf16.mxu0 0
      %2401 = vmatpush1.bf16.msra.mxu0 %v2345
      %2402 = vmatprep.subr.bf16.mxu0 0
      %2403 = vmatpush1.bf16.msra.mxu0 %v2346
      %2404 = vmatprep.subr.bf16.mxu0 0
      %2405 = vmatpush1.bf16.msra.mxu0 %v2347
      %2406 = vmatprep.subr.bf16.mxu0 0
      %2407 = vmatpush1.bf16.msra.mxu0 %v2348
      %2408 = vmatprep.subr.bf16.mxu0 0
      %2409 = vmatpush1.bf16.msra.mxu0 %v2349
      %2410 = vmatprep.subr.bf16.mxu0 0
      %2411 = vmatpush1.bf16.msra.mxu0 %v2350
      %2412 = vmatprep.subr.bf16.mxu0 0
      %2413 = vmatpush1.bf16.msra.mxu0 %v2351
      %2414 = vmatprep.subr.bf16.mxu0 0
      %2415 = vmatpush1.bf16.msra.mxu0 %v2352
      %2416 = vmatprep.subr.bf16.mxu0 0
      %2417 = vmatpush1.bf16.msra.mxu0 %v2353
      %2418 = vmatprep.mubr.bf16.mxu0 %v1591
      %2419 = vmatmul.mubr.bf16.gmra.mrb[0].mxu0 %v1590
      %v2420 = vpop.f32.mrb[0].mxu0
      %v2421 = vadd.f32 0.0, %v2420
      %v2422 = vpop.f32.mrb[0].mxu0
      %v2423 = vpop.f32.mrb[0].mxu0
      %v2424 = vadd.f32 0.0, %v2423
      %v2425 = vpop.f32.mrb[0].mxu0
      %2426 = vmatprep.mubr.bf16.mxu0 %v1626
      %2427 = vmatmul.mubr.bf16.gmra.mrb[0].mxu0 %v1625
      %v2428 = vpop.f32.mrb[0].mxu0
      %v2429 = vadd.f32 0.0, %v2428
      %v2430 = vpop.f32.mrb[0].mxu0
      %v2431 = vpop.f32.mrb[0].mxu0
      %v2432 = vadd.f32 0.0, %v2431
      %v2433 = vpop.f32.mrb[0].mxu0
      %2434 = vmatprep.mubr.bf16.mxu0 %v1661
      %2435 = vmatmul.mubr.bf16.gmra.mrb[0].mxu0 %v1660
      %v2436 = vpop.f32.mrb[0].mxu0
      %v2437 = vadd.f32 0.0, %v2436
      %v2438 = vpop.f32.mrb[0].mxu0
      %v2439 = vpop.f32.mrb[0].mxu0
      %v2440 = vadd.f32 0.0, %v2439
      %v2441 = vpop.f32.mrb[0].mxu0
      %2442 = vmatprep.mubr.bf16.mxu0 %v1696
      %2443 = vmatmul.mubr.bf16.gmra.mrb[0].mxu0 %v1695
      %v2444 = vpop.f32.mrb[0].mxu0
      %v2445 = vadd.f32 0.0, %v2444
      %v2446 = vpop.f32.mrb[0].mxu0
      %v2447 = vpop.f32.mrb[0].mxu0
      %v2448 = vadd.f32 0.0, %v2447
      %v2449 = vpop.f32.mrb[0].mxu0
      %2450 = vmatprep.mubr.bf16.mxu0 %v1731
      %2451 = vmatmul.mubr.bf16.gmra.mrb[0].mxu0 %v1730
      %v2452 = vpop.f32.mrb[0].mxu0
      %v2453 = vadd.f32 0.0, %v2452
      %v2454 = vpop.f32.mrb[0].mxu0
      %v2455 = vpop.f32.mrb[0].mxu0
      %v2456 = vadd.f32 0.0, %v2455
      %v2457 = vpop.f32.mrb[0].mxu0
      %2458 = vmatprep.mubr.bf16.mxu0 %v1766
      %2459 = vmatmul.mubr.bf16.gmra.mrb[0].mxu0 %v1765
      %v2460 = vpop.f32.mrb[0].mxu0
      %v2461 = vadd.f32 0.0, %v2460
      %v2462 = vpop.f32.mrb[0].mxu0
      %v2463 = vpop.f32.mrb[0].mxu0
      %v2464 = vadd.f32 0.0, %v2463
      %v2465 = vpop.f32.mrb[0].mxu0
      %2466 = vmatprep.mubr.bf16.mxu0 %v1801
      %2467 = vmatmul.mubr.bf16.gmra.mrb[0].mxu0 %v1800
      %v2468 = vpop.f32.mrb[0].mxu0
      %v2469 = vadd.f32 0.0, %v2468
      %v2470 = vpop.f32.mrb[0].mxu0
      %v2471 = vpop.f32.mrb[0].mxu0
      %v2472 = vadd.f32 0.0, %v2471
      %v2473 = vpop.f32.mrb[0].mxu0
      %2474 = vmatprep.mubr.bf16.mxu0 %v1836
      %2475 = vmatmul.mubr.bf16.gmra.mrb[0].mxu0 %v1835
      %v2476 = vpop.f32.mrb[0].mxu0
      %v2477 = vadd.f32 0.0, %v2476
      %v2478 = vpop.f32.mrb[0].mxu0
      %v2479 = vpop.f32.mrb[0].mxu0
      %v2480 = vadd.f32 0.0, %v2479
      %v2481 = vpop.f32.mrb[0].mxu0
      %2482 = vmatprep.mubr.bf16.mxu0 %v1871
      %2483 = vmatmul.mubr.bf16.gmra.mrb[0].mxu0 %v1870
      %v2484 = vpop.f32.mrb[0].mxu0
      %v2485 = vadd.f32 0.0, %v2484
      %v2486 = vpop.f32.mrb[0].mxu0
      %v2487 = vpop.f32.mrb[0].mxu0
      %v2488 = vadd.f32 0.0, %v2487
      %v2489 = vpop.f32.mrb[0].mxu0
      %2490 = vmatprep.mubr.bf16.mxu0 %v1906
      %2491 = vmatmul.mubr.bf16.gmra.mrb[0].mxu0 %v1905
      %v2492 = vpop.f32.mrb[0].mxu0
      %v2493 = vadd.f32 0.0, %v2492
      %v2494 = vpop.f32.mrb[0].mxu0
      %v2495 = vpop.f32.mrb[0].mxu0
      %v2496 = vadd.f32 0.0, %v2495
      %v2497 = vpop.f32.mrb[0].mxu0
      %2498 = vmatprep.mubr.bf16.mxu0 %v1941
      %2499 = vmatmul.mubr.bf16.gmra.mrb[0].mxu0 %v1940
      %v2500 = vpop.f32.mrb[0].mxu0
      %v2501 = vadd.f32 0.0, %v2500
      %v2502 = vpop.f32.mrb[0].mxu0
      %v2503 = vpop.f32.mrb[0].mxu0
      %v2504 = vadd.f32 0.0, %v2503
      %v2505 = vpop.f32.mrb[0].mxu0
      %2506 = vmatprep.mubr.bf16.mxu0 %v1976
      %2507 = vmatmul.mubr.bf16.gmra.mrb[0].mxu0 %v1975
      %v2508 = vpop.f32.mrb[0].mxu0
      %v2509 = vadd.f32 0.0, %v2508
      %v2510 = vpop.f32.mrb[0].mxu0
      %v2511 = vpop.f32.mrb[0].mxu0
      %v2512 = vadd.f32 0.0, %v2511
      %v2513 = vpop.f32.mrb[0].mxu0
      %2514 = vmatprep.mubr.bf16.mxu0 %v2011
      %2515 = vmatmul.mubr.bf16.gmra.mrb[0].mxu0 %v2010
      %v2516 = vpop.f32.mrb[0].mxu0
      %v2517 = vadd.f32 0.0, %v2516
      %v2518 = vpop.f32.mrb[0].mxu0
      %v2519 = vpop.f32.mrb[0].mxu0
      %v2520 = vadd.f32 0.0, %v2519
      %v2521 = vpop.f32.mrb[0].mxu0
      %2522 = vmatprep.mubr.bf16.mxu0 %v2046
      %2523 = vmatmul.mubr.bf16.gmra.mrb[0].mxu0 %v2045
      %v2524 = vpop.f32.mrb[0].mxu0
      %v2525 = vadd.f32 0.0, %v2524
      %v2526 = vpop.f32.mrb[0].mxu0
      %v2527 = vpop.f32.mrb[0].mxu0
      %v2528 = vadd.f32 0.0, %v2527
      %v2529 = vpop.f32.mrb[0].mxu0
      %2530 = vmatprep.mubr.bf16.mxu0 %v2081
      %2531 = vmatmul.mubr.bf16.gmra.mrb[0].mxu0 %v2080
      %v2532 = vpop.f32.mrb[0].mxu0
      %v2533 = vadd.f32 0.0, %v2532
      %v2534 = vpop.f32.mrb[0].mxu0
      %v2535 = vpop.f32.mrb[0].mxu0
      %v2536 = vadd.f32 0.0, %v2535
      %v2537 = vpop.f32.mrb[0].mxu0
      %2538 = vmatprep.mubr.bf16.mxu0 %v2116
      %2539 = vmatmul.mubr.bf16.gmra.mrb[0].mxu0 %v2115
      %v2540 = vpop.f32.mrb[0].mxu0
      %v2541 = vadd.f32 0.0, %v2540
      %v2542 = vpop.f32.mrb[0].mxu0
      %v2543 = vpop.f32.mrb[0].mxu0
      %v2544 = vadd.f32 0.0, %v2543
      %v2545 = vpop.f32.mrb[0].mxu0
      %2546 = vmatprep.mubr.bf16.mxu0 %v2151
      %2547 = vmatmul.mubr.bf16.gmra.mrb[0].mxu0 %v2150
      %v2548 = vpop.f32.mrb[0].mxu0
      %v2549 = vadd.f32 0.0, %v2548
      %v2550 = vpop.f32.mrb[0].mxu0
      %v2551 = vpop.f32.mrb[0].mxu0
      %v2552 = vadd.f32 0.0, %v2551
      %v2553 = vpop.f32.mrb[0].mxu0
      %2554 = vmatprep.mubr.bf16.mxu0 %v2186
      %2555 = vmatmul.mubr.bf16.gmra.mrb[0].mxu0 %v2185
      %v2556 = vpop.f32.mrb[0].mxu0
      %v2557 = vadd.f32 0.0, %v2556
      %v2558 = vpop.f32.mrb[0].mxu0
      %v2559 = vpop.f32.mrb[0].mxu0
      %v2560 = vadd.f32 0.0, %v2559
      %v2561 = vpop.f32.mrb[0].mxu0
      %2562 = vdwg.mxu0
      %2563 = vmatprep.subr.bf16.mxu0 0
      %2564 = vmatpush1.bf16.msra.mxu0 %v2354
      %2565 = vmatprep.subr.bf16.mxu0 0
      %2566 = vmatpush1.bf16.msra.mxu0 %v2355
      %2567 = vmatprep.subr.bf16.mxu0 0
      %2568 = vmatpush1.bf16.msra.mxu0 %v2356
      %2569 = vmatprep.subr.bf16.mxu0 0
      %2570 = vmatpush1.bf16.msra.mxu0 %v2357
      %2571 = vmatprep.subr.bf16.mxu0 0
      %2572 = vmatpush1.bf16.msra.mxu0 %v2358
      %2573 = vmatprep.subr.bf16.mxu0 0
      %2574 = vmatpush1.bf16.msra.mxu0 %v2359
      %2575 = vmatprep.subr.bf16.mxu0 0
      %2576 = vmatpush1.bf16.msra.mxu0 %v2360
      %2577 = vmatprep.subr.bf16.mxu0 0
      %2578 = vmatpush1.bf16.msra.mxu0 %v2361
      %2579 = vmatprep.subr.bf16.mxu0 0
      %2580 = vmatpush1.bf16.msra.mxu0 0
      %2581 = vmatprep.subr.bf16.mxu0 0
      %2582 = vmatpush1.bf16.msra.mxu0 0
      %2583 = vmatprep.subr.bf16.mxu0 0
      %2584 = vmatpush1.bf16.msra.mxu0 0
      %2585 = vmatprep.subr.bf16.mxu0 0
      %2586 = vmatpush1.bf16.msra.mxu0 0
      %2587 = vmatprep.subr.bf16.mxu0 0
      %2588 = vmatpush1.bf16.msra.mxu0 0
      %2589 = vmatprep.subr.bf16.mxu0 0
      %2590 = vmatpush1.bf16.msra.mxu0 0
      %2591 = vmatprep.subr.bf16.mxu0 0
      %2592 = vmatpush1.bf16.msra.mxu0 0
      %2593 = vmatprep.subr.bf16.mxu0 0
      %2594 = vmatpush1.bf16.msra.mxu0 0
      %2595 = vmatprep.mubr.bf16.mxu0 0
      %2596 = vmatmul.mubr.bf16.gmra.mrb[0].mxu0 %v1592
      %v2597 = vpop.f32.mrb[0].mxu0
      %v2598 = vadd.f32 %v2421, %v2597
      %v2599 = vpop.f32.mrb[0].mxu0
      %v2600 = vpop.f32.mrb[0].mxu0
      %v2601 = vadd.f32 %v2424, %v2600
      %v2602 = vpop.f32.mrb[0].mxu0
      %2603 = vmatprep.mubr.bf16.mxu0 0
      %2604 = vmatmul.mubr.bf16.gmra.mrb[0].mxu0 %v1627
      %v2605 = vpop.f32.mrb[0].mxu0
      %v2606 = vadd.f32 %v2429, %v2605
      %v2607 = vpop.f32.mrb[0].mxu0
      %v2608 = vpop.f32.mrb[0].mxu0
      %v2609 = vadd.f32 %v2432, %v2608
      %v2610 = vpop.f32.mrb[0].mxu0
      %2611 = vmatprep.mubr.bf16.mxu0 0
      %2612 = vmatmul.mubr.bf16.gmra.mrb[0].mxu0 %v1662
      %v2613 = vpop.f32.mrb[0].mxu0
      %v2614 = vadd.f32 %v2437, %v2613
      %v2615 = vpop.f32.mrb[0].mxu0
      %v2616 = vpop.f32.mrb[0].mxu0
      %v2617 = vadd.f32 %v2440, %v2616
      %v2618 = vpop.f32.mrb[0].mxu0
      %2619 = vmatprep.mubr.bf16.mxu0 0
      %2620 = vmatmul.mubr.bf16.gmra.mrb[0].mxu0 %v1697
      %v2621 = vpop.f32.mrb[0].mxu0
      %v2622 = vadd.f32 %v2445, %v2621
      %v2623 = vpop.f32.mrb[0].mxu0
      %v2624 = vpop.f32.mrb[0].mxu0
      %v2625 = vadd.f32 %v2448, %v2624
      %v2626 = vpop.f32.mrb[0].mxu0
      %2627 = vmatprep.mubr.bf16.mxu0 0
      %2628 = vmatmul.mubr.bf16.gmra.mrb[0].mxu0 %v1732
      %v2629 = vpop.f32.mrb[0].mxu0
      %v2630 = vadd.f32 %v2453, %v2629
      %v2631 = vpop.f32.mrb[0].mxu0
      %v2632 = vpop.f32.mrb[0].mxu0
      %v2633 = vadd.f32 %v2456, %v2632
      %v2634 = vpop.f32.mrb[0].mxu0
      %2635 = vmatprep.mubr.bf16.mxu0 0
      %2636 = vmatmul.mubr.bf16.gmra.mrb[0].mxu0 %v1767
      %v2637 = vpop.f32.mrb[0].mxu0
      %v2638 = vadd.f32 %v2461, %v2637
      %v2639 = vpop.f32.mrb[0].mxu0
      %v2640 = vpop.f32.mrb[0].mxu0
      %v2641 = vadd.f32 %v2464, %v2640
      %v2642 = vpop.f32.mrb[0].mxu0
      %2643 = vmatprep.mubr.bf16.mxu0 0
      %2644 = vmatmul.mubr.bf16.gmra.mrb[0].mxu0 %v1802
      %v2645 = vpop.f32.mrb[0].mxu0
      %v2646 = vadd.f32 %v2469, %v2645
      %v2647 = vpop.f32.mrb[0].mxu0
      %v2648 = vpop.f32.mrb[0].mxu0
      %v2649 = vadd.f32 %v2472, %v2648
      %v2650 = vpop.f32.mrb[0].mxu0
      %2651 = vmatprep.mubr.bf16.mxu0 0
      %2652 = vmatmul.mubr.bf16.gmra.mrb[0].mxu0 %v1837
      %v2653 = vpop.f32.mrb[0].mxu0
      %v2654 = vadd.f32 %v2477, %v2653
      %v2655 = vpop.f32.mrb[0].mxu0
      %v2656 = vpop.f32.mrb[0].mxu0
      %v2657 = vadd.f32 %v2480, %v2656
      %v2658 = vpop.f32.mrb[0].mxu0
      %2659 = vmatprep.mubr.bf16.mxu0 0
      %2660 = vmatmul.mubr.bf16.gmra.mrb[0].mxu0 %v1872
      %v2661 = vpop.f32.mrb[0].mxu0
      %v2662 = vadd.f32 %v2485, %v2661
      %v2663 = vpop.f32.mrb[0].mxu0
      %v2664 = vpop.f32.mrb[0].mxu0
      %v2665 = vadd.f32 %v2488, %v2664
      %v2666 = vpop.f32.mrb[0].mxu0
      %2667 = vmatprep.mubr.bf16.mxu0 0
      %2668 = vmatmul.mubr.bf16.gmra.mrb[0].mxu0 %v1907
      %v2669 = vpop.f32.mrb[0].mxu0
      %v2670 = vadd.f32 %v2493, %v2669
      %v2671 = vpop.f32.mrb[0].mxu0
      %v2672 = vpop.f32.mrb[0].mxu0
      %v2673 = vadd.f32 %v2496, %v2672
      %v2674 = vpop.f32.mrb[0].mxu0
      %2675 = vmatprep.mubr.bf16.mxu0 0
      %2676 = vmatmul.mubr.bf16.gmra.mrb[0].mxu0 %v1942
      %v2677 = vpop.f32.mrb[0].mxu0
      %v2678 = vadd.f32 %v2501, %v2677
      %v2679 = vpop.f32.mrb[0].mxu0
      %v2680 = vpop.f32.mrb[0].mxu0
      %v2681 = vadd.f32 %v2504, %v2680
      %v2682 = vpop.f32.mrb[0].mxu0
      %2683 = vmatprep.mubr.bf16.mxu0 0
      %2684 = vmatmul.mubr.bf16.gmra.mrb[0].mxu0 %v1977
      %v2685 = vpop.f32.mrb[0].mxu0
      %v2686 = vadd.f32 %v2509, %v2685
      %v2687 = vpop.f32.mrb[0].mxu0
      %v2688 = vpop.f32.mrb[0].mxu0
      %v2689 = vadd.f32 %v2512, %v2688
      %v2690 = vpop.f32.mrb[0].mxu0
      %2691 = vmatprep.mubr.bf16.mxu0 0
      %2692 = vmatmul.mubr.bf16.gmra.mrb[0].mxu0 %v2012
      %v2693 = vpop.f32.mrb[0].mxu0
      %v2694 = vadd.f32 %v2517, %v2693
      %v2695 = vpop.f32.mrb[0].mxu0
      %v2696 = vpop.f32.mrb[0].mxu0
      %v2697 = vadd.f32 %v2520, %v2696
      %v2698 = vpop.f32.mrb[0].mxu0
      %2699 = vmatprep.mubr.bf16.mxu0 0
      %2700 = vmatmul.mubr.bf16.gmra.mrb[0].mxu0 %v2047
      %v2701 = vpop.f32.mrb[0].mxu0
      %v2702 = vadd.f32 %v2525, %v2701
      %v2703 = vpop.f32.mrb[0].mxu0
      %v2704 = vpop.f32.mrb[0].mxu0
      %v2705 = vadd.f32 %v2528, %v2704
      %v2706 = vpop.f32.mrb[0].mxu0
      %2707 = vmatprep.mubr.bf16.mxu0 0
      %2708 = vmatmul.mubr.bf16.gmra.mrb[0].mxu0 %v2082
      %v2709 = vpop.f32.mrb[0].mxu0
      %v2710 = vadd.f32 %v2533, %v2709
      %v2711 = vpop.f32.mrb[0].mxu0
      %v2712 = vpop.f32.mrb[0].mxu0
      %v2713 = vadd.f32 %v2536, %v2712
      %v2714 = vpop.f32.mrb[0].mxu0
      %2715 = vmatprep.mubr.bf16.mxu0 0
      %2716 = vmatmul.mubr.bf16.gmra.mrb[0].mxu0 %v2117
      %v2717 = vpop.f32.mrb[0].mxu0
      %v2718 = vadd.f32 %v2541, %v2717
      %v2719 = vpop.f32.mrb[0].mxu0
      %v2720 = vpop.f32.mrb[0].mxu0
      %v2721 = vadd.f32 %v2544, %v2720
      %v2722 = vpop.f32.mrb[0].mxu0
      %2723 = vmatprep.mubr.bf16.mxu0 0
      %2724 = vmatmul.mubr.bf16.gmra.mrb[0].mxu0 %v2152
      %v2725 = vpop.f32.mrb[0].mxu0
      %v2726 = vadd.f32 %v2549, %v2725
      %v2727 = vpop.f32.mrb[0].mxu0
      %v2728 = vpop.f32.mrb[0].mxu0
      %v2729 = vadd.f32 %v2552, %v2728
      %v2730 = vpop.f32.mrb[0].mxu0
      %2731 = vmatprep.mubr.bf16.mxu0 0
      %2732 = vmatmul.mubr.bf16.gmra.mrb[0].mxu0 %v2187
      %v2733 = vpop.f32.mrb[0].mxu0
      %v2734 = vadd.f32 %v2557, %v2733
      %v2735 = vpop.f32.mrb[0].mxu0
      %v2736 = vpop.f32.mrb[0].mxu0
      %v2737 = vadd.f32 %v2560, %v2736
      %v2738 = vpop.f32.mrb[0].mxu0
      %2739 = vdwg.mxu0
      %v2740 = vld [vmem:[%s2] sm:$0x1]
      %v2742 = vlaneseq
      %v2743 = vshrl.u32 %v2742, 7
      %v2744 = vsub.s32 0, %v2743
      %v2745 = vrot.slane %v2740, %v2744
      %v2747 = vmul.f32 %v2598, %v2745
      %v2748 = vmul.f32 %v2601, %v2745
      %v2749 = vmul.f32 %v2606, %v2745
      %v2750 = vmul.f32 %v2609, %v2745
      %v2751 = vmul.f32 %v2614, %v2745
      %v2752 = vmul.f32 %v2617, %v2745
      %v2753 = vmul.f32 %v2622, %v2745
      %v2754 = vmul.f32 %v2625, %v2745
      %v2755 = vmul.f32 %v2630, %v2745
      %v2756 = vmul.f32 %v2633, %v2745
      %v2757 = vmul.f32 %v2638, %v2745
      %v2758 = vmul.f32 %v2641, %v2745
      %v2759 = vmul.f32 %v2646, %v2745
      %v2760 = vmul.f32 %v2649, %v2745
      %v2761 = vmul.f32 %v2654, %v2745
      %v2762 = vmul.f32 %v2657, %v2745
      %v2763 = vmul.f32 %v2662, %v2745
      %v2764 = vmul.f32 %v2665, %v2745
      %v2765 = vmul.f32 %v2670, %v2745
      %v2766 = vmul.f32 %v2673, %v2745
      %v2767 = vmul.f32 %v2678, %v2745
      %v2768 = vmul.f32 %v2681, %v2745
      %v2769 = vmul.f32 %v2686, %v2745
      %v2770 = vmul.f32 %v2689, %v2745
      %v2771 = vmul.f32 %v2694, %v2745
      %v2772 = vmul.f32 %v2697, %v2745
      %v2773 = vmul.f32 %v2702, %v2745
      %v2774 = vmul.f32 %v2705, %v2745
      %v2775 = vmul.f32 %v2710, %v2745
      %v2776 = vmul.f32 %v2713, %v2745
      %v2777 = vmul.f32 %v2718, %v2745
      %v2778 = vmul.f32 %v2721, %v2745
      %v2779 = vmul.f32 %v2726, %v2745
      %v2780 = vmul.f32 %v2729, %v2745
      %v2781 = vmul.f32 %v2734, %v2745
      %v2782 = vmul.f32 %v2737, %v2745
      %v2783 = vld [vmem:[%s3] sm:$0x1]
      %v2785 = vlaneseq
      %v2786 = vshrl.u32 %v2785, 7
      %v2787 = vsub.s32 0, %v2786
      %v2788 = vrot.slane %v2783, %v2787
      %v2790 = vadd.f32 %v2747, %v2788
      %v2791 = vadd.f32 %v2748, %v2788
      %v2792 = vadd.f32 %v2749, %v2788
      %v2793 = vadd.f32 %v2750, %v2788
      %v2794 = vadd.f32 %v2751, %v2788
      %v2795 = vadd.f32 %v2752, %v2788
      %v2796 = vadd.f32 %v2753, %v2788
      %v2797 = vadd.f32 %v2754, %v2788
      %v2798 = vadd.f32 %v2755, %v2788
      %v2799 = vadd.f32 %v2756, %v2788
      %v2800 = vadd.f32 %v2757, %v2788
      %v2801 = vadd.f32 %v2758, %v2788
      %v2802 = vadd.f32 %v2759, %v2788
      %v2803 = vadd.f32 %v2760, %v2788
      %v2804 = vadd.f32 %v2761, %v2788
      %v2805 = vadd.f32 %v2762, %v2788
      %v2806 = vadd.f32 %v2763, %v2788
      %v2807 = vadd.f32 %v2764, %v2788
      %v2808 = vadd.f32 %v2765, %v2788
      %v2809 = vadd.f32 %v2766, %v2788
      %v2810 = vadd.f32 %v2767, %v2788
      %v2811 = vadd.f32 %v2768, %v2788
      %v2812 = vadd.f32 %v2769, %v2788
      %v2813 = vadd.f32 %v2770, %v2788
      %v2814 = vadd.f32 %v2771, %v2788
      %v2815 = vadd.f32 %v2772, %v2788
      %v2816 = vadd.f32 %v2773, %v2788
      %v2817 = vadd.f32 %v2774, %v2788
      %v2818 = vadd.f32 %v2775, %v2788
      %v2819 = vadd.f32 %v2776, %v2788
      %v2820 = vadd.f32 %v2777, %v2788
      %v2821 = vadd.f32 %v2778, %v2788
      %v2822 = vadd.f32 %v2779, %v2788
      %v2823 = vadd.f32 %v2780, %v2788
      %v2824 = vadd.f32 %v2781, %v2788
      %v2825 = vadd.f32 %v2782, %v2788
      %v2826 = vmax.f32 %v2790, 0.0
      %v2827 = vmax.f32 %v2791, 0.0
      %v2828 = vmax.f32 %v2792, 0.0
      %v2829 = vmax.f32 %v2793, 0.0
      %v2830 = vmax.f32 %v2794, 0.0
      %v2831 = vmax.f32 %v2795, 0.0
      %v2832 = vmax.f32 %v2796, 0.0
      %v2833 = vmax.f32 %v2797, 0.0
      %v2834 = vmax.f32 %v2798, 0.0
      %v2835 = vmax.f32 %v2799, 0.0
      %v2836 = vmax.f32 %v2800, 0.0
      %v2837 = vmax.f32 %v2801, 0.0
      %v2838 = vmax.f32 %v2802, 0.0
      %v2839 = vmax.f32 %v2803, 0.0
      %v2840 = vmax.f32 %v2804, 0.0
      %v2841 = vmax.f32 %v2805, 0.0
      %v2842 = vmax.f32 %v2806, 0.0
      %v2843 = vmax.f32 %v2807, 0.0
      %v2844 = vmax.f32 %v2808, 0.0
      %v2845 = vmax.f32 %v2809, 0.0
      %v2846 = vmax.f32 %v2810, 0.0
      %v2847 = vmax.f32 %v2811, 0.0
      %v2848 = vmax.f32 %v2812, 0.0
      %v2849 = vmax.f32 %v2813, 0.0
      %v2850 = vmax.f32 %v2814, 0.0
      %v2851 = vmax.f32 %v2815, 0.0
      %v2852 = vmax.f32 %v2816, 0.0
      %v2853 = vmax.f32 %v2817, 0.0
      %v2854 = vmax.f32 %v2818, 0.0
      %v2855 = vmax.f32 %v2819, 0.0
      %v2856 = vmax.f32 %v2820, 0.0
      %v2857 = vmax.f32 %v2821, 0.0
      %v2858 = vmax.f32 %v2822, 0.0
      %v2859 = vmax.f32 %v2823, 0.0
      %v2860 = vmax.f32 %v2824, 0.0
      %v2861 = vmax.f32 %v2825, 0.0
      %v2898 = vcombine.high %v2826, %v2826
      %v2899 = vcombine.high %v2827, %v2827
      %v2900 = vcombine.high %v2828, %v2828
      %v2901 = vcombine.high %v2829, %v2829
      %v2902 = vcombine.high %v2830, %v2830
      %v2903 = vcombine.high %v2831, %v2831
      %v2904 = vcombine.high %v2832, %v2832
      %v2905 = vcombine.high %v2833, %v2833
      %v2906 = vcombine.high %v2834, %v2834
      %v2907 = vcombine.high %v2835, %v2835
      %v2908 = vcombine.high %v2836, %v2836
      %v2909 = vcombine.high %v2837, %v2837
      %v2910 = vcombine.high %v2838, %v2838
      %v2911 = vcombine.high %v2839, %v2839
      %v2912 = vcombine.high %v2840, %v2840
      %v2913 = vcombine.high %v2841, %v2841
      %v2914 = vcombine.high %v2842, %v2842
      %v2915 = vcombine.high %v2843, %v2843
      %v2916 = vcombine.high %v2844, %v2844
      %v2917 = vcombine.high %v2845, %v2845
      %v2918 = vcombine.high %v2846, %v2846
      %v2919 = vcombine.high %v2847, %v2847
      %v2920 = vcombine.high %v2848, %v2848
      %v2921 = vcombine.high %v2849, %v2849
      %v2922 = vcombine.high %v2850, %v2850
      %v2923 = vcombine.high %v2851, %v2851
      %v2924 = vcombine.high %v2852, %v2852
      %v2925 = vcombine.high %v2853, %v2853
      %v2926 = vcombine.high %v2854, %v2854
      %v2927 = vcombine.high %v2855, %v2855
      %v2928 = vcombine.high %v2856, %v2856
      %v2929 = vcombine.high %v2857, %v2857
      %v2930 = vcombine.high %v2858, %v2858
      %v2931 = vcombine.high %v2859, %v2859
      %v2932 = vcombine.high %v2860, %v2860
      %v2933 = vcombine.high %v2861, %v2861
      %v2970 = vmax.f32 %v2826, %v2899
      %v2971 = vmax.f32 %v2898, %v2828
      %v2972 = vmax.f32 %v2827, %v2900
      %v2973 = vmax.f32 %v2829, %v2902
      %v2974 = vmax.f32 %v2901, %v2831
      %v2975 = vmax.f32 %v2830, %v2903
      %v2976 = vmax.f32 %v2832, %v2905
      %v2977 = vmax.f32 %v2904, %v2834
      %v2978 = vmax.f32 %v2833, %v2906
      %v2979 = vmax.f32 %v2835, %v2908
      %v2980 = vmax.f32 %v2907, %v2837
      %v2981 = vmax.f32 %v2836, %v2909
      %v2982 = vmax.f32 %v2838, %v2911
      %v2983 = vmax.f32 %v2910, %v2840
      %v2984 = vmax.f32 %v2839, %v2912
      %v2985 = vmax.f32 %v2841, %v2914
      %v2986 = vmax.f32 %v2913, %v2843
      %v2987 = vmax.f32 %v2842, %v2915
      %v2988 = vmax.f32 %v2844, %v2917
      %v2989 = vmax.f32 %v2916, %v2846
      %v2990 = vmax.f32 %v2845, %v2918
      %v2991 = vmax.f32 %v2847, %v2920
      %v2992 = vmax.f32 %v2919, %v2849
      %v2993 = vmax.f32 %v2848, %v2921
      %v2994 = vmax.f32 %v2850, %v2923
      %v2995 = vmax.f32 %v2922, %v2852
      %v2996 = vmax.f32 %v2851, %v2924
      %v2997 = vmax.f32 %v2853, %v2926
      %v2998 = vmax.f32 %v2925, %v2855
      %v2999 = vmax.f32 %v2854, %v2927
      %v3000 = vmax.f32 %v2856, %v2929
      %v3001 = vmax.f32 %v2928, %v2858
      %v3002 = vmax.f32 %v2857, %v2930
      %v3003 = vmax.f32 %v2859, %v2932
      %v3004 = vmax.f32 %v2931, %v2861
      %v3005 = vmax.f32 %v2860, %v2933
      %3042 = vrot.lane.b32.xlu0 %v2970, 64
      %v3043 = vpop.permute.xlu0 %3042
      %3044 = vrot.lane.b32.xlu0 %v2971, 64
      %v3045 = vpop.permute.xlu0 %3044
      %3046 = vrot.lane.b32.xlu0 %v2972, 64
      %v3047 = vpop.permute.xlu0 %3046
      %3048 = vrot.lane.b32.xlu0 %v2973, 64
      %v3049 = vpop.permute.xlu0 %3048
      %3050 = vrot.lane.b32.xlu0 %v2974, 64
      %v3051 = vpop.permute.xlu0 %3050
      %3052 = vrot.lane.b32.xlu0 %v2975, 64
      %v3053 = vpop.permute.xlu0 %3052
      %3054 = vrot.lane.b32.xlu0 %v2976, 64
      %v3055 = vpop.permute.xlu0 %3054
      %3056 = vrot.lane.b32.xlu0 %v2977, 64
      %v3057 = vpop.permute.xlu0 %3056
      %3058 = vrot.lane.b32.xlu0 %v2978, 64
      %v3059 = vpop.permute.xlu0 %3058
      %3060 = vrot.lane.b32.xlu0 %v2979, 64
      %v3061 = vpop.permute.xlu0 %3060
      %3062 = vrot.lane.b32.xlu0 %v2980, 64
      %v3063 = vpop.permute.xlu0 %3062
      %3064 = vrot.lane.b32.xlu0 %v2981, 64
      %v3065 = vpop.permute.xlu0 %3064
      %3066 = vrot.lane.b32.xlu0 %v2982, 64
      %v3067 = vpop.permute.xlu0 %3066
      %3068 = vrot.lane.b32.xlu0 %v2983, 64
      %v3069 = vpop.permute.xlu0 %3068
      %3070 = vrot.lane.b32.xlu0 %v2984, 64
      %v3071 = vpop.permute.xlu0 %3070
      %3072 = vrot.lane.b32.xlu0 %v2985, 64
      %v3073 = vpop.permute.xlu0 %3072
      %3074 = vrot.lane.b32.xlu0 %v2986, 64
      %v3075 = vpop.permute.xlu0 %3074
      %3076 = vrot.lane.b32.xlu0 %v2987, 64
      %v3077 = vpop.permute.xlu0 %3076
      %3078 = vrot.lane.b32.xlu0 %v2988, 64
      %v3079 = vpop.permute.xlu0 %3078
      %3080 = vrot.lane.b32.xlu0 %v2989, 64
      %v3081 = vpop.permute.xlu0 %3080
      %3082 = vrot.lane.b32.xlu0 %v2990, 64
      %v3083 = vpop.permute.xlu0 %3082
      %3084 = vrot.lane.b32.xlu0 %v2991, 64
      %v3085 = vpop.permute.xlu0 %3084
      %3086 = vrot.lane.b32.xlu0 %v2992, 64
      %v3087 = vpop.permute.xlu0 %3086
      %3088 = vrot.lane.b32.xlu0 %v2993, 64
      %v3089 = vpop.permute.xlu0 %3088
      %3090 = vrot.lane.b32.xlu0 %v2994, 64
      %v3091 = vpop.permute.xlu0 %3090
      %3092 = vrot.lane.b32.xlu0 %v2995, 64
      %v3093 = vpop.permute.xlu0 %3092
      %3094 = vrot.lane.b32.xlu0 %v2996, 64
      %v3095 = vpop.permute.xlu0 %3094
      %3096 = vrot.lane.b32.xlu0 %v2997, 64
      %v3097 = vpop.permute.xlu0 %3096
      %3098 = vrot.lane.b32.xlu0 %v2998, 64
      %v3099 = vpop.permute.xlu0 %3098
      %3100 = vrot.lane.b32.xlu0 %v2999, 64
      %v3101 = vpop.permute.xlu0 %3100
      %3102 = vrot.lane.b32.xlu0 %v3000, 64
      %v3103 = vpop.permute.xlu0 %3102
      %3104 = vrot.lane.b32.xlu0 %v3001, 64
      %v3105 = vpop.permute.xlu0 %3104
      %3106 = vrot.lane.b32.xlu0 %v3002, 64
      %v3107 = vpop.permute.xlu0 %3106
      %3108 = vrot.lane.b32.xlu0 %v3003, 64
      %v3109 = vpop.permute.xlu0 %3108
      %3110 = vrot.lane.b32.xlu0 %v3004, 64
      %v3111 = vpop.permute.xlu0 %3110
      %3112 = vrot.lane.b32.xlu0 %v3005, 64
      %v3113 = vpop.permute.xlu0 %3112
      %v3150 = vmax.f32 %v2970, %v3043
      %v3151 = vmax.f32 %v2971, %v3045
      %v3152 = vmax.f32 %v2972, %v3047
      %v3153 = vmax.f32 %v2973, %v3049
      %v3154 = vmax.f32 %v2974, %v3051
      %v3155 = vmax.f32 %v2975, %v3053
      %v3156 = vmax.f32 %v2976, %v3055
      %v3157 = vmax.f32 %v2977, %v3057
      %v3158 = vmax.f32 %v2978, %v3059
      %v3159 = vmax.f32 %v2979, %v3061
      %v3160 = vmax.f32 %v2980, %v3063
      %v3161 = vmax.f32 %v2981, %v3065
      %v3162 = vmax.f32 %v2982, %v3067
      %v3163 = vmax.f32 %v2983, %v3069
      %v3164 = vmax.f32 %v2984, %v3071
      %v3165 = vmax.f32 %v2985, %v3073
      %v3166 = vmax.f32 %v2986, %v3075
      %v3167 = vmax.f32 %v2987, %v3077
      %v3168 = vmax.f32 %v2988, %v3079
      %v3169 = vmax.f32 %v2989, %v3081
      %v3170 = vmax.f32 %v2990, %v3083
      %v3171 = vmax.f32 %v2991, %v3085
      %v3172 = vmax.f32 %v2992, %v3087
      %v3173 = vmax.f32 %v2993, %v3089
      %v3174 = vmax.f32 %v2994, %v3091
      %v3175 = vmax.f32 %v2995, %v3093
      %v3176 = vmax.f32 %v2996, %v3095
      %v3177 = vmax.f32 %v2997, %v3097
      %v3178 = vmax.f32 %v2998, %v3099
      %v3179 = vmax.f32 %v2999, %v3101
      %v3180 = vmax.f32 %v3000, %v3103
      %v3181 = vmax.f32 %v3001, %v3105
      %v3182 = vmax.f32 %v3002, %v3107
      %v3183 = vmax.f32 %v3003, %v3109
      %v3184 = vmax.f32 %v3004, %v3111
      %v3185 = vmax.f32 %v3005, %v3113
      %v3210 = vcombine.low %v3150, %v3151
      %v3211 = vcombine.low %v3153, %v3154
      %v3212 = vcombine.low %v3156, %v3157
      %v3213 = vcombine.low %v3159, %v3160
      %v3214 = vcombine.low %v3162, %v3163
      %v3215 = vcombine.low %v3165, %v3166
      %v3216 = vcombine.low %v3168, %v3169
      %v3217 = vcombine.low %v3171, %v3172
      %v3218 = vcombine.low %v3174, %v3175
      %v3219 = vcombine.low %v3177, %v3178
      %v3220 = vcombine.low %v3180, %v3181
      %v3221 = vcombine.low %v3183, %v3184
      %v3234 = vpack.c.bf16 %v3152, %v3210
      %v3235 = vpack.c.bf16 %v3155, %v3211
      %v3236 = vpack.c.bf16 %v3158, %v3212
      %v3237 = vpack.c.bf16 %v3161, %v3213
      %v3238 = vpack.c.bf16 %v3164, %v3214
      %v3239 = vpack.c.bf16 %v3167, %v3215
      %v3240 = vpack.c.bf16 %v3170, %v3216
      %v3241 = vpack.c.bf16 %v3173, %v3217
      %v3242 = vpack.c.bf16 %v3176, %v3218
      %v3243 = vpack.c.bf16 %v3179, %v3219
      %v3244 = vpack.c.bf16 %v3182, %v3220
      %v3245 = vpack.c.bf16 %v3185, %v3221
      %v3258 = vunpack.c.l.b16 %v3234
      %v3259 = vunpack.c.h.b16 %v3234
      %v3260 = vunpack.c.l.b16 %v3235
      %v3261 = vunpack.c.h.b16 %v3235
      %v3262 = vunpack.c.l.b16 %v3236
      %v3263 = vunpack.c.h.b16 %v3236
      %v3264 = vunpack.c.l.b16 %v3237
      %v3265 = vunpack.c.h.b16 %v3237
      %v3266 = vunpack.c.l.b16 %v3238
      %v3267 = vunpack.c.h.b16 %v3238
      %v3268 = vunpack.c.l.b16 %v3239
      %v3269 = vunpack.c.h.b16 %v3239
      %v3270 = vunpack.c.l.b16 %v3240
      %v3271 = vunpack.c.h.b16 %v3240
      %v3272 = vunpack.c.l.b16 %v3241
      %v3273 = vunpack.c.h.b16 %v3241
      %v3274 = vunpack.c.l.b16 %v3242
      %v3275 = vunpack.c.h.b16 %v3242
      %v3276 = vunpack.c.l.b16 %v3243
      %v3277 = vunpack.c.h.b16 %v3243
      %v3278 = vunpack.c.l.b16 %v3244
      %v3279 = vunpack.c.h.b16 %v3244
      %v3280 = vunpack.c.l.b16 %v3245
      %v3281 = vunpack.c.h.b16 %v3245
      %v3282 = vpack.c.b16 %v3258, %v3258
      %v3283 = vpack.c.b16 %v3259, %v3259
      %v3284 = vpack.c.b16 %v3260, %v3260
      %v3285 = vpack.c.b16 %v3261, %v3261
      %v3286 = vpack.c.b16 %v3262, %v3262
      %v3287 = vpack.c.b16 %v3263, %v3263
      %v3288 = vpack.c.b16 %v3264, %v3264
      %v3289 = vpack.c.b16 %v3265, %v3265
      %v3290 = vpack.c.b16 %v3266, %v3266
      %v3291 = vpack.c.b16 %v3267, %v3267
      %v3292 = vpack.c.b16 %v3268, %v3268
      %v3293 = vpack.c.b16 %v3269, %v3269
      %v3294 = vpack.c.b16 %v3270, %v3270
      %v3295 = vpack.c.b16 %v3271, %v3271
      %v3296 = vpack.c.b16 %v3272, %v3272
      %v3297 = vpack.c.b16 %v3273, %v3273
      %v3298 = vpack.c.b16 %v3274, %v3274
      %v3299 = vpack.c.b16 %v3275, %v3275
      %v3300 = vpack.c.b16 %v3276, %v3276
      %v3301 = vpack.c.b16 %v3277, %v3277
      %v3302 = vpack.c.b16 %v3278, %v3278
      %v3303 = vpack.c.b16 %v3279, %v3279
      %v3304 = vpack.c.b16 %v3280, %v3280
      %v3305 = vpack.c.b16 %v3281, %v3281
      %vm3330 = vcmask 519168
      %3331 = vst.msk [vmem:[%s197] sm:$0xf] %vm3330, %v3282
      %vm3332 = vcmask 517120
      %3333 = vst.msk [vmem:[%s197 + $0x4] sm:$0x3] %vm3332, %v3283
      %3334 = vst.msk [vmem:[%s197 + $0x8] sm:$0xf] %vm3330, %v3284
      %3335 = vst.msk [vmem:[%s197 + $0xc] sm:$0x3] %vm3332, %v3285
      %3336 = vst.msk [vmem:[%s197 + $0x10] sm:$0xf] %vm3330, %v3286
      %3337 = vst.msk [vmem:[%s197 + $0x14] sm:$0x3] %vm3332, %v3287
      %3338 = vst.msk [vmem:[%s197 + $0x18] sm:$0xf] %vm3330, %v3288
      %3339 = vst.msk [vmem:[%s197 + $0x1c] sm:$0x3] %vm3332, %v3289
      %3340 = vst.msk [vmem:[%s197 + $0x20] sm:$0xf] %vm3330, %v3290
      %3341 = vst.msk [vmem:[%s197 + $0x24] sm:$0x3] %vm3332, %v3291
      %3342 = vst.msk [vmem:[%s197 + $0x28] sm:$0xf] %vm3330, %v3292
      %3343 = vst.msk [vmem:[%s197 + $0x2c] sm:$0x3] %vm3332, %v3293
      %3344 = vst.msk [vmem:[%s197 + $0x30] sm:$0xf] %vm3330, %v3294
      %3345 = vst.msk [vmem:[%s197 + $0x34] sm:$0x3] %vm3332, %v3295
      %3346 = vst.msk [vmem:[%s197 + $0x38] sm:$0xf] %vm3330, %v3296
      %3347 = vst.msk [vmem:[%s197 + $0x3c] sm:$0x3] %vm3332, %v3297
      %3348 = vst.msk [vmem:[%s197 + $0x40] sm:$0xf] %vm3330, %v3298
      %3349 = vst.msk [vmem:[%s197 + $0x44] sm:$0x3] %vm3332, %v3299
      %3350 = vst.msk [vmem:[%s197 + $0x48] sm:$0xf] %vm3330, %v3300
      %3351 = vst.msk [vmem:[%s197 + $0x4c] sm:$0x3] %vm3332, %v3301
      %3352 = vst.msk [vmem:[%s197 + $0x50] sm:$0xf] %vm3330, %v3302
      %3353 = vst.msk [vmem:[%s197 + $0x54] sm:$0x3] %vm3332, %v3303
      %3354 = vst.msk [vmem:[%s197 + $0x58] sm:$0xf] %vm3330, %v3304
      %3355 = vst.msk [vmem:[%s197 + $0x5c] sm:$0x3] %vm3332, %v3305
      %p3356 = scmp.lt.s32.totalorder %s15, 1
      %s3357 = scalar_select %p3356, %s15, 1
      %s3358 = smul.addr %s3357, 24
      %s3359 = smul.addr %s3358, 4
      %s3360 = scalar_lea.vmem %s4, %s3359
      // Predicated region
      $region37: #{cnn_forward.7} parent=35 // pred_check
        %p3361 = pneg %p122
      $region38: #{cnn_forward.7} parent=35 // pred_check_branch
        %3363 = sbr.rel (%p3361) target = $region40
      $region39: #{cnn_forward.7} parent=35 // pred_region
        _
      $region40: #{cnn_forward.7} parent=35 // pred_fallthru
        _
    $region36: #{cnn_forward.7} parent=5 // pred_fallthru
      _
    %p3364 = scmp.le.s32.totalorder 2, %s10
    // Predicated region
    $region41: #{cnn_forward.7} parent=5 // pred_check
      %p3365 = pneg %p3364
    $region42: #{cnn_forward.7} parent=5 // pred_check_branch
      %3367 = sbr.rel (%p3365) target = $region44
    $region43: #{cnn_forward.7} parent=5 // pred_region
      %s3368 = ssub.s32 %s10, 2
      // Predicated region
      $region45: #{cnn_forward.7} parent=43 // pred_check
        %p3369 = pneg %p128
      $region46: #{cnn_forward.7} parent=43 // pred_check_branch
        %3371 = sbr.rel (%p3369) target = $region48
      $region47: #{cnn_forward.7} parent=43 // pred_region
        %p3372 = scmp.lt.s32.totalorder %s16, 1
        %s3373 = scalar_select %p3372, %s16, 1
        %s3374 = smul.addr %s3373, 24
        %s3375 = smul.addr %s3374, 4
        %s3376 = scalar_lea.vmem %s4, %s3375
      $region48: #{cnn_forward.7} parent=43 // pred_fallthru
        _
    $region44: #{cnn_forward.7} parent=5 // pred_fallthru
      _
  $region6: #{cnn_forward.7} parent=0 // loop_footer
    %s14 = sadd.s32 1, %s10
  $region7: #{cnn_forward.7} parent=0 // loop_footer_branch
    %9 = sbr.rel target = $region3
  $region8: #{cnn_forward.7} parent=0 // loop_exit
    _

// kernel: cnn_forward.8
$region0: #{cnn_forward.8}
  #allocation0 [shape = 'u32[]', space=smem, size = 0x4, offset = 0x4, fixed_abs, tag = 'smem constant byte address 0x4 - core index']
  #allocation1 [shape = 'u32[144,128]{1,0:T(1,128)}', space=vmem, size = 0x12000, scoped, tag = 'internal scratch']
  %s0 = inlined_call_operand.vmem [shape: bf16[2,14,7,128], index: 0, kind: input, shape index: {}]
  %s1 = inlined_call_operand.vmem [shape: bf16[768,256], index: 1, kind: input, shape index: {}]
  %s2 = inlined_call_operand.vmem [shape: f32[1,256], index: 2, kind: input, shape index: {}]
  %s3 = inlined_call_operand.vmem [shape: f32[1,256], index: 3, kind: input, shape index: {}]
  %s4 = inlined_call_operand.vmem [shape: bf16[2,6,6,128], index: 4, kind: output, shape index: {}]
  %s5 = sld [smem:[#allocation0]]
  $region49: #{cnn_forward.8} parent=0
    _
  %s7 = ssub.s32 1, %s5
  %s8 = scalar_select 0, %s7, %s5
  loop: start=0, step=1, limit=4
  $region2: #{cnn_forward.8} parent=0 // loop_pre_header
    _
  $region3: #{cnn_forward.8} parent=0 // loop_header
    %s10 = sphi 0, %s14
    %p11 = scmp.ge.s32.totalorder %s10, 4
    %s20 = sphi 0, %s22
    %s23 = sphi 0, %s20
    %s24 = sphi 0, %s23
    %s40 = sphi 0, %s24
    %s44 = sphi 0, %s44
    %s46 = sphi 0, %s44
    %s47 = sphi 0, %s46
    %s61 = sphi 0, %s47
    %s65 = sphi 0, %s65
    %s67 = sphi 0, %s65
    %s68 = sphi 0, %s67
    %s82 = sphi 0, %s68
    %s86 = sphi 0, %s86
    %s88 = sphi 0, %s86
    %s89 = sphi 0, %s88
    %s103 = sphi 0, %s89
    %s109 = sphi 0, %s111
    %s112 = sphi 0, %s109
    %s113 = sphi 0, %s112
    %s129 = sphi 0, %s113
  $region4: #{cnn_forward.8} parent=0 // loop_header_branch
    %13 = sbr.rel (%p11) target = $region8
  $region5: #{cnn_forward.8} parent=0 // loop_body
    %s15 = ssub.s32 %s10, 1
    %s16 = ssub.s32 %s10, 2
    %s17 = sadd.s32 %s10, 1
    %s18 = ssub.s32 %s10, %s17
    %p19 = scmp.eq.s32.totalorder %s18, 0
    %s21 = sadd.s32 %s20, 1
    %s22 = scalar_select %p19, %s20, %s21
    %p25 = pneg %p19
    %p26 = scmp.eq.s32.totalorder %s10, 1
    %p27 = por %p25, %p26
    %p28 = scmp.ne.s32.totalorder %s20, %s23
    %p29 = scmp.eq.s32.totalorder %s10, 0
    %p30 = por %p28, %p29
    %p31 = scmp.ne.s32.totalorder %s20, %s23
    %p32 = scmp.eq.s32.totalorder %s15, 1
    %p33 = por %p31, %p32
    %p34 = scmp.ne.s32.totalorder %s23, %s24
    %p35 = scmp.eq.s32.totalorder %s15, 0
    %p36 = por %p34, %p35
    %p37 = scmp.ne.s32.totalorder %s23, %s24
    %p38 = scmp.eq.s32.totalorder %s16, 1
    %p39 = por %p37, %p38
    %p41 = scmp.ne.s32.totalorder %s24, %s40
    %p42 = scmp.eq.s32.totalorder %s16, 0
    %p43 = por %p41, %p42
    %s45 = sadd.s32 %s44, 1
    %p48 = scmp.eq.s32.totalorder %s10, 1
    %p49 = scmp.ne.s32.totalorder %s44, %s46
    %p50 = scmp.eq.s32.totalorder %s10, 0
    %p51 = por %p49, %p50
    %p52 = scmp.ne.s32.totalorder %s44, %s46
    %p53 = scmp.eq.s32.totalorder %s15, 1
    %p54 = por %p52, %p53
    %p55 = scmp.ne.s32.totalorder %s46, %s47
    %p56 = scmp.eq.s32.totalorder %s15, 0
    %p57 = por %p55, %p56
    %p58 = scmp.ne.s32.totalorder %s46, %s47
    %p59 = scmp.eq.s32.totalorder %s16, 1
    %p60 = por %p58, %p59
    %p62 = scmp.ne.s32.totalorder %s47, %s61
    %p63 = scmp.eq.s32.totalorder %s16, 0
    %p64 = por %p62, %p63
    %s66 = sadd.s32 %s65, 1
    %p69 = scmp.eq.s32.totalorder %s10, 1
    %p70 = scmp.ne.s32.totalorder %s65, %s67
    %p71 = scmp.eq.s32.totalorder %s10, 0
    %p72 = por %p70, %p71
    %p73 = scmp.ne.s32.totalorder %s65, %s67
    %p74 = scmp.eq.s32.totalorder %s15, 1
    %p75 = por %p73, %p74
    %p76 = scmp.ne.s32.totalorder %s67, %s68
    %p77 = scmp.eq.s32.totalorder %s15, 0
    %p78 = por %p76, %p77
    %p79 = scmp.ne.s32.totalorder %s67, %s68
    %p80 = scmp.eq.s32.totalorder %s16, 1
    %p81 = por %p79, %p80
    %p83 = scmp.ne.s32.totalorder %s68, %s82
    %p84 = scmp.eq.s32.totalorder %s16, 0
    %p85 = por %p83, %p84
    %s87 = sadd.s32 %s86, 1
    %p90 = scmp.eq.s32.totalorder %s10, 1
    %p91 = scmp.ne.s32.totalorder %s86, %s88
    %p92 = scmp.eq.s32.totalorder %s10, 0
    %p93 = por %p91, %p92
    %p94 = scmp.ne.s32.totalorder %s86, %s88
    %p95 = scmp.eq.s32.totalorder %s15, 1
    %p96 = por %p94, %p95
    %p97 = scmp.ne.s32.totalorder %s88, %s89
    %p98 = scmp.eq.s32.totalorder %s15, 0
    %p99 = por %p97, %p98
    %p100 = scmp.ne.s32.totalorder %s88, %s89
    %p101 = scmp.eq.s32.totalorder %s16, 1
    %p102 = por %p100, %p101
    %p104 = scmp.ne.s32.totalorder %s89, %s103
    %p105 = scmp.eq.s32.totalorder %s16, 0
    %p106 = por %p104, %p105
    %s107 = ssub.s32 %s10, %s17
    %p108 = scmp.eq.s32.totalorder %s107, 0
    %s110 = sadd.s32 %s109, 1
    %s111 = scalar_select %p108, %s109, %s110
    %p114 = pneg %p108
    %p115 = scmp.eq.s32.totalorder %s10, 1
    %p116 = por %p114, %p115
    %p117 = scmp.ne.s32.totalorder %s109, %s112
    %p118 = scmp.eq.s32.totalorder %s10, 0
    %p119 = por %p117, %p118
    %p120 = scmp.ne.s32.totalorder %s109, %s112
    %p121 = scmp.eq.s32.totalorder %s15, 1
    %p122 = por %p120, %p121
    %p123 = scmp.ne.s32.totalorder %s112, %s113
    %p124 = scmp.eq.s32.totalorder %s15, 0
    %p125 = por %p123, %p124
    %p126 = scmp.ne.s32.totalorder %s112, %s113
    %p127 = scmp.eq.s32.totalorder %s16, 1
    %p128 = por %p126, %p127
    %p130 = scmp.ne.s32.totalorder %s113, %s129
    %p131 = scmp.eq.s32.totalorder %s16, 0
    %p132 = por %p130, %p131
    %p133 = scmp.le.s32.totalorder 1, %s10
    %p134 = scmp.lt.s32.totalorder %s10, 3
    %p135 = pnand %p133, %p134
    %p136 = pneg %p135
    // Predicated region
    $region9: #{cnn_forward.8} parent=5 // pred_check
      _
    $region10: #{cnn_forward.8} parent=5 // pred_check_branch
      %138 = sbr.rel (%p135) target = $region12
    $region11: #{cnn_forward.8} parent=5 // pred_region
      %s139 = ssub.s32 %s10, 1
      // Predicated region
      $region13: #{cnn_forward.8} parent=11 // pred_check
        %p140 = pneg %p57
      $region14: #{cnn_forward.8} parent=11 // pred_check_branch
        %142 = sbr.rel (%p140) target = $region16
      $region15: #{cnn_forward.8} parent=11 // pred_region
        _
      $region16: #{cnn_forward.8} parent=11 // pred_fallthru
        _
      // Predicated region
      $region17: #{cnn_forward.8} parent=11 // pred_check
        %p143 = pneg %p78
      $region18: #{cnn_forward.8} parent=11 // pred_check_branch
        %145 = sbr.rel (%p143) target = $region20
      $region19: #{cnn_forward.8} parent=11 // pred_region
        _
      $region20: #{cnn_forward.8} parent=11 // pred_fallthru
        _
      // Predicated region
      $region21: #{cnn_forward.8} parent=11 // pred_check
        %p146 = pneg %p99
      $region22: #{cnn_forward.8} parent=11 // pred_check_branch
        %148 = sbr.rel (%p146) target = $region24
      $region23: #{cnn_forward.8} parent=11 // pred_region
        _
      $region24: #{cnn_forward.8} parent=11 // pred_fallthru
        _
    $region12: #{cnn_forward.8} parent=5 // pred_fallthru
      _
    %p149 = scmp.lt.s32.totalorder %s10, 2
    // Predicated region
    $region25: #{cnn_forward.8} parent=5 // pred_check
      %p150 = pneg %p149
    $region26: #{cnn_forward.8} parent=5 // pred_check_branch
      %152 = sbr.rel (%p150) target = $region28
    $region27: #{cnn_forward.8} parent=5 // pred_region
      // Predicated region
      $region29: #{cnn_forward.8} parent=27 // pred_check
        %p153 = pneg %p30
      $region30: #{cnn_forward.8} parent=27 // pred_check_branch
        %155 = sbr.rel (%p153) target = $region32
      $region31: #{cnn_forward.8} parent=27 // pred_region
        %p156 = scmp.lt.s32.totalorder %s10, 1
        %s157 = scalar_select %p156, %s10, 1
        %s158 = smul.addr %s157, 14
        %s159 = smul.addr %s158, 4
        %s160 = scalar_lea.vmem %s0, %s159
      $region32: #{cnn_forward.8} parent=27 // pred_fallthru
        _
    $region28: #{cnn_forward.8} parent=5 // pred_fallthru
      _
    %p161 = scmp.le.s32.totalorder 1, %s10
    %p162 = scmp.lt.s32.totalorder %s10, 3
    %p163 = pnand %p161, %p162
    %p164 = pneg %p163
    // Predicated region
    $region33: #{cnn_forward.8} parent=5 // pred_check
      _
    $region34: #{cnn_forward.8} parent=5 // pred_check_branch
      %166 = sbr.rel (%p163) target = $region36
    $region35: #{cnn_forward.8} parent=5 // pred_region
      %s167 = ssub.s32 %s10, 1
      %p168 = scmp.lt.s32.totalorder %s15, 1
      %s169 = scalar_select %p168, %s15, 1
      %s170 = smul.addr %s169, 14
      %s171 = smul.addr %s170, 4
      %s172 = scalar_lea.vmem %s0, %s171
      %p173 = pneg %p36
      %p174 = pneg %p33
      %p175 = pneg %p57
      %p176 = pneg %p54
      %p177 = pneg %p78
      %p178 = pneg %p75
      %p179 = pneg %p99
      %p180 = pneg %p96
      %p181 = pneg %p125
      %p182 = pneg %p122
      %p183 = scmp.lt.s32.totalorder %s15, 1
      %s184 = scalar_select %p183, %s15, 1
      %s185 = smul.addr %s184, 6
      %s186 = smul.addr %s185, 4
      %s187 = scalar_lea.vmem %s4, %s186
      %p188 = scmp.lt.s32.totalorder %s15, 1
      %s189 = scalar_select %p188, %s15, 1
      %s190 = smul.addr %s189, 14
      %s191 = smul.addr %s190, 4
      %s192 = scalar_lea.vmem %s0, %s191
      %p193 = scmp.lt.s32.totalorder %s15, 1
      %s194 = scalar_select %p193, %s15, 1
      %s195 = smul.addr %s194, 6
      %s196 = smul.addr %s195, 4
      %s197 = scalar_lea.vmem %s4, %s196
      %v198 = vld [vmem:[%s192] sm:$0xf]
      %v199 = vld [vmem:[%s192 + $0x4] sm:$0xf]
      %v200 = vld [vmem:[%s192 + $0x8] sm:$0xf]
      %v201 = vld [vmem:[%s192 + $0xc] sm:$0xf]
      %v202 = vld [vmem:[%s192 + $0x10] sm:$0xf]
      %v203 = vld [vmem:[%s192 + $0x14] sm:$0xf]
      %v204 = vld [vmem:[%s192 + $0x18] sm:$0xf]
      %v205 = vld [vmem:[%s192 + $0x1c] sm:$0xf]
      %v206 = vld [vmem:[%s192 + $0x20] sm:$0xf]
      %v207 = vld [vmem:[%s192 + $0x24] sm:$0xf]
      %v208 = vld [vmem:[%s192 + $0x28] sm:$0xf]
      %v209 = vld [vmem:[%s192 + $0x2c] sm:$0xf]
      %v210 = vld [vmem:[%s192 + $0x30] sm:$0xf]
      %v211 = vld [vmem:[%s192 + $0x34] sm:$0xf]
      %v224 = vunpack.c.l.b16 %v198
      %v225 = vunpack.c.l.b16 %v199
      %v226 = vunpack.c.l.b16 %v200
      %v227 = vunpack.c.l.b16 %v201
      %v228 = vunpack.c.l.b16 %v202
      %v229 = vunpack.c.l.b16 %v203
      %v230 = vunpack.c.l.b16 %v204
      %v231 = vunpack.c.l.b16 %v205
      %v232 = vunpack.c.l.b16 %v206
      %v233 = vunpack.c.l.b16 %v207
      %v234 = vunpack.c.l.b16 %v208
      %v235 = vunpack.c.l.b16 %v209
      %v236 = vpack.c.b16 %v224, %v224
      %v237 = vpack.c.b16 %v225, %v225
      %v238 = vpack.c.b16 %v226, %v226
      %v239 = vpack.c.b16 %v227, %v227
      %v240 = vpack.c.b16 %v228, %v228
      %v241 = vpack.c.b16 %v229, %v229
      %v242 = vpack.c.b16 %v230, %v230
      %v243 = vpack.c.b16 %v231, %v231
      %v244 = vpack.c.b16 %v232, %v232
      %v245 = vpack.c.b16 %v233, %v233
      %v246 = vpack.c.b16 %v234, %v234
      %v247 = vpack.c.b16 %v235, %v235
      %v249 = vshrl.u32 %v236, 16
      %v251 = vshll.u32 %v236, 16
      %v253 = vrot.slane %v251, 1
      %v254 = vor.u32 %v249, %v253
      %v256 = vshrl.u32 %v237, 16
      %v258 = vshll.u32 %v237, 16
      %v260 = vrot.slane %v258, 1
      %v261 = vor.u32 %v256, %v260
      %v263 = vshrl.u32 %v238, 16
      %v265 = vshll.u32 %v238, 16
      %v267 = vrot.slane %v265, 1
      %v268 = vor.u32 %v263, %v267
      %v270 = vshrl.u32 %v239, 16
      %v272 = vshll.u32 %v239, 16
      %v274 = vrot.slane %v272, 1
      %v275 = vor.u32 %v270, %v274
      %v277 = vshrl.u32 %v240, 16
      %v279 = vshll.u32 %v240, 16
      %v281 = vrot.slane %v279, 1
      %v282 = vor.u32 %v277, %v281
      %v284 = vshrl.u32 %v241, 16
      %v286 = vshll.u32 %v241, 16
      %v288 = vrot.slane %v286, 1
      %v289 = vor.u32 %v284, %v288
      %v291 = vshrl.u32 %v242, 16
      %v293 = vshll.u32 %v242, 16
      %v295 = vrot.slane %v293, 1
      %v296 = vor.u32 %v291, %v295
      %v298 = vshrl.u32 %v243, 16
      %v300 = vshll.u32 %v243, 16
      %v302 = vrot.slane %v300, 1
      %v303 = vor.u32 %v298, %v302
      %v305 = vshrl.u32 %v244, 16
      %v307 = vshll.u32 %v244, 16
      %v309 = vrot.slane %v307, 1
      %v310 = vor.u32 %v305, %v309
      %v312 = vshrl.u32 %v245, 16
      %v314 = vshll.u32 %v245, 16
      %v316 = vrot.slane %v314, 1
      %v317 = vor.u32 %v312, %v316
      %v319 = vshrl.u32 %v246, 16
      %v321 = vshll.u32 %v246, 16
      %v323 = vrot.slane %v321, 1
      %v324 = vor.u32 %v319, %v323
      %v326 = vshrl.u32 %v247, 16
      %v328 = vshll.u32 %v247, 16
      %v330 = vrot.slane %v328, 1
      %v331 = vor.u32 %v326, %v330
      %v333 = vunpack.c.l.b16 %v210
      %v334 = vpack.c.b16 %v333, %v333
      %v336 = vshrl.u32 %v334, 16
      %v338 = vshll.u32 %v334, 16
      %v340 = vrot.slane %v338, 1
      %v341 = vor.u32 %v336, %v340
      %v343 = vunpack.c.l.b16 %v211
      %v344 = vpack.c.b16 %v343, %v343
      %v346 = vshrl.u32 %v344, 16
      %v348 = vshll.u32 %v344, 16
      %v350 = vrot.slane %v348, 1
      %v351 = vor.u32 %v346, %v350
      %v352 = vcombine.low %v198, %v254
      %v353 = vcombine.low %v199, %v261
      %v354 = vcombine.low %v200, %v268
      %v356 = vunpack.c.l.s4 1966171168
      %v357 = vunpack.c.0.s8 %v356
      %v358 = vlaneseq
      %v359 = vshrl.u32 %v358, 7
      %v360 = vsub.s32 %v357, %v359
      %v361 = vrot.slane %v352, %v360
      %v363 = vunpack.c.l.s4 1966171168
      %v364 = vunpack.c.0.s8 %v363
      %v365 = vlaneseq
      %v366 = vshrl.u32 %v365, 7
      %v367 = vsub.s32 %v364, %v366
      %v368 = vrot.slane %v353, %v367
      %v370 = vunpack.c.l.s4 1966171168
      %v371 = vunpack.c.0.s8 %v370
      %v372 = vlaneseq
      %v373 = vshrl.u32 %v372, 7
      %v374 = vsub.s32 %v371, %v373
      %v375 = vrot.slane %v354, %v374
      %v376 = vcombine.low %v361, %v368
      %v377 = vcombine.high %v361, %v368
      %v378 = vcombine.high %v375, %v375
      %v380 = vunpack.c.l.s4 1966171168
      %v381 = vunpack.c.0.s8 %v380
      %v382 = vlaneseq
      %v383 = vshrl.u32 %v382, 7
      %v384 = vsub.s32 %v381, %v383
      %v385 = vrot.slane %v376, %v384
      %v387 = vunpack.c.l.s4 1966171168
      %v388 = vunpack.c.0.s8 %v387
      %v389 = vlaneseq
      %v390 = vshrl.u32 %v389, 7
      %v391 = vsub.s32 %v388, %v390
      %v392 = vrot.slane %v377, %v391
      %v394 = vunpack.c.l.s4 1966171168
      %v395 = vunpack.c.0.s8 %v394
      %v396 = vlaneseq
      %v397 = vshrl.u32 %v396, 7
      %v398 = vsub.s32 %v395, %v397
      %v399 = vrot.slane %v375, %v398
      %v401 = vunpack.c.l.s4 1966171168
      %v402 = vunpack.c.0.s8 %v401
      %v403 = vlaneseq
      %v404 = vshrl.u32 %v403, 7
      %v405 = vsub.s32 %v402, %v404
      %v406 = vrot.slane %v378, %v405
      %v407 = vcombine.low %v385, %v399
      %v408 = vcombine.high %v385, %v399
      %v409 = vcombine.low %v392, %v406
      %v410 = vcombine.low %v201, %v275
      %v412 = vunpack.c.l.s4 1966171168
      %v413 = vunpack.c.0.s8 %v412
      %v414 = vlaneseq
      %v415 = vshrl.u32 %v414, 7
      %v416 = vsub.s32 %v413, %v415
      %v417 = vrot.slane %v410, %v416
      %v418 = vcombine.low %v368, %v375
      %v419 = vcombine.high %v368, %v375
      %v420 = vcombine.high %v417, %v417
      %v422 = vunpack.c.l.s4 1966171168
      %v423 = vunpack.c.0.s8 %v422
      %v424 = vlaneseq
      %v425 = vshrl.u32 %v424, 7
      %v426 = vsub.s32 %v423, %v425
      %v427 = vrot.slane %v418, %v426
      %v429 = vunpack.c.l.s4 1966171168
      %v430 = vunpack.c.0.s8 %v429
      %v431 = vlaneseq
      %v432 = vshrl.u32 %v431, 7
      %v433 = vsub.s32 %v430, %v432
      %v434 = vrot.slane %v419, %v433
      %v436 = vunpack.c.l.s4 1966171168
      %v437 = vunpack.c.0.s8 %v436
      %v438 = vlaneseq
      %v439 = vshrl.u32 %v438, 7
      %v440 = vsub.s32 %v437, %v439
      %v441 = vrot.slane %v417, %v440
      %v443 = vunpack.c.l.s4 1966171168
      %v444 = vunpack.c.0.s8 %v443
      %v445 = vlaneseq
      %v446 = vshrl.u32 %v445, 7
      %v447 = vsub.s32 %v444, %v446
      %v448 = vrot.slane %v420, %v447
      %v449 = vcombine.low %v427, %v441
      %v450 = vcombine.high %v427, %v441
      %v451 = vcombine.low %v434, %v448
      %v452 = vcombine.low %v202, %v282
      %v454 = vunpack.c.l.s4 1966171168
      %v455 = vunpack.c.0.s8 %v454
      %v456 = vlaneseq
      %v457 = vshrl.u32 %v456, 7
      %v458 = vsub.s32 %v455, %v457
      %v459 = vrot.slane %v452, %v458
      %v460 = vcombine.low %v375, %v417
      %v461 = vcombine.high %v375, %v417
      %v462 = vcombine.high %v459, %v459
      %v464 = vunpack.c.l.s4 1966171168
      %v465 = vunpack.c.0.s8 %v464
      %v466 = vlaneseq
      %v467 = vshrl.u32 %v466, 7
      %v468 = vsub.s32 %v465, %v467
      %v469 = vrot.slane %v460, %v468
      %v471 = vunpack.c.l.s4 1966171168
      %v472 = vunpack.c.0.s8 %v471
      %v473 = vlaneseq
      %v474 = vshrl.u32 %v473, 7
      %v475 = vsub.s32 %v472, %v474
      %v476 = vrot.slane %v461, %v475
      %v478 = vunpack.c.l.s4 1966171168
      %v479 = vunpack.c.0.s8 %v478
      %v480 = vlaneseq
      %v481 = vshrl.u32 %v480, 7
      %v482 = vsub.s32 %v479, %v481
      %v483 = vrot.slane %v459, %v482
      %v485 = vunpack.c.l.s4 1966171168
      %v486 = vunpack.c.0.s8 %v485
      %v487 = vlaneseq
      %v488 = vshrl.u32 %v487, 7
      %v489 = vsub.s32 %v486, %v488
      %v490 = vrot.slane %v462, %v489
      %v491 = vcombine.low %v469, %v483
      %v492 = vcombine.high %v469, %v483
      %v493 = vcombine.low %v476, %v490
      %v494 = vcombine.low %v203, %v289
      %v496 = vunpack.c.l.s4 1966171168
      %v497 = vunpack.c.0.s8 %v496
      %v498 = vlaneseq
      %v499 = vshrl.u32 %v498, 7
      %v500 = vsub.s32 %v497, %v499
      %v501 = vrot.slane %v494, %v500
      %v502 = vcombine.low %v417, %v459
      %v503 = vcombine.high %v417, %v459
      %v504 = vcombine.high %v501, %v501
      %v506 = vunpack.c.l.s4 1966171168
      %v507 = vunpack.c.0.s8 %v506
      %v508 = vlaneseq
      %v509 = vshrl.u32 %v508, 7
      %v510 = vsub.s32 %v507, %v509
      %v511 = vrot.slane %v502, %v510
      %v513 = vunpack.c.l.s4 1966171168
      %v514 = vunpack.c.0.s8 %v513
      %v515 = vlaneseq
      %v516 = vshrl.u32 %v515, 7
      %v517 = vsub.s32 %v514, %v516
      %v518 = vrot.slane %v503, %v517
      %v520 = vunpack.c.l.s4 1966171168
      %v521 = vunpack.c.0.s8 %v520
      %v522 = vlaneseq
      %v523 = vshrl.u32 %v522, 7
      %v524 = vsub.s32 %v521, %v523
      %v525 = vrot.slane %v501, %v524
      %v527 = vunpack.c.l.s4 1966171168
      %v528 = vunpack.c.0.s8 %v527
      %v529 = vlaneseq
      %v530 = vshrl.u32 %v529, 7
      %v531 = vsub.s32 %v528, %v530
      %v532 = vrot.slane %v504, %v531
      %v533 = vcombine.low %v511, %v525
      %v534 = vcombine.high %v511, %v525
      %v535 = vcombine.low %v518, %v532
      %v536 = vcombine.low %v204, %v296
      %v538 = vunpack.c.l.s4 1966171168
      %v539 = vunpack.c.0.s8 %v538
      %v540 = vlaneseq
      %v541 = vshrl.u32 %v540, 7
      %v542 = vsub.s32 %v539, %v541
      %v543 = vrot.slane %v536, %v542
      %v544 = vcombine.low %v459, %v501
      %v545 = vcombine.high %v459, %v501
      %v546 = vcombine.high %v543, %v543
      %v548 = vunpack.c.l.s4 1966171168
      %v549 = vunpack.c.0.s8 %v548
      %v550 = vlaneseq
      %v551 = vshrl.u32 %v550, 7
      %v552 = vsub.s32 %v549, %v551
      %v553 = vrot.slane %v544, %v552
      %v555 = vunpack.c.l.s4 1966171168
      %v556 = vunpack.c.0.s8 %v555
      %v557 = vlaneseq
      %v558 = vshrl.u32 %v557, 7
      %v559 = vsub.s32 %v556, %v558
      %v560 = vrot.slane %v545, %v559
      %v562 = vunpack.c.l.s4 1966171168
      %v563 = vunpack.c.0.s8 %v562
      %v564 = vlaneseq
      %v565 = vshrl.u32 %v564, 7
      %v566 = vsub.s32 %v563, %v565
      %v567 = vrot.slane %v543, %v566
      %v569 = vunpack.c.l.s4 1966171168
      %v570 = vunpack.c.0.s8 %v569
      %v571 = vlaneseq
      %v572 = vshrl.u32 %v571, 7
      %v573 = vsub.s32 %v570, %v572
      %v574 = vrot.slane %v546, %v573
      %v575 = vcombine.low %v553, %v567
      %v576 = vcombine.high %v553, %v567
      %v577 = vcombine.low %v560, %v574
      %v578 = vcombine.low %v205, %v303
      %v580 = vunpack.c.l.s4 1966171168
      %v581 = vunpack.c.0.s8 %v580
      %v582 = vlaneseq
      %v583 = vshrl.u32 %v582, 7
      %v584 = vsub.s32 %v581, %v583
      %v585 = vrot.slane %v578, %v584
      %v586 = vcombine.low %v501, %v543
      %v587 = vcombine.high %v501, %v543
      %v588 = vcombine.high %v585, %v585
      %v590 = vunpack.c.l.s4 1966171168
      %v591 = vunpack.c.0.s8 %v590
      %v592 = vlaneseq
      %v593 = vshrl.u32 %v592, 7
      %v594 = vsub.s32 %v591, %v593
      %v595 = vrot.slane %v586, %v594
      %v597 = vunpack.c.l.s4 1966171168
      %v598 = vunpack.c.0.s8 %v597
      %v599 = vlaneseq
      %v600 = vshrl.u32 %v599, 7
      %v601 = vsub.s32 %v598, %v600
      %v602 = vrot.slane %v587, %v601
      %v604 = vunpack.c.l.s4 1966171168
      %v605 = vunpack.c.0.s8 %v604
      %v606 = vlaneseq
      %v607 = vshrl.u32 %v606, 7
      %v608 = vsub.s32 %v605, %v607
      %v609 = vrot.slane %v585, %v608
      %v611 = vunpack.c.l.s4 1966171168
      %v612 = vunpack.c.0.s8 %v611
      %v613 = vlaneseq
      %v614 = vshrl.u32 %v613, 7
      %v615 = vsub.s32 %v612, %v614
      %v616 = vrot.slane %v588, %v615
      %v617 = vcombine.low %v595, %v609
      %v618 = vcombine.high %v595, %v609
      %v619 = vcombine.low %v602, %v616
      %v620 = vcombine.low %v206, %v310
      %v622 = vunpack.c.l.s4 1966171168
      %v623 = vunpack.c.0.s8 %v622
      %v624 = vlaneseq
      %v625 = vshrl.u32 %v624, 7
      %v626 = vsub.s32 %v623, %v625
      %v627 = vrot.slane %v620, %v626
      %v628 = vcombine.low %v543, %v585
      %v629 = vcombine.high %v543, %v585
      %v630 = vcombine.high %v627, %v627
      %v632 = vunpack.c.l.s4 1966171168
      %v633 = vunpack.c.0.s8 %v632
      %v634 = vlaneseq
      %v635 = vshrl.u32 %v634, 7
      %v636 = vsub.s32 %v633, %v635
      %v637 = vrot.slane %v628, %v636
      %v639 = vunpack.c.l.s4 1966171168
      %v640 = vunpack.c.0.s8 %v639
      %v641 = vlaneseq
      %v642 = vshrl.u32 %v641, 7
      %v643 = vsub.s32 %v640, %v642
      %v644 = vrot.slane %v629, %v643
      %v646 = vunpack.c.l.s4 1966171168
      %v647 = vunpack.c.0.s8 %v646
      %v648 = vlaneseq
      %v649 = vshrl.u32 %v648, 7
      %v650 = vsub.s32 %v647, %v649
      %v651 = vrot.slane %v627, %v650
      %v653 = vunpack.c.l.s4 1966171168
      %v654 = vunpack.c.0.s8 %v653
      %v655 = vlaneseq
      %v656 = vshrl.u32 %v655, 7
      %v657 = vsub.s32 %v654, %v656
      %v658 = vrot.slane %v630, %v657
      %v659 = vcombine.low %v637, %v651
      %v660 = vcombine.high %v637, %v651
      %v661 = vcombine.low %v644, %v658
      %v662 = vcombine.low %v207, %v317
      %v664 = vunpack.c.l.s4 1966171168
      %v665 = vunpack.c.0.s8 %v664
      %v666 = vlaneseq
      %v667 = vshrl.u32 %v666, 7
      %v668 = vsub.s32 %v665, %v667
      %v669 = vrot.slane %v662, %v668
      %v670 = vcombine.low %v585, %v627
      %v671 = vcombine.high %v585, %v627
      %v672 = vcombine.high %v669, %v669
      %v674 = vunpack.c.l.s4 1966171168
      %v675 = vunpack.c.0.s8 %v674
      %v676 = vlaneseq
      %v677 = vshrl.u32 %v676, 7
      %v678 = vsub.s32 %v675, %v677
      %v679 = vrot.slane %v670, %v678
      %v681 = vunpack.c.l.s4 1966171168
      %v682 = vunpack.c.0.s8 %v681
      %v683 = vlaneseq
      %v684 = vshrl.u32 %v683, 7
      %v685 = vsub.s32 %v682, %v684
      %v686 = vrot.slane %v671, %v685
      %v688 = vunpack.c.l.s4 1966171168
      %v689 = vunpack.c.0.s8 %v688
      %v690 = vlaneseq
      %v691 = vshrl.u32 %v690, 7
      %v692 = vsub.s32 %v689, %v691
      %v693 = vrot.slane %v669, %v692
      %v695 = vunpack.c.l.s4 1966171168
      %v696 = vunpack.c.0.s8 %v695
      %v697 = vlaneseq
      %v698 = vshrl.u32 %v697, 7
      %v699 = vsub.s32 %v696, %v698
      %v700 = vrot.slane %v672, %v699
      %v701 = vcombine.low %v679, %v693
      %v702 = vcombine.high %v679, %v693
      %v703 = vcombine.low %v686, %v700
      %v704 = vcombine.low %v208, %v324
      %v706 = vunpack.c.l.s4 1966171168
      %v707 = vunpack.c.0.s8 %v706
      %v708 = vlaneseq
      %v709 = vshrl.u32 %v708, 7
      %v710 = vsub.s32 %v707, %v709
      %v711 = vrot.slane %v704, %v710
      %v712 = vcombine.low %v627, %v669
      %v713 = vcombine.high %v627, %v669
      %v714 = vcombine.high %v711, %v711
      %v716 = vunpack.c.l.s4 1966171168
      %v717 = vunpack.c.0.s8 %v716
      %v718 = vlaneseq
      %v719 = vshrl.u32 %v718, 7
      %v720 = vsub.s32 %v717, %v719
      %v721 = vrot.slane %v712, %v720
      %v723 = vunpack.c.l.s4 1966171168
      %v724 = vunpack.c.0.s8 %v723
      %v725 = vlaneseq
      %v726 = vshrl.u32 %v725, 7
      %v727 = vsub.s32 %v724, %v726
      %v728 = vrot.slane %v713, %v727
      %v730 = vunpack.c.l.s4 1966171168
      %v731 = vunpack.c.0.s8 %v730
      %v732 = vlaneseq
      %v733 = vshrl.u32 %v732, 7
      %v734 = vsub.s32 %v731, %v733
      %v735 = vrot.slane %v711, %v734
      %v737 = vunpack.c.l.s4 1966171168
      %v738 = vunpack.c.0.s8 %v737
      %v739 = vlaneseq
      %v740 = vshrl.u32 %v739, 7
      %v741 = vsub.s32 %v738, %v740
      %v742 = vrot.slane %v714, %v741
      %v743 = vcombine.low %v721, %v735
      %v744 = vcombine.high %v721, %v735
      %v745 = vcombine.low %v728, %v742
      %v746 = vcombine.low %v209, %v331
      %v748 = vunpack.c.l.s4 1966171168
      %v749 = vunpack.c.0.s8 %v748
      %v750 = vlaneseq
      %v751 = vshrl.u32 %v750, 7
      %v752 = vsub.s32 %v749, %v751
      %v753 = vrot.slane %v746, %v752
      %v754 = vcombine.low %v669, %v711
      %v755 = vcombine.high %v669, %v711
      %v756 = vcombine.high %v753, %v753
      %v758 = vunpack.c.l.s4 1966171168
      %v759 = vunpack.c.0.s8 %v758
      %v760 = vlaneseq
      %v761 = vshrl.u32 %v760, 7
      %v762 = vsub.s32 %v759, %v761
      %v763 = vrot.slane %v754, %v762
      %v765 = vunpack.c.l.s4 1966171168
      %v766 = vunpack.c.0.s8 %v765
      %v767 = vlaneseq
      %v768 = vshrl.u32 %v767, 7
      %v769 = vsub.s32 %v766, %v768
      %v770 = vrot.slane %v755, %v769
      %v772 = vunpack.c.l.s4 1966171168
      %v773 = vunpack.c.0.s8 %v772
      %v774 = vlaneseq
      %v775 = vshrl.u32 %v774, 7
      %v776 = vsub.s32 %v773, %v775
      %v777 = vrot.slane %v753, %v776
      %v779 = vunpack.c.l.s4 1966171168
      %v780 = vunpack.c.0.s8 %v779
      %v781 = vlaneseq
      %v782 = vshrl.u32 %v781, 7
      %v783 = vsub.s32 %v780, %v782
      %v784 = vrot.slane %v756, %v783
      %v785 = vcombine.low %v763, %v777
      %v786 = vcombine.high %v763, %v777
      %v787 = vcombine.low %v770, %v784
      %v788 = vcombine.low %v210, %v341
      %v790 = vunpack.c.l.s4 1966171168
      %v791 = vunpack.c.0.s8 %v790
      %v792 = vlaneseq
      %v793 = vshrl.u32 %v792, 7
      %v794 = vsub.s32 %v791, %v793
      %v795 = vrot.slane %v788, %v794
      %v796 = vcombine.low %v711, %v753
      %v797 = vcombine.high %v711, %v753
      %v798 = vcombine.high %v795, %v795
      %v800 = vunpack.c.l.s4 1966171168
      %v801 = vunpack.c.0.s8 %v800
      %v802 = vlaneseq
      %v803 = vshrl.u32 %v802, 7
      %v804 = vsub.s32 %v801, %v803
      %v805 = vrot.slane %v796, %v804
      %v807 = vunpack.c.l.s4 1966171168
      %v808 = vunpack.c.0.s8 %v807
      %v809 = vlaneseq
      %v810 = vshrl.u32 %v809, 7
      %v811 = vsub.s32 %v808, %v810
      %v812 = vrot.slane %v797, %v811
      %v814 = vunpack.c.l.s4 1966171168
      %v815 = vunpack.c.0.s8 %v814
      %v816 = vlaneseq
      %v817 = vshrl.u32 %v816, 7
      %v818 = vsub.s32 %v815, %v817
      %v819 = vrot.slane %v795, %v818
      %v821 = vunpack.c.l.s4 1966171168
      %v822 = vunpack.c.0.s8 %v821
      %v823 = vlaneseq
      %v824 = vshrl.u32 %v823, 7
      %v825 = vsub.s32 %v822, %v824
      %v826 = vrot.slane %v798, %v825
      %v827 = vcombine.low %v805, %v819
      %v828 = vcombine.high %v805, %v819
      %v829 = vcombine.low %v812, %v826
      %v830 = vcombine.low %v211, %v351
      %v832 = vunpack.c.l.s4 1966171168
      %v833 = vunpack.c.0.s8 %v832
      %v834 = vlaneseq
      %v835 = vshrl.u32 %v834, 7
      %v836 = vsub.s32 %v833, %v835
      %v837 = vrot.slane %v830, %v836
      %v838 = vcombine.low %v753, %v795
      %v839 = vcombine.high %v753, %v795
      %v840 = vcombine.high %v837, %v837
      %v842 = vunpack.c.l.s4 1966171168
      %v843 = vunpack.c.0.s8 %v842
      %v844 = vlaneseq
      %v845 = vshrl.u32 %v844, 7
      %v846 = vsub.s32 %v843, %v845
      %v847 = vrot.slane %v838, %v846
      %v849 = vunpack.c.l.s4 1966171168
      %v850 = vunpack.c.0.s8 %v849
      %v851 = vlaneseq
      %v852 = vshrl.u32 %v851, 7
      %v853 = vsub.s32 %v850, %v852
      %v854 = vrot.slane %v839, %v853
      %v856 = vunpack.c.l.s4 1966171168
      %v857 = vunpack.c.0.s8 %v856
      %v858 = vlaneseq
      %v859 = vshrl.u32 %v858, 7
      %v860 = vsub.s32 %v857, %v859
      %v861 = vrot.slane %v837, %v860
      %v863 = vunpack.c.l.s4 1966171168
      %v864 = vunpack.c.0.s8 %v863
      %v865 = vlaneseq
      %v866 = vshrl.u32 %v865, 7
      %v867 = vsub.s32 %v864, %v866
      %v868 = vrot.slane %v840, %v867
      %v869 = vcombine.low %v847, %v861
      %v870 = vcombine.high %v847, %v861
      %v871 = vcombine.low %v854, %v868
      %v872 = vld [vmem:[%s1] sm:$0xff]
      %v873 = vld [vmem:[%s1 + $0x8] sm:$0xff]
      %v874 = vld [vmem:[%s1 + $0x10] sm:$0xff]
      %v875 = vld [vmem:[%s1 + $0x18] sm:$0xff]
      %v876 = vld [vmem:[%s1 + $0x20] sm:$0xff]
      %v877 = vld [vmem:[%s1 + $0x28] sm:$0xff]
      %v878 = vld [vmem:[%s1 + $0x30] sm:$0xff]
      %v879 = vld [vmem:[%s1 + $0x38] sm:$0xff]
      %v880 = vld [vmem:[%s1 + $0x40] sm:$0xff]
      %v881 = vld [vmem:[%s1 + $0x48] sm:$0xff]
      %v882 = vld [vmem:[%s1 + $0x50] sm:$0xff]
      %v883 = vld [vmem:[%s1 + $0x58] sm:$0xff]
      %v884 = vld [vmem:[%s1 + $0x60] sm:$0xff]
      %v885 = vld [vmem:[%s1 + $0x68] sm:$0xff]
      %v886 = vld [vmem:[%s1 + $0x70] sm:$0xff]
      %v887 = vld [vmem:[%s1 + $0x78] sm:$0xff]
      %v888 = vld [vmem:[%s1 + $0x80] sm:$0xff]
      %v889 = vld [vmem:[%s1 + $0x88] sm:$0xff]
      %v890 = vld [vmem:[%s1 + $0x90] sm:$0xff]
      %v891 = vld [vmem:[%s1 + $0x98] sm:$0xff]
      %v892 = vld [vmem:[%s1 + $0xa0] sm:$0xff]
      %v893 = vld [vmem:[%s1 + $0xa8] sm:$0xff]
      %v894 = vld [vmem:[%s1 + $0xb0] sm:$0xff]
      %v895 = vld [vmem:[%s1 + $0xb8] sm:$0xff]
      %v896 = vld [vmem:[%s1 + $0xc0] sm:$0xff]
      %v897 = vld [vmem:[%s1 + $0xc8] sm:$0xff]
      %v898 = vld [vmem:[%s1 + $0xd0] sm:$0xff]
      %v899 = vld [vmem:[%s1 + $0xd8] sm:$0xff]
      %v900 = vld [vmem:[%s1 + $0xe0] sm:$0xff]
      %v901 = vld [vmem:[%s1 + $0xe8] sm:$0xff]
      %v902 = vld [vmem:[%s1 + $0xf0] sm:$0xff]
      %v903 = vld [vmem:[%s1 + $0xf8] sm:$0xff]
      %v904 = vld [vmem:[%s1 + $0x100] sm:$0xff]
      %v905 = vld [vmem:[%s1 + $0x108] sm:$0xff]
      %v906 = vld [vmem:[%s1 + $0x110] sm:$0xff]
      %v907 = vld [vmem:[%s1 + $0x118] sm:$0xff]
      %v908 = vld [vmem:[%s1 + $0x120] sm:$0xff]
      %v909 = vld [vmem:[%s1 + $0x128] sm:$0xff]
      %v910 = vld [vmem:[%s1 + $0x130] sm:$0xff]
      %v911 = vld [vmem:[%s1 + $0x138] sm:$0xff]
      %v912 = vld [vmem:[%s1 + $0x140] sm:$0xff]
      %v913 = vld [vmem:[%s1 + $0x148] sm:$0xff]
      %v914 = vld [vmem:[%s1 + $0x150] sm:$0xff]
      %v915 = vld [vmem:[%s1 + $0x158] sm:$0xff]
      %v916 = vld [vmem:[%s1 + $0x160] sm:$0xff]
      %v917 = vld [vmem:[%s1 + $0x168] sm:$0xff]
      %v918 = vld [vmem:[%s1 + $0x170] sm:$0xff]
      %v919 = vld [vmem:[%s1 + $0x178] sm:$0xff]
      %v920 = vld [vmem:[%s1 + $0x180] sm:$0xff]
      %v921 = vld [vmem:[%s1 + $0x188] sm:$0xff]
      %v922 = vld [vmem:[%s1 + $0x190] sm:$0xff]
      %v923 = vld [vmem:[%s1 + $0x198] sm:$0xff]
      %v924 = vld [vmem:[%s1 + $0x1a0] sm:$0xff]
      %v925 = vld [vmem:[%s1 + $0x1a8] sm:$0xff]
      %v926 = vld [vmem:[%s1 + $0x1b0] sm:$0xff]
      %v927 = vld [vmem:[%s1 + $0x1b8] sm:$0xff]
      %v928 = vld [vmem:[%s1 + $0x1c0] sm:$0xff]
      %v929 = vld [vmem:[%s1 + $0x1c8] sm:$0xff]
      %v930 = vld [vmem:[%s1 + $0x1d0] sm:$0xff]
      %v931 = vld [vmem:[%s1 + $0x1d8] sm:$0xff]
      %v932 = vld [vmem:[%s1 + $0x1e0] sm:$0xff]
      %v933 = vld [vmem:[%s1 + $0x1e8] sm:$0xff]
      %v934 = vld [vmem:[%s1 + $0x1f0] sm:$0xff]
      %v935 = vld [vmem:[%s1 + $0x1f8] sm:$0xff]
      %v936 = vld [vmem:[%s1 + $0x200] sm:$0xff]
      %v937 = vld [vmem:[%s1 + $0x208] sm:$0xff]
      %v938 = vld [vmem:[%s1 + $0x210] sm:$0xff]
      %v939 = vld [vmem:[%s1 + $0x218] sm:$0xff]
      %v940 = vld [vmem:[%s1 + $0x220] sm:$0xff]
      %v941 = vld [vmem:[%s1 + $0x228] sm:$0xff]
      %v942 = vld [vmem:[%s1 + $0x230] sm:$0xff]
      %v943 = vld [vmem:[%s1 + $0x238] sm:$0xff]
      %v944 = vld [vmem:[%s1 + $0x240] sm:$0xff]
      %v945 = vld [vmem:[%s1 + $0x248] sm:$0xff]
      %v946 = vld [vmem:[%s1 + $0x250] sm:$0xff]
      %v947 = vld [vmem:[%s1 + $0x258] sm:$0xff]
      %v948 = vld [vmem:[%s1 + $0x260] sm:$0xff]
      %v949 = vld [vmem:[%s1 + $0x268] sm:$0xff]
      %v950 = vld [vmem:[%s1 + $0x270] sm:$0xff]
      %v951 = vld [vmem:[%s1 + $0x278] sm:$0xff]
      %v952 = vld [vmem:[%s1 + $0x280] sm:$0xff]
      %v953 = vld [vmem:[%s1 + $0x288] sm:$0xff]
      %v954 = vld [vmem:[%s1 + $0x290] sm:$0xff]
      %v955 = vld [vmem:[%s1 + $0x298] sm:$0xff]
      %v956 = vld [vmem:[%s1 + $0x2a0] sm:$0xff]
      %v957 = vld [vmem:[%s1 + $0x2a8] sm:$0xff]
      %v958 = vld [vmem:[%s1 + $0x2b0] sm:$0xff]
      %v959 = vld [vmem:[%s1 + $0x2b8] sm:$0xff]
      %v960 = vld [vmem:[%s1 + $0x2c0] sm:$0xff]
      %v961 = vld [vmem:[%s1 + $0x2c8] sm:$0xff]
      %v962 = vld [vmem:[%s1 + $0x2d0] sm:$0xff]
      %v963 = vld [vmem:[%s1 + $0x2d8] sm:$0xff]
      %v964 = vld [vmem:[%s1 + $0x2e0] sm:$0xff]
      %v965 = vld [vmem:[%s1 + $0x2e8] sm:$0xff]
      %v966 = vld [vmem:[%s1 + $0x2f0] sm:$0xff]
      %v967 = vld [vmem:[%s1 + $0x2f8] sm:$0xff]
      %v968 = vcombine.low %v407, %v409
      %v969 = vcombine.high %v407, %v409
      %v970 = vcombine.low %v408, %v449
      %v971 = vcombine.high %v408, %v449
      %v972 = vcombine.low %v451, %v450
      %v973 = vcombine.high %v451, %v450
      %v974 = vcombine.low %v491, %v493
      %v975 = vcombine.high %v491, %v493
      %v977 = vunpack.c.l.s4 1966171168
      %v978 = vunpack.c.0.s8 %v977
      %v979 = vlaneseq
      %v980 = vshrl.u32 %v979, 7
      %v981 = vsub.s32 %v978, %v980
      %v982 = vrot.slane %v968, %v981
      %v984 = vunpack.c.l.s4 1966171168
      %v985 = vunpack.c.0.s8 %v984
      %v986 = vlaneseq
      %v987 = vshrl.u32 %v986, 7
      %v988 = vsub.s32 %v985, %v987
      %v989 = vrot.slane %v969, %v988
      %v991 = vunpack.c.l.s4 1966171168
      %v992 = vunpack.c.0.s8 %v991
      %v993 = vlaneseq
      %v994 = vshrl.u32 %v993, 7
      %v995 = vsub.s32 %v992, %v994
      %v996 = vrot.slane %v970, %v995
      %v998 = vunpack.c.l.s4 1966171168
      %v999 = vunpack.c.0.s8 %v998
      %v1000 = vlaneseq
      %v1001 = vshrl.u32 %v1000, 7
      %v1002 = vsub.s32 %v999, %v1001
      %v1003 = vrot.slane %v971, %v1002
      %v1005 = vunpack.c.l.s4 1966171168
      %v1006 = vunpack.c.0.s8 %v1005
      %v1007 = vlaneseq
      %v1008 = vshrl.u32 %v1007, 7
      %v1009 = vsub.s32 %v1006, %v1008
      %v1010 = vrot.slane %v972, %v1009
      %v1012 = vunpack.c.l.s4 1966171168
      %v1013 = vunpack.c.0.s8 %v1012
      %v1014 = vlaneseq
      %v1015 = vshrl.u32 %v1014, 7
      %v1016 = vsub.s32 %v1013, %v1015
      %v1017 = vrot.slane %v973, %v1016
      %v1019 = vunpack.c.l.s4 1966171168
      %v1020 = vunpack.c.0.s8 %v1019
      %v1021 = vlaneseq
      %v1022 = vshrl.u32 %v1021, 7
      %v1023 = vsub.s32 %v1020, %v1022
      %v1024 = vrot.slane %v974, %v1023
      %v1026 = vunpack.c.l.s4 1966171168
      %v1027 = vunpack.c.0.s8 %v1026
      %v1028 = vlaneseq
      %v1029 = vshrl.u32 %v1028, 7
      %v1030 = vsub.s32 %v1027, %v1029
      %v1031 = vrot.slane %v975, %v1030
      %v1032 = vcombine.low %v982, %v996
      %v1033 = vcombine.high %v982, %v996
      %v1034 = vcombine.low %v989, %v1003
      %v1035 = vcombine.high %v989, %v1003
      %v1036 = vcombine.low %v1010, %v1024
      %v1037 = vcombine.high %v1010, %v1024
      %v1038 = vcombine.low %v1017, %v1031
      %v1039 = vcombine.high %v1017, %v1031
      %v1041 = vunpack.c.l.s4 1966171168
      %v1042 = vunpack.c.0.s8 %v1041
      %v1043 = vlaneseq
      %v1044 = vshrl.u32 %v1043, 7
      %v1045 = vsub.s32 %v1042, %v1044
      %v1046 = vrot.slane %v1032, %v1045
      %v1048 = vunpack.c.l.s4 1966171168
      %v1049 = vunpack.c.0.s8 %v1048
      %v1050 = vlaneseq
      %v1051 = vshrl.u32 %v1050, 7
      %v1052 = vsub.s32 %v1049, %v1051
      %v1053 = vrot.slane %v1034, %v1052
      %v1055 = vunpack.c.l.s4 1966171168
      %v1056 = vunpack.c.0.s8 %v1055
      %v1057 = vlaneseq
      %v1058 = vshrl.u32 %v1057, 7
      %v1059 = vsub.s32 %v1056, %v1058
      %v1060 = vrot.slane %v1033, %v1059
      %v1062 = vunpack.c.l.s4 1966171168
      %v1063 = vunpack.c.0.s8 %v1062
      %v1064 = vlaneseq
      %v1065 = vshrl.u32 %v1064, 7
      %v1066 = vsub.s32 %v1063, %v1065
      %v1067 = vrot.slane %v1035, %v1066
      %v1069 = vunpack.c.l.s4 1966171168
      %v1070 = vunpack.c.0.s8 %v1069
      %v1071 = vlaneseq
      %v1072 = vshrl.u32 %v1071, 7
      %v1073 = vsub.s32 %v1070, %v1072
      %v1074 = vrot.slane %v1036, %v1073
      %v1076 = vunpack.c.l.s4 1966171168
      %v1077 = vunpack.c.0.s8 %v1076
      %v1078 = vlaneseq
      %v1079 = vshrl.u32 %v1078, 7
      %v1080 = vsub.s32 %v1077, %v1079
      %v1081 = vrot.slane %v1038, %v1080
      %v1083 = vunpack.c.l.s4 1966171168
      %v1084 = vunpack.c.0.s8 %v1083
      %v1085 = vlaneseq
      %v1086 = vshrl.u32 %v1085, 7
      %v1087 = vsub.s32 %v1084, %v1086
      %v1088 = vrot.slane %v1037, %v1087
      %v1090 = vunpack.c.l.s4 1966171168
      %v1091 = vunpack.c.0.s8 %v1090
      %v1092 = vlaneseq
      %v1093 = vshrl.u32 %v1092, 7
      %v1094 = vsub.s32 %v1091, %v1093
      %v1095 = vrot.slane %v1039, %v1094
      %v1096 = vcombine.low %v1046, %v1074
      %v1097 = vcombine.high %v1046, %v1074
      %v1098 = vcombine.low %v1053, %v1081
      %v1099 = vcombine.low %v1060, %v1088
      %v1100 = vcombine.high %v1060, %v1088
      %v1101 = vcombine.low %v1067, %v1095
      %v1102 = vcombine.low %v492, %v533
      %v1103 = vcombine.high %v492, %v533
      %v1104 = vcombine.low %v535, %v534
      %v1105 = vcombine.high %v535, %v534
      %v1106 = vcombine.low %v575, %v577
      %v1107 = vcombine.high %v575, %v577
      %v1108 = vcombine.low %v576, %v617
      %v1109 = vcombine.high %v576, %v617
      %v1111 = vunpack.c.l.s4 1966171168
      %v1112 = vunpack.c.0.s8 %v1111
      %v1113 = vlaneseq
      %v1114 = vshrl.u32 %v1113, 7
      %v1115 = vsub.s32 %v1112, %v1114
      %v1116 = vrot.slane %v1102, %v1115
      %v1118 = vunpack.c.l.s4 1966171168
      %v1119 = vunpack.c.0.s8 %v1118
      %v1120 = vlaneseq
      %v1121 = vshrl.u32 %v1120, 7
      %v1122 = vsub.s32 %v1119, %v1121
      %v1123 = vrot.slane %v1103, %v1122
      %v1125 = vunpack.c.l.s4 1966171168
      %v1126 = vunpack.c.0.s8 %v1125
      %v1127 = vlaneseq
      %v1128 = vshrl.u32 %v1127, 7
      %v1129 = vsub.s32 %v1126, %v1128
      %v1130 = vrot.slane %v1104, %v1129
      %v1132 = vunpack.c.l.s4 1966171168
      %v1133 = vunpack.c.0.s8 %v1132
      %v1134 = vlaneseq
      %v1135 = vshrl.u32 %v1134, 7
      %v1136 = vsub.s32 %v1133, %v1135
      %v1137 = vrot.slane %v1105, %v1136
      %v1139 = vunpack.c.l.s4 1966171168
      %v1140 = vunpack.c.0.s8 %v1139
      %v1141 = vlaneseq
      %v1142 = vshrl.u32 %v1141, 7
      %v1143 = vsub.s32 %v1140, %v1142
      %v1144 = vrot.slane %v1106, %v1143
      %v1146 = vunpack.c.l.s4 1966171168
      %v1147 = vunpack.c.0.s8 %v1146
      %v1148 = vlaneseq
      %v1149 = vshrl.u32 %v1148, 7
      %v1150 = vsub.s32 %v1147, %v1149
      %v1151 = vrot.slane %v1107, %v1150
      %v1153 = vunpack.c.l.s4 1966171168
      %v1154 = vunpack.c.0.s8 %v1153
      %v1155 = vlaneseq
      %v1156 = vshrl.u32 %v1155, 7
      %v1157 = vsub.s32 %v1154, %v1156
      %v1158 = vrot.slane %v1108, %v1157
      %v1160 = vunpack.c.l.s4 1966171168
      %v1161 = vunpack.c.0.s8 %v1160
      %v1162 = vlaneseq
      %v1163 = vshrl.u32 %v1162, 7
      %v1164 = vsub.s32 %v1161, %v1163
      %v1165 = vrot.slane %v1109, %v1164
      %v1166 = vcombine.low %v1116, %v1130
      %v1167 = vcombine.high %v1116, %v1130
      %v1168 = vcombine.low %v1123, %v1137
      %v1169 = vcombine.high %v1123, %v1137
      %v1170 = vcombine.low %v1144, %v1158
      %v1171 = vcombine.high %v1144, %v1158
      %v1172 = vcombine.low %v1151, %v1165
      %v1173 = vcombine.high %v1151, %v1165
      %v1175 = vunpack.c.l.s4 1966171168
      %v1176 = vunpack.c.0.s8 %v1175
      %v1177 = vlaneseq
      %v1178 = vshrl.u32 %v1177, 7
      %v1179 = vsub.s32 %v1176, %v1178
      %v1180 = vrot.slane %v1166, %v1179
      %v1182 = vunpack.c.l.s4 1966171168
      %v1183 = vunpack.c.0.s8 %v1182
      %v1184 = vlaneseq
      %v1185 = vshrl.u32 %v1184, 7
      %v1186 = vsub.s32 %v1183, %v1185
      %v1187 = vrot.slane %v1168, %v1186
      %v1189 = vunpack.c.l.s4 1966171168
      %v1190 = vunpack.c.0.s8 %v1189
      %v1191 = vlaneseq
      %v1192 = vshrl.u32 %v1191, 7
      %v1193 = vsub.s32 %v1190, %v1192
      %v1194 = vrot.slane %v1167, %v1193
      %v1196 = vunpack.c.l.s4 1966171168
      %v1197 = vunpack.c.0.s8 %v1196
      %v1198 = vlaneseq
      %v1199 = vshrl.u32 %v1198, 7
      %v1200 = vsub.s32 %v1197, %v1199
      %v1201 = vrot.slane %v1169, %v1200
      %v1203 = vunpack.c.l.s4 1966171168
      %v1204 = vunpack.c.0.s8 %v1203
      %v1205 = vlaneseq
      %v1206 = vshrl.u32 %v1205, 7
      %v1207 = vsub.s32 %v1204, %v1206
      %v1208 = vrot.slane %v1170, %v1207
      %v1210 = vunpack.c.l.s4 1966171168
      %v1211 = vunpack.c.0.s8 %v1210
      %v1212 = vlaneseq
      %v1213 = vshrl.u32 %v1212, 7
      %v1214 = vsub.s32 %v1211, %v1213
      %v1215 = vrot.slane %v1172, %v1214
      %v1217 = vunpack.c.l.s4 1966171168
      %v1218 = vunpack.c.0.s8 %v1217
      %v1219 = vlaneseq
      %v1220 = vshrl.u32 %v1219, 7
      %v1221 = vsub.s32 %v1218, %v1220
      %v1222 = vrot.slane %v1171, %v1221
      %v1224 = vunpack.c.l.s4 1966171168
      %v1225 = vunpack.c.0.s8 %v1224
      %v1226 = vlaneseq
      %v1227 = vshrl.u32 %v1226, 7
      %v1228 = vsub.s32 %v1225, %v1227
      %v1229 = vrot.slane %v1173, %v1228
      %v1230 = vcombine.low %v1180, %v1208
      %v1231 = vcombine.high %v1180, %v1208
      %v1232 = vcombine.low %v1187, %v1215
      %v1233 = vcombine.low %v1194, %v1222
      %v1234 = vcombine.high %v1194, %v1222
      %v1235 = vcombine.low %v1201, %v1229
      %v1236 = vcombine.low %v619, %v618
      %v1237 = vcombine.high %v619, %v618
      %v1238 = vcombine.low %v659, %v661
      %v1239 = vcombine.high %v659, %v661
      %v1240 = vcombine.low %v660, %v701
      %v1241 = vcombine.high %v660, %v701
      %v1242 = vcombine.low %v703, %v702
      %v1243 = vcombine.high %v703, %v702
      %v1245 = vunpack.c.l.s4 1966171168
      %v1246 = vunpack.c.0.s8 %v1245
      %v1247 = vlaneseq
      %v1248 = vshrl.u32 %v1247, 7
      %v1249 = vsub.s32 %v1246, %v1248
      %v1250 = vrot.slane %v1236, %v1249
      %v1252 = vunpack.c.l.s4 1966171168
      %v1253 = vunpack.c.0.s8 %v1252
      %v1254 = vlaneseq
      %v1255 = vshrl.u32 %v1254, 7
      %v1256 = vsub.s32 %v1253, %v1255
      %v1257 = vrot.slane %v1237, %v1256
      %v1259 = vunpack.c.l.s4 1966171168
      %v1260 = vunpack.c.0.s8 %v1259
      %v1261 = vlaneseq
      %v1262 = vshrl.u32 %v1261, 7
      %v1263 = vsub.s32 %v1260, %v1262
      %v1264 = vrot.slane %v1238, %v1263
      %v1266 = vunpack.c.l.s4 1966171168
      %v1267 = vunpack.c.0.s8 %v1266
      %v1268 = vlaneseq
      %v1269 = vshrl.u32 %v1268, 7
      %v1270 = vsub.s32 %v1267, %v1269
      %v1271 = vrot.slane %v1239, %v1270
      %v1273 = vunpack.c.l.s4 1966171168
      %v1274 = vunpack.c.0.s8 %v1273
      %v1275 = vlaneseq
      %v1276 = vshrl.u32 %v1275, 7
      %v1277 = vsub.s32 %v1274, %v1276
      %v1278 = vrot.slane %v1240, %v1277
      %v1280 = vunpack.c.l.s4 1966171168
      %v1281 = vunpack.c.0.s8 %v1280
      %v1282 = vlaneseq
      %v1283 = vshrl.u32 %v1282, 7
      %v1284 = vsub.s32 %v1281, %v1283
      %v1285 = vrot.slane %v1241, %v1284
      %v1287 = vunpack.c.l.s4 1966171168
      %v1288 = vunpack.c.0.s8 %v1287
      %v1289 = vlaneseq
      %v1290 = vshrl.u32 %v1289, 7
      %v1291 = vsub.s32 %v1288, %v1290
      %v1292 = vrot.slane %v1242, %v1291
      %v1294 = vunpack.c.l.s4 1966171168
      %v1295 = vunpack.c.0.s8 %v1294
      %v1296 = vlaneseq
      %v1297 = vshrl.u32 %v1296, 7
      %v1298 = vsub.s32 %v1295, %v1297
      %v1299 = vrot.slane %v1243, %v1298
      %v1300 = vcombine.low %v1250, %v1264
      %v1301 = vcombine.high %v1250, %v1264
      %v1302 = vcombine.low %v1257, %v1271
      %v1303 = vcombine.high %v1257, %v1271
      %v1304 = vcombine.low %v1278, %v1292
      %v1305 = vcombine.high %v1278, %v1292
      %v1306 = vcombine.low %v1285, %v1299
      %v1307 = vcombine.high %v1285, %v1299
      %v1309 = vunpack.c.l.s4 1966171168
      %v1310 = vunpack.c.0.s8 %v1309
      %v1311 = vlaneseq
      %v1312 = vshrl.u32 %v1311, 7
      %v1313 = vsub.s32 %v1310, %v1312
      %v1314 = vrot.slane %v1300, %v1313
      %v1316 = vunpack.c.l.s4 1966171168
      %v1317 = vunpack.c.0.s8 %v1316
      %v1318 = vlaneseq
      %v1319 = vshrl.u32 %v1318, 7
      %v1320 = vsub.s32 %v1317, %v1319
      %v1321 = vrot.slane %v1302, %v1320
      %v1323 = vunpack.c.l.s4 1966171168
      %v1324 = vunpack.c.0.s8 %v1323
      %v1325 = vlaneseq
      %v1326 = vshrl.u32 %v1325, 7
      %v1327 = vsub.s32 %v1324, %v1326
      %v1328 = vrot.slane %v1301, %v1327
      %v1330 = vunpack.c.l.s4 1966171168
      %v1331 = vunpack.c.0.s8 %v1330
      %v1332 = vlaneseq
      %v1333 = vshrl.u32 %v1332, 7
      %v1334 = vsub.s32 %v1331, %v1333
      %v1335 = vrot.slane %v1303, %v1334
      %v1337 = vunpack.c.l.s4 1966171168
      %v1338 = vunpack.c.0.s8 %v1337
      %v1339 = vlaneseq
      %v1340 = vshrl.u32 %v1339, 7
      %v1341 = vsub.s32 %v1338, %v1340
      %v1342 = vrot.slane %v1304, %v1341
      %v1344 = vunpack.c.l.s4 1966171168
      %v1345 = vunpack.c.0.s8 %v1344
      %v1346 = vlaneseq
      %v1347 = vshrl.u32 %v1346, 7
      %v1348 = vsub.s32 %v1345, %v1347
      %v1349 = vrot.slane %v1306, %v1348
      %v1351 = vunpack.c.l.s4 1966171168
      %v1352 = vunpack.c.0.s8 %v1351
      %v1353 = vlaneseq
      %v1354 = vshrl.u32 %v1353, 7
      %v1355 = vsub.s32 %v1352, %v1354
      %v1356 = vrot.slane %v1305, %v1355
      %v1358 = vunpack.c.l.s4 1966171168
      %v1359 = vunpack.c.0.s8 %v1358
      %v1360 = vlaneseq
      %v1361 = vshrl.u32 %v1360, 7
      %v1362 = vsub.s32 %v1359, %v1361
      %v1363 = vrot.slane %v1307, %v1362
      %v1364 = vcombine.low %v1314, %v1342
      %v1365 = vcombine.high %v1314, %v1342
      %v1366 = vcombine.low %v1321, %v1349
      %v1367 = vcombine.low %v1328, %v1356
      %v1368 = vcombine.high %v1328, %v1356
      %v1369 = vcombine.low %v1335, %v1363
      %v1370 = vcombine.low %v743, %v745
      %v1371 = vcombine.high %v743, %v745
      %v1372 = vcombine.low %v744, %v785
      %v1373 = vcombine.high %v744, %v785
      %v1374 = vcombine.low %v787, %v786
      %v1375 = vcombine.high %v787, %v786
      %v1376 = vcombine.low %v827, %v829
      %v1377 = vcombine.high %v827, %v829
      %v1379 = vunpack.c.l.s4 1966171168
      %v1380 = vunpack.c.0.s8 %v1379
      %v1381 = vlaneseq
      %v1382 = vshrl.u32 %v1381, 7
      %v1383 = vsub.s32 %v1380, %v1382
      %v1384 = vrot.slane %v1370, %v1383
      %v1386 = vunpack.c.l.s4 1966171168
      %v1387 = vunpack.c.0.s8 %v1386
      %v1388 = vlaneseq
      %v1389 = vshrl.u32 %v1388, 7
      %v1390 = vsub.s32 %v1387, %v1389
      %v1391 = vrot.slane %v1371, %v1390
      %v1393 = vunpack.c.l.s4 1966171168
      %v1394 = vunpack.c.0.s8 %v1393
      %v1395 = vlaneseq
      %v1396 = vshrl.u32 %v1395, 7
      %v1397 = vsub.s32 %v1394, %v1396
      %v1398 = vrot.slane %v1372, %v1397
      %v1400 = vunpack.c.l.s4 1966171168
      %v1401 = vunpack.c.0.s8 %v1400
      %v1402 = vlaneseq
      %v1403 = vshrl.u32 %v1402, 7
      %v1404 = vsub.s32 %v1401, %v1403
      %v1405 = vrot.slane %v1373, %v1404
      %v1407 = vunpack.c.l.s4 1966171168
      %v1408 = vunpack.c.0.s8 %v1407
      %v1409 = vlaneseq
      %v1410 = vshrl.u32 %v1409, 7
      %v1411 = vsub.s32 %v1408, %v1410
      %v1412 = vrot.slane %v1374, %v1411
      %v1414 = vunpack.c.l.s4 1966171168
      %v1415 = vunpack.c.0.s8 %v1414
      %v1416 = vlaneseq
      %v1417 = vshrl.u32 %v1416, 7
      %v1418 = vsub.s32 %v1415, %v1417
      %v1419 = vrot.slane %v1375, %v1418
      %v1421 = vunpack.c.l.s4 1966171168
      %v1422 = vunpack.c.0.s8 %v1421
      %v1423 = vlaneseq
      %v1424 = vshrl.u32 %v1423, 7
      %v1425 = vsub.s32 %v1422, %v1424
      %v1426 = vrot.slane %v1376, %v1425
      %v1428 = vunpack.c.l.s4 1966171168
      %v1429 = vunpack.c.0.s8 %v1428
      %v1430 = vlaneseq
      %v1431 = vshrl.u32 %v1430, 7
      %v1432 = vsub.s32 %v1429, %v1431
      %v1433 = vrot.slane %v1377, %v1432
      %v1434 = vcombine.low %v1384, %v1398
      %v1435 = vcombine.high %v1384, %v1398
      %v1436 = vcombine.low %v1391, %v1405
      %v1437 = vcombine.high %v1391, %v1405
      %v1438 = vcombine.low %v1412, %v1426
      %v1439 = vcombine.high %v1412, %v1426
      %v1440 = vcombine.low %v1419, %v1433
      %v1441 = vcombine.high %v1419, %v1433
      %v1443 = vunpack.c.l.s4 1966171168
      %v1444 = vunpack.c.0.s8 %v1443
      %v1445 = vlaneseq
      %v1446 = vshrl.u32 %v1445, 7
      %v1447 = vsub.s32 %v1444, %v1446
      %v1448 = vrot.slane %v1434, %v1447
      %v1450 = vunpack.c.l.s4 1966171168
      %v1451 = vunpack.c.0.s8 %v1450
      %v1452 = vlaneseq
      %v1453 = vshrl.u32 %v1452, 7
      %v1454 = vsub.s32 %v1451, %v1453
      %v1455 = vrot.slane %v1436, %v1454
      %v1457 = vunpack.c.l.s4 1966171168
      %v1458 = vunpack.c.0.s8 %v1457
      %v1459 = vlaneseq
      %v1460 = vshrl.u32 %v1459, 7
      %v1461 = vsub.s32 %v1458, %v1460
      %v1462 = vrot.slane %v1435, %v1461
      %v1464 = vunpack.c.l.s4 1966171168
      %v1465 = vunpack.c.0.s8 %v1464
      %v1466 = vlaneseq
      %v1467 = vshrl.u32 %v1466, 7
      %v1468 = vsub.s32 %v1465, %v1467
      %v1469 = vrot.slane %v1437, %v1468
      %v1471 = vunpack.c.l.s4 1966171168
      %v1472 = vunpack.c.0.s8 %v1471
      %v1473 = vlaneseq
      %v1474 = vshrl.u32 %v1473, 7
      %v1475 = vsub.s32 %v1472, %v1474
      %v1476 = vrot.slane %v1438, %v1475
      %v1478 = vunpack.c.l.s4 1966171168
      %v1479 = vunpack.c.0.s8 %v1478
      %v1480 = vlaneseq
      %v1481 = vshrl.u32 %v1480, 7
      %v1482 = vsub.s32 %v1479, %v1481
      %v1483 = vrot.slane %v1440, %v1482
      %v1485 = vunpack.c.l.s4 1966171168
      %v1486 = vunpack.c.0.s8 %v1485
      %v1487 = vlaneseq
      %v1488 = vshrl.u32 %v1487, 7
      %v1489 = vsub.s32 %v1486, %v1488
      %v1490 = vrot.slane %v1439, %v1489
      %v1492 = vunpack.c.l.s4 1966171168
      %v1493 = vunpack.c.0.s8 %v1492
      %v1494 = vlaneseq
      %v1495 = vshrl.u32 %v1494, 7
      %v1496 = vsub.s32 %v1493, %v1495
      %v1497 = vrot.slane %v1441, %v1496
      %v1498 = vcombine.low %v1448, %v1476
      %v1499 = vcombine.high %v1448, %v1476
      %v1500 = vcombine.low %v1455, %v1483
      %v1501 = vcombine.low %v1462, %v1490
      %v1502 = vcombine.high %v1462, %v1490
      %v1503 = vcombine.low %v1469, %v1497
      %v1504 = vcombine.low %v828, %v869
      %v1505 = vcombine.high %v828, %v869
      %v1506 = vcombine.low %v871, %v870
      %v1507 = vcombine.high %v871, %v870
      %v1509 = vunpack.c.l.s4 1966171168
      %v1510 = vunpack.c.0.s8 %v1509
      %v1511 = vlaneseq
      %v1512 = vshrl.u32 %v1511, 7
      %v1513 = vsub.s32 %v1510, %v1512
      %v1514 = vrot.slane %v1504, %v1513
      %v1516 = vunpack.c.l.s4 1966171168
      %v1517 = vunpack.c.0.s8 %v1516
      %v1518 = vlaneseq
      %v1519 = vshrl.u32 %v1518, 7
      %v1520 = vsub.s32 %v1517, %v1519
      %v1521 = vrot.slane %v1505, %v1520
      %v1523 = vunpack.c.l.s4 1966171168
      %v1524 = vunpack.c.0.s8 %v1523
      %v1525 = vlaneseq
      %v1526 = vshrl.u32 %v1525, 7
      %v1527 = vsub.s32 %v1524, %v1526
      %v1528 = vrot.slane %v1506, %v1527
      %v1530 = vunpack.c.l.s4 1966171168
      %v1531 = vunpack.c.0.s8 %v1530
      %v1532 = vlaneseq
      %v1533 = vshrl.u32 %v1532, 7
      %v1534 = vsub.s32 %v1531, %v1533
      %v1535 = vrot.slane %v1507, %v1534
      %v1536 = vcombine.low %v1514, %v1528
      %v1537 = vcombine.high %v1514, %v1528
      %v1538 = vcombine.low %v1521, %v1535
      %v1539 = vcombine.high %v1521, %v1535
      %v1541 = vunpack.c.l.s4 1966171168
      %v1542 = vunpack.c.0.s8 %v1541
      %v1543 = vlaneseq
      %v1544 = vshrl.u32 %v1543, 7
      %v1545 = vsub.s32 %v1542, %v1544
      %v1546 = vrot.slane %v1536, %v1545
      %v1548 = vunpack.c.l.s4 1966171168
      %v1549 = vunpack.c.0.s8 %v1548
      %v1550 = vlaneseq
      %v1551 = vshrl.u32 %v1550, 7
      %v1552 = vsub.s32 %v1549, %v1551
      %v1553 = vrot.slane %v1538, %v1552
      %v1555 = vunpack.c.l.s4 1966171168
      %v1556 = vunpack.c.0.s8 %v1555
      %v1557 = vlaneseq
      %v1558 = vshrl.u32 %v1557, 7
      %v1559 = vsub.s32 %v1556, %v1558
      %v1560 = vrot.slane %v1537, %v1559
      %v1562 = vunpack.c.l.s4 1966171168
      %v1563 = vunpack.c.0.s8 %v1562
      %v1564 = vlaneseq
      %v1565 = vshrl.u32 %v1564, 7
      %v1566 = vsub.s32 %v1563, %v1565
      %v1567 = vrot.slane %v1539, %v1566
      %v1568 = vcombine.high %v1546, %v1546
      %v1569 = vcombine.high %v1560, %v1560
      %v1696 = vunpack.c.l.b16 %v872
      %v1697 = vunpack.c.h.b16 %v872
      %v1698 = vunpack.c.l.b16 %v873
      %v1699 = vunpack.c.h.b16 %v873
      %v1700 = vunpack.c.l.b16 %v874
      %v1701 = vunpack.c.h.b16 %v874
      %v1702 = vunpack.c.l.b16 %v875
      %v1703 = vunpack.c.h.b16 %v875
      %v1704 = vunpack.c.l.b16 %v876
      %v1705 = vunpack.c.h.b16 %v876
      %v1706 = vunpack.c.l.b16 %v877
      %v1707 = vunpack.c.h.b16 %v877
      %v1708 = vunpack.c.l.b16 %v878
      %v1709 = vunpack.c.h.b16 %v878
      %v1710 = vunpack.c.l.b16 %v879
      %v1711 = vunpack.c.h.b16 %v879
      %v1712 = vunpack.c.l.b16 %v880
      %v1713 = vunpack.c.h.b16 %v880
      %v1714 = vunpack.c.l.b16 %v881
      %v1715 = vunpack.c.h.b16 %v881
      %v1716 = vunpack.c.l.b16 %v882
      %v1717 = vunpack.c.h.b16 %v882
      %v1718 = vunpack.c.l.b16 %v883
      %v1719 = vunpack.c.h.b16 %v883
      %v1720 = vunpack.c.l.b16 %v884
      %v1721 = vunpack.c.h.b16 %v884
      %v1722 = vunpack.c.l.b16 %v885
      %v1723 = vunpack.c.h.b16 %v885
      %v1724 = vunpack.c.l.b16 %v886
      %v1725 = vunpack.c.h.b16 %v886
      %v1726 = vunpack.c.l.b16 %v887
      %v1727 = vunpack.c.h.b16 %v887
      %v1728 = vunpack.c.l.b16 %v888
      %v1729 = vunpack.c.h.b16 %v888
      %v1730 = vunpack.c.l.b16 %v889
      %v1731 = vunpack.c.h.b16 %v889
      %v1732 = vunpack.c.l.b16 %v890
      %v1733 = vunpack.c.h.b16 %v890
      %v1734 = vunpack.c.l.b16 %v891
      %v1735 = vunpack.c.h.b16 %v891
      %v1736 = vunpack.c.l.b16 %v892
      %v1737 = vunpack.c.h.b16 %v892
      %v1738 = vunpack.c.l.b16 %v893
      %v1739 = vunpack.c.h.b16 %v893
      %v1740 = vunpack.c.l.b16 %v894
      %v1741 = vunpack.c.h.b16 %v894
      %v1742 = vunpack.c.l.b16 %v895
      %v1743 = vunpack.c.h.b16 %v895
      %v1744 = vunpack.c.l.b16 %v896
      %v1745 = vunpack.c.h.b16 %v896
      %v1746 = vunpack.c.l.b16 %v897
      %v1747 = vunpack.c.h.b16 %v897
      %v1748 = vunpack.c.l.b16 %v898
      %v1749 = vunpack.c.h.b16 %v898
      %v1750 = vunpack.c.l.b16 %v899
      %v1751 = vunpack.c.h.b16 %v899
      %v1752 = vunpack.c.l.b16 %v900
      %v1753 = vunpack.c.h.b16 %v900
      %v1754 = vunpack.c.l.b16 %v901
      %v1755 = vunpack.c.h.b16 %v901
      %v1756 = vunpack.c.l.b16 %v902
      %v1757 = vunpack.c.h.b16 %v902
      %v1758 = vunpack.c.l.b16 %v903
      %v1759 = vunpack.c.h.b16 %v903
      %v1760 = vunpack.c.l.b16 %v904
      %v1761 = vunpack.c.h.b16 %v904
      %v1762 = vunpack.c.l.b16 %v905
      %v1763 = vunpack.c.h.b16 %v905
      %v1764 = vunpack.c.l.b16 %v906
      %v1765 = vunpack.c.h.b16 %v906
      %v1766 = vunpack.c.l.b16 %v907
      %v1767 = vunpack.c.h.b16 %v907
      %v1768 = vunpack.c.l.b16 %v908
      %v1769 = vunpack.c.h.b16 %v908
      %v1770 = vunpack.c.l.b16 %v909
      %v1771 = vunpack.c.h.b16 %v909
      %v1772 = vunpack.c.l.b16 %v910
      %v1773 = vunpack.c.h.b16 %v910
      %v1774 = vunpack.c.l.b16 %v911
      %v1775 = vunpack.c.h.b16 %v911
      %v1776 = vunpack.c.l.b16 %v912
      %v1777 = vunpack.c.h.b16 %v912
      %v1778 = vunpack.c.l.b16 %v913
      %v1779 = vunpack.c.h.b16 %v913
      %v1780 = vunpack.c.l.b16 %v914
      %v1781 = vunpack.c.h.b16 %v914
      %v1782 = vunpack.c.l.b16 %v915
      %v1783 = vunpack.c.h.b16 %v915
      %v1784 = vunpack.c.l.b16 %v916
      %v1785 = vunpack.c.h.b16 %v916
      %v1786 = vunpack.c.l.b16 %v917
      %v1787 = vunpack.c.h.b16 %v917
      %v1788 = vunpack.c.l.b16 %v918
      %v1789 = vunpack.c.h.b16 %v918
      %v1790 = vunpack.c.l.b16 %v919
      %v1791 = vunpack.c.h.b16 %v919
      %v1792 = vunpack.c.l.b16 %v920
      %v1793 = vunpack.c.h.b16 %v920
      %v1794 = vunpack.c.l.b16 %v921
      %v1795 = vunpack.c.h.b16 %v921
      %v1796 = vunpack.c.l.b16 %v922
      %v1797 = vunpack.c.h.b16 %v922
      %v1798 = vunpack.c.l.b16 %v923
      %v1799 = vunpack.c.h.b16 %v923
      %v1800 = vunpack.c.l.b16 %v924
      %v1801 = vunpack.c.h.b16 %v924
      %v1802 = vunpack.c.l.b16 %v925
      %v1803 = vunpack.c.h.b16 %v925
      %v1804 = vunpack.c.l.b16 %v926
      %v1805 = vunpack.c.h.b16 %v926
      %v1806 = vunpack.c.l.b16 %v927
      %v1807 = vunpack.c.h.b16 %v927
      %v1808 = vunpack.c.l.b16 %v928
      %v1809 = vunpack.c.h.b16 %v928
      %v1810 = vunpack.c.l.b16 %v929
      %v1811 = vunpack.c.h.b16 %v929
      %v1812 = vunpack.c.l.b16 %v930
      %v1813 = vunpack.c.h.b16 %v930
      %v1814 = vunpack.c.l.b16 %v931
      %v1815 = vunpack.c.h.b16 %v931
      %v1816 = vunpack.c.l.b16 %v932
      %v1817 = vunpack.c.h.b16 %v932
      %v1818 = vunpack.c.l.b16 %v933
      %v1819 = vunpack.c.h.b16 %v933
      %v1820 = vunpack.c.l.b16 %v934
      %v1821 = vunpack.c.h.b16 %v934
      %v1822 = vunpack.c.l.b16 %v935
      %v1823 = vunpack.c.h.b16 %v935
      %v1824 = vunpack.c.l.b16 %v936
      %v1825 = vunpack.c.h.b16 %v936
      %v1826 = vunpack.c.l.b16 %v937
      %v1827 = vunpack.c.h.b16 %v937
      %v1828 = vunpack.c.l.b16 %v938
      %v1829 = vunpack.c.h.b16 %v938
      %v1830 = vunpack.c.l.b16 %v939
      %v1831 = vunpack.c.h.b16 %v939
      %v1832 = vunpack.c.l.b16 %v940
      %v1833 = vunpack.c.h.b16 %v940
      %v1834 = vunpack.c.l.b16 %v941
      %v1835 = vunpack.c.h.b16 %v941
      %v1836 = vunpack.c.l.b16 %v942
      %v1837 = vunpack.c.h.b16 %v942
      %v1838 = vunpack.c.l.b16 %v943
      %v1839 = vunpack.c.h.b16 %v943
      %v1840 = vunpack.c.l.b16 %v944
      %v1841 = vunpack.c.h.b16 %v944
      %v1842 = vunpack.c.l.b16 %v945
      %v1843 = vunpack.c.h.b16 %v945
      %v1844 = vunpack.c.l.b16 %v946
      %v1845 = vunpack.c.h.b16 %v946
      %v1846 = vunpack.c.l.b16 %v947
      %v1847 = vunpack.c.h.b16 %v947
      %v1848 = vunpack.c.l.b16 %v948
      %v1849 = vunpack.c.h.b16 %v948
      %v1850 = vunpack.c.l.b16 %v949
      %v1851 = vunpack.c.h.b16 %v949
      %v1852 = vunpack.c.l.b16 %v950
      %v1853 = vunpack.c.h.b16 %v950
      %v1854 = vunpack.c.l.b16 %v951
      %v1855 = vunpack.c.h.b16 %v951
      %v1856 = vunpack.c.l.b16 %v952
      %v1857 = vunpack.c.h.b16 %v952
      %v1858 = vunpack.c.l.b16 %v953
      %v1859 = vunpack.c.h.b16 %v953
      %v1860 = vunpack.c.l.b16 %v954
      %v1861 = vunpack.c.h.b16 %v954
      %v1862 = vunpack.c.l.b16 %v955
      %v1863 = vunpack.c.h.b16 %v955
      %v1864 = vunpack.c.l.b16 %v956
      %v1865 = vunpack.c.h.b16 %v956
      %v1866 = vunpack.c.l.b16 %v957
      %v1867 = vunpack.c.h.b16 %v957
      %v1868 = vunpack.c.l.b16 %v958
      %v1869 = vunpack.c.h.b16 %v958
      %v1870 = vunpack.c.l.b16 %v959
      %v1871 = vunpack.c.h.b16 %v959
      %v1872 = vunpack.c.l.b16 %v960
      %v1873 = vunpack.c.h.b16 %v960
      %v1874 = vunpack.c.l.b16 %v961
      %v1875 = vunpack.c.h.b16 %v961
      %v1876 = vunpack.c.l.b16 %v962
      %v1877 = vunpack.c.h.b16 %v962
      %v1878 = vunpack.c.l.b16 %v963
      %v1879 = vunpack.c.h.b16 %v963
      %v1880 = vunpack.c.l.b16 %v964
      %v1881 = vunpack.c.h.b16 %v964
      %v1882 = vunpack.c.l.b16 %v965
      %v1883 = vunpack.c.h.b16 %v965
      %v1884 = vunpack.c.l.b16 %v966
      %v1885 = vunpack.c.h.b16 %v966
      %v1886 = vunpack.c.l.b16 %v967
      %v1887 = vunpack.c.h.b16 %v967
      %v1888 = vpack.c.b16 %v1698, %v1696
      %v1889 = vpack.c.b16 %v1699, %v1697
      %v1890 = vpack.c.b16 %v1702, %v1700
      %v1891 = vpack.c.b16 %v1703, %v1701
      %v1892 = vpack.c.b16 %v1706, %v1704
      %v1893 = vpack.c.b16 %v1707, %v1705
      %v1894 = vpack.c.b16 %v1710, %v1708
      %v1895 = vpack.c.b16 %v1711, %v1709
      %v1896 = vpack.c.b16 %v1714, %v1712
      %v1897 = vpack.c.b16 %v1715, %v1713
      %v1898 = vpack.c.b16 %v1718, %v1716
      %v1899 = vpack.c.b16 %v1719, %v1717
      %v1900 = vpack.c.b16 %v1722, %v1720
      %v1901 = vpack.c.b16 %v1723, %v1721
      %v1902 = vpack.c.b16 %v1726, %v1724
      %v1903 = vpack.c.b16 %v1727, %v1725
      %v1904 = vpack.c.b16 %v1730, %v1728
      %v1905 = vpack.c.b16 %v1731, %v1729
      %v1906 = vpack.c.b16 %v1734, %v1732
      %v1907 = vpack.c.b16 %v1735, %v1733
      %v1908 = vpack.c.b16 %v1738, %v1736
      %v1909 = vpack.c.b16 %v1739, %v1737
      %v1910 = vpack.c.b16 %v1742, %v1740
      %v1911 = vpack.c.b16 %v1743, %v1741
      %v1912 = vpack.c.b16 %v1746, %v1744
      %v1913 = vpack.c.b16 %v1747, %v1745
      %v1914 = vpack.c.b16 %v1750, %v1748
      %v1915 = vpack.c.b16 %v1751, %v1749
      %v1916 = vpack.c.b16 %v1754, %v1752
      %v1917 = vpack.c.b16 %v1755, %v1753
      %v1918 = vpack.c.b16 %v1758, %v1756
      %v1919 = vpack.c.b16 %v1759, %v1757
      %v1920 = vpack.c.b16 %v1762, %v1760
      %v1921 = vpack.c.b16 %v1763, %v1761
      %v1922 = vpack.c.b16 %v1766, %v1764
      %v1923 = vpack.c.b16 %v1767, %v1765
      %v1924 = vpack.c.b16 %v1770, %v1768
      %v1925 = vpack.c.b16 %v1771, %v1769
      %v1926 = vpack.c.b16 %v1774, %v1772
      %v1927 = vpack.c.b16 %v1775, %v1773
      %v1928 = vpack.c.b16 %v1778, %v1776
      %v1929 = vpack.c.b16 %v1779, %v1777
      %v1930 = vpack.c.b16 %v1782, %v1780
      %v1931 = vpack.c.b16 %v1783, %v1781
      %v1932 = vpack.c.b16 %v1786, %v1784
      %v1933 = vpack.c.b16 %v1787, %v1785
      %v1934 = vpack.c.b16 %v1790, %v1788
      %v1935 = vpack.c.b16 %v1791, %v1789
      %v1936 = vpack.c.b16 %v1794, %v1792
      %v1937 = vpack.c.b16 %v1795, %v1793
      %v1938 = vpack.c.b16 %v1798, %v1796
      %v1939 = vpack.c.b16 %v1799, %v1797
      %v1940 = vpack.c.b16 %v1802, %v1800
      %v1941 = vpack.c.b16 %v1803, %v1801
      %v1942 = vpack.c.b16 %v1806, %v1804
      %v1943 = vpack.c.b16 %v1807, %v1805
      %v1944 = vpack.c.b16 %v1810, %v1808
      %v1945 = vpack.c.b16 %v1811, %v1809
      %v1946 = vpack.c.b16 %v1814, %v1812
      %v1947 = vpack.c.b16 %v1815, %v1813
      %v1948 = vpack.c.b16 %v1818, %v1816
      %v1949 = vpack.c.b16 %v1819, %v1817
      %v1950 = vpack.c.b16 %v1822, %v1820
      %v1951 = vpack.c.b16 %v1823, %v1821
      %v1952 = vpack.c.b16 %v1826, %v1824
      %v1953 = vpack.c.b16 %v1827, %v1825
      %v1954 = vpack.c.b16 %v1830, %v1828
      %v1955 = vpack.c.b16 %v1831, %v1829
      %v1956 = vpack.c.b16 %v1834, %v1832
      %v1957 = vpack.c.b16 %v1835, %v1833
      %v1958 = vpack.c.b16 %v1838, %v1836
      %v1959 = vpack.c.b16 %v1839, %v1837
      %v1960 = vpack.c.b16 %v1842, %v1840
      %v1961 = vpack.c.b16 %v1843, %v1841
      %v1962 = vpack.c.b16 %v1846, %v1844
      %v1963 = vpack.c.b16 %v1847, %v1845
      %v1964 = vpack.c.b16 %v1850, %v1848
      %v1965 = vpack.c.b16 %v1851, %v1849
      %v1966 = vpack.c.b16 %v1854, %v1852
      %v1967 = vpack.c.b16 %v1855, %v1853
      %v1968 = vpack.c.b16 %v1858, %v1856
      %v1969 = vpack.c.b16 %v1859, %v1857
      %v1970 = vpack.c.b16 %v1862, %v1860
      %v1971 = vpack.c.b16 %v1863, %v1861
      %v1972 = vpack.c.b16 %v1866, %v1864
      %v1973 = vpack.c.b16 %v1867, %v1865
      %v1974 = vpack.c.b16 %v1870, %v1868
      %v1975 = vpack.c.b16 %v1871, %v1869
      %v1976 = vpack.c.b16 %v1874, %v1872
      %v1977 = vpack.c.b16 %v1875, %v1873
      %v1978 = vpack.c.b16 %v1878, %v1876
      %v1979 = vpack.c.b16 %v1879, %v1877
      %v1980 = vpack.c.b16 %v1882, %v1880
      %v1981 = vpack.c.b16 %v1883, %v1881
      %v1982 = vpack.c.b16 %v1886, %v1884
      %v1983 = vpack.c.b16 %v1887, %v1885
      %2080 = vmatprep.subr.bf16.mxu0 %v1889
      %2081 = vmatpush1.bf16.msra.mxu0 %v1888
      %2082 = vmatprep.subr.bf16.mxu0 %v1891
      %2083 = vmatpush1.bf16.msra.mxu0 %v1890
      %2084 = vmatprep.subr.bf16.mxu0 %v1893
      %2085 = vmatpush1.bf16.msra.mxu0 %v1892
      %2086 = vmatprep.subr.bf16.mxu0 %v1895
      %2087 = vmatpush1.bf16.msra.mxu0 %v1894
      %2088 = vmatprep.subr.bf16.mxu0 %v1897
      %2089 = vmatpush1.bf16.msra.mxu0 %v1896
      %2090 = vmatprep.subr.bf16.mxu0 %v1899
      %2091 = vmatpush1.bf16.msra.mxu0 %v1898
      %2092 = vmatprep.subr.bf16.mxu0 %v1901
      %2093 = vmatpush1.bf16.msra.mxu0 %v1900
      %2094 = vmatprep.subr.bf16.mxu0 %v1903
      %2095 = vmatpush1.bf16.msra.mxu0 %v1902
      %2096 = vmatprep.subr.bf16.mxu0 %v1905
      %2097 = vmatpush1.bf16.msra.mxu0 %v1904
      %2098 = vmatprep.subr.bf16.mxu0 %v1907
      %2099 = vmatpush1.bf16.msra.mxu0 %v1906
      %2100 = vmatprep.subr.bf16.mxu0 %v1909
      %2101 = vmatpush1.bf16.msra.mxu0 %v1908
      %2102 = vmatprep.subr.bf16.mxu0 %v1911
      %2103 = vmatpush1.bf16.msra.mxu0 %v1910
      %2104 = vmatprep.subr.bf16.mxu0 %v1913
      %2105 = vmatpush1.bf16.msra.mxu0 %v1912
      %2106 = vmatprep.subr.bf16.mxu0 %v1915
      %2107 = vmatpush1.bf16.msra.mxu0 %v1914
      %2108 = vmatprep.subr.bf16.mxu0 %v1917
      %2109 = vmatpush1.bf16.msra.mxu0 %v1916
      %2110 = vmatprep.subr.bf16.mxu0 %v1919
      %2111 = vmatpush1.bf16.msra.mxu0 %v1918
      %2112 = vmatprep.mubr.bf16.mxu0 %v1099
      %2113 = vmatmul.mubr.bf16.gmra.mrb[0].mxu0 %v1096
      %v2114 = vpop.f32.mrb[0].mxu0
      %v2115 = vadd.f32 0.0, %v2114
      %v2116 = vpop.f32.mrb[0].mxu0
      %v2117 = vadd.f32 0.0, %v2116
      %v2118 = vpop.f32.mrb[0].mxu0
      %v2119 = vadd.f32 0.0, %v2118
      %v2120 = vpop.f32.mrb[0].mxu0
      %v2121 = vadd.f32 0.0, %v2120
      %2122 = vmatprep.mubr.bf16.mxu0 %v1233
      %2123 = vmatmul.mubr.bf16.gmra.mrb[0].mxu0 %v1230
      %v2124 = vpop.f32.mrb[0].mxu0
      %v2125 = vadd.f32 0.0, %v2124
      %v2126 = vpop.f32.mrb[0].mxu0
      %v2127 = vadd.f32 0.0, %v2126
      %v2128 = vpop.f32.mrb[0].mxu0
      %v2129 = vadd.f32 0.0, %v2128
      %v2130 = vpop.f32.mrb[0].mxu0
      %v2131 = vadd.f32 0.0, %v2130
      %2132 = vmatprep.mubr.bf16.mxu0 %v1367
      %2133 = vmatmul.mubr.bf16.gmra.mrb[0].mxu0 %v1364
      %v2134 = vpop.f32.mrb[0].mxu0
      %v2135 = vadd.f32 0.0, %v2134
      %v2136 = vpop.f32.mrb[0].mxu0
      %v2137 = vadd.f32 0.0, %v2136
      %v2138 = vpop.f32.mrb[0].mxu0
      %v2139 = vadd.f32 0.0, %v2138
      %v2140 = vpop.f32.mrb[0].mxu0
      %v2141 = vadd.f32 0.0, %v2140
      %2142 = vmatprep.mubr.bf16.mxu0 %v1501
      %2143 = vmatmul.mubr.bf16.gmra.mrb[0].mxu0 %v1498
      %v2144 = vpop.f32.mrb[0].mxu0
      %v2145 = vadd.f32 0.0, %v2144
      %v2146 = vpop.f32.mrb[0].mxu0
      %v2147 = vadd.f32 0.0, %v2146
      %v2148 = vpop.f32.mrb[0].mxu0
      %v2149 = vadd.f32 0.0, %v2148
      %v2150 = vpop.f32.mrb[0].mxu0
      %v2151 = vadd.f32 0.0, %v2150
      %2152 = vmatprep.mubr.bf16.mxu0 %v1560
      %2153 = vmatmul.mubr.bf16.gmra.mrb[0].mxu0 %v1546
      %v2154 = vpop.f32.mrb[0].mxu0
      %v2155 = vadd.f32 0.0, %v2154
      %v2156 = vpop.f32.mrb[0].mxu0
      %v2157 = vadd.f32 0.0, %v2156
      %v2158 = vpop.f32.mrb[0].mxu0
      %v2159 = vpop.f32.mrb[0].mxu0
      %2160 = vdwg.mxu0
      %2161 = vmatprep.subr.bf16.mxu0 %v1921
      %2162 = vmatpush1.bf16.msra.mxu0 %v1920
      %2163 = vmatprep.subr.bf16.mxu0 %v1923
      %2164 = vmatpush1.bf16.msra.mxu0 %v1922
      %2165 = vmatprep.subr.bf16.mxu0 %v1925
      %2166 = vmatpush1.bf16.msra.mxu0 %v1924
      %2167 = vmatprep.subr.bf16.mxu0 %v1927
      %2168 = vmatpush1.bf16.msra.mxu0 %v1926
      %2169 = vmatprep.subr.bf16.mxu0 %v1929
      %2170 = vmatpush1.bf16.msra.mxu0 %v1928
      %2171 = vmatprep.subr.bf16.mxu0 %v1931
      %2172 = vmatpush1.bf16.msra.mxu0 %v1930
      %2173 = vmatprep.subr.bf16.mxu0 %v1933
      %2174 = vmatpush1.bf16.msra.mxu0 %v1932
      %2175 = vmatprep.subr.bf16.mxu0 %v1935
      %2176 = vmatpush1.bf16.msra.mxu0 %v1934
      %2177 = vmatprep.subr.bf16.mxu0 %v1937
      %2178 = vmatpush1.bf16.msra.mxu0 %v1936
      %2179 = vmatprep.subr.bf16.mxu0 %v1939
      %2180 = vmatpush1.bf16.msra.mxu0 %v1938
      %2181 = vmatprep.subr.bf16.mxu0 %v1941
      %2182 = vmatpush1.bf16.msra.mxu0 %v1940
      %2183 = vmatprep.subr.bf16.mxu0 %v1943
      %2184 = vmatpush1.bf16.msra.mxu0 %v1942
      %2185 = vmatprep.subr.bf16.mxu0 %v1945
      %2186 = vmatpush1.bf16.msra.mxu0 %v1944
      %2187 = vmatprep.subr.bf16.mxu0 %v1947
      %2188 = vmatpush1.bf16.msra.mxu0 %v1946
      %2189 = vmatprep.subr.bf16.mxu0 %v1949
      %2190 = vmatpush1.bf16.msra.mxu0 %v1948
      %2191 = vmatprep.subr.bf16.mxu0 %v1951
      %2192 = vmatpush1.bf16.msra.mxu0 %v1950
      %2193 = vmatprep.mubr.bf16.mxu0 %v1100
      %2194 = vmatmul.mubr.bf16.gmra.mrb[0].mxu0 %v1097
      %v2195 = vpop.f32.mrb[0].mxu0
      %v2196 = vadd.f32 %v2115, %v2195
      %v2197 = vpop.f32.mrb[0].mxu0
      %v2198 = vadd.f32 %v2117, %v2197
      %v2199 = vpop.f32.mrb[0].mxu0
      %v2200 = vadd.f32 %v2119, %v2199
      %v2201 = vpop.f32.mrb[0].mxu0
      %v2202 = vadd.f32 %v2121, %v2201
      %2203 = vmatprep.mubr.bf16.mxu0 %v1234
      %2204 = vmatmul.mubr.bf16.gmra.mrb[0].mxu0 %v1231
      %v2205 = vpop.f32.mrb[0].mxu0
      %v2206 = vadd.f32 %v2125, %v2205
      %v2207 = vpop.f32.mrb[0].mxu0
      %v2208 = vadd.f32 %v2127, %v2207
      %v2209 = vpop.f32.mrb[0].mxu0
      %v2210 = vadd.f32 %v2129, %v2209
      %v2211 = vpop.f32.mrb[0].mxu0
      %v2212 = vadd.f32 %v2131, %v2211
      %2213 = vmatprep.mubr.bf16.mxu0 %v1368
      %2214 = vmatmul.mubr.bf16.gmra.mrb[0].mxu0 %v1365
      %v2215 = vpop.f32.mrb[0].mxu0
      %v2216 = vadd.f32 %v2135, %v2215
      %v2217 = vpop.f32.mrb[0].mxu0
      %v2218 = vadd.f32 %v2137, %v2217
      %v2219 = vpop.f32.mrb[0].mxu0
      %v2220 = vadd.f32 %v2139, %v2219
      %v2221 = vpop.f32.mrb[0].mxu0
      %v2222 = vadd.f32 %v2141, %v2221
      %2223 = vmatprep.mubr.bf16.mxu0 %v1502
      %2224 = vmatmul.mubr.bf16.gmra.mrb[0].mxu0 %v1499
      %v2225 = vpop.f32.mrb[0].mxu0
      %v2226 = vadd.f32 %v2145, %v2225
      %v2227 = vpop.f32.mrb[0].mxu0
      %v2228 = vadd.f32 %v2147, %v2227
      %v2229 = vpop.f32.mrb[0].mxu0
      %v2230 = vadd.f32 %v2149, %v2229
      %v2231 = vpop.f32.mrb[0].mxu0
      %v2232 = vadd.f32 %v2151, %v2231
      %2233 = vmatprep.mubr.bf16.mxu0 %v1569
      %2234 = vmatmul.mubr.bf16.gmra.mrb[0].mxu0 %v1568
      %v2235 = vpop.f32.mrb[0].mxu0
      %v2236 = vadd.f32 %v2155, %v2235
      %v2237 = vpop.f32.mrb[0].mxu0
      %v2238 = vadd.f32 %v2157, %v2237
      %v2239 = vpop.f32.mrb[0].mxu0
      %v2240 = vpop.f32.mrb[0].mxu0
      %2241 = vdwg.mxu0
      %2242 = vmatprep.subr.bf16.mxu0 %v1953
      %2243 = vmatpush1.bf16.msra.mxu0 %v1952
      %2244 = vmatprep.subr.bf16.mxu0 %v1955
      %2245 = vmatpush1.bf16.msra.mxu0 %v1954
      %2246 = vmatprep.subr.bf16.mxu0 %v1957
      %2247 = vmatpush1.bf16.msra.mxu0 %v1956
      %2248 = vmatprep.subr.bf16.mxu0 %v1959
      %2249 = vmatpush1.bf16.msra.mxu0 %v1958
      %2250 = vmatprep.subr.bf16.mxu0 %v1961
      %2251 = vmatpush1.bf16.msra.mxu0 %v1960
      %2252 = vmatprep.subr.bf16.mxu0 %v1963
      %2253 = vmatpush1.bf16.msra.mxu0 %v1962
      %2254 = vmatprep.subr.bf16.mxu0 %v1965
      %2255 = vmatpush1.bf16.msra.mxu0 %v1964
      %2256 = vmatprep.subr.bf16.mxu0 %v1967
      %2257 = vmatpush1.bf16.msra.mxu0 %v1966
      %2258 = vmatprep.subr.bf16.mxu0 %v1969
      %2259 = vmatpush1.bf16.msra.mxu0 %v1968
      %2260 = vmatprep.subr.bf16.mxu0 %v1971
      %2261 = vmatpush1.bf16.msra.mxu0 %v1970
      %2262 = vmatprep.subr.bf16.mxu0 %v1973
      %2263 = vmatpush1.bf16.msra.mxu0 %v1972
      %2264 = vmatprep.subr.bf16.mxu0 %v1975
      %2265 = vmatpush1.bf16.msra.mxu0 %v1974
      %2266 = vmatprep.subr.bf16.mxu0 %v1977
      %2267 = vmatpush1.bf16.msra.mxu0 %v1976
      %2268 = vmatprep.subr.bf16.mxu0 %v1979
      %2269 = vmatpush1.bf16.msra.mxu0 %v1978
      %2270 = vmatprep.subr.bf16.mxu0 %v1981
      %2271 = vmatpush1.bf16.msra.mxu0 %v1980
      %2272 = vmatprep.subr.bf16.mxu0 %v1983
      %2273 = vmatpush1.bf16.msra.mxu0 %v1982
      %2274 = vmatprep.mubr.bf16.mxu0 %v1101
      %2275 = vmatmul.mubr.bf16.gmra.mrb[0].mxu0 %v1098
      %v2276 = vpop.f32.mrb[0].mxu0
      %v2277 = vadd.f32 %v2196, %v2276
      %v2278 = vpop.f32.mrb[0].mxu0
      %v2279 = vadd.f32 %v2198, %v2278
      %v2280 = vpop.f32.mrb[0].mxu0
      %v2281 = vadd.f32 %v2200, %v2280
      %v2282 = vpop.f32.mrb[0].mxu0
      %v2283 = vadd.f32 %v2202, %v2282
      %2284 = vmatprep.mubr.bf16.mxu0 %v1235
      %2285 = vmatmul.mubr.bf16.gmra.mrb[0].mxu0 %v1232
      %v2286 = vpop.f32.mrb[0].mxu0
      %v2287 = vadd.f32 %v2206, %v2286
      %v2288 = vpop.f32.mrb[0].mxu0
      %v2289 = vadd.f32 %v2208, %v2288
      %v2290 = vpop.f32.mrb[0].mxu0
      %v2291 = vadd.f32 %v2210, %v2290
      %v2292 = vpop.f32.mrb[0].mxu0
      %v2293 = vadd.f32 %v2212, %v2292
      %2294 = vmatprep.mubr.bf16.mxu0 %v1369
      %2295 = vmatmul.mubr.bf16.gmra.mrb[0].mxu0 %v1366
      %v2296 = vpop.f32.mrb[0].mxu0
      %v2297 = vadd.f32 %v2216, %v2296
      %v2298 = vpop.f32.mrb[0].mxu0
      %v2299 = vadd.f32 %v2218, %v2298
      %v2300 = vpop.f32.mrb[0].mxu0
      %v2301 = vadd.f32 %v2220, %v2300
      %v2302 = vpop.f32.mrb[0].mxu0
      %v2303 = vadd.f32 %v2222, %v2302
      %2304 = vmatprep.mubr.bf16.mxu0 %v1503
      %2305 = vmatmul.mubr.bf16.gmra.mrb[0].mxu0 %v1500
      %v2306 = vpop.f32.mrb[0].mxu0
      %v2307 = vadd.f32 %v2226, %v2306
      %v2308 = vpop.f32.mrb[0].mxu0
      %v2309 = vadd.f32 %v2228, %v2308
      %v2310 = vpop.f32.mrb[0].mxu0
      %v2311 = vadd.f32 %v2230, %v2310
      %v2312 = vpop.f32.mrb[0].mxu0
      %v2313 = vadd.f32 %v2232, %v2312
      %2314 = vmatprep.mubr.bf16.mxu0 %v1567
      %2315 = vmatmul.mubr.bf16.gmra.mrb[0].mxu0 %v1553
      %v2316 = vpop.f32.mrb[0].mxu0
      %v2317 = vadd.f32 %v2236, %v2316
      %v2318 = vpop.f32.mrb[0].mxu0
      %v2319 = vadd.f32 %v2238, %v2318
      %v2320 = vpop.f32.mrb[0].mxu0
      %v2321 = vpop.f32.mrb[0].mxu0
      %2322 = vdwg.mxu0
      %v2323 = vld [vmem:[%s2] sm:$0x3]
      %v2325 = vlaneseq
      %v2326 = vshrl.u32 %v2325, 7
      %v2327 = vsub.s32 0, %v2326
      %v2328 = vrot.slane %v2323, %v2327
      %v2329 = vlaneseq
      %v2330 = vshrl.u32 %v2329, 7
      %v2331 = vsub.s32 1, %v2330
      %v2332 = vrot.slane %v2323, %v2331
      %v2335 = vmul.f32 %v2277, %v2328
      %v2336 = vmul.f32 %v2279, %v2332
      %v2337 = vmul.f32 %v2281, %v2328
      %v2338 = vmul.f32 %v2283, %v2332
      %v2339 = vmul.f32 %v2287, %v2328
      %v2340 = vmul.f32 %v2289, %v2332
      %v2341 = vmul.f32 %v2291, %v2328
      %v2342 = vmul.f32 %v2293, %v2332
      %v2343 = vmul.f32 %v2297, %v2328
      %v2344 = vmul.f32 %v2299, %v2332
      %v2345 = vmul.f32 %v2301, %v2328
      %v2346 = vmul.f32 %v2303, %v2332
      %v2347 = vmul.f32 %v2307, %v2328
      %v2348 = vmul.f32 %v2309, %v2332
      %v2349 = vmul.f32 %v2311, %v2328
      %v2350 = vmul.f32 %v2313, %v2332
      %v2351 = vmul.f32 %v2317, %v2328
      %v2352 = vmul.f32 %v2319, %v2332
      %v2353 = vld [vmem:[%s3] sm:$0x3]
      %v2355 = vlaneseq
      %v2356 = vshrl.u32 %v2355, 7
      %v2357 = vsub.s32 0, %v2356
      %v2358 = vrot.slane %v2353, %v2357
      %v2359 = vlaneseq
      %v2360 = vshrl.u32 %v2359, 7
      %v2361 = vsub.s32 1, %v2360
      %v2362 = vrot.slane %v2353, %v2361
      %v2365 = vadd.f32 %v2335, %v2358
      %v2366 = vadd.f32 %v2336, %v2362
      %v2367 = vadd.f32 %v2337, %v2358
      %v2368 = vadd.f32 %v2338, %v2362
      %v2369 = vadd.f32 %v2339, %v2358
      %v2370 = vadd.f32 %v2340, %v2362
      %v2371 = vadd.f32 %v2341, %v2358
      %v2372 = vadd.f32 %v2342, %v2362
      %v2373 = vadd.f32 %v2343, %v2358
      %v2374 = vadd.f32 %v2344, %v2362
      %v2375 = vadd.f32 %v2345, %v2358
      %v2376 = vadd.f32 %v2346, %v2362
      %v2377 = vadd.f32 %v2347, %v2358
      %v2378 = vadd.f32 %v2348, %v2362
      %v2379 = vadd.f32 %v2349, %v2358
      %v2380 = vadd.f32 %v2350, %v2362
      %v2381 = vadd.f32 %v2351, %v2358
      %v2382 = vadd.f32 %v2352, %v2362
      %v2383 = vmax.f32 %v2365, 0.0
      %v2384 = vmax.f32 %v2366, 0.0
      %v2385 = vmax.f32 %v2367, 0.0
      %v2386 = vmax.f32 %v2368, 0.0
      %v2387 = vmax.f32 %v2369, 0.0
      %v2388 = vmax.f32 %v2370, 0.0
      %v2389 = vmax.f32 %v2371, 0.0
      %v2390 = vmax.f32 %v2372, 0.0
      %v2391 = vmax.f32 %v2373, 0.0
      %v2392 = vmax.f32 %v2374, 0.0
      %v2393 = vmax.f32 %v2375, 0.0
      %v2394 = vmax.f32 %v2376, 0.0
      %v2395 = vmax.f32 %v2377, 0.0
      %v2396 = vmax.f32 %v2378, 0.0
      %v2397 = vmax.f32 %v2379, 0.0
      %v2398 = vmax.f32 %v2380, 0.0
      %v2399 = vmax.f32 %v2381, 0.0
      %v2400 = vmax.f32 %v2382, 0.0
      %v2419 = vcombine.low %v2383, %v2384
      %v2420 = vcombine.high %v2383, %v2384
      %v2422 = vunpack.c.l.s4 1983009808
      %v2423 = vunpack.c.0.s8 %v2422
      %v2424 = vlaneseq
      %v2425 = vshrl.u32 %v2424, 7
      %v2426 = vsub.s32 %v2423, %v2425
      %v2427 = vrot.slane %v2419, %v2426
      %v2429 = vunpack.c.l.s4 1983009808
      %v2430 = vunpack.c.0.s8 %v2429
      %v2431 = vlaneseq
      %v2432 = vshrl.u32 %v2431, 7
      %v2433 = vsub.s32 %v2430, %v2432
      %v2434 = vrot.slane %v2420, %v2433
      %v2435 = vcombine.high %v2427, %v2427
      %v2436 = vcombine.high %v2434, %v2434
      %v2437 = vcombine.low %v2385, %v2386
      %v2438 = vcombine.high %v2385, %v2386
      %v2440 = vunpack.c.l.s4 1983009808
      %v2441 = vunpack.c.0.s8 %v2440
      %v2442 = vlaneseq
      %v2443 = vshrl.u32 %v2442, 7
      %v2444 = vsub.s32 %v2441, %v2443
      %v2445 = vrot.slane %v2437, %v2444
      %v2447 = vunpack.c.l.s4 1983009808
      %v2448 = vunpack.c.0.s8 %v2447
      %v2449 = vlaneseq
      %v2450 = vshrl.u32 %v2449, 7
      %v2451 = vsub.s32 %v2448, %v2450
      %v2452 = vrot.slane %v2438, %v2451
      %v2453 = vcombine.high %v2445, %v2445
      %v2454 = vcombine.high %v2452, %v2452
      %v2455 = vcombine.low %v2387, %v2388
      %v2456 = vcombine.high %v2387, %v2388
      %v2458 = vunpack.c.l.s4 1983009808
      %v2459 = vunpack.c.0.s8 %v2458
      %v2460 = vlaneseq
      %v2461 = vshrl.u32 %v2460, 7
      %v2462 = vsub.s32 %v2459, %v2461
      %v2463 = vrot.slane %v2455, %v2462
      %v2465 = vunpack.c.l.s4 1983009808
      %v2466 = vunpack.c.0.s8 %v2465
      %v2467 = vlaneseq
      %v2468 = vshrl.u32 %v2467, 7
      %v2469 = vsub.s32 %v2466, %v2468
      %v2470 = vrot.slane %v2456, %v2469
      %v2471 = vcombine.high %v2463, %v2463
      %v2472 = vcombine.high %v2470, %v2470
      %v2473 = vcombine.low %v2389, %v2390
      %v2474 = vcombine.high %v2389, %v2390
      %v2476 = vunpack.c.l.s4 1983009808
      %v2477 = vunpack.c.0.s8 %v2476
      %v2478 = vlaneseq
      %v2479 = vshrl.u32 %v2478, 7
      %v2480 = vsub.s32 %v2477, %v2479
      %v2481 = vrot.slane %v2473, %v2480
      %v2483 = vunpack.c.l.s4 1983009808
      %v2484 = vunpack.c.0.s8 %v2483
      %v2485 = vlaneseq
      %v2486 = vshrl.u32 %v2485, 7
      %v2487 = vsub.s32 %v2484, %v2486
      %v2488 = vrot.slane %v2474, %v2487
      %v2489 = vcombine.high %v2481, %v2481
      %v2490 = vcombine.high %v2488, %v2488
      %v2491 = vcombine.low %v2391, %v2392
      %v2492 = vcombine.high %v2391, %v2392
      %v2494 = vunpack.c.l.s4 1983009808
      %v2495 = vunpack.c.0.s8 %v2494
      %v2496 = vlaneseq
      %v2497 = vshrl.u32 %v2496, 7
      %v2498 = vsub.s32 %v2495, %v2497
      %v2499 = vrot.slane %v2491, %v2498
      %v2501 = vunpack.c.l.s4 1983009808
      %v2502 = vunpack.c.0.s8 %v2501
      %v2503 = vlaneseq
      %v2504 = vshrl.u32 %v2503, 7
      %v2505 = vsub.s32 %v2502, %v2504
      %v2506 = vrot.slane %v2492, %v2505
      %v2507 = vcombine.high %v2499, %v2499
      %v2508 = vcombine.high %v2506, %v2506
      %v2509 = vcombine.low %v2393, %v2394
      %v2510 = vcombine.high %v2393, %v2394
      %v2512 = vunpack.c.l.s4 1983009808
      %v2513 = vunpack.c.0.s8 %v2512
      %v2514 = vlaneseq
      %v2515 = vshrl.u32 %v2514, 7
      %v2516 = vsub.s32 %v2513, %v2515
      %v2517 = vrot.slane %v2509, %v2516
      %v2519 = vunpack.c.l.s4 1983009808
      %v2520 = vunpack.c.0.s8 %v2519
      %v2521 = vlaneseq
      %v2522 = vshrl.u32 %v2521, 7
      %v2523 = vsub.s32 %v2520, %v2522
      %v2524 = vrot.slane %v2510, %v2523
      %v2525 = vcombine.high %v2517, %v2517
      %v2526 = vcombine.high %v2524, %v2524
      %v2527 = vcombine.low %v2395, %v2396
      %v2528 = vcombine.high %v2395, %v2396
      %v2530 = vunpack.c.l.s4 1983009808
      %v2531 = vunpack.c.0.s8 %v2530
      %v2532 = vlaneseq
      %v2533 = vshrl.u32 %v2532, 7
      %v2534 = vsub.s32 %v2531, %v2533
      %v2535 = vrot.slane %v2527, %v2534
      %v2537 = vunpack.c.l.s4 1983009808
      %v2538 = vunpack.c.0.s8 %v2537
      %v2539 = vlaneseq
      %v2540 = vshrl.u32 %v2539, 7
      %v2541 = vsub.s32 %v2538, %v2540
      %v2542 = vrot.slane %v2528, %v2541
      %v2543 = vcombine.high %v2535, %v2535
      %v2544 = vcombine.high %v2542, %v2542
      %v2545 = vcombine.low %v2397, %v2398
      %v2546 = vcombine.high %v2397, %v2398
      %v2548 = vunpack.c.l.s4 1983009808
      %v2549 = vunpack.c.0.s8 %v2548
      %v2550 = vlaneseq
      %v2551 = vshrl.u32 %v2550, 7
      %v2552 = vsub.s32 %v2549, %v2551
      %v2553 = vrot.slane %v2545, %v2552
      %v2555 = vunpack.c.l.s4 1983009808
      %v2556 = vunpack.c.0.s8 %v2555
      %v2557 = vlaneseq
      %v2558 = vshrl.u32 %v2557, 7
      %v2559 = vsub.s32 %v2556, %v2558
      %v2560 = vrot.slane %v2546, %v2559
      %v2561 = vcombine.high %v2553, %v2553
      %v2562 = vcombine.high %v2560, %v2560
      %v2563 = vcombine.low %v2399, %v2400
      %v2564 = vcombine.high %v2399, %v2400
      %v2566 = vunpack.c.l.s4 1983009808
      %v2567 = vunpack.c.0.s8 %v2566
      %v2568 = vlaneseq
      %v2569 = vshrl.u32 %v2568, 7
      %v2570 = vsub.s32 %v2567, %v2569
      %v2571 = vrot.slane %v2563, %v2570
      %v2573 = vunpack.c.l.s4 1983009808
      %v2574 = vunpack.c.0.s8 %v2573
      %v2575 = vlaneseq
      %v2576 = vshrl.u32 %v2575, 7
      %v2577 = vsub.s32 %v2574, %v2576
      %v2578 = vrot.slane %v2564, %v2577
      %v2579 = vcombine.high %v2571, %v2571
      %v2580 = vcombine.high %v2578, %v2578
      %v2617 = vmax.f32 %v2427, %v2436
      %v2618 = vmax.f32 %v2435, %v2445
      %v2619 = vmax.f32 %v2434, %v2453
      %v2620 = vmax.f32 %v2452, %v2471
      %v2621 = vmax.f32 %v2454, %v2470
      %v2622 = vmax.f32 %v2463, %v2472
      %v2623 = vmax.f32 %v2481, %v2490
      %v2624 = vmax.f32 %v2489, %v2499
      %v2625 = vmax.f32 %v2488, %v2507
      %v2626 = vmax.f32 %v2506, %v2525
      %v2627 = vmax.f32 %v2508, %v2524
      %v2628 = vmax.f32 %v2517, %v2526
      %v2629 = vmax.f32 %v2535, %v2544
      %v2630 = vmax.f32 %v2543, %v2553
      %v2631 = vmax.f32 %v2542, %v2561
      %v2632 = vmax.f32 %v2560, %v2579
      %v2633 = vmax.f32 %v2562, %v2578
      %v2634 = vmax.f32 %v2571, %v2580
      %v2653 = vrot.slane %v2617, 2
      %v2654 = vrot.slane %v2618, 2
      %v2655 = vrot.slane %v2619, 2
      %v2656 = vrot.slane %v2620, 2
      %v2657 = vrot.slane %v2621, 2
      %v2658 = vrot.slane %v2622, 2
      %v2659 = vrot.slane %v2623, 2
      %v2660 = vrot.slane %v2624, 2
      %v2661 = vrot.slane %v2625, 2
      %v2662 = vrot.slane %v2626, 2
      %v2663 = vrot.slane %v2627, 2
      %v2664 = vrot.slane %v2628, 2
      %v2665 = vrot.slane %v2629, 2
      %v2666 = vrot.slane %v2630, 2
      %v2667 = vrot.slane %v2631, 2
      %v2668 = vrot.slane %v2632, 2
      %v2669 = vrot.slane %v2633, 2
      %v2670 = vrot.slane %v2634, 2
      %v2689 = vmax.f32 %v2617, %v2653
      %v2690 = vmax.f32 %v2618, %v2654
      %v2691 = vmax.f32 %v2619, %v2655
      %v2692 = vmax.f32 %v2620, %v2656
      %v2693 = vmax.f32 %v2621, %v2657
      %v2694 = vmax.f32 %v2622, %v2658
      %v2695 = vmax.f32 %v2623, %v2659
      %v2696 = vmax.f32 %v2624, %v2660
      %v2697 = vmax.f32 %v2625, %v2661
      %v2698 = vmax.f32 %v2626, %v2662
      %v2699 = vmax.f32 %v2627, %v2663
      %v2700 = vmax.f32 %v2628, %v2664
      %v2701 = vmax.f32 %v2629, %v2665
      %v2702 = vmax.f32 %v2630, %v2666
      %v2703 = vmax.f32 %v2631, %v2667
      %v2704 = vmax.f32 %v2632, %v2668
      %v2705 = vmax.f32 %v2633, %v2669
      %v2706 = vmax.f32 %v2634, %v2670
      %v2725 = vcombine.low %v2689, %v2690
      %v2727 = vunpack.c.l.s4 1983009808
      %v2728 = vunpack.c.0.s8 %v2727
      %v2729 = vlaneseq
      %v2730 = vshrl.u32 %v2729, 7
      %v2731 = vsub.s32 %v2728, %v2730
      %v2732 = vrot.slane %v2725, %v2731
      %v2734 = vunpack.c.l.s4 1983009808
      %v2735 = vunpack.c.0.s8 %v2734
      %v2736 = vlaneseq
      %v2737 = vshrl.u32 %v2736, 7
      %v2738 = vsub.s32 %v2735, %v2737
      %v2739 = vrot.slane %v2691, %v2738
      %v2740 = vcombine.low %v2732, %v2739
      %v2741 = vcombine.low %v2692, %v2693
      %v2743 = vunpack.c.l.s4 1983009808
      %v2744 = vunpack.c.0.s8 %v2743
      %v2745 = vlaneseq
      %v2746 = vshrl.u32 %v2745, 7
      %v2747 = vsub.s32 %v2744, %v2746
      %v2748 = vrot.slane %v2741, %v2747
      %v2750 = vunpack.c.l.s4 1983009808
      %v2751 = vunpack.c.0.s8 %v2750
      %v2752 = vlaneseq
      %v2753 = vshrl.u32 %v2752, 7
      %v2754 = vsub.s32 %v2751, %v2753
      %v2755 = vrot.slane %v2694, %v2754
      %v2756 = vcombine.low %v2748, %v2755
      %v2757 = vcombine.low %v2695, %v2696
      %v2759 = vunpack.c.l.s4 1983009808
      %v2760 = vunpack.c.0.s8 %v2759
      %v2761 = vlaneseq
      %v2762 = vshrl.u32 %v2761, 7
      %v2763 = vsub.s32 %v2760, %v2762
      %v2764 = vrot.slane %v2757, %v2763
      %v2766 = vunpack.c.l.s4 1983009808
      %v2767 = vunpack.c.0.s8 %v2766
      %v2768 = vlaneseq
      %v2769 = vshrl.u32 %v2768, 7
      %v2770 = vsub.s32 %v2767, %v2769
      %v2771 = vrot.slane %v2697, %v2770
      %v2772 = vcombine.low %v2764, %v2771
      %v2773 = vcombine.low %v2698, %v2699
      %v2775 = vunpack.c.l.s4 1983009808
      %v2776 = vunpack.c.0.s8 %v2775
      %v2777 = vlaneseq
      %v2778 = vshrl.u32 %v2777, 7
      %v2779 = vsub.s32 %v2776, %v2778
      %v2780 = vrot.slane %v2773, %v2779
      %v2782 = vunpack.c.l.s4 1983009808
      %v2783 = vunpack.c.0.s8 %v2782
      %v2784 = vlaneseq
      %v2785 = vshrl.u32 %v2784, 7
      %v2786 = vsub.s32 %v2783, %v2785
      %v2787 = vrot.slane %v2700, %v2786
      %v2788 = vcombine.low %v2780, %v2787
      %v2789 = vcombine.low %v2701, %v2702
      %v2791 = vunpack.c.l.s4 1983009808
      %v2792 = vunpack.c.0.s8 %v2791
      %v2793 = vlaneseq
      %v2794 = vshrl.u32 %v2793, 7
      %v2795 = vsub.s32 %v2792, %v2794
      %v2796 = vrot.slane %v2789, %v2795
      %v2798 = vunpack.c.l.s4 1983009808
      %v2799 = vunpack.c.0.s8 %v2798
      %v2800 = vlaneseq
      %v2801 = vshrl.u32 %v2800, 7
      %v2802 = vsub.s32 %v2799, %v2801
      %v2803 = vrot.slane %v2703, %v2802
      %v2804 = vcombine.low %v2796, %v2803
      %v2805 = vcombine.low %v2704, %v2705
      %v2807 = vunpack.c.l.s4 1983009808
      %v2808 = vunpack.c.0.s8 %v2807
      %v2809 = vlaneseq
      %v2810 = vshrl.u32 %v2809, 7
      %v2811 = vsub.s32 %v2808, %v2810
      %v2812 = vrot.slane %v2805, %v2811
      %v2814 = vunpack.c.l.s4 1983009808
      %v2815 = vunpack.c.0.s8 %v2814
      %v2816 = vlaneseq
      %v2817 = vshrl.u32 %v2816, 7
      %v2818 = vsub.s32 %v2815, %v2817
      %v2819 = vrot.slane %v2706, %v2818
      %v2820 = vcombine.low %v2812, %v2819
      %v2827 = vpack.c.bf16 %v2740, %v2740
      %v2828 = vpack.c.bf16 %v2756, %v2756
      %v2829 = vpack.c.bf16 %v2772, %v2772
      %v2830 = vpack.c.bf16 %v2788, %v2788
      %v2831 = vpack.c.bf16 %v2804, %v2804
      %v2832 = vpack.c.bf16 %v2820, %v2820
      %2833 = vst [vmem:[%s197] sm:$0x7] %v2827
      %2834 = vst [vmem:[%s197 + $0x4] sm:$0x7] %v2828
      %2835 = vst [vmem:[%s197 + $0x8] sm:$0x7] %v2829
      %2836 = vst [vmem:[%s197 + $0xc] sm:$0x7] %v2830
      %2837 = vst [vmem:[%s197 + $0x10] sm:$0x7] %v2831
      %2838 = vst [vmem:[%s197 + $0x14] sm:$0x7] %v2832
      %p2839 = scmp.lt.s32.totalorder %s15, 1
      %s2840 = scalar_select %p2839, %s15, 1
      %s2841 = smul.addr %s2840, 6
      %s2842 = smul.addr %s2841, 4
      %s2843 = scalar_lea.vmem %s4, %s2842
      // Predicated region
      $region37: #{cnn_forward.8} parent=35 // pred_check
        %p2844 = pneg %p122
      $region38: #{cnn_forward.8} parent=35 // pred_check_branch
        %2846 = sbr.rel (%p2844) target = $region40
      $region39: #{cnn_forward.8} parent=35 // pred_region
        _
      $region40: #{cnn_forward.8} parent=35 // pred_fallthru
        _
    $region36: #{cnn_forward.8} parent=5 // pred_fallthru
      _
    %p2847 = scmp.le.s32.totalorder 2, %s10
    // Predicated region
    $region41: #{cnn_forward.8} parent=5 // pred_check
      %p2848 = pneg %p2847
    $region42: #{cnn_forward.8} parent=5 // pred_check_branch
      %2850 = sbr.rel (%p2848) target = $region44
    $region43: #{cnn_forward.8} parent=5 // pred_region
      %s2851 = ssub.s32 %s10, 2
      // Predicated region
      $region45: #{cnn_forward.8} parent=43 // pred_check
        %p2852 = pneg %p128
      $region46: #{cnn_forward.8} parent=43 // pred_check_branch
        %2854 = sbr.rel (%p2852) target = $region48
      $region47: #{cnn_forward.8} parent=43 // pred_region
        %p2855 = scmp.lt.s32.totalorder %s16, 1
        %s2856 = scalar_select %p2855, %s16, 1
        %s2857 = smul.addr %s2856, 6
        %s2858 = smul.addr %s2857, 4
        %s2859 = scalar_lea.vmem %s4, %s2858
      $region48: #{cnn_forward.8} parent=43 // pred_fallthru
        _
    $region44: #{cnn_forward.8} parent=5 // pred_fallthru
      _
  $region6: #{cnn_forward.8} parent=0 // loop_footer
    %s14 = sadd.s32 1, %s10
  $region7: #{cnn_forward.8} parent=0 // loop_footer_branch
    %9 = sbr.rel target = $region3
  $region8: #{cnn_forward.8} parent=0 // loop_exit
    _

// kernel: cnn_forward.9
$region0: #{cnn_forward.9}
  #allocation0 [shape = 'u32[]', space=smem, size = 0x4, offset = 0x4, fixed_abs, tag = 'smem constant byte address 0x4 - core index']
  #allocation1 [shape = 'u32[144,128]{1,0:T(1,128)}', space=vmem, size = 0x12000, scoped, tag = 'internal scratch']
  %s0 = inlined_call_operand.vmem [shape: bf16[2,36,128], index: 0, kind: input, shape index: {}]
  %s1 = inlined_call_operand.vmem [shape: bf16[128,160], index: 1, kind: input, shape index: {}]
  %s2 = inlined_call_operand.vmem [shape: f32[1,160], index: 2, kind: input, shape index: {}]
  %s3 = inlined_call_operand.vmem [shape: bf16[2,36,128], index: 3, kind: output, shape index: {}]
  %s4 = sld [smem:[#allocation0]]
  $region45: #{cnn_forward.9} parent=0
    _
  %s6 = ssub.s32 1, %s4
  %s7 = scalar_select 0, %s6, %s4
  loop: start=0, step=1, limit=4
  $region2: #{cnn_forward.9} parent=0 // loop_pre_header
    _
  $region3: #{cnn_forward.9} parent=0 // loop_header
    %s9 = sphi 0, %s13
    %p10 = scmp.ge.s32.totalorder %s9, 4
    %s19 = sphi 0, %s21
    %s22 = sphi 0, %s19
    %s23 = sphi 0, %s22
    %s39 = sphi 0, %s23
    %s43 = sphi 0, %s43
    %s45 = sphi 0, %s43
    %s46 = sphi 0, %s45
    %s60 = sphi 0, %s46
    %s64 = sphi 0, %s64
    %s66 = sphi 0, %s64
    %s67 = sphi 0, %s66
    %s81 = sphi 0, %s67
    %s87 = sphi 0, %s89
    %s90 = sphi 0, %s87
    %s91 = sphi 0, %s90
    %s107 = sphi 0, %s91
  $region4: #{cnn_forward.9} parent=0 // loop_header_branch
    %12 = sbr.rel (%p10) target = $region8
  $region5: #{cnn_forward.9} parent=0 // loop_body
    %s14 = ssub.s32 %s9, 1
    %s15 = ssub.s32 %s9, 2
    %s16 = sadd.s32 %s9, 1
    %s17 = ssub.s32 %s9, %s16
    %p18 = scmp.eq.s32.totalorder %s17, 0
    %s20 = sadd.s32 %s19, 1
    %s21 = scalar_select %p18, %s19, %s20
    %p24 = pneg %p18
    %p25 = scmp.eq.s32.totalorder %s9, 1
    %p26 = por %p24, %p25
    %p27 = scmp.ne.s32.totalorder %s19, %s22
    %p28 = scmp.eq.s32.totalorder %s9, 0
    %p29 = por %p27, %p28
    %p30 = scmp.ne.s32.totalorder %s19, %s22
    %p31 = scmp.eq.s32.totalorder %s14, 1
    %p32 = por %p30, %p31
    %p33 = scmp.ne.s32.totalorder %s22, %s23
    %p34 = scmp.eq.s32.totalorder %s14, 0
    %p35 = por %p33, %p34
    %p36 = scmp.ne.s32.totalorder %s22, %s23
    %p37 = scmp.eq.s32.totalorder %s15, 1
    %p38 = por %p36, %p37
    %p40 = scmp.ne.s32.totalorder %s23, %s39
    %p41 = scmp.eq.s32.totalorder %s15, 0
    %p42 = por %p40, %p41
    %s44 = sadd.s32 %s43, 1
    %p47 = scmp.eq.s32.totalorder %s9, 1
    %p48 = scmp.ne.s32.totalorder %s43, %s45
    %p49 = scmp.eq.s32.totalorder %s9, 0
    %p50 = por %p48, %p49
    %p51 = scmp.ne.s32.totalorder %s43, %s45
    %p52 = scmp.eq.s32.totalorder %s14, 1
    %p53 = por %p51, %p52
    %p54 = scmp.ne.s32.totalorder %s45, %s46
    %p55 = scmp.eq.s32.totalorder %s14, 0
    %p56 = por %p54, %p55
    %p57 = scmp.ne.s32.totalorder %s45, %s46
    %p58 = scmp.eq.s32.totalorder %s15, 1
    %p59 = por %p57, %p58
    %p61 = scmp.ne.s32.totalorder %s46, %s60
    %p62 = scmp.eq.s32.totalorder %s15, 0
    %p63 = por %p61, %p62
    %s65 = sadd.s32 %s64, 1
    %p68 = scmp.eq.s32.totalorder %s9, 1
    %p69 = scmp.ne.s32.totalorder %s64, %s66
    %p70 = scmp.eq.s32.totalorder %s9, 0
    %p71 = por %p69, %p70
    %p72 = scmp.ne.s32.totalorder %s64, %s66
    %p73 = scmp.eq.s32.totalorder %s14, 1
    %p74 = por %p72, %p73
    %p75 = scmp.ne.s32.totalorder %s66, %s67
    %p76 = scmp.eq.s32.totalorder %s14, 0
    %p77 = por %p75, %p76
    %p78 = scmp.ne.s32.totalorder %s66, %s67
    %p79 = scmp.eq.s32.totalorder %s15, 1
    %p80 = por %p78, %p79
    %p82 = scmp.ne.s32.totalorder %s67, %s81
    %p83 = scmp.eq.s32.totalorder %s15, 0
    %p84 = por %p82, %p83
    %s85 = ssub.s32 %s9, %s16
    %p86 = scmp.eq.s32.totalorder %s85, 0
    %s88 = sadd.s32 %s87, 1
    %s89 = scalar_select %p86, %s87, %s88
    %p92 = pneg %p86
    %p93 = scmp.eq.s32.totalorder %s9, 1
    %p94 = por %p92, %p93
    %p95 = scmp.ne.s32.totalorder %s87, %s90
    %p96 = scmp.eq.s32.totalorder %s9, 0
    %p97 = por %p95, %p96
    %p98 = scmp.ne.s32.totalorder %s87, %s90
    %p99 = scmp.eq.s32.totalorder %s14, 1
    %p100 = por %p98, %p99
    %p101 = scmp.ne.s32.totalorder %s90, %s91
    %p102 = scmp.eq.s32.totalorder %s14, 0
    %p103 = por %p101, %p102
    %p104 = scmp.ne.s32.totalorder %s90, %s91
    %p105 = scmp.eq.s32.totalorder %s15, 1
    %p106 = por %p104, %p105
    %p108 = scmp.ne.s32.totalorder %s91, %s107
    %p109 = scmp.eq.s32.totalorder %s15, 0
    %p110 = por %p108, %p109
    %p111 = scmp.le.s32.totalorder 1, %s9
    %p112 = scmp.lt.s32.totalorder %s9, 3
    %p113 = pnand %p111, %p112
    %p114 = pneg %p113
    // Predicated region
    $region9: #{cnn_forward.9} parent=5 // pred_check
      _
    $region10: #{cnn_forward.9} parent=5 // pred_check_branch
      %116 = sbr.rel (%p113) target = $region12
    $region11: #{cnn_forward.9} parent=5 // pred_region
      %s117 = ssub.s32 %s9, 1
      // Predicated region
      $region13: #{cnn_forward.9} parent=11 // pred_check
        %p118 = pneg %p56
      $region14: #{cnn_forward.9} parent=11 // pred_check_branch
        %120 = sbr.rel (%p118) target = $region16
      $region15: #{cnn_forward.9} parent=11 // pred_region
        _
      $region16: #{cnn_forward.9} parent=11 // pred_fallthru
        _
      // Predicated region
      $region17: #{cnn_forward.9} parent=11 // pred_check
        %p121 = pneg %p77
      $region18: #{cnn_forward.9} parent=11 // pred_check_branch
        %123 = sbr.rel (%p121) target = $region20
      $region19: #{cnn_forward.9} parent=11 // pred_region
        _
      $region20: #{cnn_forward.9} parent=11 // pred_fallthru
        _
    $region12: #{cnn_forward.9} parent=5 // pred_fallthru
      _
    %p124 = scmp.lt.s32.totalorder %s9, 2
    // Predicated region
    $region21: #{cnn_forward.9} parent=5 // pred_check
      %p125 = pneg %p124
    $region22: #{cnn_forward.9} parent=5 // pred_check_branch
      %127 = sbr.rel (%p125) target = $region24
    $region23: #{cnn_forward.9} parent=5 // pred_region
      // Predicated region
      $region25: #{cnn_forward.9} parent=23 // pred_check
        %p128 = pneg %p29
      $region26: #{cnn_forward.9} parent=23 // pred_check_branch
        %130 = sbr.rel (%p128) target = $region28
      $region27: #{cnn_forward.9} parent=23 // pred_region
        %p131 = scmp.lt.s32.totalorder %s9, 1
        %s132 = scalar_select %p131, %s9, 1
        %s133 = smul.addr %s132, 5
        %s134 = smul.addr %s133, 4
        %s135 = scalar_lea.vmem %s0, %s134
      $region28: #{cnn_forward.9} parent=23 // pred_fallthru
        _
    $region24: #{cnn_forward.9} parent=5 // pred_fallthru
      _
    %p136 = scmp.le.s32.totalorder 1, %s9
    %p137 = scmp.lt.s32.totalorder %s9, 3
    %p138 = pnand %p136, %p137
    %p139 = pneg %p138
    // Predicated region
    $region29: #{cnn_forward.9} parent=5 // pred_check
      _
    $region30: #{cnn_forward.9} parent=5 // pred_check_branch
      %141 = sbr.rel (%p138) target = $region32
    $region31: #{cnn_forward.9} parent=5 // pred_region
      %s142 = ssub.s32 %s9, 1
      %p143 = scmp.lt.s32.totalorder %s14, 1
      %s144 = scalar_select %p143, %s14, 1
      %s145 = smul.addr %s144, 5
      %s146 = smul.addr %s145, 4
      %s147 = scalar_lea.vmem %s0, %s146
      %p148 = pneg %p35
      %p149 = pneg %p32
      %p150 = pneg %p56
      %p151 = pneg %p53
      %p152 = pneg %p77
      %p153 = pneg %p74
      %p154 = pneg %p103
      %p155 = pneg %p100
      %p156 = scmp.lt.s32.totalorder %s14, 1
      %s157 = scalar_select %p156, %s14, 1
      %s158 = smul.addr %s157, 5
      %s159 = smul.addr %s158, 4
      %s160 = scalar_lea.vmem %s3, %s159
      %p161 = scmp.lt.s32.totalorder %s14, 1
      %s162 = scalar_select %p161, %s14, 1
      %s163 = smul.addr %s162, 5
      %s164 = smul.addr %s163, 4
      %s165 = scalar_lea.vmem %s0, %s164
      %p166 = scmp.lt.s32.totalorder %s14, 1
      %s167 = scalar_select %p166, %s14, 1
      %s168 = smul.addr %s167, 5
      %s169 = smul.addr %s168, 4
      %s170 = scalar_lea.vmem %s3, %s169
      %v172 = vld [vmem:[%s165] sm:$0xf]
      %v173 = vld [vmem:[%s165 + $0x4] sm:$0xf]
      %v174 = vld [vmem:[%s165 + $0x8] sm:$0xf]
      %v175 = vld [vmem:[%s165 + $0xc] sm:$0xf]
      %v176 = vld [vmem:[%s165 + $0x10] sm:$0x3]
      %v177 = vld [vmem:[%s1] sm:$0xff]
      %v178 = vld [vmem:[%s1 + $0x8] sm:$0xff]
      %v179 = vld [vmem:[%s1 + $0x10] sm:$0xff]
      %v180 = vld [vmem:[%s1 + $0x18] sm:$0xff]
      %v181 = vld [vmem:[%s1 + $0x20] sm:$0xff]
      %v182 = vld [vmem:[%s1 + $0x28] sm:$0xff]
      %v183 = vld [vmem:[%s1 + $0x30] sm:$0xff]
      %v184 = vld [vmem:[%s1 + $0x38] sm:$0xff]
      %v185 = vld [vmem:[%s1 + $0x40] sm:$0xff]
      %v186 = vld [vmem:[%s1 + $0x48] sm:$0xff]
      %v187 = vld [vmem:[%s1 + $0x50] sm:$0xff]
      %v188 = vld [vmem:[%s1 + $0x58] sm:$0xff]
      %v189 = vld [vmem:[%s1 + $0x60] sm:$0xff]
      %v190 = vld [vmem:[%s1 + $0x68] sm:$0xff]
      %v191 = vld [vmem:[%s1 + $0x70] sm:$0xff]
      %v192 = vld [vmem:[%s1 + $0x78] sm:$0xff]
      %v193 = vld [vmem:[%s2] sm:$0x3]
      %v195 = vlaneseq
      %v196 = vshrl.u32 %v195, 7
      %v197 = vsub.s32 0, %v196
      %v198 = vrot.slane %v193, %v197
      %v199 = vlaneseq
      %v200 = vshrl.u32 %v199, 7
      %v201 = vsub.s32 1, %v200
      %v202 = vrot.slane %v193, %v201
      %v210 = vunpack.c.l.b16 %v172
      %v211 = vunpack.c.l.b16 %v173
      %v212 = vunpack.c.l.b16 %v174
      %v213 = vunpack.c.l.b16 %v175
      %v214 = vunpack.c.l.b16 %v176
      %v215 = vpack.c.b16 %v211, %v210
      %v216 = vpack.c.b16 %v213, %v212
      %v217 = vpack.c.b16 %v214, %v214
      %v237 = vunpack.c.l.b16 %v177
      %v238 = vunpack.c.h.b16 %v177
      %v239 = vunpack.c.l.b16 %v178
      %v240 = vunpack.c.h.b16 %v178
      %v241 = vunpack.c.l.b16 %v179
      %v242 = vunpack.c.h.b16 %v179
      %v243 = vunpack.c.l.b16 %v180
      %v244 = vunpack.c.h.b16 %v180
      %v245 = vunpack.c.l.b16 %v181
      %v246 = vunpack.c.h.b16 %v181
      %v247 = vunpack.c.l.b16 %v182
      %v248 = vunpack.c.h.b16 %v182
      %v249 = vunpack.c.l.b16 %v183
      %v250 = vunpack.c.h.b16 %v183
      %v251 = vunpack.c.l.b16 %v184
      %v252 = vunpack.c.h.b16 %v184
      %v253 = vunpack.c.l.b16 %v185
      %v254 = vunpack.c.h.b16 %v185
      %v255 = vunpack.c.l.b16 %v186
      %v256 = vunpack.c.h.b16 %v186
      %v257 = vunpack.c.l.b16 %v187
      %v258 = vunpack.c.h.b16 %v187
      %v259 = vunpack.c.l.b16 %v188
      %v260 = vunpack.c.h.b16 %v188
      %v261 = vunpack.c.l.b16 %v189
      %v262 = vunpack.c.h.b16 %v189
      %v263 = vunpack.c.l.b16 %v190
      %v264 = vunpack.c.h.b16 %v190
      %v265 = vunpack.c.l.b16 %v191
      %v266 = vunpack.c.h.b16 %v191
      %v267 = vunpack.c.l.b16 %v192
      %v268 = vunpack.c.h.b16 %v192
      %v269 = vpack.c.b16 %v239, %v237
      %v270 = vpack.c.b16 %v240, %v238
      %v271 = vpack.c.b16 %v243, %v241
      %v272 = vpack.c.b16 %v244, %v242
      %v273 = vpack.c.b16 %v247, %v245
      %v274 = vpack.c.b16 %v248, %v246
      %v275 = vpack.c.b16 %v251, %v249
      %v276 = vpack.c.b16 %v252, %v250
      %v277 = vpack.c.b16 %v255, %v253
      %v278 = vpack.c.b16 %v256, %v254
      %v279 = vpack.c.b16 %v259, %v257
      %v280 = vpack.c.b16 %v260, %v258
      %v281 = vpack.c.b16 %v263, %v261
      %v282 = vpack.c.b16 %v264, %v262
      %v283 = vpack.c.b16 %v267, %v265
      %v284 = vpack.c.b16 %v268, %v266
      %301 = vmatprep.subr.bf16.mxu0 %v270
      %302 = vmatpush1.bf16.msra.mxu0 %v269
      %303 = vmatprep.subr.bf16.mxu0 %v272
      %304 = vmatpush1.bf16.msra.mxu0 %v271
      %305 = vmatprep.subr.bf16.mxu0 %v274
      %306 = vmatpush1.bf16.msra.mxu0 %v273
      %307 = vmatprep.subr.bf16.mxu0 %v276
      %308 = vmatpush1.bf16.msra.mxu0 %v275
      %309 = vmatprep.subr.bf16.mxu0 %v278
      %310 = vmatpush1.bf16.msra.mxu0 %v277
      %311 = vmatprep.subr.bf16.mxu0 %v280
      %312 = vmatpush1.bf16.msra.mxu0 %v279
      %313 = vmatprep.subr.bf16.mxu0 %v282
      %314 = vmatpush1.bf16.msra.mxu0 %v281
      %315 = vmatprep.subr.bf16.mxu0 %v284
      %316 = vmatpush1.bf16.msra.mxu0 %v283
      %317 = vmatprep.subr.bf16.mxu0 0
      %318 = vmatpush1.bf16.msra.mxu0 0
      %319 = vmatprep.subr.bf16.mxu0 0
      %320 = vmatpush1.bf16.msra.mxu0 0
      %321 = vmatprep.subr.bf16.mxu0 0
      %322 = vmatpush1.bf16.msra.mxu0 0
      %323 = vmatprep.subr.bf16.mxu0 0
      %324 = vmatpush1.bf16.msra.mxu0 0
      %325 = vmatprep.subr.bf16.mxu0 0
      %326 = vmatpush1.bf16.msra.mxu0 0
      %327 = vmatprep.subr.bf16.mxu0 0
      %328 = vmatpush1.bf16.msra.mxu0 0
      %329 = vmatprep.subr.bf16.mxu0 0
      %330 = vmatpush1.bf16.msra.mxu0 0
      %331 = vmatprep.subr.bf16.mxu0 0
      %332 = vmatpush1.bf16.msra.mxu0 0
      %333 = vmatprep.mubr.bf16.mxu0 0
      %334 = vmatmul.mubr.bf16.gmra.mrb[0].mxu0 %v215
      %v335 = vpop.f32.mrb[0].mxu0
      %v336 = vadd.f32 %v198, %v335
      %v337 = vpop.f32.mrb[0].mxu0
      %v338 = vadd.f32 %v202, %v337
      %v339 = vpop.f32.mrb[0].mxu0
      %v340 = vadd.f32 %v198, %v339
      %v341 = vpop.f32.mrb[0].mxu0
      %v342 = vadd.f32 %v202, %v341
      %343 = vmatprep.mubr.bf16.mxu0 0
      %344 = vmatmul.mubr.bf16.gmra.mrb[0].mxu0 %v216
      %v345 = vpop.f32.mrb[0].mxu0
      %v346 = vadd.f32 %v198, %v345
      %v347 = vpop.f32.mrb[0].mxu0
      %v348 = vadd.f32 %v202, %v347
      %v349 = vpop.f32.mrb[0].mxu0
      %v350 = vadd.f32 %v198, %v349
      %v351 = vpop.f32.mrb[0].mxu0
      %v352 = vadd.f32 %v202, %v351
      %353 = vmatprep.mubr.bf16.mxu0 0
      %354 = vmatmul.mubr.bf16.gmra.mrb[0].mxu0 %v217
      %v355 = vpop.f32.mrb[0].mxu0
      %v356 = vadd.f32 %v198, %v355
      %v357 = vpop.f32.mrb[0].mxu0
      %v358 = vadd.f32 %v202, %v357
      %v359 = vpop.f32.mrb[0].mxu0
      %v360 = vpop.f32.mrb[0].mxu0
      %361 = vdwg.mxu0
      %v362 = vpack.c.bf16 %v340, %v336
      %v363 = vpack.c.bf16 %v350, %v346
      %v364 = vpack.c.bf16 %v356, %v356
      %v365 = vpack.c.bf16 %v342, %v338
      %v366 = vpack.c.bf16 %v352, %v348
      %v367 = vpack.c.bf16 %v358, %v358
      %371 = vrot.lane.b32.xlu0 %v362, 112
      %v372 = vpop.permute.xlu0 %371
      %373 = vrot.lane.b32.xlu0 %v363, 112
      %v374 = vpop.permute.xlu0 %373
      %375 = vrot.lane.b32.xlu0 %v364, 112
      %v376 = vpop.permute.xlu0 %375
      %vm377 = vcmask 130048
      %v379 = vsel %vm377, %v362, 0
      %v382 = vsel %vm377, %v363, 0
      %v385 = vsel %vm377, %v364, 0
      %v388 = vsel %vm377, %v372, 0
      %v391 = vsel %vm377, %v374, 0
      %v394 = vsel %vm377, %v376, 0
      %396 = vmatprep.subr.bf16.mxu0 0
      %397 = vmatpush1.bf16.xpose.msra.mxu0 %v388
      %398 = vmatprep.subr.bf16.mxu0 0
      %399 = vmatpush1.bf16.xpose.msra.mxu0 %v391
      %400 = vmatprep.subr.bf16.mxu0 0
      %401 = vmatpush1.bf16.xpose.msra.mxu0 %v394
      %402 = vmatprep.subr.bf16.mxu0 0
      %403 = vmatpush1.bf16.xpose.msra.mxu0 0
      %404 = vmatprep.subr.bf16.mxu0 0
      %405 = vmatpush1.bf16.xpose.msra.mxu0 0
      %406 = vmatprep.subr.bf16.mxu0 0
      %407 = vmatpush1.bf16.xpose.msra.mxu0 0
      %408 = vmatprep.subr.bf16.mxu0 0
      %409 = vmatpush1.bf16.xpose.msra.mxu0 0
      %410 = vmatprep.subr.bf16.mxu0 0
      %411 = vmatpush1.bf16.xpose.msra.mxu0 0
      %412 = vmatprep.subr.bf16.mxu0 0
      %413 = vmatpush1.bf16.xpose.msra.mxu0 0
      %414 = vmatprep.subr.bf16.mxu0 0
      %415 = vmatpush1.bf16.xpose.msra.mxu0 0
      %416 = vmatprep.subr.bf16.mxu0 0
      %417 = vmatpush1.bf16.xpose.msra.mxu0 0
      %418 = vmatprep.subr.bf16.mxu0 0
      %419 = vmatpush1.bf16.xpose.msra.mxu0 0
      %420 = vmatprep.subr.bf16.mxu0 0
      %421 = vmatpush1.bf16.xpose.msra.mxu0 0
      %422 = vmatprep.subr.bf16.mxu0 0
      %423 = vmatpush1.bf16.xpose.msra.mxu0 0
      %424 = vmatprep.subr.bf16.mxu0 0
      %425 = vmatpush1.bf16.xpose.msra.mxu0 0
      %426 = vmatprep.subr.bf16.mxu0 0
      %427 = vmatpush1.bf16.xpose.msra.mxu0 0
      %428 = vmatprep.mubr.bf16.mxu0 0
      %429 = vmatmul.mubr.bf16.gmra.mrb[0].mxu0 %v379
      %v430 = vpop.f32.mrb[0].mxu0
      %v431 = vadd.f32 0.0, %v430
      %v432 = vpop.f32.mrb[0].mxu0
      %v433 = vpop.f32.mrb[0].mxu0
      %v434 = vadd.f32 0.0, %v433
      %v435 = vpop.f32.mrb[0].mxu0
      %436 = vmatprep.mubr.bf16.mxu0 0
      %437 = vmatmul.mubr.bf16.gmra.mrb[0].mxu0 %v382
      %v438 = vpop.f32.mrb[0].mxu0
      %v439 = vadd.f32 0.0, %v438
      %v440 = vpop.f32.mrb[0].mxu0
      %v441 = vpop.f32.mrb[0].mxu0
      %v442 = vadd.f32 0.0, %v441
      %v443 = vpop.f32.mrb[0].mxu0
      %444 = vmatprep.mubr.bf16.mxu0 0
      %445 = vmatmul.mubr.bf16.gmra.mrb[0].mxu0 %v385
      %v446 = vpop.f32.mrb[0].mxu0
      %v447 = vadd.f32 0.0, %v446
      %v448 = vpop.f32.mrb[0].mxu0
      %v449 = vpop.f32.mrb[0].mxu0
      %v450 = vpop.f32.mrb[0].mxu0
      %451 = vdwg.mxu0
      %vm452 = vcmask 293888
      %v453 = vsel %vm452, %v431, -inf
      %454 = vmax.xlane.f32.xlu0 %v453
      %v455 = vpop.xlane.xlu0 %454
      %v456 = vsel %vm452, %v434, -inf
      %457 = vmax.xlane.f32.xlu0 %v456
      %v458 = vpop.xlane.xlu0 %457
      %v459 = vsel %vm452, %v439, -inf
      %460 = vmax.xlane.f32.xlu0 %v459
      %v461 = vpop.xlane.xlu0 %460
      %v462 = vsel %vm452, %v442, -inf
      %463 = vmax.xlane.f32.xlu0 %v462
      %v464 = vpop.xlane.xlu0 %463
      %vm465 = vcmask 289792
      %v466 = vsel %vm465, %v447, -inf
      %467 = vmax.xlane.f32.xlu0 %v466
      %v468 = vpop.xlane.xlu0 %467
      %v469 = vsub.f32 %v431, %v455
      %v470 = vsub.f32 %v434, %v458
      %v471 = vsub.f32 %v439, %v461
      %v472 = vsub.f32 %v442, %v464
      %v473 = vsub.f32 %v447, %v468
      %v474 = vmul.f32 %v469, 1.442695
      %v475 = vpow.pop %v474
      %v476 = vmul.f32 %v470, 1.442695
      %v477 = vpow.pop %v476
      %v478 = vmul.f32 %v471, 1.442695
      %v479 = vpow.pop %v478
      %v480 = vmul.f32 %v472, 1.442695
      %v481 = vpow.pop %v480
      %v482 = vmul.f32 %v473, 1.442695
      %v483 = vpow.pop %v482
      %v484 = vsel %vm452, %v475, 0.0
      %485 = vadd.xlane.f32.xlu0 %v484
      %v486 = vpop.xlane.xlu0 %485
      %v487 = vsel %vm452, %v477, 0.0
      %488 = vadd.xlane.f32.xlu0 %v487
      %v489 = vpop.xlane.xlu0 %488
      %v490 = vsel %vm452, %v479, 0.0
      %491 = vadd.xlane.f32.xlu0 %v490
      %v492 = vpop.xlane.xlu0 %491
      %v493 = vsel %vm452, %v481, 0.0
      %494 = vadd.xlane.f32.xlu0 %v493
      %v495 = vpop.xlane.xlu0 %494
      %v496 = vsel %vm465, %v483, 0.0
      %497 = vadd.xlane.f32.xlu0 %v496
      %v498 = vpop.xlane.xlu0 %497
      %v499 = vrcp.pop %v486
      %v500 = vrcp.pop %v489
      %v501 = vrcp.pop %v492
      %v502 = vrcp.pop %v495
      %v503 = vrcp.pop %v498
      %v504 = vmul.f32 %v475, %v499
      %v505 = vmul.f32 %v477, %v500
      %v506 = vmul.f32 %v479, %v501
      %v507 = vmul.f32 %v481, %v502
      %v508 = vmul.f32 %v483, %v503
      %v509 = vpack.c.bf16 %v505, %v504
      %v510 = vpack.c.bf16 %v507, %v506
      %v511 = vpack.c.bf16 %v508, %v508
      %v512 = vunpack.c.l.bf16 %v172
      %v513 = vunpack.c.l.bf16 %v173
      %v514 = vunpack.c.l.bf16 %v174
      %v515 = vunpack.c.l.bf16 %v175
      %v516 = vunpack.c.l.bf16 %v176
      %520 = vrot.lane.b32.xlu0 %v362, 96
      %v521 = vpop.permute.xlu0 %520
      %522 = vrot.lane.b32.xlu0 %v365, 96
      %v523 = vpop.permute.xlu0 %522
      %524 = vrot.lane.b32.xlu0 %v363, 96
      %v525 = vpop.permute.xlu0 %524
      %526 = vrot.lane.b32.xlu0 %v366, 96
      %v527 = vpop.permute.xlu0 %526
      %528 = vrot.lane.b32.xlu0 %v364, 96
      %v529 = vpop.permute.xlu0 %528
      %530 = vrot.lane.b32.xlu0 %v367, 96
      %v531 = vpop.permute.xlu0 %530
      %vm532 = vcmask 785408
      %v533 = vsel %vm532, %v521, %v523
      %v534 = vsel %vm532, %v525, %v527
      %v535 = vsel %vm532, %v529, %v531
      %v539 = vsel %vm452, %v509, 0
      %v542 = vsel %vm452, %v510, 0
      %v545 = vsel %vm452, %v511, 0
      %vm547 = vcmask 1041408
      %v549 = vsel %vm547, %v535, 0
      %551 = vmatprep.subr.bf16.mxu0 0
      %552 = vmatpush1.bf16.msra.mxu0 %v533
      %553 = vmatprep.subr.bf16.mxu0 0
      %554 = vmatpush1.bf16.msra.mxu0 %v534
      %555 = vmatprep.subr.bf16.mxu0 0
      %556 = vmatpush1.bf16.msra.mxu0 %v549
      %557 = vmatprep.subr.bf16.mxu0 0
      %558 = vmatpush1.bf16.msra.mxu0 0
      %559 = vmatprep.subr.bf16.mxu0 0
      %560 = vmatpush1.bf16.msra.mxu0 0
      %561 = vmatprep.subr.bf16.mxu0 0
      %562 = vmatpush1.bf16.msra.mxu0 0
      %563 = vmatprep.subr.bf16.mxu0 0
      %564 = vmatpush1.bf16.msra.mxu0 0
      %565 = vmatprep.subr.bf16.mxu0 0
      %566 = vmatpush1.bf16.msra.mxu0 0
      %567 = vmatprep.subr.bf16.mxu0 0
      %568 = vmatpush1.bf16.msra.mxu0 0
      %569 = vmatprep.subr.bf16.mxu0 0
      %570 = vmatpush1.bf16.msra.mxu0 0
      %571 = vmatprep.subr.bf16.mxu0 0
      %572 = vmatpush1.bf16.msra.mxu0 0
      %573 = vmatprep.subr.bf16.mxu0 0
      %574 = vmatpush1.bf16.msra.mxu0 0
      %575 = vmatprep.subr.bf16.mxu0 0
      %576 = vmatpush1.bf16.msra.mxu0 0
      %577 = vmatprep.subr.bf16.mxu0 0
      %578 = vmatpush1.bf16.msra.mxu0 0
      %579 = vmatprep.subr.bf16.mxu0 0
      %580 = vmatpush1.bf16.msra.mxu0 0
      %581 = vmatprep.subr.bf16.mxu0 0
      %582 = vmatpush1.bf16.msra.mxu0 0
      %583 = vmatprep.mubr.bf16.mxu0 0
      %584 = vmatmul.mubr.bf16.gmra.mrb[0].mxu0 %v539
      %v585 = vpop.f32.mrb[0].mxu0
      %v586 = vadd.f32 %v512, %v585
      %v587 = vpop.f32.mrb[0].mxu0
      %v588 = vpop.f32.mrb[0].mxu0
      %v589 = vadd.f32 %v513, %v588
      %v590 = vpop.f32.mrb[0].mxu0
      %591 = vmatprep.mubr.bf16.mxu0 0
      %592 = vmatmul.mubr.bf16.gmra.mrb[0].mxu0 %v542
      %v593 = vpop.f32.mrb[0].mxu0
      %v594 = vadd.f32 %v514, %v593
      %v595 = vpop.f32.mrb[0].mxu0
      %v596 = vpop.f32.mrb[0].mxu0
      %v597 = vadd.f32 %v515, %v596
      %v598 = vpop.f32.mrb[0].mxu0
      %599 = vmatprep.mubr.bf16.mxu0 0
      %600 = vmatmul.mubr.bf16.gmra.mrb[0].mxu0 %v545
      %v601 = vpop.f32.mrb[0].mxu0
      %v602 = vadd.f32 %v516, %v601
      %v603 = vpop.f32.mrb[0].mxu0
      %v604 = vpop.f32.mrb[0].mxu0
      %v605 = vpop.f32.mrb[0].mxu0
      %606 = vdwg.mxu0
      %v607 = vpack.c.bf16 %v589, %v586
      %v608 = vpack.c.bf16 %v597, %v594
      %v609 = vpack.c.bf16 %v602, %v602
      %v613 = vunpack.c.l.b16 %v607
      %v614 = vunpack.c.h.b16 %v607
      %v615 = vunpack.c.l.b16 %v608
      %v616 = vunpack.c.h.b16 %v608
      %v617 = vunpack.c.l.b16 %v609
      %v618 = vpack.c.b16 %v613, %v613
      %v619 = vpack.c.b16 %v614, %v614
      %v620 = vpack.c.b16 %v615, %v615
      %v621 = vpack.c.b16 %v616, %v616
      %v622 = vpack.c.b16 %v617, %v617
      %628 = vst [vmem:[%s170] sm:$0xf] %v618
      %629 = vst [vmem:[%s170 + $0x4] sm:$0xf] %v619
      %630 = vst [vmem:[%s170 + $0x8] sm:$0xf] %v620
      %631 = vst [vmem:[%s170 + $0xc] sm:$0xf] %v621
      %632 = vst [vmem:[%s170 + $0x10] sm:$0x3] %v622
      %p633 = scmp.lt.s32.totalorder %s14, 1
      %s634 = scalar_select %p633, %s14, 1
      %s635 = smul.addr %s634, 5
      %s636 = smul.addr %s635, 4
      %s637 = scalar_lea.vmem %s3, %s636
      // Predicated region
      $region33: #{cnn_forward.9} parent=31 // pred_check
        %p638 = pneg %p100
      $region34: #{cnn_forward.9} parent=31 // pred_check_branch
        %640 = sbr.rel (%p638) target = $region36
      $region35: #{cnn_forward.9} parent=31 // pred_region
        _
      $region36: #{cnn_forward.9} parent=31 // pred_fallthru
        _
    $region32: #{cnn_forward.9} parent=5 // pred_fallthru
      _
    %p641 = scmp.le.s32.totalorder 2, %s9
    // Predicated region
    $region37: #{cnn_forward.9} parent=5 // pred_check
      %p642 = pneg %p641
    $region38: #{cnn_forward.9} parent=5 // pred_check_branch
      %644 = sbr.rel (%p642) target = $region40
    $region39: #{cnn_forward.9} parent=5 // pred_region
      %s645 = ssub.s32 %s9, 2
      // Predicated region
      $region41: #{cnn_forward.9} parent=39 // pred_check
        %p646 = pneg %p106
      $region42: #{cnn_forward.9} parent=39 // pred_check_branch
        %648 = sbr.rel (%p646) target = $region44
      $region43: #{cnn_forward.9} parent=39 // pred_region
        %p649 = scmp.lt.s32.totalorder %s15, 1
        %s650 = scalar_select %p649, %s15, 1
        %s651 = smul.addr %s650, 5
        %s652 = smul.addr %s651, 4
        %s653 = scalar_lea.vmem %s3, %s652
      $region44: #{cnn_forward.9} parent=39 // pred_fallthru
        _
    $region40: #{cnn_forward.9} parent=5 // pred_fallthru
      _
  $region6: #{cnn_forward.9} parent=0 // loop_footer
    %s13 = sadd.s32 1, %s9
  $region7: #{cnn_forward.9} parent=0 // loop_footer_branch
    %8 = sbr.rel target = $region3
  $region8: #{cnn_forward.9} parent=0 // loop_exit
    _

// kernel: cnn_forward.11
$region0: #{cnn_forward.11}
  #allocation0 [shape = 'u32[]', space=smem, size = 0x4, offset = 0x4, fixed_abs, tag = 'smem constant byte address 0x4 - core index']
  #allocation1 [shape = 'u32[144,128]{1,0:T(1,128)}', space=vmem, size = 0x12000, scoped, tag = 'internal scratch']
  %s0 = inlined_call_operand.vmem [shape: bf16[8,256], index: 0, kind: input, shape index: {}]
  %s1 = inlined_call_operand.vmem [shape: bf16[256,7], index: 1, kind: input, shape index: {}]
  %s2 = inlined_call_operand.vmem [shape: f32[1,7], index: 2, kind: input, shape index: {}]
  %s3 = inlined_call_operand.vmem [shape: f32[8,7], index: 3, kind: output, shape index: {}]
  %s4 = sld [smem:[#allocation0]]
  $region22: #{cnn_forward.11} parent=0
    _
  %s6 = ssub.s32 1, %s4
  %s7 = scalar_select 0, %s6, %s4
  // Predicated region
  $region2: #{cnn_forward.11} parent=0 // pred_check
    _
  $region3: #{cnn_forward.11} parent=0 // pred_check_branch
    %9 = sbr.rel (0) target = $region5
  $region4: #{cnn_forward.11} parent=0 // pred_region
    _
  $region5: #{cnn_forward.11} parent=0 // pred_fallthru
    _
  // Predicated region
  $region6: #{cnn_forward.11} parent=0 // pred_check
    _
  $region7: #{cnn_forward.11} parent=0 // pred_check_branch
    %11 = sbr.rel (0) target = $region9
  $region8: #{cnn_forward.11} parent=0 // pred_region
    _
  $region9: #{cnn_forward.11} parent=0 // pred_fallthru
    _
  // Predicated region
  $region10: #{cnn_forward.11} parent=0 // pred_check
    _
  $region11: #{cnn_forward.11} parent=0 // pred_check_branch
    %13 = sbr.rel (0) target = $region13
  $region12: #{cnn_forward.11} parent=0 // pred_region
    _
  $region13: #{cnn_forward.11} parent=0 // pred_fallthru
    _
  %v15 = vld [vmem:[%s0] sm:$0xff]
  %v16 = vld [vmem:[%s1] sm:$0xf]
  %v17 = vld [vmem:[%s1 + $0x4] sm:$0xf]
  %v18 = vld [vmem:[%s1 + $0x8] sm:$0xf]
  %v19 = vld [vmem:[%s1 + $0xc] sm:$0xf]
  %v20 = vld [vmem:[%s1 + $0x10] sm:$0xf]
  %v21 = vld [vmem:[%s1 + $0x14] sm:$0xf]
  %v22 = vld [vmem:[%s1 + $0x18] sm:$0xf]
  %v23 = vld [vmem:[%s1 + $0x1c] sm:$0xf]
  %v24 = vld [vmem:[%s1 + $0x20] sm:$0xf]
  %v25 = vld [vmem:[%s1 + $0x24] sm:$0xf]
  %v26 = vld [vmem:[%s1 + $0x28] sm:$0xf]
  %v27 = vld [vmem:[%s1 + $0x2c] sm:$0xf]
  %v28 = vld [vmem:[%s1 + $0x30] sm:$0xf]
  %v29 = vld [vmem:[%s1 + $0x34] sm:$0xf]
  %v30 = vld [vmem:[%s1 + $0x38] sm:$0xf]
  %v31 = vld [vmem:[%s1 + $0x3c] sm:$0xf]
  %v32 = vld [vmem:[%s1 + $0x40] sm:$0xf]
  %v33 = vld [vmem:[%s1 + $0x44] sm:$0xf]
  %v34 = vld [vmem:[%s1 + $0x48] sm:$0xf]
  %v35 = vld [vmem:[%s1 + $0x4c] sm:$0xf]
  %v36 = vld [vmem:[%s1 + $0x50] sm:$0xf]
  %v37 = vld [vmem:[%s1 + $0x54] sm:$0xf]
  %v38 = vld [vmem:[%s1 + $0x58] sm:$0xf]
  %v39 = vld [vmem:[%s1 + $0x5c] sm:$0xf]
  %v40 = vld [vmem:[%s1 + $0x60] sm:$0xf]
  %v41 = vld [vmem:[%s1 + $0x64] sm:$0xf]
  %v42 = vld [vmem:[%s1 + $0x68] sm:$0xf]
  %v43 = vld [vmem:[%s1 + $0x6c] sm:$0xf]
  %v44 = vld [vmem:[%s1 + $0x70] sm:$0xf]
  %v45 = vld [vmem:[%s1 + $0x74] sm:$0xf]
  %v46 = vld [vmem:[%s1 + $0x78] sm:$0xf]
  %v47 = vld [vmem:[%s1 + $0x7c] sm:$0xf]
  %v48 = vld [vmem:[%s2] sm:$0x1]
  %v50 = vlaneseq
  %v51 = vshrl.u32 %v50, 7
  %v52 = vsub.s32 0, %v51
  %v53 = vrot.slane %v48, %v52
  %v56 = vunpack.c.l.b16 %v15
  %v57 = vunpack.c.h.b16 %v15
  %v58 = vpack.c.b16 %v56, %v56
  %v59 = vpack.c.b16 %v57, %v57
  %v94 = vunpack.c.l.b16 %v16
  %v95 = vunpack.c.l.b16 %v17
  %v96 = vunpack.c.l.b16 %v18
  %v97 = vunpack.c.l.b16 %v19
  %v98 = vunpack.c.l.b16 %v20
  %v99 = vunpack.c.l.b16 %v21
  %v100 = vunpack.c.l.b16 %v22
  %v101 = vunpack.c.l.b16 %v23
  %v102 = vunpack.c.l.b16 %v24
  %v103 = vunpack.c.l.b16 %v25
  %v104 = vunpack.c.l.b16 %v26
  %v105 = vunpack.c.l.b16 %v27
  %v106 = vunpack.c.l.b16 %v28
  %v107 = vunpack.c.l.b16 %v29
  %v108 = vunpack.c.l.b16 %v30
  %v109 = vunpack.c.l.b16 %v31
  %v110 = vunpack.c.l.b16 %v32
  %v111 = vunpack.c.l.b16 %v33
  %v112 = vunpack.c.l.b16 %v34
  %v113 = vunpack.c.l.b16 %v35
  %v114 = vunpack.c.l.b16 %v36
  %v115 = vunpack.c.l.b16 %v37
  %v116 = vunpack.c.l.b16 %v38
  %v117 = vunpack.c.l.b16 %v39
  %v118 = vunpack.c.l.b16 %v40
  %v119 = vunpack.c.l.b16 %v41
  %v120 = vunpack.c.l.b16 %v42
  %v121 = vunpack.c.l.b16 %v43
  %v122 = vunpack.c.l.b16 %v44
  %v123 = vunpack.c.l.b16 %v45
  %v124 = vunpack.c.l.b16 %v46
  %v125 = vunpack.c.l.b16 %v47
  %v126 = vpack.c.b16 %v95, %v94
  %v127 = vpack.c.b16 %v97, %v96
  %v128 = vpack.c.b16 %v99, %v98
  %v129 = vpack.c.b16 %v101, %v100
  %v130 = vpack.c.b16 %v103, %v102
  %v131 = vpack.c.b16 %v105, %v104
  %v132 = vpack.c.b16 %v107, %v106
  %v133 = vpack.c.b16 %v109, %v108
  %v134 = vpack.c.b16 %v111, %v110
  %v135 = vpack.c.b16 %v113, %v112
  %v136 = vpack.c.b16 %v115, %v114
  %v137 = vpack.c.b16 %v117, %v116
  %v138 = vpack.c.b16 %v119, %v118
  %v139 = vpack.c.b16 %v121, %v120
  %v140 = vpack.c.b16 %v123, %v122
  %v141 = vpack.c.b16 %v125, %v124
  %158 = vmatprep.subr.bf16.mxu0 0
  %159 = vmatpush1.bf16.msra.mxu0 %v126
  %160 = vmatprep.subr.bf16.mxu0 0
  %161 = vmatpush1.bf16.msra.mxu0 %v127
  %162 = vmatprep.subr.bf16.mxu0 0
  %163 = vmatpush1.bf16.msra.mxu0 %v128
  %164 = vmatprep.subr.bf16.mxu0 0
  %165 = vmatpush1.bf16.msra.mxu0 %v129
  %166 = vmatprep.subr.bf16.mxu0 0
  %167 = vmatpush1.bf16.msra.mxu0 %v130
  %168 = vmatprep.subr.bf16.mxu0 0
  %169 = vmatpush1.bf16.msra.mxu0 %v131
  %170 = vmatprep.subr.bf16.mxu0 0
  %171 = vmatpush1.bf16.msra.mxu0 %v132
  %172 = vmatprep.subr.bf16.mxu0 0
  %173 = vmatpush1.bf16.msra.mxu0 %v133
  %174 = vmatprep.subr.bf16.mxu0 0
  %175 = vmatpush1.bf16.msra.mxu0 %v134
  %176 = vmatprep.subr.bf16.mxu0 0
  %177 = vmatpush1.bf16.msra.mxu0 %v135
  %178 = vmatprep.subr.bf16.mxu0 0
  %179 = vmatpush1.bf16.msra.mxu0 %v136
  %180 = vmatprep.subr.bf16.mxu0 0
  %181 = vmatpush1.bf16.msra.mxu0 %v137
  %182 = vmatprep.subr.bf16.mxu0 0
  %183 = vmatpush1.bf16.msra.mxu0 %v138
  %184 = vmatprep.subr.bf16.mxu0 0
  %185 = vmatpush1.bf16.msra.mxu0 %v139
  %186 = vmatprep.subr.bf16.mxu0 0
  %187 = vmatpush1.bf16.msra.mxu0 %v140
  %188 = vmatprep.subr.bf16.mxu0 0
  %189 = vmatpush1.bf16.msra.mxu0 %v141
  %190 = vmatprep.mubr.bf16.mxu0 %v59
  %191 = vmatmul.mubr.bf16.gmra.mrb[0].mxu0 %v58
  %v192 = vpop.f32.mrb[0].mxu0
  %v193 = vadd.f32 %v53, %v192
  %v194 = vpop.f32.mrb[0].mxu0
  %v195 = vpop.f32.mrb[0].mxu0
  %v196 = vpop.f32.mrb[0].mxu0
  %197 = vdwg.mxu0
  %vm198 = vcmask 56320
  %199 = vst.msk [vmem:[%s3] sm:$0xff] %vm198, %v193
  // Predicated region
  $region14: #{cnn_forward.11} parent=0 // pred_check
    _
  $region15: #{cnn_forward.11} parent=0 // pred_check_branch
    %201 = sbr.rel (0) target = $region17
  $region16: #{cnn_forward.11} parent=0 // pred_region
    _
  $region17: #{cnn_forward.11} parent=0 // pred_fallthru
    _
  // Predicated region
  $region18: #{cnn_forward.11} parent=0 // pred_check
    _
  $region19: #{cnn_forward.11} parent=0 // pred_check_branch
    %203 = sbr.rel (0) target = $region21
  $region20: #{cnn_forward.11} parent=0 // pred_region
    _
  $region21: #{cnn_forward.11} parent=0 // pred_fallthru
    _

// kernel: cnn_forward.10
$region0: #{cnn_forward.10}
  #allocation0 [shape = 'u32[]', space=smem, size = 0x4, offset = 0x4, fixed_abs, tag = 'smem constant byte address 0x4 - core index']
  #allocation1 [shape = 'u32[144,128]{1,0:T(1,128)}', space=vmem, size = 0x12000, scoped, tag = 'internal scratch']
  %s0 = inlined_call_operand.vmem [shape: bf16[8,4608], index: 0, kind: input, shape index: {}]
  %s1 = inlined_call_operand.vmem [shape: bf16[4608,256], index: 1, kind: input, shape index: {}]
  %s2 = inlined_call_operand.vmem [shape: f32[1,256], index: 2, kind: input, shape index: {}]
  %s3 = inlined_call_operand.vmem [shape: bf16[8,256], index: 3, kind: output, shape index: {}]
  %s4 = sld [smem:[#allocation0]]
  $region22: #{cnn_forward.10} parent=0
    _
  %s6 = ssub.s32 1, %s4
  %s7 = scalar_select 0, %s6, %s4
  // Predicated region
  $region2: #{cnn_forward.10} parent=0 // pred_check
    _
  $region3: #{cnn_forward.10} parent=0 // pred_check_branch
    %9 = sbr.rel (0) target = $region5
  $region4: #{cnn_forward.10} parent=0 // pred_region
    _
  $region5: #{cnn_forward.10} parent=0 // pred_fallthru
    _
  // Predicated region
  $region6: #{cnn_forward.10} parent=0 // pred_check
    _
  $region7: #{cnn_forward.10} parent=0 // pred_check_branch
    %11 = sbr.rel (0) target = $region9
  $region8: #{cnn_forward.10} parent=0 // pred_region
    _
  $region9: #{cnn_forward.10} parent=0 // pred_fallthru
    _
  // Predicated region
  $region10: #{cnn_forward.10} parent=0 // pred_check
    _
  $region11: #{cnn_forward.10} parent=0 // pred_check_branch
    %13 = sbr.rel (0) target = $region13
  $region12: #{cnn_forward.10} parent=0 // pred_region
    _
  $region13: #{cnn_forward.10} parent=0 // pred_fallthru
    _
  %v14 = vld [vmem:[%s0] sm:$0xff]
  %v15 = vld [vmem:[%s0 + $0x8] sm:$0xff]
  %v16 = vld [vmem:[%s0 + $0x10] sm:$0xff]
  %v17 = vld [vmem:[%s0 + $0x18] sm:$0xff]
  %v18 = vld [vmem:[%s0 + $0x20] sm:$0xff]
  %v19 = vld [vmem:[%s0 + $0x28] sm:$0xff]
  %v20 = vld [vmem:[%s0 + $0x30] sm:$0xff]
  %v21 = vld [vmem:[%s0 + $0x38] sm:$0xff]
  %v22 = vld [vmem:[%s0 + $0x40] sm:$0xff]
  %v23 = vld [vmem:[%s0 + $0x48] sm:$0xff]
  %v24 = vld [vmem:[%s0 + $0x50] sm:$0xff]
  %v25 = vld [vmem:[%s0 + $0x58] sm:$0xff]
  %v26 = vld [vmem:[%s0 + $0x60] sm:$0xff]
  %v27 = vld [vmem:[%s0 + $0x68] sm:$0xff]
  %v28 = vld [vmem:[%s0 + $0x70] sm:$0xff]
  %v29 = vld [vmem:[%s0 + $0x78] sm:$0xff]
  %v30 = vld [vmem:[%s0 + $0x80] sm:$0xff]
  %v31 = vld [vmem:[%s0 + $0x88] sm:$0xff]
  %v32 = vld [vmem:[%s1] sm:$0xff]
  %v33 = vld [vmem:[%s1 + $0x8] sm:$0xff]
  %v34 = vld [vmem:[%s1 + $0x10] sm:$0xff]
  %v35 = vld [vmem:[%s1 + $0x18] sm:$0xff]
  %v36 = vld [vmem:[%s1 + $0x20] sm:$0xff]
  %v37 = vld [vmem:[%s1 + $0x28] sm:$0xff]
  %v38 = vld [vmem:[%s1 + $0x30] sm:$0xff]
  %v39 = vld [vmem:[%s1 + $0x38] sm:$0xff]
  %v40 = vld [vmem:[%s1 + $0x40] sm:$0xff]
  %v41 = vld [vmem:[%s1 + $0x48] sm:$0xff]
  %v42 = vld [vmem:[%s1 + $0x50] sm:$0xff]
  %v43 = vld [vmem:[%s1 + $0x58] sm:$0xff]
  %v44 = vld [vmem:[%s1 + $0x60] sm:$0xff]
  %v45 = vld [vmem:[%s1 + $0x68] sm:$0xff]
  %v46 = vld [vmem:[%s1 + $0x70] sm:$0xff]
  %v47 = vld [vmem:[%s1 + $0x78] sm:$0xff]
  %v48 = vld [vmem:[%s1 + $0x80] sm:$0xff]
  %v49 = vld [vmem:[%s1 + $0x88] sm:$0xff]
  %v50 = vld [vmem:[%s1 + $0x90] sm:$0xff]
  %v51 = vld [vmem:[%s1 + $0x98] sm:$0xff]
  %v52 = vld [vmem:[%s1 + $0xa0] sm:$0xff]
  %v53 = vld [vmem:[%s1 + $0xa8] sm:$0xff]
  %v54 = vld [vmem:[%s1 + $0xb0] sm:$0xff]
  %v55 = vld [vmem:[%s1 + $0xb8] sm:$0xff]
  %v56 = vld [vmem:[%s1 + $0xc0] sm:$0xff]
  %v57 = vld [vmem:[%s1 + $0xc8] sm:$0xff]
  %v58 = vld [vmem:[%s1 + $0xd0] sm:$0xff]
  %v59 = vld [vmem:[%s1 + $0xd8] sm:$0xff]
  %v60 = vld [vmem:[%s1 + $0xe0] sm:$0xff]
  %v61 = vld [vmem:[%s1 + $0xe8] sm:$0xff]
  %v62 = vld [vmem:[%s1 + $0xf0] sm:$0xff]
  %v63 = vld [vmem:[%s1 + $0xf8] sm:$0xff]
  %v64 = vld [vmem:[%s1 + $0x100] sm:$0xff]
  %v65 = vld [vmem:[%s1 + $0x108] sm:$0xff]
  %v66 = vld [vmem:[%s1 + $0x110] sm:$0xff]
  %v67 = vld [vmem:[%s1 + $0x118] sm:$0xff]
  %v68 = vld [vmem:[%s1 + $0x120] sm:$0xff]
  %v69 = vld [vmem:[%s1 + $0x128] sm:$0xff]
  %v70 = vld [vmem:[%s1 + $0x130] sm:$0xff]
  %v71 = vld [vmem:[%s1 + $0x138] sm:$0xff]
  %v72 = vld [vmem:[%s1 + $0x140] sm:$0xff]
  %v73 = vld [vmem:[%s1 + $0x148] sm:$0xff]
  %v74 = vld [vmem:[%s1 + $0x150] sm:$0xff]
  %v75 = vld [vmem:[%s1 + $0x158] sm:$0xff]
  %v76 = vld [vmem:[%s1 + $0x160] sm:$0xff]
  %v77 = vld [vmem:[%s1 + $0x168] sm:$0xff]
  %v78 = vld [vmem:[%s1 + $0x170] sm:$0xff]
  %v79 = vld [vmem:[%s1 + $0x178] sm:$0xff]
  %v80 = vld [vmem:[%s1 + $0x180] sm:$0xff]
  %v81 = vld [vmem:[%s1 + $0x188] sm:$0xff]
  %v82 = vld [vmem:[%s1 + $0x190] sm:$0xff]
  %v83 = vld [vmem:[%s1 + $0x198] sm:$0xff]
  %v84 = vld [vmem:[%s1 + $0x1a0] sm:$0xff]
  %v85 = vld [vmem:[%s1 + $0x1a8] sm:$0xff]
  %v86 = vld [vmem:[%s1 + $0x1b0] sm:$0xff]
  %v87 = vld [vmem:[%s1 + $0x1b8] sm:$0xff]
  %v88 = vld [vmem:[%s1 + $0x1c0] sm:$0xff]
  %v89 = vld [vmem:[%s1 + $0x1c8] sm:$0xff]
  %v90 = vld [vmem:[%s1 + $0x1d0] sm:$0xff]
  %v91 = vld [vmem:[%s1 + $0x1d8] sm:$0xff]
  %v92 = vld [vmem:[%s1 + $0x1e0] sm:$0xff]
  %v93 = vld [vmem:[%s1 + $0x1e8] sm:$0xff]
  %v94 = vld [vmem:[%s1 + $0x1f0] sm:$0xff]
  %v95 = vld [vmem:[%s1 + $0x1f8] sm:$0xff]
  %v96 = vld [vmem:[%s1 + $0x200] sm:$0xff]
  %v97 = vld [vmem:[%s1 + $0x208] sm:$0xff]
  %v98 = vld [vmem:[%s1 + $0x210] sm:$0xff]
  %v99 = vld [vmem:[%s1 + $0x218] sm:$0xff]
  %v100 = vld [vmem:[%s1 + $0x220] sm:$0xff]
  %v101 = vld [vmem:[%s1 + $0x228] sm:$0xff]
  %v102 = vld [vmem:[%s1 + $0x230] sm:$0xff]
  %v103 = vld [vmem:[%s1 + $0x238] sm:$0xff]
  %v104 = vld [vmem:[%s1 + $0x240] sm:$0xff]
  %v105 = vld [vmem:[%s1 + $0x248] sm:$0xff]
  %v106 = vld [vmem:[%s1 + $0x250] sm:$0xff]
  %v107 = vld [vmem:[%s1 + $0x258] sm:$0xff]
  %v108 = vld [vmem:[%s1 + $0x260] sm:$0xff]
  %v109 = vld [vmem:[%s1 + $0x268] sm:$0xff]
  %v110 = vld [vmem:[%s1 + $0x270] sm:$0xff]
  %v111 = vld [vmem:[%s1 + $0x278] sm:$0xff]
  %v112 = vld [vmem:[%s1 + $0x280] sm:$0xff]
  %v113 = vld [vmem:[%s1 + $0x288] sm:$0xff]
  %v114 = vld [vmem:[%s1 + $0x290] sm:$0xff]
  %v115 = vld [vmem:[%s1 + $0x298] sm:$0xff]
  %v116 = vld [vmem:[%s1 + $0x2a0] sm:$0xff]
  %v117 = vld [vmem:[%s1 + $0x2a8] sm:$0xff]
  %v118 = vld [vmem:[%s1 + $0x2b0] sm:$0xff]
  %v119 = vld [vmem:[%s1 + $0x2b8] sm:$0xff]
  %v120 = vld [vmem:[%s1 + $0x2c0] sm:$0xff]
  %v121 = vld [vmem:[%s1 + $0x2c8] sm:$0xff]
  %v122 = vld [vmem:[%s1 + $0x2d0] sm:$0xff]
  %v123 = vld [vmem:[%s1 + $0x2d8] sm:$0xff]
  %v124 = vld [vmem:[%s1 + $0x2e0] sm:$0xff]
  %v125 = vld [vmem:[%s1 + $0x2e8] sm:$0xff]
  %v126 = vld [vmem:[%s1 + $0x2f0] sm:$0xff]
  %v127 = vld [vmem:[%s1 + $0x2f8] sm:$0xff]
  %v128 = vld [vmem:[%s1 + $0x300] sm:$0xff]
  %v129 = vld [vmem:[%s1 + $0x308] sm:$0xff]
  %v130 = vld [vmem:[%s1 + $0x310] sm:$0xff]
  %v131 = vld [vmem:[%s1 + $0x318] sm:$0xff]
  %v132 = vld [vmem:[%s1 + $0x320] sm:$0xff]
  %v133 = vld [vmem:[%s1 + $0x328] sm:$0xff]
  %v134 = vld [vmem:[%s1 + $0x330] sm:$0xff]
  %v135 = vld [vmem:[%s1 + $0x338] sm:$0xff]
  %v136 = vld [vmem:[%s1 + $0x340] sm:$0xff]
  %v137 = vld [vmem:[%s1 + $0x348] sm:$0xff]
  %v138 = vld [vmem:[%s1 + $0x350] sm:$0xff]
  %v139 = vld [vmem:[%s1 + $0x358] sm:$0xff]
  %v140 = vld [vmem:[%s1 + $0x360] sm:$0xff]
  %v141 = vld [vmem:[%s1 + $0x368] sm:$0xff]
  %v142 = vld [vmem:[%s1 + $0x370] sm:$0xff]
  %v143 = vld [vmem:[%s1 + $0x378] sm:$0xff]
  %v144 = vld [vmem:[%s1 + $0x380] sm:$0xff]
  %v145 = vld [vmem:[%s1 + $0x388] sm:$0xff]
  %v146 = vld [vmem:[%s1 + $0x390] sm:$0xff]
  %v147 = vld [vmem:[%s1 + $0x398] sm:$0xff]
  %v148 = vld [vmem:[%s1 + $0x3a0] sm:$0xff]
  %v149 = vld [vmem:[%s1 + $0x3a8] sm:$0xff]
  %v150 = vld [vmem:[%s1 + $0x3b0] sm:$0xff]
  %v151 = vld [vmem:[%s1 + $0x3b8] sm:$0xff]
  %v152 = vld [vmem:[%s1 + $0x3c0] sm:$0xff]
  %v153 = vld [vmem:[%s1 + $0x3c8] sm:$0xff]
  %v154 = vld [vmem:[%s1 + $0x3d0] sm:$0xff]
  %v155 = vld [vmem:[%s1 + $0x3d8] sm:$0xff]
  %v156 = vld [vmem:[%s1 + $0x3e0] sm:$0xff]
  %v157 = vld [vmem:[%s1 + $0x3e8] sm:$0xff]
  %v158 = vld [vmem:[%s1 + $0x3f0] sm:$0xff]
  %v159 = vld [vmem:[%s1 + $0x3f8] sm:$0xff]
  %v160 = vld [vmem:[%s1 + $0x400] sm:$0xff]
  %v161 = vld [vmem:[%s1 + $0x408] sm:$0xff]
  %v162 = vld [vmem:[%s1 + $0x410] sm:$0xff]
  %v163 = vld [vmem:[%s1 + $0x418] sm:$0xff]
  %v164 = vld [vmem:[%s1 + $0x420] sm:$0xff]
  %v165 = vld [vmem:[%s1 + $0x428] sm:$0xff]
  %v166 = vld [vmem:[%s1 + $0x430] sm:$0xff]
  %v167 = vld [vmem:[%s1 + $0x438] sm:$0xff]
  %v168 = vld [vmem:[%s1 + $0x440] sm:$0xff]
  %v169 = vld [vmem:[%s1 + $0x448] sm:$0xff]
  %v170 = vld [vmem:[%s1 + $0x450] sm:$0xff]
  %v171 = vld [vmem:[%s1 + $0x458] sm:$0xff]
  %v172 = vld [vmem:[%s1 + $0x460] sm:$0xff]
  %v173 = vld [vmem:[%s1 + $0x468] sm:$0xff]
  %v174 = vld [vmem:[%s1 + $0x470] sm:$0xff]
  %v175 = vld [vmem:[%s1 + $0x478] sm:$0xff]
  %v176 = vld [vmem:[%s1 + $0x480] sm:$0xff]
  %v177 = vld [vmem:[%s1 + $0x488] sm:$0xff]
  %v178 = vld [vmem:[%s1 + $0x490] sm:$0xff]
  %v179 = vld [vmem:[%s1 + $0x498] sm:$0xff]
  %v180 = vld [vmem:[%s1 + $0x4a0] sm:$0xff]
  %v181 = vld [vmem:[%s1 + $0x4a8] sm:$0xff]
  %v182 = vld [vmem:[%s1 + $0x4b0] sm:$0xff]
  %v183 = vld [vmem:[%s1 + $0x4b8] sm:$0xff]
  %v184 = vld [vmem:[%s1 + $0x4c0] sm:$0xff]
  %v185 = vld [vmem:[%s1 + $0x4c8] sm:$0xff]
  %v186 = vld [vmem:[%s1 + $0x4d0] sm:$0xff]
  %v187 = vld [vmem:[%s1 + $0x4d8] sm:$0xff]
  %v188 = vld [vmem:[%s1 + $0x4e0] sm:$0xff]
  %v189 = vld [vmem:[%s1 + $0x4e8] sm:$0xff]
  %v190 = vld [vmem:[%s1 + $0x4f0] sm:$0xff]
  %v191 = vld [vmem:[%s1 + $0x4f8] sm:$0xff]
  %v192 = vld [vmem:[%s1 + $0x500] sm:$0xff]
  %v193 = vld [vmem:[%s1 + $0x508] sm:$0xff]
  %v194 = vld [vmem:[%s1 + $0x510] sm:$0xff]
  %v195 = vld [vmem:[%s1 + $0x518] sm:$0xff]
  %v196 = vld [vmem:[%s1 + $0x520] sm:$0xff]
  %v197 = vld [vmem:[%s1 + $0x528] sm:$0xff]
  %v198 = vld [vmem:[%s1 + $0x530] sm:$0xff]
  %v199 = vld [vmem:[%s1 + $0x538] sm:$0xff]
  %v200 = vld [vmem:[%s1 + $0x540] sm:$0xff]
  %v201 = vld [vmem:[%s1 + $0x548] sm:$0xff]
  %v202 = vld [vmem:[%s1 + $0x550] sm:$0xff]
  %v203 = vld [vmem:[%s1 + $0x558] sm:$0xff]
  %v204 = vld [vmem:[%s1 + $0x560] sm:$0xff]
  %v205 = vld [vmem:[%s1 + $0x568] sm:$0xff]
  %v206 = vld [vmem:[%s1 + $0x570] sm:$0xff]
  %v207 = vld [vmem:[%s1 + $0x578] sm:$0xff]
  %v208 = vld [vmem:[%s1 + $0x580] sm:$0xff]
  %v209 = vld [vmem:[%s1 + $0x588] sm:$0xff]
  %v210 = vld [vmem:[%s1 + $0x590] sm:$0xff]
  %v211 = vld [vmem:[%s1 + $0x598] sm:$0xff]
  %v212 = vld [vmem:[%s1 + $0x5a0] sm:$0xff]
  %v213 = vld [vmem:[%s1 + $0x5a8] sm:$0xff]
  %v214 = vld [vmem:[%s1 + $0x5b0] sm:$0xff]
  %v215 = vld [vmem:[%s1 + $0x5b8] sm:$0xff]
  %v216 = vld [vmem:[%s1 + $0x5c0] sm:$0xff]
  %v217 = vld [vmem:[%s1 + $0x5c8] sm:$0xff]
  %v218 = vld [vmem:[%s1 + $0x5d0] sm:$0xff]
  %v219 = vld [vmem:[%s1 + $0x5d8] sm:$0xff]
  %v220 = vld [vmem:[%s1 + $0x5e0] sm:$0xff]
  %v221 = vld [vmem:[%s1 + $0x5e8] sm:$0xff]
  %v222 = vld [vmem:[%s1 + $0x5f0] sm:$0xff]
  %v223 = vld [vmem:[%s1 + $0x5f8] sm:$0xff]
  %v224 = vld [vmem:[%s1 + $0x600] sm:$0xff]
  %v225 = vld [vmem:[%s1 + $0x608] sm:$0xff]
  %v226 = vld [vmem:[%s1 + $0x610] sm:$0xff]
  %v227 = vld [vmem:[%s1 + $0x618] sm:$0xff]
  %v228 = vld [vmem:[%s1 + $0x620] sm:$0xff]
  %v229 = vld [vmem:[%s1 + $0x628] sm:$0xff]
  %v230 = vld [vmem:[%s1 + $0x630] sm:$0xff]
  %v231 = vld [vmem:[%s1 + $0x638] sm:$0xff]
  %v232 = vld [vmem:[%s1 + $0x640] sm:$0xff]
  %v233 = vld [vmem:[%s1 + $0x648] sm:$0xff]
  %v234 = vld [vmem:[%s1 + $0x650] sm:$0xff]
  %v235 = vld [vmem:[%s1 + $0x658] sm:$0xff]
  %v236 = vld [vmem:[%s1 + $0x660] sm:$0xff]
  %v237 = vld [vmem:[%s1 + $0x668] sm:$0xff]
  %v238 = vld [vmem:[%s1 + $0x670] sm:$0xff]
  %v239 = vld [vmem:[%s1 + $0x678] sm:$0xff]
  %v240 = vld [vmem:[%s1 + $0x680] sm:$0xff]
  %v241 = vld [vmem:[%s1 + $0x688] sm:$0xff]
  %v242 = vld [vmem:[%s1 + $0x690] sm:$0xff]
  %v243 = vld [vmem:[%s1 + $0x698] sm:$0xff]
  %v244 = vld [vmem:[%s1 + $0x6a0] sm:$0xff]
  %v245 = vld [vmem:[%s1 + $0x6a8] sm:$0xff]
  %v246 = vld [vmem:[%s1 + $0x6b0] sm:$0xff]
  %v247 = vld [vmem:[%s1 + $0x6b8] sm:$0xff]
  %v248 = vld [vmem:[%s1 + $0x6c0] sm:$0xff]
  %v249 = vld [vmem:[%s1 + $0x6c8] sm:$0xff]
  %v250 = vld [vmem:[%s1 + $0x6d0] sm:$0xff]
  %v251 = vld [vmem:[%s1 + $0x6d8] sm:$0xff]
  %v252 = vld [vmem:[%s1 + $0x6e0] sm:$0xff]
  %v253 = vld [vmem:[%s1 + $0x6e8] sm:$0xff]
  %v254 = vld [vmem:[%s1 + $0x6f0] sm:$0xff]
  %v255 = vld [vmem:[%s1 + $0x6f8] sm:$0xff]
  %v256 = vld [vmem:[%s1 + $0x700] sm:$0xff]
  %v257 = vld [vmem:[%s1 + $0x708] sm:$0xff]
  %v258 = vld [vmem:[%s1 + $0x710] sm:$0xff]
  %v259 = vld [vmem:[%s1 + $0x718] sm:$0xff]
  %v260 = vld [vmem:[%s1 + $0x720] sm:$0xff]
  %v261 = vld [vmem:[%s1 + $0x728] sm:$0xff]
  %v262 = vld [vmem:[%s1 + $0x730] sm:$0xff]
  %v263 = vld [vmem:[%s1 + $0x738] sm:$0xff]
  %v264 = vld [vmem:[%s1 + $0x740] sm:$0xff]
  %v265 = vld [vmem:[%s1 + $0x748] sm:$0xff]
  %v266 = vld [vmem:[%s1 + $0x750] sm:$0xff]
  %v267 = vld [vmem:[%s1 + $0x758] sm:$0xff]
  %v268 = vld [vmem:[%s1 + $0x760] sm:$0xff]
  %v269 = vld [vmem:[%s1 + $0x768] sm:$0xff]
  %v270 = vld [vmem:[%s1 + $0x770] sm:$0xff]
  %v271 = vld [vmem:[%s1 + $0x778] sm:$0xff]
  %v272 = vld [vmem:[%s1 + $0x780] sm:$0xff]
  %v273 = vld [vmem:[%s1 + $0x788] sm:$0xff]
  %v274 = vld [vmem:[%s1 + $0x790] sm:$0xff]
  %v275 = vld [vmem:[%s1 + $0x798] sm:$0xff]
  %v276 = vld [vmem:[%s1 + $0x7a0] sm:$0xff]
  %v277 = vld [vmem:[%s1 + $0x7a8] sm:$0xff]
  %v278 = vld [vmem:[%s1 + $0x7b0] sm:$0xff]
  %v279 = vld [vmem:[%s1 + $0x7b8] sm:$0xff]
  %v280 = vld [vmem:[%s1 + $0x7c0] sm:$0xff]
  %v281 = vld [vmem:[%s1 + $0x7c8] sm:$0xff]
  %v282 = vld [vmem:[%s1 + $0x7d0] sm:$0xff]
  %v283 = vld [vmem:[%s1 + $0x7d8] sm:$0xff]
  %v284 = vld [vmem:[%s1 + $0x7e0] sm:$0xff]
  %v285 = vld [vmem:[%s1 + $0x7e8] sm:$0xff]
  %v286 = vld [vmem:[%s1 + $0x7f0] sm:$0xff]
  %v287 = vld [vmem:[%s1 + $0x7f8] sm:$0xff]
  %v288 = vld [vmem:[%s1 + $0x800] sm:$0xff]
  %v289 = vld [vmem:[%s1 + $0x808] sm:$0xff]
  %v290 = vld [vmem:[%s1 + $0x810] sm:$0xff]
  %v291 = vld [vmem:[%s1 + $0x818] sm:$0xff]
  %v292 = vld [vmem:[%s1 + $0x820] sm:$0xff]
  %v293 = vld [vmem:[%s1 + $0x828] sm:$0xff]
  %v294 = vld [vmem:[%s1 + $0x830] sm:$0xff]
  %v295 = vld [vmem:[%s1 + $0x838] sm:$0xff]
  %v296 = vld [vmem:[%s1 + $0x840] sm:$0xff]
  %v297 = vld [vmem:[%s1 + $0x848] sm:$0xff]
  %v298 = vld [vmem:[%s1 + $0x850] sm:$0xff]
  %v299 = vld [vmem:[%s1 + $0x858] sm:$0xff]
  %v300 = vld [vmem:[%s1 + $0x860] sm:$0xff]
  %v301 = vld [vmem:[%s1 + $0x868] sm:$0xff]
  %v302 = vld [vmem:[%s1 + $0x870] sm:$0xff]
  %v303 = vld [vmem:[%s1 + $0x878] sm:$0xff]
  %v304 = vld [vmem:[%s1 + $0x880] sm:$0xff]
  %v305 = vld [vmem:[%s1 + $0x888] sm:$0xff]
  %v306 = vld [vmem:[%s1 + $0x890] sm:$0xff]
  %v307 = vld [vmem:[%s1 + $0x898] sm:$0xff]
  %v308 = vld [vmem:[%s1 + $0x8a0] sm:$0xff]
  %v309 = vld [vmem:[%s1 + $0x8a8] sm:$0xff]
  %v310 = vld [vmem:[%s1 + $0x8b0] sm:$0xff]
  %v311 = vld [vmem:[%s1 + $0x8b8] sm:$0xff]
  %v312 = vld [vmem:[%s1 + $0x8c0] sm:$0xff]
  %v313 = vld [vmem:[%s1 + $0x8c8] sm:$0xff]
  %v314 = vld [vmem:[%s1 + $0x8d0] sm:$0xff]
  %v315 = vld [vmem:[%s1 + $0x8d8] sm:$0xff]
  %v316 = vld [vmem:[%s1 + $0x8e0] sm:$0xff]
  %v317 = vld [vmem:[%s1 + $0x8e8] sm:$0xff]
  %v318 = vld [vmem:[%s1 + $0x8f0] sm:$0xff]
  %v319 = vld [vmem:[%s1 + $0x8f8] sm:$0xff]
  %v320 = vld [vmem:[%s1 + $0x900] sm:$0xff]
  %v321 = vld [vmem:[%s1 + $0x908] sm:$0xff]
  %v322 = vld [vmem:[%s1 + $0x910] sm:$0xff]
  %v323 = vld [vmem:[%s1 + $0x918] sm:$0xff]
  %v324 = vld [vmem:[%s1 + $0x920] sm:$0xff]
  %v325 = vld [vmem:[%s1 + $0x928] sm:$0xff]
  %v326 = vld [vmem:[%s1 + $0x930] sm:$0xff]
  %v327 = vld [vmem:[%s1 + $0x938] sm:$0xff]
  %v328 = vld [vmem:[%s1 + $0x940] sm:$0xff]
  %v329 = vld [vmem:[%s1 + $0x948] sm:$0xff]
  %v330 = vld [vmem:[%s1 + $0x950] sm:$0xff]
  %v331 = vld [vmem:[%s1 + $0x958] sm:$0xff]
  %v332 = vld [vmem:[%s1 + $0x960] sm:$0xff]
  %v333 = vld [vmem:[%s1 + $0x968] sm:$0xff]
  %v334 = vld [vmem:[%s1 + $0x970] sm:$0xff]
  %v335 = vld [vmem:[%s1 + $0x978] sm:$0xff]
  %v336 = vld [vmem:[%s1 + $0x980] sm:$0xff]
  %v337 = vld [vmem:[%s1 + $0x988] sm:$0xff]
  %v338 = vld [vmem:[%s1 + $0x990] sm:$0xff]
  %v339 = vld [vmem:[%s1 + $0x998] sm:$0xff]
  %v340 = vld [vmem:[%s1 + $0x9a0] sm:$0xff]
  %v341 = vld [vmem:[%s1 + $0x9a8] sm:$0xff]
  %v342 = vld [vmem:[%s1 + $0x9b0] sm:$0xff]
  %v343 = vld [vmem:[%s1 + $0x9b8] sm:$0xff]
  %v344 = vld [vmem:[%s1 + $0x9c0] sm:$0xff]
  %v345 = vld [vmem:[%s1 + $0x9c8] sm:$0xff]
  %v346 = vld [vmem:[%s1 + $0x9d0] sm:$0xff]
  %v347 = vld [vmem:[%s1 + $0x9d8] sm:$0xff]
  %v348 = vld [vmem:[%s1 + $0x9e0] sm:$0xff]
  %v349 = vld [vmem:[%s1 + $0x9e8] sm:$0xff]
  %v350 = vld [vmem:[%s1 + $0x9f0] sm:$0xff]
  %v351 = vld [vmem:[%s1 + $0x9f8] sm:$0xff]
  %v352 = vld [vmem:[%s1 + $0xa00] sm:$0xff]
  %v353 = vld [vmem:[%s1 + $0xa08] sm:$0xff]
  %v354 = vld [vmem:[%s1 + $0xa10] sm:$0xff]
  %v355 = vld [vmem:[%s1 + $0xa18] sm:$0xff]
  %v356 = vld [vmem:[%s1 + $0xa20] sm:$0xff]
  %v357 = vld [vmem:[%s1 + $0xa28] sm:$0xff]
  %v358 = vld [vmem:[%s1 + $0xa30] sm:$0xff]
  %v359 = vld [vmem:[%s1 + $0xa38] sm:$0xff]
  %v360 = vld [vmem:[%s1 + $0xa40] sm:$0xff]
  %v361 = vld [vmem:[%s1 + $0xa48] sm:$0xff]
  %v362 = vld [vmem:[%s1 + $0xa50] sm:$0xff]
  %v363 = vld [vmem:[%s1 + $0xa58] sm:$0xff]
  %v364 = vld [vmem:[%s1 + $0xa60] sm:$0xff]
  %v365 = vld [vmem:[%s1 + $0xa68] sm:$0xff]
  %v366 = vld [vmem:[%s1 + $0xa70] sm:$0xff]
  %v367 = vld [vmem:[%s1 + $0xa78] sm:$0xff]
  %v368 = vld [vmem:[%s1 + $0xa80] sm:$0xff]
  %v369 = vld [vmem:[%s1 + $0xa88] sm:$0xff]
  %v370 = vld [vmem:[%s1 + $0xa90] sm:$0xff]
  %v371 = vld [vmem:[%s1 + $0xa98] sm:$0xff]
  %v372 = vld [vmem:[%s1 + $0xaa0] sm:$0xff]
  %v373 = vld [vmem:[%s1 + $0xaa8] sm:$0xff]
  %v374 = vld [vmem:[%s1 + $0xab0] sm:$0xff]
  %v375 = vld [vmem:[%s1 + $0xab8] sm:$0xff]
  %v376 = vld [vmem:[%s1 + $0xac0] sm:$0xff]
  %v377 = vld [vmem:[%s1 + $0xac8] sm:$0xff]
  %v378 = vld [vmem:[%s1 + $0xad0] sm:$0xff]
  %v379 = vld [vmem:[%s1 + $0xad8] sm:$0xff]
  %v380 = vld [vmem:[%s1 + $0xae0] sm:$0xff]
  %v381 = vld [vmem:[%s1 + $0xae8] sm:$0xff]
  %v382 = vld [vmem:[%s1 + $0xaf0] sm:$0xff]
  %v383 = vld [vmem:[%s1 + $0xaf8] sm:$0xff]
  %v384 = vld [vmem:[%s1 + $0xb00] sm:$0xff]
  %v385 = vld [vmem:[%s1 + $0xb08] sm:$0xff]
  %v386 = vld [vmem:[%s1 + $0xb10] sm:$0xff]
  %v387 = vld [vmem:[%s1 + $0xb18] sm:$0xff]
  %v388 = vld [vmem:[%s1 + $0xb20] sm:$0xff]
  %v389 = vld [vmem:[%s1 + $0xb28] sm:$0xff]
  %v390 = vld [vmem:[%s1 + $0xb30] sm:$0xff]
  %v391 = vld [vmem:[%s1 + $0xb38] sm:$0xff]
  %v392 = vld [vmem:[%s1 + $0xb40] sm:$0xff]
  %v393 = vld [vmem:[%s1 + $0xb48] sm:$0xff]
  %v394 = vld [vmem:[%s1 + $0xb50] sm:$0xff]
  %v395 = vld [vmem:[%s1 + $0xb58] sm:$0xff]
  %v396 = vld [vmem:[%s1 + $0xb60] sm:$0xff]
  %v397 = vld [vmem:[%s1 + $0xb68] sm:$0xff]
  %v398 = vld [vmem:[%s1 + $0xb70] sm:$0xff]
  %v399 = vld [vmem:[%s1 + $0xb78] sm:$0xff]
  %v400 = vld [vmem:[%s1 + $0xb80] sm:$0xff]
  %v401 = vld [vmem:[%s1 + $0xb88] sm:$0xff]
  %v402 = vld [vmem:[%s1 + $0xb90] sm:$0xff]
  %v403 = vld [vmem:[%s1 + $0xb98] sm:$0xff]
  %v404 = vld [vmem:[%s1 + $0xba0] sm:$0xff]
  %v405 = vld [vmem:[%s1 + $0xba8] sm:$0xff]
  %v406 = vld [vmem:[%s1 + $0xbb0] sm:$0xff]
  %v407 = vld [vmem:[%s1 + $0xbb8] sm:$0xff]
  %v408 = vld [vmem:[%s1 + $0xbc0] sm:$0xff]
  %v409 = vld [vmem:[%s1 + $0xbc8] sm:$0xff]
  %v410 = vld [vmem:[%s1 + $0xbd0] sm:$0xff]
  %v411 = vld [vmem:[%s1 + $0xbd8] sm:$0xff]
  %v412 = vld [vmem:[%s1 + $0xbe0] sm:$0xff]
  %v413 = vld [vmem:[%s1 + $0xbe8] sm:$0xff]
  %v414 = vld [vmem:[%s1 + $0xbf0] sm:$0xff]
  %v415 = vld [vmem:[%s1 + $0xbf8] sm:$0xff]
  %v416 = vld [vmem:[%s1 + $0xc00] sm:$0xff]
  %v417 = vld [vmem:[%s1 + $0xc08] sm:$0xff]
  %v418 = vld [vmem:[%s1 + $0xc10] sm:$0xff]
  %v419 = vld [vmem:[%s1 + $0xc18] sm:$0xff]
  %v420 = vld [vmem:[%s1 + $0xc20] sm:$0xff]
  %v421 = vld [vmem:[%s1 + $0xc28] sm:$0xff]
  %v422 = vld [vmem:[%s1 + $0xc30] sm:$0xff]
  %v423 = vld [vmem:[%s1 + $0xc38] sm:$0xff]
  %v424 = vld [vmem:[%s1 + $0xc40] sm:$0xff]
  %v425 = vld [vmem:[%s1 + $0xc48] sm:$0xff]
  %v426 = vld [vmem:[%s1 + $0xc50] sm:$0xff]
  %v427 = vld [vmem:[%s1 + $0xc58] sm:$0xff]
  %v428 = vld [vmem:[%s1 + $0xc60] sm:$0xff]
  %v429 = vld [vmem:[%s1 + $0xc68] sm:$0xff]
  %v430 = vld [vmem:[%s1 + $0xc70] sm:$0xff]
  %v431 = vld [vmem:[%s1 + $0xc78] sm:$0xff]
  %v432 = vld [vmem:[%s1 + $0xc80] sm:$0xff]
  %v433 = vld [vmem:[%s1 + $0xc88] sm:$0xff]
  %v434 = vld [vmem:[%s1 + $0xc90] sm:$0xff]
  %v435 = vld [vmem:[%s1 + $0xc98] sm:$0xff]
  %v436 = vld [vmem:[%s1 + $0xca0] sm:$0xff]
  %v437 = vld [vmem:[%s1 + $0xca8] sm:$0xff]
  %v438 = vld [vmem:[%s1 + $0xcb0] sm:$0xff]
  %v439 = vld [vmem:[%s1 + $0xcb8] sm:$0xff]
  %v440 = vld [vmem:[%s1 + $0xcc0] sm:$0xff]
  %v441 = vld [vmem:[%s1 + $0xcc8] sm:$0xff]
  %v442 = vld [vmem:[%s1 + $0xcd0] sm:$0xff]
  %v443 = vld [vmem:[%s1 + $0xcd8] sm:$0xff]
  %v444 = vld [vmem:[%s1 + $0xce0] sm:$0xff]
  %v445 = vld [vmem:[%s1 + $0xce8] sm:$0xff]
  %v446 = vld [vmem:[%s1 + $0xcf0] sm:$0xff]
  %v447 = vld [vmem:[%s1 + $0xcf8] sm:$0xff]
  %v448 = vld [vmem:[%s1 + $0xd00] sm:$0xff]
  %v449 = vld [vmem:[%s1 + $0xd08] sm:$0xff]
  %v450 = vld [vmem:[%s1 + $0xd10] sm:$0xff]
  %v451 = vld [vmem:[%s1 + $0xd18] sm:$0xff]
  %v452 = vld [vmem:[%s1 + $0xd20] sm:$0xff]
  %v453 = vld [vmem:[%s1 + $0xd28] sm:$0xff]
  %v454 = vld [vmem:[%s1 + $0xd30] sm:$0xff]
  %v455 = vld [vmem:[%s1 + $0xd38] sm:$0xff]
  %v456 = vld [vmem:[%s1 + $0xd40] sm:$0xff]
  %v457 = vld [vmem:[%s1 + $0xd48] sm:$0xff]
  %v458 = vld [vmem:[%s1 + $0xd50] sm:$0xff]
  %v459 = vld [vmem:[%s1 + $0xd58] sm:$0xff]
  %v460 = vld [vmem:[%s1 + $0xd60] sm:$0xff]
  %v461 = vld [vmem:[%s1 + $0xd68] sm:$0xff]
  %v462 = vld [vmem:[%s1 + $0xd70] sm:$0xff]
  %v463 = vld [vmem:[%s1 + $0xd78] sm:$0xff]
  %v464 = vld [vmem:[%s1 + $0xd80] sm:$0xff]
  %v465 = vld [vmem:[%s1 + $0xd88] sm:$0xff]
  %v466 = vld [vmem:[%s1 + $0xd90] sm:$0xff]
  %v467 = vld [vmem:[%s1 + $0xd98] sm:$0xff]
  %v468 = vld [vmem:[%s1 + $0xda0] sm:$0xff]
  %v469 = vld [vmem:[%s1 + $0xda8] sm:$0xff]
  %v470 = vld [vmem:[%s1 + $0xdb0] sm:$0xff]
  %v471 = vld [vmem:[%s1 + $0xdb8] sm:$0xff]
  %v472 = vld [vmem:[%s1 + $0xdc0] sm:$0xff]
  %v473 = vld [vmem:[%s1 + $0xdc8] sm:$0xff]
  %v474 = vld [vmem:[%s1 + $0xdd0] sm:$0xff]
  %v475 = vld [vmem:[%s1 + $0xdd8] sm:$0xff]
  %v476 = vld [vmem:[%s1 + $0xde0] sm:$0xff]
  %v477 = vld [vmem:[%s1 + $0xde8] sm:$0xff]
  %v478 = vld [vmem:[%s1 + $0xdf0] sm:$0xff]
  %v479 = vld [vmem:[%s1 + $0xdf8] sm:$0xff]
  %v480 = vld [vmem:[%s1 + $0xe00] sm:$0xff]
  %v481 = vld [vmem:[%s1 + $0xe08] sm:$0xff]
  %v482 = vld [vmem:[%s1 + $0xe10] sm:$0xff]
  %v483 = vld [vmem:[%s1 + $0xe18] sm:$0xff]
  %v484 = vld [vmem:[%s1 + $0xe20] sm:$0xff]
  %v485 = vld [vmem:[%s1 + $0xe28] sm:$0xff]
  %v486 = vld [vmem:[%s1 + $0xe30] sm:$0xff]
  %v487 = vld [vmem:[%s1 + $0xe38] sm:$0xff]
  %v488 = vld [vmem:[%s1 + $0xe40] sm:$0xff]
  %v489 = vld [vmem:[%s1 + $0xe48] sm:$0xff]
  %v490 = vld [vmem:[%s1 + $0xe50] sm:$0xff]
  %v491 = vld [vmem:[%s1 + $0xe58] sm:$0xff]
  %v492 = vld [vmem:[%s1 + $0xe60] sm:$0xff]
  %v493 = vld [vmem:[%s1 + $0xe68] sm:$0xff]
  %v494 = vld [vmem:[%s1 + $0xe70] sm:$0xff]
  %v495 = vld [vmem:[%s1 + $0xe78] sm:$0xff]
  %v496 = vld [vmem:[%s1 + $0xe80] sm:$0xff]
  %v497 = vld [vmem:[%s1 + $0xe88] sm:$0xff]
  %v498 = vld [vmem:[%s1 + $0xe90] sm:$0xff]
  %v499 = vld [vmem:[%s1 + $0xe98] sm:$0xff]
  %v500 = vld [vmem:[%s1 + $0xea0] sm:$0xff]
  %v501 = vld [vmem:[%s1 + $0xea8] sm:$0xff]
  %v502 = vld [vmem:[%s1 + $0xeb0] sm:$0xff]
  %v503 = vld [vmem:[%s1 + $0xeb8] sm:$0xff]
  %v504 = vld [vmem:[%s1 + $0xec0] sm:$0xff]
  %v505 = vld [vmem:[%s1 + $0xec8] sm:$0xff]
  %v506 = vld [vmem:[%s1 + $0xed0] sm:$0xff]
  %v507 = vld [vmem:[%s1 + $0xed8] sm:$0xff]
  %v508 = vld [vmem:[%s1 + $0xee0] sm:$0xff]
  %v509 = vld [vmem:[%s1 + $0xee8] sm:$0xff]
  %v510 = vld [vmem:[%s1 + $0xef0] sm:$0xff]
  %v511 = vld [vmem:[%s1 + $0xef8] sm:$0xff]
  %v512 = vld [vmem:[%s1 + $0xf00] sm:$0xff]
  %v513 = vld [vmem:[%s1 + $0xf08] sm:$0xff]
  %v514 = vld [vmem:[%s1 + $0xf10] sm:$0xff]
  %v515 = vld [vmem:[%s1 + $0xf18] sm:$0xff]
  %v516 = vld [vmem:[%s1 + $0xf20] sm:$0xff]
  %v517 = vld [vmem:[%s1 + $0xf28] sm:$0xff]
  %v518 = vld [vmem:[%s1 + $0xf30] sm:$0xff]
  %v519 = vld [vmem:[%s1 + $0xf38] sm:$0xff]
  %v520 = vld [vmem:[%s1 + $0xf40] sm:$0xff]
  %v521 = vld [vmem:[%s1 + $0xf48] sm:$0xff]
  %v522 = vld [vmem:[%s1 + $0xf50] sm:$0xff]
  %v523 = vld [vmem:[%s1 + $0xf58] sm:$0xff]
  %v524 = vld [vmem:[%s1 + $0xf60] sm:$0xff]
  %v525 = vld [vmem:[%s1 + $0xf68] sm:$0xff]
  %v526 = vld [vmem:[%s1 + $0xf70] sm:$0xff]
  %v527 = vld [vmem:[%s1 + $0xf78] sm:$0xff]
  %v528 = vld [vmem:[%s1 + $0xf80] sm:$0xff]
  %v529 = vld [vmem:[%s1 + $0xf88] sm:$0xff]
  %v530 = vld [vmem:[%s1 + $0xf90] sm:$0xff]
  %v531 = vld [vmem:[%s1 + $0xf98] sm:$0xff]
  %v532 = vld [vmem:[%s1 + $0xfa0] sm:$0xff]
  %v533 = vld [vmem:[%s1 + $0xfa8] sm:$0xff]
  %v534 = vld [vmem:[%s1 + $0xfb0] sm:$0xff]
  %v535 = vld [vmem:[%s1 + $0xfb8] sm:$0xff]
  %v536 = vld [vmem:[%s1 + $0xfc0] sm:$0xff]
  %v537 = vld [vmem:[%s1 + $0xfc8] sm:$0xff]
  %v538 = vld [vmem:[%s1 + $0xfd0] sm:$0xff]
  %v539 = vld [vmem:[%s1 + $0xfd8] sm:$0xff]
  %v540 = vld [vmem:[%s1 + $0xfe0] sm:$0xff]
  %v541 = vld [vmem:[%s1 + $0xfe8] sm:$0xff]
  %v542 = vld [vmem:[%s1 + $0xff0] sm:$0xff]
  %v543 = vld [vmem:[%s1 + $0xff8] sm:$0xff]
  %v544 = vld [vmem:[%s1 + $0x1000] sm:$0xff]
  %v545 = vld [vmem:[%s1 + $0x1008] sm:$0xff]
  %v546 = vld [vmem:[%s1 + $0x1010] sm:$0xff]
  %v547 = vld [vmem:[%s1 + $0x1018] sm:$0xff]
  %v548 = vld [vmem:[%s1 + $0x1020] sm:$0xff]
  %v549 = vld [vmem:[%s1 + $0x1028] sm:$0xff]
  %v550 = vld [vmem:[%s1 + $0x1030] sm:$0xff]
  %v551 = vld [vmem:[%s1 + $0x1038] sm:$0xff]
  %v552 = vld [vmem:[%s1 + $0x1040] sm:$0xff]
  %v553 = vld [vmem:[%s1 + $0x1048] sm:$0xff]
  %v554 = vld [vmem:[%s1 + $0x1050] sm:$0xff]
  %v555 = vld [vmem:[%s1 + $0x1058] sm:$0xff]
  %v556 = vld [vmem:[%s1 + $0x1060] sm:$0xff]
  %v557 = vld [vmem:[%s1 + $0x1068] sm:$0xff]
  %v558 = vld [vmem:[%s1 + $0x1070] sm:$0xff]
  %v559 = vld [vmem:[%s1 + $0x1078] sm:$0xff]
  %v560 = vld [vmem:[%s1 + $0x1080] sm:$0xff]
  %v561 = vld [vmem:[%s1 + $0x1088] sm:$0xff]
  %v562 = vld [vmem:[%s1 + $0x1090] sm:$0xff]
  %v563 = vld [vmem:[%s1 + $0x1098] sm:$0xff]
  %v564 = vld [vmem:[%s1 + $0x10a0] sm:$0xff]
  %v565 = vld [vmem:[%s1 + $0x10a8] sm:$0xff]
  %v566 = vld [vmem:[%s1 + $0x10b0] sm:$0xff]
  %v567 = vld [vmem:[%s1 + $0x10b8] sm:$0xff]
  %v568 = vld [vmem:[%s1 + $0x10c0] sm:$0xff]
  %v569 = vld [vmem:[%s1 + $0x10c8] sm:$0xff]
  %v570 = vld [vmem:[%s1 + $0x10d0] sm:$0xff]
  %v571 = vld [vmem:[%s1 + $0x10d8] sm:$0xff]
  %v572 = vld [vmem:[%s1 + $0x10e0] sm:$0xff]
  %v573 = vld [vmem:[%s1 + $0x10e8] sm:$0xff]
  %v574 = vld [vmem:[%s1 + $0x10f0] sm:$0xff]
  %v575 = vld [vmem:[%s1 + $0x10f8] sm:$0xff]
  %v576 = vld [vmem:[%s1 + $0x1100] sm:$0xff]
  %v577 = vld [vmem:[%s1 + $0x1108] sm:$0xff]
  %v578 = vld [vmem:[%s1 + $0x1110] sm:$0xff]
  %v579 = vld [vmem:[%s1 + $0x1118] sm:$0xff]
  %v580 = vld [vmem:[%s1 + $0x1120] sm:$0xff]
  %v581 = vld [vmem:[%s1 + $0x1128] sm:$0xff]
  %v582 = vld [vmem:[%s1 + $0x1130] sm:$0xff]
  %v583 = vld [vmem:[%s1 + $0x1138] sm:$0xff]
  %v584 = vld [vmem:[%s1 + $0x1140] sm:$0xff]
  %v585 = vld [vmem:[%s1 + $0x1148] sm:$0xff]
  %v586 = vld [vmem:[%s1 + $0x1150] sm:$0xff]
  %v587 = vld [vmem:[%s1 + $0x1158] sm:$0xff]
  %v588 = vld [vmem:[%s1 + $0x1160] sm:$0xff]
  %v589 = vld [vmem:[%s1 + $0x1168] sm:$0xff]
  %v590 = vld [vmem:[%s1 + $0x1170] sm:$0xff]
  %v591 = vld [vmem:[%s1 + $0x1178] sm:$0xff]
  %v592 = vld [vmem:[%s1 + $0x1180] sm:$0xff]
  %v593 = vld [vmem:[%s1 + $0x1188] sm:$0xff]
  %v594 = vld [vmem:[%s1 + $0x1190] sm:$0xff]
  %v595 = vld [vmem:[%s1 + $0x1198] sm:$0xff]
  %v596 = vld [vmem:[%s1 + $0x11a0] sm:$0xff]
  %v597 = vld [vmem:[%s1 + $0x11a8] sm:$0xff]
  %v598 = vld [vmem:[%s1 + $0x11b0] sm:$0xff]
  %v599 = vld [vmem:[%s1 + $0x11b8] sm:$0xff]
  %v600 = vld [vmem:[%s1 + $0x11c0] sm:$0xff]
  %v601 = vld [vmem:[%s1 + $0x11c8] sm:$0xff]
  %v602 = vld [vmem:[%s1 + $0x11d0] sm:$0xff]
  %v603 = vld [vmem:[%s1 + $0x11d8] sm:$0xff]
  %v604 = vld [vmem:[%s1 + $0x11e0] sm:$0xff]
  %v605 = vld [vmem:[%s1 + $0x11e8] sm:$0xff]
  %v606 = vld [vmem:[%s1 + $0x11f0] sm:$0xff]
  %v607 = vld [vmem:[%s1 + $0x11f8] sm:$0xff]
  %v608 = vld [vmem:[%s2] sm:$0x3]
  %v610 = vlaneseq
  %v611 = vshrl.u32 %v610, 7
  %v612 = vsub.s32 0, %v611
  %v613 = vrot.slane %v608, %v612
  %v614 = vlaneseq
  %v615 = vshrl.u32 %v614, 7
  %v616 = vsub.s32 1, %v615
  %v617 = vrot.slane %v608, %v616
  %v638 = vunpack.c.l.b16 %v14
  %v639 = vunpack.c.h.b16 %v14
  %v640 = vunpack.c.l.b16 %v15
  %v641 = vunpack.c.h.b16 %v15
  %v642 = vunpack.c.l.b16 %v16
  %v643 = vunpack.c.h.b16 %v16
  %v644 = vunpack.c.l.b16 %v17
  %v645 = vunpack.c.h.b16 %v17
  %v646 = vunpack.c.l.b16 %v18
  %v647 = vunpack.c.h.b16 %v18
  %v648 = vunpack.c.l.b16 %v19
  %v649 = vunpack.c.h.b16 %v19
  %v650 = vunpack.c.l.b16 %v20
  %v651 = vunpack.c.h.b16 %v20
  %v652 = vunpack.c.l.b16 %v21
  %v653 = vunpack.c.h.b16 %v21
  %v654 = vunpack.c.l.b16 %v22
  %v655 = vunpack.c.h.b16 %v22
  %v656 = vunpack.c.l.b16 %v23
  %v657 = vunpack.c.h.b16 %v23
  %v658 = vunpack.c.l.b16 %v24
  %v659 = vunpack.c.h.b16 %v24
  %v660 = vunpack.c.l.b16 %v25
  %v661 = vunpack.c.h.b16 %v25
  %v662 = vunpack.c.l.b16 %v26
  %v663 = vunpack.c.h.b16 %v26
  %v664 = vunpack.c.l.b16 %v27
  %v665 = vunpack.c.h.b16 %v27
  %v666 = vunpack.c.l.b16 %v28
  %v667 = vunpack.c.h.b16 %v28
  %v668 = vunpack.c.l.b16 %v29
  %v669 = vunpack.c.h.b16 %v29
  %v670 = vunpack.c.l.b16 %v30
  %v671 = vunpack.c.h.b16 %v30
  %v672 = vunpack.c.l.b16 %v31
  %v673 = vunpack.c.h.b16 %v31
  %v674 = vpack.c.b16 %v638, %v638
  %v675 = vpack.c.b16 %v639, %v639
  %v676 = vpack.c.b16 %v640, %v640
  %v677 = vpack.c.b16 %v641, %v641
  %v678 = vpack.c.b16 %v642, %v642
  %v679 = vpack.c.b16 %v643, %v643
  %v680 = vpack.c.b16 %v644, %v644
  %v681 = vpack.c.b16 %v645, %v645
  %v682 = vpack.c.b16 %v646, %v646
  %v683 = vpack.c.b16 %v647, %v647
  %v684 = vpack.c.b16 %v648, %v648
  %v685 = vpack.c.b16 %v649, %v649
  %v686 = vpack.c.b16 %v650, %v650
  %v687 = vpack.c.b16 %v651, %v651
  %v688 = vpack.c.b16 %v652, %v652
  %v689 = vpack.c.b16 %v653, %v653
  %v690 = vpack.c.b16 %v654, %v654
  %v691 = vpack.c.b16 %v655, %v655
  %v692 = vpack.c.b16 %v656, %v656
  %v693 = vpack.c.b16 %v657, %v657
  %v694 = vpack.c.b16 %v658, %v658
  %v695 = vpack.c.b16 %v659, %v659
  %v696 = vpack.c.b16 %v660, %v660
  %v697 = vpack.c.b16 %v661, %v661
  %v698 = vpack.c.b16 %v662, %v662
  %v699 = vpack.c.b16 %v663, %v663
  %v700 = vpack.c.b16 %v664, %v664
  %v701 = vpack.c.b16 %v665, %v665
  %v702 = vpack.c.b16 %v666, %v666
  %v703 = vpack.c.b16 %v667, %v667
  %v704 = vpack.c.b16 %v668, %v668
  %v705 = vpack.c.b16 %v669, %v669
  %v706 = vpack.c.b16 %v670, %v670
  %v707 = vpack.c.b16 %v671, %v671
  %v708 = vpack.c.b16 %v672, %v672
  %v709 = vpack.c.b16 %v673, %v673
  %v1322 = vunpack.c.l.b16 %v32
  %v1323 = vunpack.c.h.b16 %v32
  %v1324 = vunpack.c.l.b16 %v33
  %v1325 = vunpack.c.h.b16 %v33
  %v1326 = vunpack.c.l.b16 %v34
  %v1327 = vunpack.c.h.b16 %v34
  %v1328 = vunpack.c.l.b16 %v35
  %v1329 = vunpack.c.h.b16 %v35
  %v1330 = vunpack.c.l.b16 %v36
  %v1331 = vunpack.c.h.b16 %v36
  %v1332 = vunpack.c.l.b16 %v37
  %v1333 = vunpack.c.h.b16 %v37
  %v1334 = vunpack.c.l.b16 %v38
  %v1335 = vunpack.c.h.b16 %v38
  %v1336 = vunpack.c.l.b16 %v39
  %v1337 = vunpack.c.h.b16 %v39
  %v1338 = vunpack.c.l.b16 %v40
  %v1339 = vunpack.c.h.b16 %v40
  %v1340 = vunpack.c.l.b16 %v41
  %v1341 = vunpack.c.h.b16 %v41
  %v1342 = vunpack.c.l.b16 %v42
  %v1343 = vunpack.c.h.b16 %v42
  %v1344 = vunpack.c.l.b16 %v43
  %v1345 = vunpack.c.h.b16 %v43
  %v1346 = vunpack.c.l.b16 %v44
  %v1347 = vunpack.c.h.b16 %v44
  %v1348 = vunpack.c.l.b16 %v45
  %v1349 = vunpack.c.h.b16 %v45
  %v1350 = vunpack.c.l.b16 %v46
  %v1351 = vunpack.c.h.b16 %v46
  %v1352 = vunpack.c.l.b16 %v47
  %v1353 = vunpack.c.h.b16 %v47
  %v1354 = vunpack.c.l.b16 %v48
  %v1355 = vunpack.c.h.b16 %v48
  %v1356 = vunpack.c.l.b16 %v49
  %v1357 = vunpack.c.h.b16 %v49
  %v1358 = vunpack.c.l.b16 %v50
  %v1359 = vunpack.c.h.b16 %v50
  %v1360 = vunpack.c.l.b16 %v51
  %v1361 = vunpack.c.h.b16 %v51
  %v1362 = vunpack.c.l.b16 %v52
  %v1363 = vunpack.c.h.b16 %v52
  %v1364 = vunpack.c.l.b16 %v53
  %v1365 = vunpack.c.h.b16 %v53
  %v1366 = vunpack.c.l.b16 %v54
  %v1367 = vunpack.c.h.b16 %v54
  %v1368 = vunpack.c.l.b16 %v55
  %v1369 = vunpack.c.h.b16 %v55
  %v1370 = vunpack.c.l.b16 %v56
  %v1371 = vunpack.c.h.b16 %v56
  %v1372 = vunpack.c.l.b16 %v57
  %v1373 = vunpack.c.h.b16 %v57
  %v1374 = vunpack.c.l.b16 %v58
  %v1375 = vunpack.c.h.b16 %v58
  %v1376 = vunpack.c.l.b16 %v59
  %v1377 = vunpack.c.h.b16 %v59
  %v1378 = vunpack.c.l.b16 %v60
  %v1379 = vunpack.c.h.b16 %v60
  %v1380 = vunpack.c.l.b16 %v61
  %v1381 = vunpack.c.h.b16 %v61
  %v1382 = vunpack.c.l.b16 %v62
  %v1383 = vunpack.c.h.b16 %v62
  %v1384 = vunpack.c.l.b16 %v63
  %v1385 = vunpack.c.h.b16 %v63
  %v1386 = vunpack.c.l.b16 %v64
  %v1387 = vunpack.c.h.b16 %v64
  %v1388 = vunpack.c.l.b16 %v65
  %v1389 = vunpack.c.h.b16 %v65
  %v1390 = vunpack.c.l.b16 %v66
  %v1391 = vunpack.c.h.b16 %v66
  %v1392 = vunpack.c.l.b16 %v67
  %v1393 = vunpack.c.h.b16 %v67
  %v1394 = vunpack.c.l.b16 %v68
  %v1395 = vunpack.c.h.b16 %v68
  %v1396 = vunpack.c.l.b16 %v69
  %v1397 = vunpack.c.h.b16 %v69
  %v1398 = vunpack.c.l.b16 %v70
  %v1399 = vunpack.c.h.b16 %v70
  %v1400 = vunpack.c.l.b16 %v71
  %v1401 = vunpack.c.h.b16 %v71
  %v1402 = vunpack.c.l.b16 %v72
  %v1403 = vunpack.c.h.b16 %v72
  %v1404 = vunpack.c.l.b16 %v73
  %v1405 = vunpack.c.h.b16 %v73
  %v1406 = vunpack.c.l.b16 %v74
  %v1407 = vunpack.c.h.b16 %v74
  %v1408 = vunpack.c.l.b16 %v75
  %v1409 = vunpack.c.h.b16 %v75
  %v1410 = vunpack.c.l.b16 %v76
  %v1411 = vunpack.c.h.b16 %v76
  %v1412 = vunpack.c.l.b16 %v77
  %v1413 = vunpack.c.h.b16 %v77
  %v1414 = vunpack.c.l.b16 %v78
  %v1415 = vunpack.c.h.b16 %v78
  %v1416 = vunpack.c.l.b16 %v79
  %v1417 = vunpack.c.h.b16 %v79
  %v1418 = vunpack.c.l.b16 %v80
  %v1419 = vunpack.c.h.b16 %v80
  %v1420 = vunpack.c.l.b16 %v81
  %v1421 = vunpack.c.h.b16 %v81
  %v1422 = vunpack.c.l.b16 %v82
  %v1423 = vunpack.c.h.b16 %v82
  %v1424 = vunpack.c.l.b16 %v83
  %v1425 = vunpack.c.h.b16 %v83
  %v1426 = vunpack.c.l.b16 %v84
  %v1427 = vunpack.c.h.b16 %v84
  %v1428 = vunpack.c.l.b16 %v85
  %v1429 = vunpack.c.h.b16 %v85
  %v1430 = vunpack.c.l.b16 %v86
  %v1431 = vunpack.c.h.b16 %v86
  %v1432 = vunpack.c.l.b16 %v87
  %v1433 = vunpack.c.h.b16 %v87
  %v1434 = vunpack.c.l.b16 %v88
  %v1435 = vunpack.c.h.b16 %v88
  %v1436 = vunpack.c.l.b16 %v89
  %v1437 = vunpack.c.h.b16 %v89
  %v1438 = vunpack.c.l.b16 %v90
  %v1439 = vunpack.c.h.b16 %v90
  %v1440 = vunpack.c.l.b16 %v91
  %v1441 = vunpack.c.h.b16 %v91
  %v1442 = vunpack.c.l.b16 %v92
  %v1443 = vunpack.c.h.b16 %v92
  %v1444 = vunpack.c.l.b16 %v93
  %v1445 = vunpack.c.h.b16 %v93
  %v1446 = vunpack.c.l.b16 %v94
  %v1447 = vunpack.c.h.b16 %v94
  %v1448 = vunpack.c.l.b16 %v95
  %v1449 = vunpack.c.h.b16 %v95
  %v1450 = vunpack.c.l.b16 %v96
  %v1451 = vunpack.c.h.b16 %v96
  %v1452 = vunpack.c.l.b16 %v97
  %v1453 = vunpack.c.h.b16 %v97
  %v1454 = vunpack.c.l.b16 %v98
  %v1455 = vunpack.c.h.b16 %v98
  %v1456 = vunpack.c.l.b16 %v99
  %v1457 = vunpack.c.h.b16 %v99
  %v1458 = vunpack.c.l.b16 %v100
  %v1459 = vunpack.c.h.b16 %v100
  %v1460 = vunpack.c.l.b16 %v101
  %v1461 = vunpack.c.h.b16 %v101
  %v1462 = vunpack.c.l.b16 %v102
  %v1463 = vunpack.c.h.b16 %v102
  %v1464 = vunpack.c.l.b16 %v103
  %v1465 = vunpack.c.h.b16 %v103
  %v1466 = vunpack.c.l.b16 %v104
  %v1467 = vunpack.c.h.b16 %v104
  %v1468 = vunpack.c.l.b16 %v105
  %v1469 = vunpack.c.h.b16 %v105
  %v1470 = vunpack.c.l.b16 %v106
  %v1471 = vunpack.c.h.b16 %v106
  %v1472 = vunpack.c.l.b16 %v107
  %v1473 = vunpack.c.h.b16 %v107
  %v1474 = vunpack.c.l.b16 %v108
  %v1475 = vunpack.c.h.b16 %v108
  %v1476 = vunpack.c.l.b16 %v109
  %v1477 = vunpack.c.h.b16 %v109
  %v1478 = vunpack.c.l.b16 %v110
  %v1479 = vunpack.c.h.b16 %v110
  %v1480 = vunpack.c.l.b16 %v111
  %v1481 = vunpack.c.h.b16 %v111
  %v1482 = vunpack.c.l.b16 %v112
  %v1483 = vunpack.c.h.b16 %v112
  %v1484 = vunpack.c.l.b16 %v113
  %v1485 = vunpack.c.h.b16 %v113
  %v1486 = vunpack.c.l.b16 %v114
  %v1487 = vunpack.c.h.b16 %v114
  %v1488 = vunpack.c.l.b16 %v115
  %v1489 = vunpack.c.h.b16 %v115
  %v1490 = vunpack.c.l.b16 %v116
  %v1491 = vunpack.c.h.b16 %v116
  %v1492 = vunpack.c.l.b16 %v117
  %v1493 = vunpack.c.h.b16 %v117
  %v1494 = vunpack.c.l.b16 %v118
  %v1495 = vunpack.c.h.b16 %v118
  %v1496 = vunpack.c.l.b16 %v119
  %v1497 = vunpack.c.h.b16 %v119
  %v1498 = vunpack.c.l.b16 %v120
  %v1499 = vunpack.c.h.b16 %v120
  %v1500 = vunpack.c.l.b16 %v121
  %v1501 = vunpack.c.h.b16 %v121
  %v1502 = vunpack.c.l.b16 %v122
  %v1503 = vunpack.c.h.b16 %v122
  %v1504 = vunpack.c.l.b16 %v123
  %v1505 = vunpack.c.h.b16 %v123
  %v1506 = vunpack.c.l.b16 %v124
  %v1507 = vunpack.c.h.b16 %v124
  %v1508 = vunpack.c.l.b16 %v125
  %v1509 = vunpack.c.h.b16 %v125
  %v1510 = vunpack.c.l.b16 %v126
  %v1511 = vunpack.c.h.b16 %v126
  %v1512 = vunpack.c.l.b16 %v127
  %v1513 = vunpack.c.h.b16 %v127
  %v1514 = vunpack.c.l.b16 %v128
  %v1515 = vunpack.c.h.b16 %v128
  %v1516 = vunpack.c.l.b16 %v129
  %v1517 = vunpack.c.h.b16 %v129
  %v1518 = vunpack.c.l.b16 %v130
  %v1519 = vunpack.c.h.b16 %v130
  %v1520 = vunpack.c.l.b16 %v131
  %v1521 = vunpack.c.h.b16 %v131
  %v1522 = vunpack.c.l.b16 %v132
  %v1523 = vunpack.c.h.b16 %v132
  %v1524 = vunpack.c.l.b16 %v133
  %v1525 = vunpack.c.h.b16 %v133
  %v1526 = vunpack.c.l.b16 %v134
  %v1527 = vunpack.c.h.b16 %v134
  %v1528 = vunpack.c.l.b16 %v135
  %v1529 = vunpack.c.h.b16 %v135
  %v1530 = vunpack.c.l.b16 %v136
  %v1531 = vunpack.c.h.b16 %v136
  %v1532 = vunpack.c.l.b16 %v137
  %v1533 = vunpack.c.h.b16 %v137
  %v1534 = vunpack.c.l.b16 %v138
  %v1535 = vunpack.c.h.b16 %v138
  %v1536 = vunpack.c.l.b16 %v139
  %v1537 = vunpack.c.h.b16 %v139
  %v1538 = vunpack.c.l.b16 %v140
  %v1539 = vunpack.c.h.b16 %v140
  %v1540 = vunpack.c.l.b16 %v141
  %v1541 = vunpack.c.h.b16 %v141
  %v1542 = vunpack.c.l.b16 %v142
  %v1543 = vunpack.c.h.b16 %v142
  %v1544 = vunpack.c.l.b16 %v143
  %v1545 = vunpack.c.h.b16 %v143
  %v1546 = vunpack.c.l.b16 %v144
  %v1547 = vunpack.c.h.b16 %v144
  %v1548 = vunpack.c.l.b16 %v145
  %v1549 = vunpack.c.h.b16 %v145
  %v1550 = vunpack.c.l.b16 %v146
  %v1551 = vunpack.c.h.b16 %v146
  %v1552 = vunpack.c.l.b16 %v147
  %v1553 = vunpack.c.h.b16 %v147
  %v1554 = vunpack.c.l.b16 %v148
  %v1555 = vunpack.c.h.b16 %v148
  %v1556 = vunpack.c.l.b16 %v149
  %v1557 = vunpack.c.h.b16 %v149
  %v1558 = vunpack.c.l.b16 %v150
  %v1559 = vunpack.c.h.b16 %v150
  %v1560 = vunpack.c.l.b16 %v151
  %v1561 = vunpack.c.h.b16 %v151
  %v1562 = vunpack.c.l.b16 %v152
  %v1563 = vunpack.c.h.b16 %v152
  %v1564 = vunpack.c.l.b16 %v153
  %v1565 = vunpack.c.h.b16 %v153
  %v1566 = vunpack.c.l.b16 %v154
  %v1567 = vunpack.c.h.b16 %v154
  %v1568 = vunpack.c.l.b16 %v155
  %v1569 = vunpack.c.h.b16 %v155
  %v1570 = vunpack.c.l.b16 %v156
  %v1571 = vunpack.c.h.b16 %v156
  %v1572 = vunpack.c.l.b16 %v157
  %v1573 = vunpack.c.h.b16 %v157
  %v1574 = vunpack.c.l.b16 %v158
  %v1575 = vunpack.c.h.b16 %v158
  %v1576 = vunpack.c.l.b16 %v159
  %v1577 = vunpack.c.h.b16 %v159
  %v1578 = vunpack.c.l.b16 %v160
  %v1579 = vunpack.c.h.b16 %v160
  %v1580 = vunpack.c.l.b16 %v161
  %v1581 = vunpack.c.h.b16 %v161
  %v1582 = vunpack.c.l.b16 %v162
  %v1583 = vunpack.c.h.b16 %v162
  %v1584 = vunpack.c.l.b16 %v163
  %v1585 = vunpack.c.h.b16 %v163
  %v1586 = vunpack.c.l.b16 %v164
  %v1587 = vunpack.c.h.b16 %v164
  %v1588 = vunpack.c.l.b16 %v165
  %v1589 = vunpack.c.h.b16 %v165
  %v1590 = vunpack.c.l.b16 %v166
  %v1591 = vunpack.c.h.b16 %v166
  %v1592 = vunpack.c.l.b16 %v167
  %v1593 = vunpack.c.h.b16 %v167
  %v1594 = vunpack.c.l.b16 %v168
  %v1595 = vunpack.c.h.b16 %v168
  %v1596 = vunpack.c.l.b16 %v169
  %v1597 = vunpack.c.h.b16 %v169
  %v1598 = vunpack.c.l.b16 %v170
  %v1599 = vunpack.c.h.b16 %v170
  %v1600 = vunpack.c.l.b16 %v171
  %v1601 = vunpack.c.h.b16 %v171
  %v1602 = vunpack.c.l.b16 %v172
  %v1603 = vunpack.c.h.b16 %v172
  %v1604 = vunpack.c.l.b16 %v173
  %v1605 = vunpack.c.h.b16 %v173
  %v1606 = vunpack.c.l.b16 %v174
  %v1607 = vunpack.c.h.b16 %v174
  %v1608 = vunpack.c.l.b16 %v175
  %v1609 = vunpack.c.h.b16 %v175
  %v1610 = vunpack.c.l.b16 %v176
  %v1611 = vunpack.c.h.b16 %v176
  %v1612 = vunpack.c.l.b16 %v177
  %v1613 = vunpack.c.h.b16 %v177
  %v1614 = vunpack.c.l.b16 %v178
  %v1615 = vunpack.c.h.b16 %v178
  %v1616 = vunpack.c.l.b16 %v179
  %v1617 = vunpack.c.h.b16 %v179
  %v1618 = vunpack.c.l.b16 %v180
  %v1619 = vunpack.c.h.b16 %v180
  %v1620 = vunpack.c.l.b16 %v181
  %v1621 = vunpack.c.h.b16 %v181
  %v1622 = vunpack.c.l.b16 %v182
  %v1623 = vunpack.c.h.b16 %v182
  %v1624 = vunpack.c.l.b16 %v183
  %v1625 = vunpack.c.h.b16 %v183
  %v1626 = vunpack.c.l.b16 %v184
  %v1627 = vunpack.c.h.b16 %v184
  %v1628 = vunpack.c.l.b16 %v185
  %v1629 = vunpack.c.h.b16 %v185
  %v1630 = vunpack.c.l.b16 %v186
  %v1631 = vunpack.c.h.b16 %v186
  %v1632 = vunpack.c.l.b16 %v187
  %v1633 = vunpack.c.h.b16 %v187
  %v1634 = vunpack.c.l.b16 %v188
  %v1635 = vunpack.c.h.b16 %v188
  %v1636 = vunpack.c.l.b16 %v189
  %v1637 = vunpack.c.h.b16 %v189
  %v1638 = vunpack.c.l.b16 %v190
  %v1639 = vunpack.c.h.b16 %v190
  %v1640 = vunpack.c.l.b16 %v191
  %v1641 = vunpack.c.h.b16 %v191
  %v1642 = vunpack.c.l.b16 %v192
  %v1643 = vunpack.c.h.b16 %v192
  %v1644 = vunpack.c.l.b16 %v193
  %v1645 = vunpack.c.h.b16 %v193
  %v1646 = vunpack.c.l.b16 %v194
  %v1647 = vunpack.c.h.b16 %v194
  %v1648 = vunpack.c.l.b16 %v195
  %v1649 = vunpack.c.h.b16 %v195
  %v1650 = vunpack.c.l.b16 %v196
  %v1651 = vunpack.c.h.b16 %v196
  %v1652 = vunpack.c.l.b16 %v197
  %v1653 = vunpack.c.h.b16 %v197
  %v1654 = vunpack.c.l.b16 %v198
  %v1655 = vunpack.c.h.b16 %v198
  %v1656 = vunpack.c.l.b16 %v199
  %v1657 = vunpack.c.h.b16 %v199
  %v1658 = vunpack.c.l.b16 %v200
  %v1659 = vunpack.c.h.b16 %v200
  %v1660 = vunpack.c.l.b16 %v201
  %v1661 = vunpack.c.h.b16 %v201
  %v1662 = vunpack.c.l.b16 %v202
  %v1663 = vunpack.c.h.b16 %v202
  %v1664 = vunpack.c.l.b16 %v203
  %v1665 = vunpack.c.h.b16 %v203
  %v1666 = vunpack.c.l.b16 %v204
  %v1667 = vunpack.c.h.b16 %v204
  %v1668 = vunpack.c.l.b16 %v205
  %v1669 = vunpack.c.h.b16 %v205
  %v1670 = vunpack.c.l.b16 %v206
  %v1671 = vunpack.c.h.b16 %v206
  %v1672 = vunpack.c.l.b16 %v207
  %v1673 = vunpack.c.h.b16 %v207
  %v1674 = vunpack.c.l.b16 %v208
  %v1675 = vunpack.c.h.b16 %v208
  %v1676 = vunpack.c.l.b16 %v209
  %v1677 = vunpack.c.h.b16 %v209
  %v1678 = vunpack.c.l.b16 %v210
  %v1679 = vunpack.c.h.b16 %v210
  %v1680 = vunpack.c.l.b16 %v211
  %v1681 = vunpack.c.h.b16 %v211
  %v1682 = vunpack.c.l.b16 %v212
  %v1683 = vunpack.c.h.b16 %v212
  %v1684 = vunpack.c.l.b16 %v213
  %v1685 = vunpack.c.h.b16 %v213
  %v1686 = vunpack.c.l.b16 %v214
  %v1687 = vunpack.c.h.b16 %v214
  %v1688 = vunpack.c.l.b16 %v215
  %v1689 = vunpack.c.h.b16 %v215
  %v1690 = vunpack.c.l.b16 %v216
  %v1691 = vunpack.c.h.b16 %v216
  %v1692 = vunpack.c.l.b16 %v217
  %v1693 = vunpack.c.h.b16 %v217
  %v1694 = vunpack.c.l.b16 %v218
  %v1695 = vunpack.c.h.b16 %v218
  %v1696 = vunpack.c.l.b16 %v219
  %v1697 = vunpack.c.h.b16 %v219
  %v1698 = vunpack.c.l.b16 %v220
  %v1699 = vunpack.c.h.b16 %v220
  %v1700 = vunpack.c.l.b16 %v221
  %v1701 = vunpack.c.h.b16 %v221
  %v1702 = vunpack.c.l.b16 %v222
  %v1703 = vunpack.c.h.b16 %v222
  %v1704 = vunpack.c.l.b16 %v223
  %v1705 = vunpack.c.h.b16 %v223
  %v1706 = vunpack.c.l.b16 %v224
  %v1707 = vunpack.c.h.b16 %v224
  %v1708 = vunpack.c.l.b16 %v225
  %v1709 = vunpack.c.h.b16 %v225
  %v1710 = vunpack.c.l.b16 %v226
  %v1711 = vunpack.c.h.b16 %v226
  %v1712 = vunpack.c.l.b16 %v227
  %v1713 = vunpack.c.h.b16 %v227
  %v1714 = vunpack.c.l.b16 %v228
  %v1715 = vunpack.c.h.b16 %v228
  %v1716 = vunpack.c.l.b16 %v229
  %v1717 = vunpack.c.h.b16 %v229
  %v1718 = vunpack.c.l.b16 %v230
  %v1719 = vunpack.c.h.b16 %v230
  %v1720 = vunpack.c.l.b16 %v231
  %v1721 = vunpack.c.h.b16 %v231
  %v1722 = vunpack.c.l.b16 %v232
  %v1723 = vunpack.c.h.b16 %v232
  %v1724 = vunpack.c.l.b16 %v233
  %v1725 = vunpack.c.h.b16 %v233
  %v1726 = vunpack.c.l.b16 %v234
  %v1727 = vunpack.c.h.b16 %v234
  %v1728 = vunpack.c.l.b16 %v235
  %v1729 = vunpack.c.h.b16 %v235
  %v1730 = vunpack.c.l.b16 %v236
  %v1731 = vunpack.c.h.b16 %v236
  %v1732 = vunpack.c.l.b16 %v237
  %v1733 = vunpack.c.h.b16 %v237
  %v1734 = vunpack.c.l.b16 %v238
  %v1735 = vunpack.c.h.b16 %v238
  %v1736 = vunpack.c.l.b16 %v239
  %v1737 = vunpack.c.h.b16 %v239
  %v1738 = vunpack.c.l.b16 %v240
  %v1739 = vunpack.c.h.b16 %v240
  %v1740 = vunpack.c.l.b16 %v241
  %v1741 = vunpack.c.h.b16 %v241
  %v1742 = vunpack.c.l.b16 %v242
  %v1743 = vunpack.c.h.b16 %v242
  %v1744 = vunpack.c.l.b16 %v243
  %v1745 = vunpack.c.h.b16 %v243
  %v1746 = vunpack.c.l.b16 %v244
  %v1747 = vunpack.c.h.b16 %v244
  %v1748 = vunpack.c.l.b16 %v245
  %v1749 = vunpack.c.h.b16 %v245
  %v1750 = vunpack.c.l.b16 %v246
  %v1751 = vunpack.c.h.b16 %v246
  %v1752 = vunpack.c.l.b16 %v247
  %v1753 = vunpack.c.h.b16 %v247
  %v1754 = vunpack.c.l.b16 %v248
  %v1755 = vunpack.c.h.b16 %v248
  %v1756 = vunpack.c.l.b16 %v249
  %v1757 = vunpack.c.h.b16 %v249
  %v1758 = vunpack.c.l.b16 %v250
  %v1759 = vunpack.c.h.b16 %v250
  %v1760 = vunpack.c.l.b16 %v251
  %v1761 = vunpack.c.h.b16 %v251
  %v1762 = vunpack.c.l.b16 %v252
  %v1763 = vunpack.c.h.b16 %v252
  %v1764 = vunpack.c.l.b16 %v253
  %v1765 = vunpack.c.h.b16 %v253
  %v1766 = vunpack.c.l.b16 %v254
  %v1767 = vunpack.c.h.b16 %v254
  %v1768 = vunpack.c.l.b16 %v255
  %v1769 = vunpack.c.h.b16 %v255
  %v1770 = vunpack.c.l.b16 %v256
  %v1771 = vunpack.c.h.b16 %v256
  %v1772 = vunpack.c.l.b16 %v257
  %v1773 = vunpack.c.h.b16 %v257
  %v1774 = vunpack.c.l.b16 %v258
  %v1775 = vunpack.c.h.b16 %v258
  %v1776 = vunpack.c.l.b16 %v259
  %v1777 = vunpack.c.h.b16 %v259
  %v1778 = vunpack.c.l.b16 %v260
  %v1779 = vunpack.c.h.b16 %v260
  %v1780 = vunpack.c.l.b16 %v261
  %v1781 = vunpack.c.h.b16 %v261
  %v1782 = vunpack.c.l.b16 %v262
  %v1783 = vunpack.c.h.b16 %v262
  %v1784 = vunpack.c.l.b16 %v263
  %v1785 = vunpack.c.h.b16 %v263
  %v1786 = vunpack.c.l.b16 %v264
  %v1787 = vunpack.c.h.b16 %v264
  %v1788 = vunpack.c.l.b16 %v265
  %v1789 = vunpack.c.h.b16 %v265
  %v1790 = vunpack.c.l.b16 %v266
  %v1791 = vunpack.c.h.b16 %v266
  %v1792 = vunpack.c.l.b16 %v267
  %v1793 = vunpack.c.h.b16 %v267
  %v1794 = vunpack.c.l.b16 %v268
  %v1795 = vunpack.c.h.b16 %v268
  %v1796 = vunpack.c.l.b16 %v269
  %v1797 = vunpack.c.h.b16 %v269
  %v1798 = vunpack.c.l.b16 %v270
  %v1799 = vunpack.c.h.b16 %v270
  %v1800 = vunpack.c.l.b16 %v271
  %v1801 = vunpack.c.h.b16 %v271
  %v1802 = vunpack.c.l.b16 %v272
  %v1803 = vunpack.c.h.b16 %v272
  %v1804 = vunpack.c.l.b16 %v273
  %v1805 = vunpack.c.h.b16 %v273
  %v1806 = vunpack.c.l.b16 %v274
  %v1807 = vunpack.c.h.b16 %v274
  %v1808 = vunpack.c.l.b16 %v275
  %v1809 = vunpack.c.h.b16 %v275
  %v1810 = vunpack.c.l.b16 %v276
  %v1811 = vunpack.c.h.b16 %v276
  %v1812 = vunpack.c.l.b16 %v277
  %v1813 = vunpack.c.h.b16 %v277
  %v1814 = vunpack.c.l.b16 %v278
  %v1815 = vunpack.c.h.b16 %v278
  %v1816 = vunpack.c.l.b16 %v279
  %v1817 = vunpack.c.h.b16 %v279
  %v1818 = vunpack.c.l.b16 %v280
  %v1819 = vunpack.c.h.b16 %v280
  %v1820 = vunpack.c.l.b16 %v281
  %v1821 = vunpack.c.h.b16 %v281
  %v1822 = vunpack.c.l.b16 %v282
  %v1823 = vunpack.c.h.b16 %v282
  %v1824 = vunpack.c.l.b16 %v283
  %v1825 = vunpack.c.h.b16 %v283
  %v1826 = vunpack.c.l.b16 %v284
  %v1827 = vunpack.c.h.b16 %v284
  %v1828 = vunpack.c.l.b16 %v285
  %v1829 = vunpack.c.h.b16 %v285
  %v1830 = vunpack.c.l.b16 %v286
  %v1831 = vunpack.c.h.b16 %v286
  %v1832 = vunpack.c.l.b16 %v287
  %v1833 = vunpack.c.h.b16 %v287
  %v1834 = vunpack.c.l.b16 %v288
  %v1835 = vunpack.c.h.b16 %v288
  %v1836 = vunpack.c.l.b16 %v289
  %v1837 = vunpack.c.h.b16 %v289
  %v1838 = vunpack.c.l.b16 %v290
  %v1839 = vunpack.c.h.b16 %v290
  %v1840 = vunpack.c.l.b16 %v291
  %v1841 = vunpack.c.h.b16 %v291
  %v1842 = vunpack.c.l.b16 %v292
  %v1843 = vunpack.c.h.b16 %v292
  %v1844 = vunpack.c.l.b16 %v293
  %v1845 = vunpack.c.h.b16 %v293
  %v1846 = vunpack.c.l.b16 %v294
  %v1847 = vunpack.c.h.b16 %v294
  %v1848 = vunpack.c.l.b16 %v295
  %v1849 = vunpack.c.h.b16 %v295
  %v1850 = vunpack.c.l.b16 %v296
  %v1851 = vunpack.c.h.b16 %v296
  %v1852 = vunpack.c.l.b16 %v297
  %v1853 = vunpack.c.h.b16 %v297
  %v1854 = vunpack.c.l.b16 %v298
  %v1855 = vunpack.c.h.b16 %v298
  %v1856 = vunpack.c.l.b16 %v299
  %v1857 = vunpack.c.h.b16 %v299
  %v1858 = vunpack.c.l.b16 %v300
  %v1859 = vunpack.c.h.b16 %v300
  %v1860 = vunpack.c.l.b16 %v301
  %v1861 = vunpack.c.h.b16 %v301
  %v1862 = vunpack.c.l.b16 %v302
  %v1863 = vunpack.c.h.b16 %v302
  %v1864 = vunpack.c.l.b16 %v303
  %v1865 = vunpack.c.h.b16 %v303
  %v1866 = vunpack.c.l.b16 %v304
  %v1867 = vunpack.c.h.b16 %v304
  %v1868 = vunpack.c.l.b16 %v305
  %v1869 = vunpack.c.h.b16 %v305
  %v1870 = vunpack.c.l.b16 %v306
  %v1871 = vunpack.c.h.b16 %v306
  %v1872 = vunpack.c.l.b16 %v307
  %v1873 = vunpack.c.h.b16 %v307
  %v1874 = vunpack.c.l.b16 %v308
  %v1875 = vunpack.c.h.b16 %v308
  %v1876 = vunpack.c.l.b16 %v309
  %v1877 = vunpack.c.h.b16 %v309
  %v1878 = vunpack.c.l.b16 %v310
  %v1879 = vunpack.c.h.b16 %v310
  %v1880 = vunpack.c.l.b16 %v311
  %v1881 = vunpack.c.h.b16 %v311
  %v1882 = vunpack.c.l.b16 %v312
  %v1883 = vunpack.c.h.b16 %v312
  %v1884 = vunpack.c.l.b16 %v313
  %v1885 = vunpack.c.h.b16 %v313
  %v1886 = vunpack.c.l.b16 %v314
  %v1887 = vunpack.c.h.b16 %v314
  %v1888 = vunpack.c.l.b16 %v315
  %v1889 = vunpack.c.h.b16 %v315
  %v1890 = vunpack.c.l.b16 %v316
  %v1891 = vunpack.c.h.b16 %v316
  %v1892 = vunpack.c.l.b16 %v317
  %v1893 = vunpack.c.h.b16 %v317
  %v1894 = vunpack.c.l.b16 %v318
  %v1895 = vunpack.c.h.b16 %v318
  %v1896 = vunpack.c.l.b16 %v319
  %v1897 = vunpack.c.h.b16 %v319
  %v1898 = vunpack.c.l.b16 %v320
  %v1899 = vunpack.c.h.b16 %v320
  %v1900 = vunpack.c.l.b16 %v321
  %v1901 = vunpack.c.h.b16 %v321
  %v1902 = vunpack.c.l.b16 %v322
  %v1903 = vunpack.c.h.b16 %v322
  %v1904 = vunpack.c.l.b16 %v323
  %v1905 = vunpack.c.h.b16 %v323
  %v1906 = vunpack.c.l.b16 %v324
  %v1907 = vunpack.c.h.b16 %v324
  %v1908 = vunpack.c.l.b16 %v325
  %v1909 = vunpack.c.h.b16 %v325
  %v1910 = vunpack.c.l.b16 %v326
  %v1911 = vunpack.c.h.b16 %v326
  %v1912 = vunpack.c.l.b16 %v327
  %v1913 = vunpack.c.h.b16 %v327
  %v1914 = vunpack.c.l.b16 %v328
  %v1915 = vunpack.c.h.b16 %v328
  %v1916 = vunpack.c.l.b16 %v329
  %v1917 = vunpack.c.h.b16 %v329
  %v1918 = vunpack.c.l.b16 %v330
  %v1919 = vunpack.c.h.b16 %v330
  %v1920 = vunpack.c.l.b16 %v331
  %v1921 = vunpack.c.h.b16 %v331
  %v1922 = vunpack.c.l.b16 %v332
  %v1923 = vunpack.c.h.b16 %v332
  %v1924 = vunpack.c.l.b16 %v333
  %v1925 = vunpack.c.h.b16 %v333
  %v1926 = vunpack.c.l.b16 %v334
  %v1927 = vunpack.c.h.b16 %v334
  %v1928 = vunpack.c.l.b16 %v335
  %v1929 = vunpack.c.h.b16 %v335
  %v1930 = vunpack.c.l.b16 %v336
  %v1931 = vunpack.c.h.b16 %v336
  %v1932 = vunpack.c.l.b16 %v337
  %v1933 = vunpack.c.h.b16 %v337
  %v1934 = vunpack.c.l.b16 %v338
  %v1935 = vunpack.c.h.b16 %v338
  %v1936 = vunpack.c.l.b16 %v339
  %v1937 = vunpack.c.h.b16 %v339
  %v1938 = vunpack.c.l.b16 %v340
  %v1939 = vunpack.c.h.b16 %v340
  %v1940 = vunpack.c.l.b16 %v341
  %v1941 = vunpack.c.h.b16 %v341
  %v1942 = vunpack.c.l.b16 %v342
  %v1943 = vunpack.c.h.b16 %v342
  %v1944 = vunpack.c.l.b16 %v343
  %v1945 = vunpack.c.h.b16 %v343
  %v1946 = vunpack.c.l.b16 %v344
  %v1947 = vunpack.c.h.b16 %v344
  %v1948 = vunpack.c.l.b16 %v345
  %v1949 = vunpack.c.h.b16 %v345
  %v1950 = vunpack.c.l.b16 %v346
  %v1951 = vunpack.c.h.b16 %v346
  %v1952 = vunpack.c.l.b16 %v347
  %v1953 = vunpack.c.h.b16 %v347
  %v1954 = vunpack.c.l.b16 %v348
  %v1955 = vunpack.c.h.b16 %v348
  %v1956 = vunpack.c.l.b16 %v349
  %v1957 = vunpack.c.h.b16 %v349
  %v1958 = vunpack.c.l.b16 %v350
  %v1959 = vunpack.c.h.b16 %v350
  %v1960 = vunpack.c.l.b16 %v351
  %v1961 = vunpack.c.h.b16 %v351
  %v1962 = vunpack.c.l.b16 %v352
  %v1963 = vunpack.c.h.b16 %v352
  %v1964 = vunpack.c.l.b16 %v353
  %v1965 = vunpack.c.h.b16 %v353
  %v1966 = vunpack.c.l.b16 %v354
  %v1967 = vunpack.c.h.b16 %v354
  %v1968 = vunpack.c.l.b16 %v355
  %v1969 = vunpack.c.h.b16 %v355
  %v1970 = vunpack.c.l.b16 %v356
  %v1971 = vunpack.c.h.b16 %v356
  %v1972 = vunpack.c.l.b16 %v357
  %v1973 = vunpack.c.h.b16 %v357
  %v1974 = vunpack.c.l.b16 %v358
  %v1975 = vunpack.c.h.b16 %v358
  %v1976 = vunpack.c.l.b16 %v359
  %v1977 = vunpack.c.h.b16 %v359
  %v1978 = vunpack.c.l.b16 %v360
  %v1979 = vunpack.c.h.b16 %v360
  %v1980 = vunpack.c.l.b16 %v361
  %v1981 = vunpack.c.h.b16 %v361
  %v1982 = vunpack.c.l.b16 %v362
  %v1983 = vunpack.c.h.b16 %v362
  %v1984 = vunpack.c.l.b16 %v363
  %v1985 = vunpack.c.h.b16 %v363
  %v1986 = vunpack.c.l.b16 %v364
  %v1987 = vunpack.c.h.b16 %v364
  %v1988 = vunpack.c.l.b16 %v365
  %v1989 = vunpack.c.h.b16 %v365
  %v1990 = vunpack.c.l.b16 %v366
  %v1991 = vunpack.c.h.b16 %v366
  %v1992 = vunpack.c.l.b16 %v367
  %v1993 = vunpack.c.h.b16 %v367
  %v1994 = vunpack.c.l.b16 %v368
  %v1995 = vunpack.c.h.b16 %v368
  %v1996 = vunpack.c.l.b16 %v369
  %v1997 = vunpack.c.h.b16 %v369
  %v1998 = vunpack.c.l.b16 %v370
  %v1999 = vunpack.c.h.b16 %v370
  %v2000 = vunpack.c.l.b16 %v371
  %v2001 = vunpack.c.h.b16 %v371
  %v2002 = vunpack.c.l.b16 %v372
  %v2003 = vunpack.c.h.b16 %v372
  %v2004 = vunpack.c.l.b16 %v373
  %v2005 = vunpack.c.h.b16 %v373
  %v2006 = vunpack.c.l.b16 %v374
  %v2007 = vunpack.c.h.b16 %v374
  %v2008 = vunpack.c.l.b16 %v375
  %v2009 = vunpack.c.h.b16 %v375
  %v2010 = vunpack.c.l.b16 %v376
  %v2011 = vunpack.c.h.b16 %v376
  %v2012 = vunpack.c.l.b16 %v377
  %v2013 = vunpack.c.h.b16 %v377
  %v2014 = vunpack.c.l.b16 %v378
  %v2015 = vunpack.c.h.b16 %v378
  %v2016 = vunpack.c.l.b16 %v379
  %v2017 = vunpack.c.h.b16 %v379
  %v2018 = vunpack.c.l.b16 %v380
  %v2019 = vunpack.c.h.b16 %v380
  %v2020 = vunpack.c.l.b16 %v381
  %v2021 = vunpack.c.h.b16 %v381
  %v2022 = vunpack.c.l.b16 %v382
  %v2023 = vunpack.c.h.b16 %v382
  %v2024 = vunpack.c.l.b16 %v383
  %v2025 = vunpack.c.h.b16 %v383
  %v2026 = vunpack.c.l.b16 %v384
  %v2027 = vunpack.c.h.b16 %v384
  %v2028 = vunpack.c.l.b16 %v385
  %v2029 = vunpack.c.h.b16 %v385
  %v2030 = vunpack.c.l.b16 %v386
  %v2031 = vunpack.c.h.b16 %v386
  %v2032 = vunpack.c.l.b16 %v387
  %v2033 = vunpack.c.h.b16 %v387
  %v2034 = vunpack.c.l.b16 %v388
  %v2035 = vunpack.c.h.b16 %v388
  %v2036 = vunpack.c.l.b16 %v389
  %v2037 = vunpack.c.h.b16 %v389
  %v2038 = vunpack.c.l.b16 %v390
  %v2039 = vunpack.c.h.b16 %v390
  %v2040 = vunpack.c.l.b16 %v391
  %v2041 = vunpack.c.h.b16 %v391
  %v2042 = vunpack.c.l.b16 %v392
  %v2043 = vunpack.c.h.b16 %v392
  %v2044 = vunpack.c.l.b16 %v393
  %v2045 = vunpack.c.h.b16 %v393
  %v2046 = vunpack.c.l.b16 %v394
  %v2047 = vunpack.c.h.b16 %v394
  %v2048 = vunpack.c.l.b16 %v395
  %v2049 = vunpack.c.h.b16 %v395
  %v2050 = vunpack.c.l.b16 %v396
  %v2051 = vunpack.c.h.b16 %v396
  %v2052 = vunpack.c.l.b16 %v397
  %v2053 = vunpack.c.h.b16 %v397
  %v2054 = vunpack.c.l.b16 %v398
  %v2055 = vunpack.c.h.b16 %v398
  %v2056 = vunpack.c.l.b16 %v399
  %v2057 = vunpack.c.h.b16 %v399
  %v2058 = vunpack.c.l.b16 %v400
  %v2059 = vunpack.c.h.b16 %v400
  %v2060 = vunpack.c.l.b16 %v401
  %v2061 = vunpack.c.h.b16 %v401
  %v2062 = vunpack.c.l.b16 %v402
  %v2063 = vunpack.c.h.b16 %v402
  %v2064 = vunpack.c.l.b16 %v403
  %v2065 = vunpack.c.h.b16 %v403
  %v2066 = vunpack.c.l.b16 %v404
  %v2067 = vunpack.c.h.b16 %v404
  %v2068 = vunpack.c.l.b16 %v405
  %v2069 = vunpack.c.h.b16 %v405
  %v2070 = vunpack.c.l.b16 %v406
  %v2071 = vunpack.c.h.b16 %v406
  %v2072 = vunpack.c.l.b16 %v407
  %v2073 = vunpack.c.h.b16 %v407
  %v2074 = vunpack.c.l.b16 %v408
  %v2075 = vunpack.c.h.b16 %v408
  %v2076 = vunpack.c.l.b16 %v409
  %v2077 = vunpack.c.h.b16 %v409
  %v2078 = vunpack.c.l.b16 %v410
  %v2079 = vunpack.c.h.b16 %v410
  %v2080 = vunpack.c.l.b16 %v411
  %v2081 = vunpack.c.h.b16 %v411
  %v2082 = vunpack.c.l.b16 %v412
  %v2083 = vunpack.c.h.b16 %v412
  %v2084 = vunpack.c.l.b16 %v413
  %v2085 = vunpack.c.h.b16 %v413
  %v2086 = vunpack.c.l.b16 %v414
  %v2087 = vunpack.c.h.b16 %v414
  %v2088 = vunpack.c.l.b16 %v415
  %v2089 = vunpack.c.h.b16 %v415
  %v2090 = vunpack.c.l.b16 %v416
  %v2091 = vunpack.c.h.b16 %v416
  %v2092 = vunpack.c.l.b16 %v417
  %v2093 = vunpack.c.h.b16 %v417
  %v2094 = vunpack.c.l.b16 %v418
  %v2095 = vunpack.c.h.b16 %v418
  %v2096 = vunpack.c.l.b16 %v419
  %v2097 = vunpack.c.h.b16 %v419
  %v2098 = vunpack.c.l.b16 %v420
  %v2099 = vunpack.c.h.b16 %v420
  %v2100 = vunpack.c.l.b16 %v421
  %v2101 = vunpack.c.h.b16 %v421
  %v2102 = vunpack.c.l.b16 %v422
  %v2103 = vunpack.c.h.b16 %v422
  %v2104 = vunpack.c.l.b16 %v423
  %v2105 = vunpack.c.h.b16 %v423
  %v2106 = vunpack.c.l.b16 %v424
  %v2107 = vunpack.c.h.b16 %v424
  %v2108 = vunpack.c.l.b16 %v425
  %v2109 = vunpack.c.h.b16 %v425
  %v2110 = vunpack.c.l.b16 %v426
  %v2111 = vunpack.c.h.b16 %v426
  %v2112 = vunpack.c.l.b16 %v427
  %v2113 = vunpack.c.h.b16 %v427
  %v2114 = vunpack.c.l.b16 %v428
  %v2115 = vunpack.c.h.b16 %v428
  %v2116 = vunpack.c.l.b16 %v429
  %v2117 = vunpack.c.h.b16 %v429
  %v2118 = vunpack.c.l.b16 %v430
  %v2119 = vunpack.c.h.b16 %v430
  %v2120 = vunpack.c.l.b16 %v431
  %v2121 = vunpack.c.h.b16 %v431
  %v2122 = vunpack.c.l.b16 %v432
  %v2123 = vunpack.c.h.b16 %v432
  %v2124 = vunpack.c.l.b16 %v433
  %v2125 = vunpack.c.h.b16 %v433
  %v2126 = vunpack.c.l.b16 %v434
  %v2127 = vunpack.c.h.b16 %v434
  %v2128 = vunpack.c.l.b16 %v435
  %v2129 = vunpack.c.h.b16 %v435
  %v2130 = vunpack.c.l.b16 %v436
  %v2131 = vunpack.c.h.b16 %v436
  %v2132 = vunpack.c.l.b16 %v437
  %v2133 = vunpack.c.h.b16 %v437
  %v2134 = vunpack.c.l.b16 %v438
  %v2135 = vunpack.c.h.b16 %v438
  %v2136 = vunpack.c.l.b16 %v439
  %v2137 = vunpack.c.h.b16 %v439
  %v2138 = vunpack.c.l.b16 %v440
  %v2139 = vunpack.c.h.b16 %v440
  %v2140 = vunpack.c.l.b16 %v441
  %v2141 = vunpack.c.h.b16 %v441
  %v2142 = vunpack.c.l.b16 %v442
  %v2143 = vunpack.c.h.b16 %v442
  %v2144 = vunpack.c.l.b16 %v443
  %v2145 = vunpack.c.h.b16 %v443
  %v2146 = vunpack.c.l.b16 %v444
  %v2147 = vunpack.c.h.b16 %v444
  %v2148 = vunpack.c.l.b16 %v445
  %v2149 = vunpack.c.h.b16 %v445
  %v2150 = vunpack.c.l.b16 %v446
  %v2151 = vunpack.c.h.b16 %v446
  %v2152 = vunpack.c.l.b16 %v447
  %v2153 = vunpack.c.h.b16 %v447
  %v2154 = vunpack.c.l.b16 %v448
  %v2155 = vunpack.c.h.b16 %v448
  %v2156 = vunpack.c.l.b16 %v449
  %v2157 = vunpack.c.h.b16 %v449
  %v2158 = vunpack.c.l.b16 %v450
  %v2159 = vunpack.c.h.b16 %v450
  %v2160 = vunpack.c.l.b16 %v451
  %v2161 = vunpack.c.h.b16 %v451
  %v2162 = vunpack.c.l.b16 %v452
  %v2163 = vunpack.c.h.b16 %v452
  %v2164 = vunpack.c.l.b16 %v453
  %v2165 = vunpack.c.h.b16 %v453
  %v2166 = vunpack.c.l.b16 %v454
  %v2167 = vunpack.c.h.b16 %v454
  %v2168 = vunpack.c.l.b16 %v455
  %v2169 = vunpack.c.h.b16 %v455
  %v2170 = vunpack.c.l.b16 %v456
  %v2171 = vunpack.c.h.b16 %v456
  %v2172 = vunpack.c.l.b16 %v457
  %v2173 = vunpack.c.h.b16 %v457
  %v2174 = vunpack.c.l.b16 %v458
  %v2175 = vunpack.c.h.b16 %v458
  %v2176 = vunpack.c.l.b16 %v459
  %v2177 = vunpack.c.h.b16 %v459
  %v2178 = vunpack.c.l.b16 %v460
  %v2179 = vunpack.c.h.b16 %v460
  %v2180 = vunpack.c.l.b16 %v461
  %v2181 = vunpack.c.h.b16 %v461
  %v2182 = vunpack.c.l.b16 %v462
  %v2183 = vunpack.c.h.b16 %v462
  %v2184 = vunpack.c.l.b16 %v463
  %v2185 = vunpack.c.h.b16 %v463
  %v2186 = vunpack.c.l.b16 %v464
  %v2187 = vunpack.c.h.b16 %v464
  %v2188 = vunpack.c.l.b16 %v465
  %v2189 = vunpack.c.h.b16 %v465
  %v2190 = vunpack.c.l.b16 %v466
  %v2191 = vunpack.c.h.b16 %v466
  %v2192 = vunpack.c.l.b16 %v467
  %v2193 = vunpack.c.h.b16 %v467
  %v2194 = vunpack.c.l.b16 %v468
  %v2195 = vunpack.c.h.b16 %v468
  %v2196 = vunpack.c.l.b16 %v469
  %v2197 = vunpack.c.h.b16 %v469
  %v2198 = vunpack.c.l.b16 %v470
  %v2199 = vunpack.c.h.b16 %v470
  %v2200 = vunpack.c.l.b16 %v471
  %v2201 = vunpack.c.h.b16 %v471
  %v2202 = vunpack.c.l.b16 %v472
  %v2203 = vunpack.c.h.b16 %v472
  %v2204 = vunpack.c.l.b16 %v473
  %v2205 = vunpack.c.h.b16 %v473
  %v2206 = vunpack.c.l.b16 %v474
  %v2207 = vunpack.c.h.b16 %v474
  %v2208 = vunpack.c.l.b16 %v475
  %v2209 = vunpack.c.h.b16 %v475
  %v2210 = vunpack.c.l.b16 %v476
  %v2211 = vunpack.c.h.b16 %v476
  %v2212 = vunpack.c.l.b16 %v477
  %v2213 = vunpack.c.h.b16 %v477
  %v2214 = vunpack.c.l.b16 %v478
  %v2215 = vunpack.c.h.b16 %v478
  %v2216 = vunpack.c.l.b16 %v479
  %v2217 = vunpack.c.h.b16 %v479
  %v2218 = vunpack.c.l.b16 %v480
  %v2219 = vunpack.c.h.b16 %v480
  %v2220 = vunpack.c.l.b16 %v481
  %v2221 = vunpack.c.h.b16 %v481
  %v2222 = vunpack.c.l.b16 %v482
  %v2223 = vunpack.c.h.b16 %v482
  %v2224 = vunpack.c.l.b16 %v483
  %v2225 = vunpack.c.h.b16 %v483
  %v2226 = vunpack.c.l.b16 %v484
  %v2227 = vunpack.c.h.b16 %v484
  %v2228 = vunpack.c.l.b16 %v485
  %v2229 = vunpack.c.h.b16 %v485
  %v2230 = vunpack.c.l.b16 %v486
  %v2231 = vunpack.c.h.b16 %v486
  %v2232 = vunpack.c.l.b16 %v487
  %v2233 = vunpack.c.h.b16 %v487
  %v2234 = vunpack.c.l.b16 %v488
  %v2235 = vunpack.c.h.b16 %v488
  %v2236 = vunpack.c.l.b16 %v489
  %v2237 = vunpack.c.h.b16 %v489
  %v2238 = vunpack.c.l.b16 %v490
  %v2239 = vunpack.c.h.b16 %v490
  %v2240 = vunpack.c.l.b16 %v491
  %v2241 = vunpack.c.h.b16 %v491
  %v2242 = vunpack.c.l.b16 %v492
  %v2243 = vunpack.c.h.b16 %v492
  %v2244 = vunpack.c.l.b16 %v493
  %v2245 = vunpack.c.h.b16 %v493
  %v2246 = vunpack.c.l.b16 %v494
  %v2247 = vunpack.c.h.b16 %v494
  %v2248 = vunpack.c.l.b16 %v495
  %v2249 = vunpack.c.h.b16 %v495
  %v2250 = vunpack.c.l.b16 %v496
  %v2251 = vunpack.c.h.b16 %v496
  %v2252 = vunpack.c.l.b16 %v497
  %v2253 = vunpack.c.h.b16 %v497
  %v2254 = vunpack.c.l.b16 %v498
  %v2255 = vunpack.c.h.b16 %v498
  %v2256 = vunpack.c.l.b16 %v499
  %v2257 = vunpack.c.h.b16 %v499
  %v2258 = vunpack.c.l.b16 %v500
  %v2259 = vunpack.c.h.b16 %v500
  %v2260 = vunpack.c.l.b16 %v501
  %v2261 = vunpack.c.h.b16 %v501
  %v2262 = vunpack.c.l.b16 %v502
  %v2263 = vunpack.c.h.b16 %v502
  %v2264 = vunpack.c.l.b16 %v503
  %v2265 = vunpack.c.h.b16 %v503
  %v2266 = vunpack.c.l.b16 %v504
  %v2267 = vunpack.c.h.b16 %v504
  %v2268 = vunpack.c.l.b16 %v505
  %v2269 = vunpack.c.h.b16 %v505
  %v2270 = vunpack.c.l.b16 %v506
  %v2271 = vunpack.c.h.b16 %v506
  %v2272 = vunpack.c.l.b16 %v507
  %v2273 = vunpack.c.h.b16 %v507
  %v2274 = vunpack.c.l.b16 %v508
  %v2275 = vunpack.c.h.b16 %v508
  %v2276 = vunpack.c.l.b16 %v509
  %v2277 = vunpack.c.h.b16 %v509
  %v2278 = vunpack.c.l.b16 %v510
  %v2279 = vunpack.c.h.b16 %v510
  %v2280 = vunpack.c.l.b16 %v511
  %v2281 = vunpack.c.h.b16 %v511
  %v2282 = vunpack.c.l.b16 %v512
  %v2283 = vunpack.c.h.b16 %v512
  %v2284 = vunpack.c.l.b16 %v513
  %v2285 = vunpack.c.h.b16 %v513
  %v2286 = vunpack.c.l.b16 %v514
  %v2287 = vunpack.c.h.b16 %v514
  %v2288 = vunpack.c.l.b16 %v515
  %v2289 = vunpack.c.h.b16 %v515
  %v2290 = vunpack.c.l.b16 %v516
  %v2291 = vunpack.c.h.b16 %v516
  %v2292 = vunpack.c.l.b16 %v517
  %v2293 = vunpack.c.h.b16 %v517
  %v2294 = vunpack.c.l.b16 %v518
  %v2295 = vunpack.c.h.b16 %v518
  %v2296 = vunpack.c.l.b16 %v519
  %v2297 = vunpack.c.h.b16 %v519
  %v2298 = vunpack.c.l.b16 %v520
  %v2299 = vunpack.c.h.b16 %v520
  %v2300 = vunpack.c.l.b16 %v521
  %v2301 = vunpack.c.h.b16 %v521
  %v2302 = vunpack.c.l.b16 %v522
  %v2303 = vunpack.c.h.b16 %v522
  %v2304 = vunpack.c.l.b16 %v523
  %v2305 = vunpack.c.h.b16 %v523
  %v2306 = vunpack.c.l.b16 %v524
  %v2307 = vunpack.c.h.b16 %v524
  %v2308 = vunpack.c.l.b16 %v525
  %v2309 = vunpack.c.h.b16 %v525
  %v2310 = vunpack.c.l.b16 %v526
  %v2311 = vunpack.c.h.b16 %v526
  %v2312 = vunpack.c.l.b16 %v527
  %v2313 = vunpack.c.h.b16 %v527
  %v2314 = vunpack.c.l.b16 %v528
  %v2315 = vunpack.c.h.b16 %v528
  %v2316 = vunpack.c.l.b16 %v529
  %v2317 = vunpack.c.h.b16 %v529
  %v2318 = vunpack.c.l.b16 %v530
  %v2319 = vunpack.c.h.b16 %v530
  %v2320 = vunpack.c.l.b16 %v531
  %v2321 = vunpack.c.h.b16 %v531
  %v2322 = vunpack.c.l.b16 %v532
  %v2323 = vunpack.c.h.b16 %v532
  %v2324 = vunpack.c.l.b16 %v533
  %v2325 = vunpack.c.h.b16 %v533
  %v2326 = vunpack.c.l.b16 %v534
  %v2327 = vunpack.c.h.b16 %v534
  %v2328 = vunpack.c.l.b16 %v535
  %v2329 = vunpack.c.h.b16 %v535
  %v2330 = vunpack.c.l.b16 %v536
  %v2331 = vunpack.c.h.b16 %v536
  %v2332 = vunpack.c.l.b16 %v537
  %v2333 = vunpack.c.h.b16 %v537
  %v2334 = vunpack.c.l.b16 %v538
  %v2335 = vunpack.c.h.b16 %v538
  %v2336 = vunpack.c.l.b16 %v539
  %v2337 = vunpack.c.h.b16 %v539
  %v2338 = vunpack.c.l.b16 %v540
  %v2339 = vunpack.c.h.b16 %v540
  %v2340 = vunpack.c.l.b16 %v541
  %v2341 = vunpack.c.h.b16 %v541
  %v2342 = vunpack.c.l.b16 %v542
  %v2343 = vunpack.c.h.b16 %v542
  %v2344 = vunpack.c.l.b16 %v543
  %v2345 = vunpack.c.h.b16 %v543
  %v2346 = vunpack.c.l.b16 %v544
  %v2347 = vunpack.c.h.b16 %v544
  %v2348 = vunpack.c.l.b16 %v545
  %v2349 = vunpack.c.h.b16 %v545
  %v2350 = vunpack.c.l.b16 %v546
  %v2351 = vunpack.c.h.b16 %v546
  %v2352 = vunpack.c.l.b16 %v547
  %v2353 = vunpack.c.h.b16 %v547
  %v2354 = vunpack.c.l.b16 %v548
  %v2355 = vunpack.c.h.b16 %v548
  %v2356 = vunpack.c.l.b16 %v549
  %v2357 = vunpack.c.h.b16 %v549
  %v2358 = vunpack.c.l.b16 %v550
  %v2359 = vunpack.c.h.b16 %v550
  %v2360 = vunpack.c.l.b16 %v551
  %v2361 = vunpack.c.h.b16 %v551
  %v2362 = vunpack.c.l.b16 %v552
  %v2363 = vunpack.c.h.b16 %v552
  %v2364 = vunpack.c.l.b16 %v553
  %v2365 = vunpack.c.h.b16 %v553
  %v2366 = vunpack.c.l.b16 %v554
  %v2367 = vunpack.c.h.b16 %v554
  %v2368 = vunpack.c.l.b16 %v555
  %v2369 = vunpack.c.h.b16 %v555
  %v2370 = vunpack.c.l.b16 %v556
  %v2371 = vunpack.c.h.b16 %v556
  %v2372 = vunpack.c.l.b16 %v557
  %v2373 = vunpack.c.h.b16 %v557
  %v2374 = vunpack.c.l.b16 %v558
  %v2375 = vunpack.c.h.b16 %v558
  %v2376 = vunpack.c.l.b16 %v559
  %v2377 = vunpack.c.h.b16 %v559
  %v2378 = vunpack.c.l.b16 %v560
  %v2379 = vunpack.c.h.b16 %v560
  %v2380 = vunpack.c.l.b16 %v561
  %v2381 = vunpack.c.h.b16 %v561
  %v2382 = vunpack.c.l.b16 %v562
  %v2383 = vunpack.c.h.b16 %v562
  %v2384 = vunpack.c.l.b16 %v563
  %v2385 = vunpack.c.h.b16 %v563
  %v2386 = vunpack.c.l.b16 %v564
  %v2387 = vunpack.c.h.b16 %v564
  %v2388 = vunpack.c.l.b16 %v565
  %v2389 = vunpack.c.h.b16 %v565
  %v2390 = vunpack.c.l.b16 %v566
  %v2391 = vunpack.c.h.b16 %v566
  %v2392 = vunpack.c.l.b16 %v567
  %v2393 = vunpack.c.h.b16 %v567
  %v2394 = vunpack.c.l.b16 %v568
  %v2395 = vunpack.c.h.b16 %v568
  %v2396 = vunpack.c.l.b16 %v569
  %v2397 = vunpack.c.h.b16 %v569
  %v2398 = vunpack.c.l.b16 %v570
  %v2399 = vunpack.c.h.b16 %v570
  %v2400 = vunpack.c.l.b16 %v571
  %v2401 = vunpack.c.h.b16 %v571
  %v2402 = vunpack.c.l.b16 %v572
  %v2403 = vunpack.c.h.b16 %v572
  %v2404 = vunpack.c.l.b16 %v573
  %v2405 = vunpack.c.h.b16 %v573
  %v2406 = vunpack.c.l.b16 %v574
  %v2407 = vunpack.c.h.b16 %v574
  %v2408 = vunpack.c.l.b16 %v575
  %v2409 = vunpack.c.h.b16 %v575
  %v2410 = vunpack.c.l.b16 %v576
  %v2411 = vunpack.c.h.b16 %v576
  %v2412 = vunpack.c.l.b16 %v577
  %v2413 = vunpack.c.h.b16 %v577
  %v2414 = vunpack.c.l.b16 %v578
  %v2415 = vunpack.c.h.b16 %v578
  %v2416 = vunpack.c.l.b16 %v579
  %v2417 = vunpack.c.h.b16 %v579
  %v2418 = vunpack.c.l.b16 %v580
  %v2419 = vunpack.c.h.b16 %v580
  %v2420 = vunpack.c.l.b16 %v581
  %v2421 = vunpack.c.h.b16 %v581
  %v2422 = vunpack.c.l.b16 %v582
  %v2423 = vunpack.c.h.b16 %v582
  %v2424 = vunpack.c.l.b16 %v583
  %v2425 = vunpack.c.h.b16 %v583
  %v2426 = vunpack.c.l.b16 %v584
  %v2427 = vunpack.c.h.b16 %v584
  %v2428 = vunpack.c.l.b16 %v585
  %v2429 = vunpack.c.h.b16 %v585
  %v2430 = vunpack.c.l.b16 %v586
  %v2431 = vunpack.c.h.b16 %v586
  %v2432 = vunpack.c.l.b16 %v587
  %v2433 = vunpack.c.h.b16 %v587
  %v2434 = vunpack.c.l.b16 %v588
  %v2435 = vunpack.c.h.b16 %v588
  %v2436 = vunpack.c.l.b16 %v589
  %v2437 = vunpack.c.h.b16 %v589
  %v2438 = vunpack.c.l.b16 %v590
  %v2439 = vunpack.c.h.b16 %v590
  %v2440 = vunpack.c.l.b16 %v591
  %v2441 = vunpack.c.h.b16 %v591
  %v2442 = vunpack.c.l.b16 %v592
  %v2443 = vunpack.c.h.b16 %v592
  %v2444 = vunpack.c.l.b16 %v593
  %v2445 = vunpack.c.h.b16 %v593
  %v2446 = vunpack.c.l.b16 %v594
  %v2447 = vunpack.c.h.b16 %v594
  %v2448 = vunpack.c.l.b16 %v595
  %v2449 = vunpack.c.h.b16 %v595
  %v2450 = vunpack.c.l.b16 %v596
  %v2451 = vunpack.c.h.b16 %v596
  %v2452 = vunpack.c.l.b16 %v597
  %v2453 = vunpack.c.h.b16 %v597
  %v2454 = vunpack.c.l.b16 %v598
  %v2455 = vunpack.c.h.b16 %v598
  %v2456 = vunpack.c.l.b16 %v599
  %v2457 = vunpack.c.h.b16 %v599
  %v2458 = vunpack.c.l.b16 %v600
  %v2459 = vunpack.c.h.b16 %v600
  %v2460 = vunpack.c.l.b16 %v601
  %v2461 = vunpack.c.h.b16 %v601
  %v2462 = vunpack.c.l.b16 %v602
  %v2463 = vunpack.c.h.b16 %v602
  %v2464 = vunpack.c.l.b16 %v603
  %v2465 = vunpack.c.h.b16 %v603
  %v2466 = vunpack.c.l.b16 %v604
  %v2467 = vunpack.c.h.b16 %v604
  %v2468 = vunpack.c.l.b16 %v605
  %v2469 = vunpack.c.h.b16 %v605
  %v2470 = vunpack.c.l.b16 %v606
  %v2471 = vunpack.c.h.b16 %v606
  %v2472 = vunpack.c.l.b16 %v607
  %v2473 = vunpack.c.h.b16 %v607
  %v2474 = vpack.c.b16 %v1324, %v1322
  %v2475 = vpack.c.b16 %v1325, %v1323
  %v2476 = vpack.c.b16 %v1328, %v1326
  %v2477 = vpack.c.b16 %v1329, %v1327
  %v2478 = vpack.c.b16 %v1332, %v1330
  %v2479 = vpack.c.b16 %v1333, %v1331
  %v2480 = vpack.c.b16 %v1336, %v1334
  %v2481 = vpack.c.b16 %v1337, %v1335
  %v2482 = vpack.c.b16 %v1340, %v1338
  %v2483 = vpack.c.b16 %v1341, %v1339
  %v2484 = vpack.c.b16 %v1344, %v1342
  %v2485 = vpack.c.b16 %v1345, %v1343
  %v2486 = vpack.c.b16 %v1348, %v1346
  %v2487 = vpack.c.b16 %v1349, %v1347
  %v2488 = vpack.c.b16 %v1352, %v1350
  %v2489 = vpack.c.b16 %v1353, %v1351
  %v2490 = vpack.c.b16 %v1356, %v1354
  %v2491 = vpack.c.b16 %v1357, %v1355
  %v2492 = vpack.c.b16 %v1360, %v1358
  %v2493 = vpack.c.b16 %v1361, %v1359
  %v2494 = vpack.c.b16 %v1364, %v1362
  %v2495 = vpack.c.b16 %v1365, %v1363
  %v2496 = vpack.c.b16 %v1368, %v1366
  %v2497 = vpack.c.b16 %v1369, %v1367
  %v2498 = vpack.c.b16 %v1372, %v1370
  %v2499 = vpack.c.b16 %v1373, %v1371
  %v2500 = vpack.c.b16 %v1376, %v1374
  %v2501 = vpack.c.b16 %v1377, %v1375
  %v2502 = vpack.c.b16 %v1380, %v1378
  %v2503 = vpack.c.b16 %v1381, %v1379
  %v2504 = vpack.c.b16 %v1384, %v1382
  %v2505 = vpack.c.b16 %v1385, %v1383
  %v2506 = vpack.c.b16 %v1388, %v1386
  %v2507 = vpack.c.b16 %v1389, %v1387
  %v2508 = vpack.c.b16 %v1392, %v1390
  %v2509 = vpack.c.b16 %v1393, %v1391
  %v2510 = vpack.c.b16 %v1396, %v1394
  %v2511 = vpack.c.b16 %v1397, %v1395
  %v2512 = vpack.c.b16 %v1400, %v1398
  %v2513 = vpack.c.b16 %v1401, %v1399
  %v2514 = vpack.c.b16 %v1404, %v1402
  %v2515 = vpack.c.b16 %v1405, %v1403
  %v2516 = vpack.c.b16 %v1408, %v1406
  %v2517 = vpack.c.b16 %v1409, %v1407
  %v2518 = vpack.c.b16 %v1412, %v1410
  %v2519 = vpack.c.b16 %v1413, %v1411
  %v2520 = vpack.c.b16 %v1416, %v1414
  %v2521 = vpack.c.b16 %v1417, %v1415
  %v2522 = vpack.c.b16 %v1420, %v1418
  %v2523 = vpack.c.b16 %v1421, %v1419
  %v2524 = vpack.c.b16 %v1424, %v1422
  %v2525 = vpack.c.b16 %v1425, %v1423
  %v2526 = vpack.c.b16 %v1428, %v1426
  %v2527 = vpack.c.b16 %v1429, %v1427
  %v2528 = vpack.c.b16 %v1432, %v1430
  %v2529 = vpack.c.b16 %v1433, %v1431
  %v2530 = vpack.c.b16 %v1436, %v1434
  %v2531 = vpack.c.b16 %v1437, %v1435
  %v2532 = vpack.c.b16 %v1440, %v1438
  %v2533 = vpack.c.b16 %v1441, %v1439
  %v2534 = vpack.c.b16 %v1444, %v1442
  %v2535 = vpack.c.b16 %v1445, %v1443
  %v2536 = vpack.c.b16 %v1448, %v1446
  %v2537 = vpack.c.b16 %v1449, %v1447
  %v2538 = vpack.c.b16 %v1452, %v1450
  %v2539 = vpack.c.b16 %v1453, %v1451
  %v2540 = vpack.c.b16 %v1456, %v1454
  %v2541 = vpack.c.b16 %v1457, %v1455
  %v2542 = vpack.c.b16 %v1460, %v1458
  %v2543 = vpack.c.b16 %v1461, %v1459
  %v2544 = vpack.c.b16 %v1464, %v1462
  %v2545 = vpack.c.b16 %v1465, %v1463
  %v2546 = vpack.c.b16 %v1468, %v1466
  %v2547 = vpack.c.b16 %v1469, %v1467
  %v2548 = vpack.c.b16 %v1472, %v1470
  %v2549 = vpack.c.b16 %v1473, %v1471
  %v2550 = vpack.c.b16 %v1476, %v1474
  %v2551 = vpack.c.b16 %v1477, %v1475
  %v2552 = vpack.c.b16 %v1480, %v1478
  %v2553 = vpack.c.b16 %v1481, %v1479
  %v2554 = vpack.c.b16 %v1484, %v1482
  %v2555 = vpack.c.b16 %v1485, %v1483
  %v2556 = vpack.c.b16 %v1488, %v1486
  %v2557 = vpack.c.b16 %v1489, %v1487
  %v2558 = vpack.c.b16 %v1492, %v1490
  %v2559 = vpack.c.b16 %v1493, %v1491
  %v2560 = vpack.c.b16 %v1496, %v1494
  %v2561 = vpack.c.b16 %v1497, %v1495
  %v2562 = vpack.c.b16 %v1500, %v1498
  %v2563 = vpack.c.b16 %v1501, %v1499
  %v2564 = vpack.c.b16 %v1504, %v1502
  %v2565 = vpack.c.b16 %v1505, %v1503
  %v2566 = vpack.c.b16 %v1508, %v1506
  %v2567 = vpack.c.b16 %v1509, %v1507
  %v2568 = vpack.c.b16 %v1512, %v1510
  %v2569 = vpack.c.b16 %v1513, %v1511
  %v2570 = vpack.c.b16 %v1516, %v1514
  %v2571 = vpack.c.b16 %v1517, %v1515
  %v2572 = vpack.c.b16 %v1520, %v1518
  %v2573 = vpack.c.b16 %v1521, %v1519
  %v2574 = vpack.c.b16 %v1524, %v1522
  %v2575 = vpack.c.b16 %v1525, %v1523
  %v2576 = vpack.c.b16 %v1528, %v1526
  %v2577 = vpack.c.b16 %v1529, %v1527
  %v2578 = vpack.c.b16 %v1532, %v1530
  %v2579 = vpack.c.b16 %v1533, %v1531
  %v2580 = vpack.c.b16 %v1536, %v1534
  %v2581 = vpack.c.b16 %v1537, %v1535
  %v2582 = vpack.c.b16 %v1540, %v1538
  %v2583 = vpack.c.b16 %v1541, %v1539
  %v2584 = vpack.c.b16 %v1544, %v1542
  %v2585 = vpack.c.b16 %v1545, %v1543
  %v2586 = vpack.c.b16 %v1548, %v1546
  %v2587 = vpack.c.b16 %v1549, %v1547
  %v2588 = vpack.c.b16 %v1552, %v1550
  %v2589 = vpack.c.b16 %v1553, %v1551
  %v2590 = vpack.c.b16 %v1556, %v1554
  %v2591 = vpack.c.b16 %v1557, %v1555
  %v2592 = vpack.c.b16 %v1560, %v1558
  %v2593 = vpack.c.b16 %v1561, %v1559
  %v2594 = vpack.c.b16 %v1564, %v1562
  %v2595 = vpack.c.b16 %v1565, %v1563
  %v2596 = vpack.c.b16 %v1568, %v1566
  %v2597 = vpack.c.b16 %v1569, %v1567
  %v2598 = vpack.c.b16 %v1572, %v1570
  %v2599 = vpack.c.b16 %v1573, %v1571
  %v2600 = vpack.c.b16 %v1576, %v1574
  %v2601 = vpack.c.b16 %v1577, %v1575
  %v2602 = vpack.c.b16 %v1580, %v1578
  %v2603 = vpack.c.b16 %v1581, %v1579
  %v2604 = vpack.c.b16 %v1584, %v1582
  %v2605 = vpack.c.b16 %v1585, %v1583
  %v2606 = vpack.c.b16 %v1588, %v1586
  %v2607 = vpack.c.b16 %v1589, %v1587
  %v2608 = vpack.c.b16 %v1592, %v1590
  %v2609 = vpack.c.b16 %v1593, %v1591
  %v2610 = vpack.c.b16 %v1596, %v1594
  %v2611 = vpack.c.b16 %v1597, %v1595
  %v2612 = vpack.c.b16 %v1600, %v1598
  %v2613 = vpack.c.b16 %v1601, %v1599
  %v2614 = vpack.c.b16 %v1604, %v1602
  %v2615 = vpack.c.b16 %v1605, %v1603
  %v2616 = vpack.c.b16 %v1608, %v1606
  %v2617 = vpack.c.b16 %v1609, %v1607
  %v2618 = vpack.c.b16 %v1612, %v1610
  %v2619 = vpack.c.b16 %v1613, %v1611
  %v2620 = vpack.c.b16 %v1616, %v1614
  %v2621 = vpack.c.b16 %v1617, %v1615
  %v2622 = vpack.c.b16 %v1620, %v1618
  %v2623 = vpack.c.b16 %v1621, %v1619
  %v2624 = vpack.c.b16 %v1624, %v1622
  %v2625 = vpack.c.b16 %v1625, %v1623
  %v2626 = vpack.c.b16 %v1628, %v1626
  %v2627 = vpack.c.b16 %v1629, %v1627
  %v2628 = vpack.c.b16 %v1632, %v1630
  %v2629 = vpack.c.b16 %v1633, %v1631
  %v2630 = vpack.c.b16 %v1636, %v1634
  %v2631 = vpack.c.b16 %v1637, %v1635
  %v2632 = vpack.c.b16 %v1640, %v1638
  %v2633 = vpack.c.b16 %v1641, %v1639
  %v2634 = vpack.c.b16 %v1644, %v1642
  %v2635 = vpack.c.b16 %v1645, %v1643
  %v2636 = vpack.c.b16 %v1648, %v1646
  %v2637 = vpack.c.b16 %v1649, %v1647
  %v2638 = vpack.c.b16 %v1652, %v1650
  %v2639 = vpack.c.b16 %v1653, %v1651
  %v2640 = vpack.c.b16 %v1656, %v1654
  %v2641 = vpack.c.b16 %v1657, %v1655
  %v2642 = vpack.c.b16 %v1660, %v1658
  %v2643 = vpack.c.b16 %v1661, %v1659
  %v2644 = vpack.c.b16 %v1664, %v1662
  %v2645 = vpack.c.b16 %v1665, %v1663
  %v2646 = vpack.c.b16 %v1668, %v1666
  %v2647 = vpack.c.b16 %v1669, %v1667
  %v2648 = vpack.c.b16 %v1672, %v1670
  %v2649 = vpack.c.b16 %v1673, %v1671
  %v2650 = vpack.c.b16 %v1676, %v1674
  %v2651 = vpack.c.b16 %v1677, %v1675
  %v2652 = vpack.c.b16 %v1680, %v1678
  %v2653 = vpack.c.b16 %v1681, %v1679
  %v2654 = vpack.c.b16 %v1684, %v1682
  %v2655 = vpack.c.b16 %v1685, %v1683
  %v2656 = vpack.c.b16 %v1688, %v1686
  %v2657 = vpack.c.b16 %v1689, %v1687
  %v2658 = vpack.c.b16 %v1692, %v1690
  %v2659 = vpack.c.b16 %v1693, %v1691
  %v2660 = vpack.c.b16 %v1696, %v1694
  %v2661 = vpack.c.b16 %v1697, %v1695
  %v2662 = vpack.c.b16 %v1700, %v1698
  %v2663 = vpack.c.b16 %v1701, %v1699
  %v2664 = vpack.c.b16 %v1704, %v1702
  %v2665 = vpack.c.b16 %v1705, %v1703
  %v2666 = vpack.c.b16 %v1708, %v1706
  %v2667 = vpack.c.b16 %v1709, %v1707
  %v2668 = vpack.c.b16 %v1712, %v1710
  %v2669 = vpack.c.b16 %v1713, %v1711
  %v2670 = vpack.c.b16 %v1716, %v1714
  %v2671 = vpack.c.b16 %v1717, %v1715
  %v2672 = vpack.c.b16 %v1720, %v1718
  %v2673 = vpack.c.b16 %v1721, %v1719
  %v2674 = vpack.c.b16 %v1724, %v1722
  %v2675 = vpack.c.b16 %v1725, %v1723
  %v2676 = vpack.c.b16 %v1728, %v1726
  %v2677 = vpack.c.b16 %v1729, %v1727
  %v2678 = vpack.c.b16 %v1732, %v1730
  %v2679 = vpack.c.b16 %v1733, %v1731
  %v2680 = vpack.c.b16 %v1736, %v1734
  %v2681 = vpack.c.b16 %v1737, %v1735
  %v2682 = vpack.c.b16 %v1740, %v1738
  %v2683 = vpack.c.b16 %v1741, %v1739
  %v2684 = vpack.c.b16 %v1744, %v1742
  %v2685 = vpack.c.b16 %v1745, %v1743
  %v2686 = vpack.c.b16 %v1748, %v1746
  %v2687 = vpack.c.b16 %v1749, %v1747
  %v2688 = vpack.c.b16 %v1752, %v1750
  %v2689 = vpack.c.b16 %v1753, %v1751
  %v2690 = vpack.c.b16 %v1756, %v1754
  %v2691 = vpack.c.b16 %v1757, %v1755
  %v2692 = vpack.c.b16 %v1760, %v1758
  %v2693 = vpack.c.b16 %v1761, %v1759
  %v2694 = vpack.c.b16 %v1764, %v1762
  %v2695 = vpack.c.b16 %v1765, %v1763
  %v2696 = vpack.c.b16 %v1768, %v1766
  %v2697 = vpack.c.b16 %v1769, %v1767
  %v2698 = vpack.c.b16 %v1772, %v1770
  %v2699 = vpack.c.b16 %v1773, %v1771
  %v2700 = vpack.c.b16 %v1776, %v1774
  %v2701 = vpack.c.b16 %v1777, %v1775
  %v2702 = vpack.c.b16 %v1780, %v1778
  %v2703 = vpack.c.b16 %v1781, %v1779
  %v2704 = vpack.c.b16 %v1784, %v1782
  %v2705 = vpack.c.b16 %v1785, %v1783
  %v2706 = vpack.c.b16 %v1788, %v1786
  %v2707 = vpack.c.b16 %v1789, %v1787
  %v2708 = vpack.c.b16 %v1792, %v1790
  %v2709 = vpack.c.b16 %v1793, %v1791
  %v2710 = vpack.c.b16 %v1796, %v1794
  %v2711 = vpack.c.b16 %v1797, %v1795
  %v2712 = vpack.c.b16 %v1800, %v1798
  %v2713 = vpack.c.b16 %v1801, %v1799
  %v2714 = vpack.c.b16 %v1804, %v1802
  %v2715 = vpack.c.b16 %v1805, %v1803
  %v2716 = vpack.c.b16 %v1808, %v1806
  %v2717 = vpack.c.b16 %v1809, %v1807
  %v2718 = vpack.c.b16 %v1812, %v1810
  %v2719 = vpack.c.b16 %v1813, %v1811
  %v2720 = vpack.c.b16 %v1816, %v1814
  %v2721 = vpack.c.b16 %v1817, %v1815
  %v2722 = vpack.c.b16 %v1820, %v1818
  %v2723 = vpack.c.b16 %v1821, %v1819
  %v2724 = vpack.c.b16 %v1824, %v1822
  %v2725 = vpack.c.b16 %v1825, %v1823
  %v2726 = vpack.c.b16 %v1828, %v1826
  %v2727 = vpack.c.b16 %v1829, %v1827
  %v2728 = vpack.c.b16 %v1832, %v1830
  %v2729 = vpack.c.b16 %v1833, %v1831
  %v2730 = vpack.c.b16 %v1836, %v1834
  %v2731 = vpack.c.b16 %v1837, %v1835
  %v2732 = vpack.c.b16 %v1840, %v1838
  %v2733 = vpack.c.b16 %v1841, %v1839
  %v2734 = vpack.c.b16 %v1844, %v1842
  %v2735 = vpack.c.b16 %v1845, %v1843
  %v2736 = vpack.c.b16 %v1848, %v1846
  %v2737 = vpack.c.b16 %v1849, %v1847
  %v2738 = vpack.c.b16 %v1852, %v1850
  %v2739 = vpack.c.b16 %v1853, %v1851
  %v2740 = vpack.c.b16 %v1856, %v1854
  %v2741 = vpack.c.b16 %v1857, %v1855
  %v2742 = vpack.c.b16 %v1860, %v1858
  %v2743 = vpack.c.b16 %v1861, %v1859
  %v2744 = vpack.c.b16 %v1864, %v1862
  %v2745 = vpack.c.b16 %v1865, %v1863
  %v2746 = vpack.c.b16 %v1868, %v1866
  %v2747 = vpack.c.b16 %v1869, %v1867
  %v2748 = vpack.c.b16 %v1872, %v1870
  %v2749 = vpack.c.b16 %v1873, %v1871
  %v2750 = vpack.c.b16 %v1876, %v1874
  %v2751 = vpack.c.b16 %v1877, %v1875
  %v2752 = vpack.c.b16 %v1880, %v1878
  %v2753 = vpack.c.b16 %v1881, %v1879
  %v2754 = vpack.c.b16 %v1884, %v1882
  %v2755 = vpack.c.b16 %v1885, %v1883
  %v2756 = vpack.c.b16 %v1888, %v1886
  %v2757 = vpack.c.b16 %v1889, %v1887
  %v2758 = vpack.c.b16 %v1892, %v1890
  %v2759 = vpack.c.b16 %v1893, %v1891
  %v2760 = vpack.c.b16 %v1896, %v1894
  %v2761 = vpack.c.b16 %v1897, %v1895
  %v2762 = vpack.c.b16 %v1900, %v1898
  %v2763 = vpack.c.b16 %v1901, %v1899
  %v2764 = vpack.c.b16 %v1904, %v1902
  %v2765 = vpack.c.b16 %v1905, %v1903
  %v2766 = vpack.c.b16 %v1908, %v1906
  %v2767 = vpack.c.b16 %v1909, %v1907
  %v2768 = vpack.c.b16 %v1912, %v1910
  %v2769 = vpack.c.b16 %v1913, %v1911
  %v2770 = vpack.c.b16 %v1916, %v1914
  %v2771 = vpack.c.b16 %v1917, %v1915
  %v2772 = vpack.c.b16 %v1920, %v1918
  %v2773 = vpack.c.b16 %v1921, %v1919
  %v2774 = vpack.c.b16 %v1924, %v1922
  %v2775 = vpack.c.b16 %v1925, %v1923
  %v2776 = vpack.c.b16 %v1928, %v1926
  %v2777 = vpack.c.b16 %v1929, %v1927
  %v2778 = vpack.c.b16 %v1932, %v1930
  %v2779 = vpack.c.b16 %v1933, %v1931
  %v2780 = vpack.c.b16 %v1936, %v1934
  %v2781 = vpack.c.b16 %v1937, %v1935
  %v2782 = vpack.c.b16 %v1940, %v1938
  %v2783 = vpack.c.b16 %v1941, %v1939
  %v2784 = vpack.c.b16 %v1944, %v1942
  %v2785 = vpack.c.b16 %v1945, %v1943
  %v2786 = vpack.c.b16 %v1948, %v1946
  %v2787 = vpack.c.b16 %v1949, %v1947
  %v2788 = vpack.c.b16 %v1952, %v1950
  %v2789 = vpack.c.b16 %v1953, %v1951
  %v2790 = vpack.c.b16 %v1956, %v1954
  %v2791 = vpack.c.b16 %v1957, %v1955
  %v2792 = vpack.c.b16 %v1960, %v1958
  %v2793 = vpack.c.b16 %v1961, %v1959
  %v2794 = vpack.c.b16 %v1964, %v1962
  %v2795 = vpack.c.b16 %v1965, %v1963
  %v2796 = vpack.c.b16 %v1968, %v1966
  %v2797 = vpack.c.b16 %v1969, %v1967
  %v2798 = vpack.c.b16 %v1972, %v1970
  %v2799 = vpack.c.b16 %v1973, %v1971
  %v2800 = vpack.c.b16 %v1976, %v1974
  %v2801 = vpack.c.b16 %v1977, %v1975
  %v2802 = vpack.c.b16 %v1980, %v1978
  %v2803 = vpack.c.b16 %v1981, %v1979
  %v2804 = vpack.c.b16 %v1984, %v1982
  %v2805 = vpack.c.b16 %v1985, %v1983
  %v2806 = vpack.c.b16 %v1988, %v1986
  %v2807 = vpack.c.b16 %v1989, %v1987
  %v2808 = vpack.c.b16 %v1992, %v1990
  %v2809 = vpack.c.b16 %v1993, %v1991
  %v2810 = vpack.c.b16 %v1996, %v1994
  %v2811 = vpack.c.b16 %v1997, %v1995
  %v2812 = vpack.c.b16 %v2000, %v1998
  %v2813 = vpack.c.b16 %v2001, %v1999
  %v2814 = vpack.c.b16 %v2004, %v2002
  %v2815 = vpack.c.b16 %v2005, %v2003
  %v2816 = vpack.c.b16 %v2008, %v2006
  %v2817 = vpack.c.b16 %v2009, %v2007
  %v2818 = vpack.c.b16 %v2012, %v2010
  %v2819 = vpack.c.b16 %v2013, %v2011
  %v2820 = vpack.c.b16 %v2016, %v2014
  %v2821 = vpack.c.b16 %v2017, %v2015
  %v2822 = vpack.c.b16 %v2020, %v2018
  %v2823 = vpack.c.b16 %v2021, %v2019
  %v2824 = vpack.c.b16 %v2024, %v2022
  %v2825 = vpack.c.b16 %v2025, %v2023
  %v2826 = vpack.c.b16 %v2028, %v2026
  %v2827 = vpack.c.b16 %v2029, %v2027
  %v2828 = vpack.c.b16 %v2032, %v2030
  %v2829 = vpack.c.b16 %v2033, %v2031
  %v2830 = vpack.c.b16 %v2036, %v2034
  %v2831 = vpack.c.b16 %v2037, %v2035
  %v2832 = vpack.c.b16 %v2040, %v2038
  %v2833 = vpack.c.b16 %v2041, %v2039
  %v2834 = vpack.c.b16 %v2044, %v2042
  %v2835 = vpack.c.b16 %v2045, %v2043
  %v2836 = vpack.c.b16 %v2048, %v2046
  %v2837 = vpack.c.b16 %v2049, %v2047
  %v2838 = vpack.c.b16 %v2052, %v2050
  %v2839 = vpack.c.b16 %v2053, %v2051
  %v2840 = vpack.c.b16 %v2056, %v2054
  %v2841 = vpack.c.b16 %v2057, %v2055
  %v2842 = vpack.c.b16 %v2060, %v2058
  %v2843 = vpack.c.b16 %v2061, %v2059
  %v2844 = vpack.c.b16 %v2064, %v2062
  %v2845 = vpack.c.b16 %v2065, %v2063
  %v2846 = vpack.c.b16 %v2068, %v2066
  %v2847 = vpack.c.b16 %v2069, %v2067
  %v2848 = vpack.c.b16 %v2072, %v2070
  %v2849 = vpack.c.b16 %v2073, %v2071
  %v2850 = vpack.c.b16 %v2076, %v2074
  %v2851 = vpack.c.b16 %v2077, %v2075
  %v2852 = vpack.c.b16 %v2080, %v2078
  %v2853 = vpack.c.b16 %v2081, %v2079
  %v2854 = vpack.c.b16 %v2084, %v2082
  %v2855 = vpack.c.b16 %v2085, %v2083
  %v2856 = vpack.c.b16 %v2088, %v2086
  %v2857 = vpack.c.b16 %v2089, %v2087
  %v2858 = vpack.c.b16 %v2092, %v2090
  %v2859 = vpack.c.b16 %v2093, %v2091
  %v2860 = vpack.c.b16 %v2096, %v2094
  %v2861 = vpack.c.b16 %v2097, %v2095
  %v2862 = vpack.c.b16 %v2100, %v2098
  %v2863 = vpack.c.b16 %v2101, %v2099
  %v2864 = vpack.c.b16 %v2104, %v2102
  %v2865 = vpack.c.b16 %v2105, %v2103
  %v2866 = vpack.c.b16 %v2108, %v2106
  %v2867 = vpack.c.b16 %v2109, %v2107
  %v2868 = vpack.c.b16 %v2112, %v2110
  %v2869 = vpack.c.b16 %v2113, %v2111
  %v2870 = vpack.c.b16 %v2116, %v2114
  %v2871 = vpack.c.b16 %v2117, %v2115
  %v2872 = vpack.c.b16 %v2120, %v2118
  %v2873 = vpack.c.b16 %v2121, %v2119
  %v2874 = vpack.c.b16 %v2124, %v2122
  %v2875 = vpack.c.b16 %v2125, %v2123
  %v2876 = vpack.c.b16 %v2128, %v2126
  %v2877 = vpack.c.b16 %v2129, %v2127
  %v2878 = vpack.c.b16 %v2132, %v2130
  %v2879 = vpack.c.b16 %v2133, %v2131
  %v2880 = vpack.c.b16 %v2136, %v2134
  %v2881 = vpack.c.b16 %v2137, %v2135
  %v2882 = vpack.c.b16 %v2140, %v2138
  %v2883 = vpack.c.b16 %v2141, %v2139
  %v2884 = vpack.c.b16 %v2144, %v2142
  %v2885 = vpack.c.b16 %v2145, %v2143
  %v2886 = vpack.c.b16 %v2148, %v2146
  %v2887 = vpack.c.b16 %v2149, %v2147
  %v2888 = vpack.c.b16 %v2152, %v2150
  %v2889 = vpack.c.b16 %v2153, %v2151
  %v2890 = vpack.c.b16 %v2156, %v2154
  %v2891 = vpack.c.b16 %v2157, %v2155
  %v2892 = vpack.c.b16 %v2160, %v2158
  %v2893 = vpack.c.b16 %v2161, %v2159
  %v2894 = vpack.c.b16 %v2164, %v2162
  %v2895 = vpack.c.b16 %v2165, %v2163
  %v2896 = vpack.c.b16 %v2168, %v2166
  %v2897 = vpack.c.b16 %v2169, %v2167
  %v2898 = vpack.c.b16 %v2172, %v2170
  %v2899 = vpack.c.b16 %v2173, %v2171
  %v2900 = vpack.c.b16 %v2176, %v2174
  %v2901 = vpack.c.b16 %v2177, %v2175
  %v2902 = vpack.c.b16 %v2180, %v2178
  %v2903 = vpack.c.b16 %v2181, %v2179
  %v2904 = vpack.c.b16 %v2184, %v2182
  %v2905 = vpack.c.b16 %v2185, %v2183
  %v2906 = vpack.c.b16 %v2188, %v2186
  %v2907 = vpack.c.b16 %v2189, %v2187
  %v2908 = vpack.c.b16 %v2192, %v2190
  %v2909 = vpack.c.b16 %v2193, %v2191
  %v2910 = vpack.c.b16 %v2196, %v2194
  %v2911 = vpack.c.b16 %v2197, %v2195
  %v2912 = vpack.c.b16 %v2200, %v2198
  %v2913 = vpack.c.b16 %v2201, %v2199
  %v2914 = vpack.c.b16 %v2204, %v2202
  %v2915 = vpack.c.b16 %v2205, %v2203
  %v2916 = vpack.c.b16 %v2208, %v2206
  %v2917 = vpack.c.b16 %v2209, %v2207
  %v2918 = vpack.c.b16 %v2212, %v2210
  %v2919 = vpack.c.b16 %v2213, %v2211
  %v2920 = vpack.c.b16 %v2216, %v2214
  %v2921 = vpack.c.b16 %v2217, %v2215
  %v2922 = vpack.c.b16 %v2220, %v2218
  %v2923 = vpack.c.b16 %v2221, %v2219
  %v2924 = vpack.c.b16 %v2224, %v2222
  %v2925 = vpack.c.b16 %v2225, %v2223
  %v2926 = vpack.c.b16 %v2228, %v2226
  %v2927 = vpack.c.b16 %v2229, %v2227
  %v2928 = vpack.c.b16 %v2232, %v2230
  %v2929 = vpack.c.b16 %v2233, %v2231
  %v2930 = vpack.c.b16 %v2236, %v2234
  %v2931 = vpack.c.b16 %v2237, %v2235
  %v2932 = vpack.c.b16 %v2240, %v2238
  %v2933 = vpack.c.b16 %v2241, %v2239
  %v2934 = vpack.c.b16 %v2244, %v2242
  %v2935 = vpack.c.b16 %v2245, %v2243
  %v2936 = vpack.c.b16 %v2248, %v2246
  %v2937 = vpack.c.b16 %v2249, %v2247
  %v2938 = vpack.c.b16 %v2252, %v2250
  %v2939 = vpack.c.b16 %v2253, %v2251
  %v2940 = vpack.c.b16 %v2256, %v2254
  %v2941 = vpack.c.b16 %v2257, %v2255
  %v2942 = vpack.c.b16 %v2260, %v2258
  %v2943 = vpack.c.b16 %v2261, %v2259
  %v2944 = vpack.c.b16 %v2264, %v2262
  %v2945 = vpack.c.b16 %v2265, %v2263
  %v2946 = vpack.c.b16 %v2268, %v2266
  %v2947 = vpack.c.b16 %v2269, %v2267
  %v2948 = vpack.c.b16 %v2272, %v2270
  %v2949 = vpack.c.b16 %v2273, %v2271
  %v2950 = vpack.c.b16 %v2276, %v2274
  %v2951 = vpack.c.b16 %v2277, %v2275
  %v2952 = vpack.c.b16 %v2280, %v2278
  %v2953 = vpack.c.b16 %v2281, %v2279
  %v2954 = vpack.c.b16 %v2284, %v2282
  %v2955 = vpack.c.b16 %v2285, %v2283
  %v2956 = vpack.c.b16 %v2288, %v2286
  %v2957 = vpack.c.b16 %v2289, %v2287
  %v2958 = vpack.c.b16 %v2292, %v2290
  %v2959 = vpack.c.b16 %v2293, %v2291
  %v2960 = vpack.c.b16 %v2296, %v2294
  %v2961 = vpack.c.b16 %v2297, %v2295
  %v2962 = vpack.c.b16 %v2300, %v2298
  %v2963 = vpack.c.b16 %v2301, %v2299
  %v2964 = vpack.c.b16 %v2304, %v2302
  %v2965 = vpack.c.b16 %v2305, %v2303
  %v2966 = vpack.c.b16 %v2308, %v2306
  %v2967 = vpack.c.b16 %v2309, %v2307
  %v2968 = vpack.c.b16 %v2312, %v2310
  %v2969 = vpack.c.b16 %v2313, %v2311
  %v2970 = vpack.c.b16 %v2316, %v2314
  %v2971 = vpack.c.b16 %v2317, %v2315
  %v2972 = vpack.c.b16 %v2320, %v2318
  %v2973 = vpack.c.b16 %v2321, %v2319
  %v2974 = vpack.c.b16 %v2324, %v2322
  %v2975 = vpack.c.b16 %v2325, %v2323
  %v2976 = vpack.c.b16 %v2328, %v2326
  %v2977 = vpack.c.b16 %v2329, %v2327
  %v2978 = vpack.c.b16 %v2332, %v2330
  %v2979 = vpack.c.b16 %v2333, %v2331
  %v2980 = vpack.c.b16 %v2336, %v2334
  %v2981 = vpack.c.b16 %v2337, %v2335
  %v2982 = vpack.c.b16 %v2340, %v2338
  %v2983 = vpack.c.b16 %v2341, %v2339
  %v2984 = vpack.c.b16 %v2344, %v2342
  %v2985 = vpack.c.b16 %v2345, %v2343
  %v2986 = vpack.c.b16 %v2348, %v2346
  %v2987 = vpack.c.b16 %v2349, %v2347
  %v2988 = vpack.c.b16 %v2352, %v2350
  %v2989 = vpack.c.b16 %v2353, %v2351
  %v2990 = vpack.c.b16 %v2356, %v2354
  %v2991 = vpack.c.b16 %v2357, %v2355
  %v2992 = vpack.c.b16 %v2360, %v2358
  %v2993 = vpack.c.b16 %v2361, %v2359
  %v2994 = vpack.c.b16 %v2364, %v2362
  %v2995 = vpack.c.b16 %v2365, %v2363
  %v2996 = vpack.c.b16 %v2368, %v2366
  %v2997 = vpack.c.b16 %v2369, %v2367
  %v2998 = vpack.c.b16 %v2372, %v2370
  %v2999 = vpack.c.b16 %v2373, %v2371
  %v3000 = vpack.c.b16 %v2376, %v2374
  %v3001 = vpack.c.b16 %v2377, %v2375
  %v3002 = vpack.c.b16 %v2380, %v2378
  %v3003 = vpack.c.b16 %v2381, %v2379
  %v3004 = vpack.c.b16 %v2384, %v2382
  %v3005 = vpack.c.b16 %v2385, %v2383
  %v3006 = vpack.c.b16 %v2388, %v2386
  %v3007 = vpack.c.b16 %v2389, %v2387
  %v3008 = vpack.c.b16 %v2392, %v2390
  %v3009 = vpack.c.b16 %v2393, %v2391
  %v3010 = vpack.c.b16 %v2396, %v2394
  %v3011 = vpack.c.b16 %v2397, %v2395
  %v3012 = vpack.c.b16 %v2400, %v2398
  %v3013 = vpack.c.b16 %v2401, %v2399
  %v3014 = vpack.c.b16 %v2404, %v2402
  %v3015 = vpack.c.b16 %v2405, %v2403
  %v3016 = vpack.c.b16 %v2408, %v2406
  %v3017 = vpack.c.b16 %v2409, %v2407
  %v3018 = vpack.c.b16 %v2412, %v2410
  %v3019 = vpack.c.b16 %v2413, %v2411
  %v3020 = vpack.c.b16 %v2416, %v2414
  %v3021 = vpack.c.b16 %v2417, %v2415
  %v3022 = vpack.c.b16 %v2420, %v2418
  %v3023 = vpack.c.b16 %v2421, %v2419
  %v3024 = vpack.c.b16 %v2424, %v2422
  %v3025 = vpack.c.b16 %v2425, %v2423
  %v3026 = vpack.c.b16 %v2428, %v2426
  %v3027 = vpack.c.b16 %v2429, %v2427
  %v3028 = vpack.c.b16 %v2432, %v2430
  %v3029 = vpack.c.b16 %v2433, %v2431
  %v3030 = vpack.c.b16 %v2436, %v2434
  %v3031 = vpack.c.b16 %v2437, %v2435
  %v3032 = vpack.c.b16 %v2440, %v2438
  %v3033 = vpack.c.b16 %v2441, %v2439
  %v3034 = vpack.c.b16 %v2444, %v2442
  %v3035 = vpack.c.b16 %v2445, %v2443
  %v3036 = vpack.c.b16 %v2448, %v2446
  %v3037 = vpack.c.b16 %v2449, %v2447
  %v3038 = vpack.c.b16 %v2452, %v2450
  %v3039 = vpack.c.b16 %v2453, %v2451
  %v3040 = vpack.c.b16 %v2456, %v2454
  %v3041 = vpack.c.b16 %v2457, %v2455
  %v3042 = vpack.c.b16 %v2460, %v2458
  %v3043 = vpack.c.b16 %v2461, %v2459
  %v3044 = vpack.c.b16 %v2464, %v2462
  %v3045 = vpack.c.b16 %v2465, %v2463
  %v3046 = vpack.c.b16 %v2468, %v2466
  %v3047 = vpack.c.b16 %v2469, %v2467
  %v3048 = vpack.c.b16 %v2472, %v2470
  %v3049 = vpack.c.b16 %v2473, %v2471
  %3626 = vmatprep.subr.bf16.mxu0 %v2475
  %3627 = vmatpush1.bf16.msra.mxu0 %v2474
  %3628 = vmatprep.subr.bf16.mxu0 %v2477
  %3629 = vmatpush1.bf16.msra.mxu0 %v2476
  %3630 = vmatprep.subr.bf16.mxu0 %v2479
  %3631 = vmatpush1.bf16.msra.mxu0 %v2478
  %3632 = vmatprep.subr.bf16.mxu0 %v2481
  %3633 = vmatpush1.bf16.msra.mxu0 %v2480
  %3634 = vmatprep.subr.bf16.mxu0 %v2483
  %3635 = vmatpush1.bf16.msra.mxu0 %v2482
  %3636 = vmatprep.subr.bf16.mxu0 %v2485
  %3637 = vmatpush1.bf16.msra.mxu0 %v2484
  %3638 = vmatprep.subr.bf16.mxu0 %v2487
  %3639 = vmatpush1.bf16.msra.mxu0 %v2486
  %3640 = vmatprep.subr.bf16.mxu0 %v2489
  %3641 = vmatpush1.bf16.msra.mxu0 %v2488
  %3642 = vmatprep.subr.bf16.mxu0 %v2491
  %3643 = vmatpush1.bf16.msra.mxu0 %v2490
  %3644 = vmatprep.subr.bf16.mxu0 %v2493
  %3645 = vmatpush1.bf16.msra.mxu0 %v2492
  %3646 = vmatprep.subr.bf16.mxu0 %v2495
  %3647 = vmatpush1.bf16.msra.mxu0 %v2494
  %3648 = vmatprep.subr.bf16.mxu0 %v2497
  %3649 = vmatpush1.bf16.msra.mxu0 %v2496
  %3650 = vmatprep.subr.bf16.mxu0 %v2499
  %3651 = vmatpush1.bf16.msra.mxu0 %v2498
  %3652 = vmatprep.subr.bf16.mxu0 %v2501
  %3653 = vmatpush1.bf16.msra.mxu0 %v2500
  %3654 = vmatprep.subr.bf16.mxu0 %v2503
  %3655 = vmatpush1.bf16.msra.mxu0 %v2502
  %3656 = vmatprep.subr.bf16.mxu0 %v2505
  %3657 = vmatpush1.bf16.msra.mxu0 %v2504
  %3658 = vmatprep.mubr.bf16.mxu0 %v675
  %3659 = vmatmul.mubr.bf16.gmra.mrb[0].mxu0 %v674
  %v3660 = vpop.f32.mrb[0].mxu0
  %v3661 = vadd.f32 %v613, %v3660
  %v3662 = vpop.f32.mrb[0].mxu0
  %v3663 = vadd.f32 %v617, %v3662
  %v3664 = vpop.f32.mrb[0].mxu0
  %v3665 = vpop.f32.mrb[0].mxu0
  %3666 = vdwg.mxu0
  %3667 = vmatprep.subr.bf16.mxu0 %v2507
  %3668 = vmatpush1.bf16.msra.mxu0 %v2506
  %3669 = vmatprep.subr.bf16.mxu0 %v2509
  %3670 = vmatpush1.bf16.msra.mxu0 %v2508
  %3671 = vmatprep.subr.bf16.mxu0 %v2511
  %3672 = vmatpush1.bf16.msra.mxu0 %v2510
  %3673 = vmatprep.subr.bf16.mxu0 %v2513
  %3674 = vmatpush1.bf16.msra.mxu0 %v2512
  %3675 = vmatprep.subr.bf16.mxu0 %v2515
  %3676 = vmatpush1.bf16.msra.mxu0 %v2514
  %3677 = vmatprep.subr.bf16.mxu0 %v2517
  %3678 = vmatpush1.bf16.msra.mxu0 %v2516
  %3679 = vmatprep.subr.bf16.mxu0 %v2519
  %3680 = vmatpush1.bf16.msra.mxu0 %v2518
  %3681 = vmatprep.subr.bf16.mxu0 %v2521
  %3682 = vmatpush1.bf16.msra.mxu0 %v2520
  %3683 = vmatprep.subr.bf16.mxu0 %v2523
  %3684 = vmatpush1.bf16.msra.mxu0 %v2522
  %3685 = vmatprep.subr.bf16.mxu0 %v2525
  %3686 = vmatpush1.bf16.msra.mxu0 %v2524
  %3687 = vmatprep.subr.bf16.mxu0 %v2527
  %3688 = vmatpush1.bf16.msra.mxu0 %v2526
  %3689 = vmatprep.subr.bf16.mxu0 %v2529
  %3690 = vmatpush1.bf16.msra.mxu0 %v2528
  %3691 = vmatprep.subr.bf16.mxu0 %v2531
  %3692 = vmatpush1.bf16.msra.mxu0 %v2530
  %3693 = vmatprep.subr.bf16.mxu0 %v2533
  %3694 = vmatpush1.bf16.msra.mxu0 %v2532
  %3695 = vmatprep.subr.bf16.mxu0 %v2535
  %3696 = vmatpush1.bf16.msra.mxu0 %v2534
  %3697 = vmatprep.subr.bf16.mxu0 %v2537
  %3698 = vmatpush1.bf16.msra.mxu0 %v2536
  %3699 = vmatprep.mubr.bf16.mxu0 %v677
  %3700 = vmatmul.mubr.bf16.gmra.mrb[0].mxu0 %v676
  %v3701 = vpop.f32.mrb[0].mxu0
  %v3702 = vadd.f32 %v3661, %v3701
  %v3703 = vpop.f32.mrb[0].mxu0
  %v3704 = vadd.f32 %v3663, %v3703
  %v3705 = vpop.f32.mrb[0].mxu0
  %v3706 = vpop.f32.mrb[0].mxu0
  %3707 = vdwg.mxu0
  %3708 = vmatprep.subr.bf16.mxu0 %v2539
  %3709 = vmatpush1.bf16.msra.mxu0 %v2538
  %3710 = vmatprep.subr.bf16.mxu0 %v2541
  %3711 = vmatpush1.bf16.msra.mxu0 %v2540
  %3712 = vmatprep.subr.bf16.mxu0 %v2543
  %3713 = vmatpush1.bf16.msra.mxu0 %v2542
  %3714 = vmatprep.subr.bf16.mxu0 %v2545
  %3715 = vmatpush1.bf16.msra.mxu0 %v2544
  %3716 = vmatprep.subr.bf16.mxu0 %v2547
  %3717 = vmatpush1.bf16.msra.mxu0 %v2546
  %3718 = vmatprep.subr.bf16.mxu0 %v2549
  %3719 = vmatpush1.bf16.msra.mxu0 %v2548
  %3720 = vmatprep.subr.bf16.mxu0 %v2551
  %3721 = vmatpush1.bf16.msra.mxu0 %v2550
  %3722 = vmatprep.subr.bf16.mxu0 %v2553
  %3723 = vmatpush1.bf16.msra.mxu0 %v2552
  %3724 = vmatprep.subr.bf16.mxu0 %v2555
  %3725 = vmatpush1.bf16.msra.mxu0 %v2554
  %3726 = vmatprep.subr.bf16.mxu0 %v2557
  %3727 = vmatpush1.bf16.msra.mxu0 %v2556
  %3728 = vmatprep.subr.bf16.mxu0 %v2559
  %3729 = vmatpush1.bf16.msra.mxu0 %v2558
  %3730 = vmatprep.subr.bf16.mxu0 %v2561
  %3731 = vmatpush1.bf16.msra.mxu0 %v2560
  %3732 = vmatprep.subr.bf16.mxu0 %v2563
  %3733 = vmatpush1.bf16.msra.mxu0 %v2562
  %3734 = vmatprep.subr.bf16.mxu0 %v2565
  %3735 = vmatpush1.bf16.msra.mxu0 %v2564
  %3736 = vmatprep.subr.bf16.mxu0 %v2567
  %3737 = vmatpush1.bf16.msra.mxu0 %v2566
  %3738 = vmatprep.subr.bf16.mxu0 %v2569
  %3739 = vmatpush1.bf16.msra.mxu0 %v2568
  %3740 = vmatprep.mubr.bf16.mxu0 %v679
  %3741 = vmatmul.mubr.bf16.gmra.mrb[0].mxu0 %v678
  %v3742 = vpop.f32.mrb[0].mxu0
  %v3743 = vadd.f32 %v3702, %v3742
  %v3744 = vpop.f32.mrb[0].mxu0
  %v3745 = vadd.f32 %v3704, %v3744
  %v3746 = vpop.f32.mrb[0].mxu0
  %v3747 = vpop.f32.mrb[0].mxu0
  %3748 = vdwg.mxu0
  %3749 = vmatprep.subr.bf16.mxu0 %v2571
  %3750 = vmatpush1.bf16.msra.mxu0 %v2570
  %3751 = vmatprep.subr.bf16.mxu0 %v2573
  %3752 = vmatpush1.bf16.msra.mxu0 %v2572
  %3753 = vmatprep.subr.bf16.mxu0 %v2575
  %3754 = vmatpush1.bf16.msra.mxu0 %v2574
  %3755 = vmatprep.subr.bf16.mxu0 %v2577
  %3756 = vmatpush1.bf16.msra.mxu0 %v2576
  %3757 = vmatprep.subr.bf16.mxu0 %v2579
  %3758 = vmatpush1.bf16.msra.mxu0 %v2578
  %3759 = vmatprep.subr.bf16.mxu0 %v2581
  %3760 = vmatpush1.bf16.msra.mxu0 %v2580
  %3761 = vmatprep.subr.bf16.mxu0 %v2583
  %3762 = vmatpush1.bf16.msra.mxu0 %v2582
  %3763 = vmatprep.subr.bf16.mxu0 %v2585
  %3764 = vmatpush1.bf16.msra.mxu0 %v2584
  %3765 = vmatprep.subr.bf16.mxu0 %v2587
  %3766 = vmatpush1.bf16.msra.mxu0 %v2586
  %3767 = vmatprep.subr.bf16.mxu0 %v2589
  %3768 = vmatpush1.bf16.msra.mxu0 %v2588
  %3769 = vmatprep.subr.bf16.mxu0 %v2591
  %3770 = vmatpush1.bf16.msra.mxu0 %v2590
  %3771 = vmatprep.subr.bf16.mxu0 %v2593
  %3772 = vmatpush1.bf16.msra.mxu0 %v2592
  %3773 = vmatprep.subr.bf16.mxu0 %v2595
  %3774 = vmatpush1.bf16.msra.mxu0 %v2594
  %3775 = vmatprep.subr.bf16.mxu0 %v2597
  %3776 = vmatpush1.bf16.msra.mxu0 %v2596
  %3777 = vmatprep.subr.bf16.mxu0 %v2599
  %3778 = vmatpush1.bf16.msra.mxu0 %v2598
  %3779 = vmatprep.subr.bf16.mxu0 %v2601
  %3780 = vmatpush1.bf16.msra.mxu0 %v2600
  %3781 = vmatprep.mubr.bf16.mxu0 %v681
  %3782 = vmatmul.mubr.bf16.gmra.mrb[0].mxu0 %v680
  %v3783 = vpop.f32.mrb[0].mxu0
  %v3784 = vadd.f32 %v3743, %v3783
  %v3785 = vpop.f32.mrb[0].mxu0
  %v3786 = vadd.f32 %v3745, %v3785
  %v3787 = vpop.f32.mrb[0].mxu0
  %v3788 = vpop.f32.mrb[0].mxu0
  %3789 = vdwg.mxu0
  %3790 = vmatprep.subr.bf16.mxu0 %v2603
  %3791 = vmatpush1.bf16.msra.mxu0 %v2602
  %3792 = vmatprep.subr.bf16.mxu0 %v2605
  %3793 = vmatpush1.bf16.msra.mxu0 %v2604
  %3794 = vmatprep.subr.bf16.mxu0 %v2607
  %3795 = vmatpush1.bf16.msra.mxu0 %v2606
  %3796 = vmatprep.subr.bf16.mxu0 %v2609
  %3797 = vmatpush1.bf16.msra.mxu0 %v2608
  %3798 = vmatprep.subr.bf16.mxu0 %v2611
  %3799 = vmatpush1.bf16.msra.mxu0 %v2610
  %3800 = vmatprep.subr.bf16.mxu0 %v2613
  %3801 = vmatpush1.bf16.msra.mxu0 %v2612
  %3802 = vmatprep.subr.bf16.mxu0 %v2615
  %3803 = vmatpush1.bf16.msra.mxu0 %v2614
  %3804 = vmatprep.subr.bf16.mxu0 %v2617
  %3805 = vmatpush1.bf16.msra.mxu0 %v2616
  %3806 = vmatprep.subr.bf16.mxu0 %v2619
  %3807 = vmatpush1.bf16.msra.mxu0 %v2618
  %3808 = vmatprep.subr.bf16.mxu0 %v2621
  %3809 = vmatpush1.bf16.msra.mxu0 %v2620
  %3810 = vmatprep.subr.bf16.mxu0 %v2623
  %3811 = vmatpush1.bf16.msra.mxu0 %v2622
  %3812 = vmatprep.subr.bf16.mxu0 %v2625
  %3813 = vmatpush1.bf16.msra.mxu0 %v2624
  %3814 = vmatprep.subr.bf16.mxu0 %v2627
  %3815 = vmatpush1.bf16.msra.mxu0 %v2626
  %3816 = vmatprep.subr.bf16.mxu0 %v2629
  %3817 = vmatpush1.bf16.msra.mxu0 %v2628
  %3818 = vmatprep.subr.bf16.mxu0 %v2631
  %3819 = vmatpush1.bf16.msra.mxu0 %v2630
  %3820 = vmatprep.subr.bf16.mxu0 %v2633
  %3821 = vmatpush1.bf16.msra.mxu0 %v2632
  %3822 = vmatprep.mubr.bf16.mxu0 %v683
  %3823 = vmatmul.mubr.bf16.gmra.mrb[0].mxu0 %v682
  %v3824 = vpop.f32.mrb[0].mxu0
  %v3825 = vadd.f32 %v3784, %v3824
  %v3826 = vpop.f32.mrb[0].mxu0
  %v3827 = vadd.f32 %v3786, %v3826
  %v3828 = vpop.f32.mrb[0].mxu0
  %v3829 = vpop.f32.mrb[0].mxu0
  %3830 = vdwg.mxu0
  %3831 = vmatprep.subr.bf16.mxu0 %v2635
  %3832 = vmatpush1.bf16.msra.mxu0 %v2634
  %3833 = vmatprep.subr.bf16.mxu0 %v2637
  %3834 = vmatpush1.bf16.msra.mxu0 %v2636
  %3835 = vmatprep.subr.bf16.mxu0 %v2639
  %3836 = vmatpush1.bf16.msra.mxu0 %v2638
  %3837 = vmatprep.subr.bf16.mxu0 %v2641
  %3838 = vmatpush1.bf16.msra.mxu0 %v2640
  %3839 = vmatprep.subr.bf16.mxu0 %v2643
  %3840 = vmatpush1.bf16.msra.mxu0 %v2642
  %3841 = vmatprep.subr.bf16.mxu0 %v2645
  %3842 = vmatpush1.bf16.msra.mxu0 %v2644
  %3843 = vmatprep.subr.bf16.mxu0 %v2647
  %3844 = vmatpush1.bf16.msra.mxu0 %v2646
  %3845 = vmatprep.subr.bf16.mxu0 %v2649
  %3846 = vmatpush1.bf16.msra.mxu0 %v2648
  %3847 = vmatprep.subr.bf16.mxu0 %v2651
  %3848 = vmatpush1.bf16.msra.mxu0 %v2650
  %3849 = vmatprep.subr.bf16.mxu0 %v2653
  %3850 = vmatpush1.bf16.msra.mxu0 %v2652
  %3851 = vmatprep.subr.bf16.mxu0 %v2655
  %3852 = vmatpush1.bf16.msra.mxu0 %v2654
  %3853 = vmatprep.subr.bf16.mxu0 %v2657
  %3854 = vmatpush1.bf16.msra.mxu0 %v2656
  %3855 = vmatprep.subr.bf16.mxu0 %v2659
  %3856 = vmatpush1.bf16.msra.mxu0 %v2658
  %3857 = vmatprep.subr.bf16.mxu0 %v2661
  %3858 = vmatpush1.bf16.msra.mxu0 %v2660
  %3859 = vmatprep.subr.bf16.mxu0 %v2663
  %3860 = vmatpush1.bf16.msra.mxu0 %v2662
  %3861 = vmatprep.subr.bf16.mxu0 %v2665
  %3862 = vmatpush1.bf16.msra.mxu0 %v2664
  %3863 = vmatprep.mubr.bf16.mxu0 %v685
  %3864 = vmatmul.mubr.bf16.gmra.mrb[0].mxu0 %v684
  %v3865 = vpop.f32.mrb[0].mxu0
  %v3866 = vadd.f32 %v3825, %v3865
  %v3867 = vpop.f32.mrb[0].mxu0
  %v3868 = vadd.f32 %v3827, %v3867
  %v3869 = vpop.f32.mrb[0].mxu0
  %v3870 = vpop.f32.mrb[0].mxu0
  %3871 = vdwg.mxu0
  %3872 = vmatprep.subr.bf16.mxu0 %v2667
  %3873 = vmatpush1.bf16.msra.mxu0 %v2666
  %3874 = vmatprep.subr.bf16.mxu0 %v2669
  %3875 = vmatpush1.bf16.msra.mxu0 %v2668
  %3876 = vmatprep.subr.bf16.mxu0 %v2671
  %3877 = vmatpush1.bf16.msra.mxu0 %v2670
  %3878 = vmatprep.subr.bf16.mxu0 %v2673
  %3879 = vmatpush1.bf16.msra.mxu0 %v2672
  %3880 = vmatprep.subr.bf16.mxu0 %v2675
  %3881 = vmatpush1.bf16.msra.mxu0 %v2674
  %3882 = vmatprep.subr.bf16.mxu0 %v2677
  %3883 = vmatpush1.bf16.msra.mxu0 %v2676
  %3884 = vmatprep.subr.bf16.mxu0 %v2679
  %3885 = vmatpush1.bf16.msra.mxu0 %v2678
  %3886 = vmatprep.subr.bf16.mxu0 %v2681
  %3887 = vmatpush1.bf16.msra.mxu0 %v2680
  %3888 = vmatprep.subr.bf16.mxu0 %v2683
  %3889 = vmatpush1.bf16.msra.mxu0 %v2682
  %3890 = vmatprep.subr.bf16.mxu0 %v2685
  %3891 = vmatpush1.bf16.msra.mxu0 %v2684
  %3892 = vmatprep.subr.bf16.mxu0 %v2687
  %3893 = vmatpush1.bf16.msra.mxu0 %v2686
  %3894 = vmatprep.subr.bf16.mxu0 %v2689
  %3895 = vmatpush1.bf16.msra.mxu0 %v2688
  %3896 = vmatprep.subr.bf16.mxu0 %v2691
  %3897 = vmatpush1.bf16.msra.mxu0 %v2690
  %3898 = vmatprep.subr.bf16.mxu0 %v2693
  %3899 = vmatpush1.bf16.msra.mxu0 %v2692
  %3900 = vmatprep.subr.bf16.mxu0 %v2695
  %3901 = vmatpush1.bf16.msra.mxu0 %v2694
  %3902 = vmatprep.subr.bf16.mxu0 %v2697
  %3903 = vmatpush1.bf16.msra.mxu0 %v2696
  %3904 = vmatprep.mubr.bf16.mxu0 %v687
  %3905 = vmatmul.mubr.bf16.gmra.mrb[0].mxu0 %v686
  %v3906 = vpop.f32.mrb[0].mxu0
  %v3907 = vadd.f32 %v3866, %v3906
  %v3908 = vpop.f32.mrb[0].mxu0
  %v3909 = vadd.f32 %v3868, %v3908
  %v3910 = vpop.f32.mrb[0].mxu0
  %v3911 = vpop.f32.mrb[0].mxu0
  %3912 = vdwg.mxu0
  %3913 = vmatprep.subr.bf16.mxu0 %v2699
  %3914 = vmatpush1.bf16.msra.mxu0 %v2698
  %3915 = vmatprep.subr.bf16.mxu0 %v2701
  %3916 = vmatpush1.bf16.msra.mxu0 %v2700
  %3917 = vmatprep.subr.bf16.mxu0 %v2703
  %3918 = vmatpush1.bf16.msra.mxu0 %v2702
  %3919 = vmatprep.subr.bf16.mxu0 %v2705
  %3920 = vmatpush1.bf16.msra.mxu0 %v2704
  %3921 = vmatprep.subr.bf16.mxu0 %v2707
  %3922 = vmatpush1.bf16.msra.mxu0 %v2706
  %3923 = vmatprep.subr.bf16.mxu0 %v2709
  %3924 = vmatpush1.bf16.msra.mxu0 %v2708
  %3925 = vmatprep.subr.bf16.mxu0 %v2711
  %3926 = vmatpush1.bf16.msra.mxu0 %v2710
  %3927 = vmatprep.subr.bf16.mxu0 %v2713
  %3928 = vmatpush1.bf16.msra.mxu0 %v2712
  %3929 = vmatprep.subr.bf16.mxu0 %v2715
  %3930 = vmatpush1.bf16.msra.mxu0 %v2714
  %3931 = vmatprep.subr.bf16.mxu0 %v2717
  %3932 = vmatpush1.bf16.msra.mxu0 %v2716
  %3933 = vmatprep.subr.bf16.mxu0 %v2719
  %3934 = vmatpush1.bf16.msra.mxu0 %v2718
  %3935 = vmatprep.subr.bf16.mxu0 %v2721
  %3936 = vmatpush1.bf16.msra.mxu0 %v2720
  %3937 = vmatprep.subr.bf16.mxu0 %v2723
  %3938 = vmatpush1.bf16.msra.mxu0 %v2722
  %3939 = vmatprep.subr.bf16.mxu0 %v2725
  %3940 = vmatpush1.bf16.msra.mxu0 %v2724
  %3941 = vmatprep.subr.bf16.mxu0 %v2727
  %3942 = vmatpush1.bf16.msra.mxu0 %v2726
  %3943 = vmatprep.subr.bf16.mxu0 %v2729
  %3944 = vmatpush1.bf16.msra.mxu0 %v2728
  %3945 = vmatprep.mubr.bf16.mxu0 %v689
  %3946 = vmatmul.mubr.bf16.gmra.mrb[0].mxu0 %v688
  %v3947 = vpop.f32.mrb[0].mxu0
  %v3948 = vadd.f32 %v3907, %v3947
  %v3949 = vpop.f32.mrb[0].mxu0
  %v3950 = vadd.f32 %v3909, %v3949
  %v3951 = vpop.f32.mrb[0].mxu0
  %v3952 = vpop.f32.mrb[0].mxu0
  %3953 = vdwg.mxu0
  %3954 = vmatprep.subr.bf16.mxu0 %v2731
  %3955 = vmatpush1.bf16.msra.mxu0 %v2730
  %3956 = vmatprep.subr.bf16.mxu0 %v2733
  %3957 = vmatpush1.bf16.msra.mxu0 %v2732
  %3958 = vmatprep.subr.bf16.mxu0 %v2735
  %3959 = vmatpush1.bf16.msra.mxu0 %v2734
  %3960 = vmatprep.subr.bf16.mxu0 %v2737
  %3961 = vmatpush1.bf16.msra.mxu0 %v2736
  %3962 = vmatprep.subr.bf16.mxu0 %v2739
  %3963 = vmatpush1.bf16.msra.mxu0 %v2738
  %3964 = vmatprep.subr.bf16.mxu0 %v2741
  %3965 = vmatpush1.bf16.msra.mxu0 %v2740
  %3966 = vmatprep.subr.bf16.mxu0 %v2743
  %3967 = vmatpush1.bf16.msra.mxu0 %v2742
  %3968 = vmatprep.subr.bf16.mxu0 %v2745
  %3969 = vmatpush1.bf16.msra.mxu0 %v2744
  %3970 = vmatprep.subr.bf16.mxu0 %v2747
  %3971 = vmatpush1.bf16.msra.mxu0 %v2746
  %3972 = vmatprep.subr.bf16.mxu0 %v2749
  %3973 = vmatpush1.bf16.msra.mxu0 %v2748
  %3974 = vmatprep.subr.bf16.mxu0 %v2751
  %3975 = vmatpush1.bf16.msra.mxu0 %v2750
  %3976 = vmatprep.subr.bf16.mxu0 %v2753
  %3977 = vmatpush1.bf16.msra.mxu0 %v2752
  %3978 = vmatprep.subr.bf16.mxu0 %v2755
  %3979 = vmatpush1.bf16.msra.mxu0 %v2754
  %3980 = vmatprep.subr.bf16.mxu0 %v2757
  %3981 = vmatpush1.bf16.msra.mxu0 %v2756
  %3982 = vmatprep.subr.bf16.mxu0 %v2759
  %3983 = vmatpush1.bf16.msra.mxu0 %v2758
  %3984 = vmatprep.subr.bf16.mxu0 %v2761
  %3985 = vmatpush1.bf16.msra.mxu0 %v2760
  %3986 = vmatprep.mubr.bf16.mxu0 %v691
  %3987 = vmatmul.mubr.bf16.gmra.mrb[0].mxu0 %v690
  %v3988 = vpop.f32.mrb[0].mxu0
  %v3989 = vadd.f32 %v3948, %v3988
  %v3990 = vpop.f32.mrb[0].mxu0
  %v3991 = vadd.f32 %v3950, %v3990
  %v3992 = vpop.f32.mrb[0].mxu0
  %v3993 = vpop.f32.mrb[0].mxu0
  %3994 = vdwg.mxu0
  %3995 = vmatprep.subr.bf16.mxu0 %v2763
  %3996 = vmatpush1.bf16.msra.mxu0 %v2762
  %3997 = vmatprep.subr.bf16.mxu0 %v2765
  %3998 = vmatpush1.bf16.msra.mxu0 %v2764
  %3999 = vmatprep.subr.bf16.mxu0 %v2767
  %4000 = vmatpush1.bf16.msra.mxu0 %v2766
  %4001 = vmatprep.subr.bf16.mxu0 %v2769
  %4002 = vmatpush1.bf16.msra.mxu0 %v2768
  %4003 = vmatprep.subr.bf16.mxu0 %v2771
  %4004 = vmatpush1.bf16.msra.mxu0 %v2770
  %4005 = vmatprep.subr.bf16.mxu0 %v2773
  %4006 = vmatpush1.bf16.msra.mxu0 %v2772
  %4007 = vmatprep.subr.bf16.mxu0 %v2775
  %4008 = vmatpush1.bf16.msra.mxu0 %v2774
  %4009 = vmatprep.subr.bf16.mxu0 %v2777
  %4010 = vmatpush1.bf16.msra.mxu0 %v2776
  %4011 = vmatprep.subr.bf16.mxu0 %v2779
  %4012 = vmatpush1.bf16.msra.mxu0 %v2778
  %4013 = vmatprep.subr.bf16.mxu0 %v2781
  %4014 = vmatpush1.bf16.msra.mxu0 %v2780
  %4015 = vmatprep.subr.bf16.mxu0 %v2783
  %4016 = vmatpush1.bf16.msra.mxu0 %v2782
  %4017 = vmatprep.subr.bf16.mxu0 %v2785
  %4018 = vmatpush1.bf16.msra.mxu0 %v2784
  %4019 = vmatprep.subr.bf16.mxu0 %v2787
  %4020 = vmatpush1.bf16.msra.mxu0 %v2786
  %4021 = vmatprep.subr.bf16.mxu0 %v2789
  %4022 = vmatpush1.bf16.msra.mxu0 %v2788
  %4023 = vmatprep.subr.bf16.mxu0 %v2791
  %4024 = vmatpush1.bf16.msra.mxu0 %v2790
  %4025 = vmatprep.subr.bf16.mxu0 %v2793
  %4026 = vmatpush1.bf16.msra.mxu0 %v2792
  %4027 = vmatprep.mubr.bf16.mxu0 %v693
  %4028 = vmatmul.mubr.bf16.gmra.mrb[0].mxu0 %v692
  %v4029 = vpop.f32.mrb[0].mxu0
  %v4030 = vadd.f32 %v3989, %v4029
  %v4031 = vpop.f32.mrb[0].mxu0
  %v4032 = vadd.f32 %v3991, %v4031
  %v4033 = vpop.f32.mrb[0].mxu0
  %v4034 = vpop.f32.mrb[0].mxu0
  %4035 = vdwg.mxu0
  %4036 = vmatprep.subr.bf16.mxu0 %v2795
  %4037 = vmatpush1.bf16.msra.mxu0 %v2794
  %4038 = vmatprep.subr.bf16.mxu0 %v2797
  %4039 = vmatpush1.bf16.msra.mxu0 %v2796
  %4040 = vmatprep.subr.bf16.mxu0 %v2799
  %4041 = vmatpush1.bf16.msra.mxu0 %v2798
  %4042 = vmatprep.subr.bf16.mxu0 %v2801
  %4043 = vmatpush1.bf16.msra.mxu0 %v2800
  %4044 = vmatprep.subr.bf16.mxu0 %v2803
  %4045 = vmatpush1.bf16.msra.mxu0 %v2802
  %4046 = vmatprep.subr.bf16.mxu0 %v2805
  %4047 = vmatpush1.bf16.msra.mxu0 %v2804
  %4048 = vmatprep.subr.bf16.mxu0 %v2807
  %4049 = vmatpush1.bf16.msra.mxu0 %v2806
  %4050 = vmatprep.subr.bf16.mxu0 %v2809
  %4051 = vmatpush1.bf16.msra.mxu0 %v2808
  %4052 = vmatprep.subr.bf16.mxu0 %v2811
  %4053 = vmatpush1.bf16.msra.mxu0 %v2810
  %4054 = vmatprep.subr.bf16.mxu0 %v2813
  %4055 = vmatpush1.bf16.msra.mxu0 %v2812
  %4056 = vmatprep.subr.bf16.mxu0 %v2815
  %4057 = vmatpush1.bf16.msra.mxu0 %v2814
  %4058 = vmatprep.subr.bf16.mxu0 %v2817
  %4059 = vmatpush1.bf16.msra.mxu0 %v2816
  %4060 = vmatprep.subr.bf16.mxu0 %v2819
  %4061 = vmatpush1.bf16.msra.mxu0 %v2818
  %4062 = vmatprep.subr.bf16.mxu0 %v2821
  %4063 = vmatpush1.bf16.msra.mxu0 %v2820
  %4064 = vmatprep.subr.bf16.mxu0 %v2823
  %4065 = vmatpush1.bf16.msra.mxu0 %v2822
  %4066 = vmatprep.subr.bf16.mxu0 %v2825
  %4067 = vmatpush1.bf16.msra.mxu0 %v2824
  %4068 = vmatprep.mubr.bf16.mxu0 %v695
  %4069 = vmatmul.mubr.bf16.gmra.mrb[0].mxu0 %v694
  %v4070 = vpop.f32.mrb[0].mxu0
  %v4071 = vadd.f32 %v4030, %v4070
  %v4072 = vpop.f32.mrb[0].mxu0
  %v4073 = vadd.f32 %v4032, %v4072
  %v4074 = vpop.f32.mrb[0].mxu0
  %v4075 = vpop.f32.mrb[0].mxu0
  %4076 = vdwg.mxu0
  %4077 = vmatprep.subr.bf16.mxu0 %v2827
  %4078 = vmatpush1.bf16.msra.mxu0 %v2826
  %4079 = vmatprep.subr.bf16.mxu0 %v2829
  %4080 = vmatpush1.bf16.msra.mxu0 %v2828
  %4081 = vmatprep.subr.bf16.mxu0 %v2831
  %4082 = vmatpush1.bf16.msra.mxu0 %v2830
  %4083 = vmatprep.subr.bf16.mxu0 %v2833
  %4084 = vmatpush1.bf16.msra.mxu0 %v2832
  %4085 = vmatprep.subr.bf16.mxu0 %v2835
  %4086 = vmatpush1.bf16.msra.mxu0 %v2834
  %4087 = vmatprep.subr.bf16.mxu0 %v2837
  %4088 = vmatpush1.bf16.msra.mxu0 %v2836
  %4089 = vmatprep.subr.bf16.mxu0 %v2839
  %4090 = vmatpush1.bf16.msra.mxu0 %v2838
  %4091 = vmatprep.subr.bf16.mxu0 %v2841
  %4092 = vmatpush1.bf16.msra.mxu0 %v2840
  %4093 = vmatprep.subr.bf16.mxu0 %v2843
  %4094 = vmatpush1.bf16.msra.mxu0 %v2842
  %4095 = vmatprep.subr.bf16.mxu0 %v2845
  %4096 = vmatpush1.bf16.msra.mxu0 %v2844
  %4097 = vmatprep.subr.bf16.mxu0 %v2847
  %4098 = vmatpush1.bf16.msra.mxu0 %v2846
  %4099 = vmatprep.subr.bf16.mxu0 %v2849
  %4100 = vmatpush1.bf16.msra.mxu0 %v2848
  %4101 = vmatprep.subr.bf16.mxu0 %v2851
  %4102 = vmatpush1.bf16.msra.mxu0 %v2850
  %4103 = vmatprep.subr.bf16.mxu0 %v2853
  %4104 = vmatpush1.bf16.msra.mxu0 %v2852
  %4105 = vmatprep.subr.bf16.mxu0 %v2855
  %4106 = vmatpush1.bf16.msra.mxu0 %v2854
  %4107 = vmatprep.subr.bf16.mxu0 %v2857
  %4108 = vmatpush1.bf16.msra.mxu0 %v2856
  %4109 = vmatprep.mubr.bf16.mxu0 %v697
  %4110 = vmatmul.mubr.bf16.gmra.mrb[0].mxu0 %v696
  %v4111 = vpop.f32.mrb[0].mxu0
  %v4112 = vadd.f32 %v4071, %v4111
  %v4113 = vpop.f32.mrb[0].mxu0
  %v4114 = vadd.f32 %v4073, %v4113
  %v4115 = vpop.f32.mrb[0].mxu0
  %v4116 = vpop.f32.mrb[0].mxu0
  %4117 = vdwg.mxu0
  %4118 = vmatprep.subr.bf16.mxu0 %v2859
  %4119 = vmatpush1.bf16.msra.mxu0 %v2858
  %4120 = vmatprep.subr.bf16.mxu0 %v2861
  %4121 = vmatpush1.bf16.msra.mxu0 %v2860
  %4122 = vmatprep.subr.bf16.mxu0 %v2863
  %4123 = vmatpush1.bf16.msra.mxu0 %v2862
  %4124 = vmatprep.subr.bf16.mxu0 %v2865
  %4125 = vmatpush1.bf16.msra.mxu0 %v2864
  %4126 = vmatprep.subr.bf16.mxu0 %v2867
  %4127 = vmatpush1.bf16.msra.mxu0 %v2866
  %4128 = vmatprep.subr.bf16.mxu0 %v2869
  %4129 = vmatpush1.bf16.msra.mxu0 %v2868
  %4130 = vmatprep.subr.bf16.mxu0 %v2871
  %4131 = vmatpush1.bf16.msra.mxu0 %v2870
  %4132 = vmatprep.subr.bf16.mxu0 %v2873
  %4133 = vmatpush1.bf16.msra.mxu0 %v2872
  %4134 = vmatprep.subr.bf16.mxu0 %v2875
  %4135 = vmatpush1.bf16.msra.mxu0 %v2874
  %4136 = vmatprep.subr.bf16.mxu0 %v2877
  %4137 = vmatpush1.bf16.msra.mxu0 %v2876
  %4138 = vmatprep.subr.bf16.mxu0 %v2879
  %4139 = vmatpush1.bf16.msra.mxu0 %v2878
  %4140 = vmatprep.subr.bf16.mxu0 %v2881
  %4141 = vmatpush1.bf16.msra.mxu0 %v2880
  %4142 = vmatprep.subr.bf16.mxu0 %v2883
  %4143 = vmatpush1.bf16.msra.mxu0 %v2882
  %4144 = vmatprep.subr.bf16.mxu0 %v2885
  %4145 = vmatpush1.bf16.msra.mxu0 %v2884
  %4146 = vmatprep.subr.bf16.mxu0 %v2887
  %4147 = vmatpush1.bf16.msra.mxu0 %v2886
  %4148 = vmatprep.subr.bf16.mxu0 %v2889
  %4149 = vmatpush1.bf16.msra.mxu0 %v2888
  %4150 = vmatprep.mubr.bf16.mxu0 %v699
  %4151 = vmatmul.mubr.bf16.gmra.mrb[0].mxu0 %v698
  %v4152 = vpop.f32.mrb[0].mxu0
  %v4153 = vadd.f32 %v4112, %v4152
  %v4154 = vpop.f32.mrb[0].mxu0
  %v4155 = vadd.f32 %v4114, %v4154
  %v4156 = vpop.f32.mrb[0].mxu0
  %v4157 = vpop.f32.mrb[0].mxu0
  %4158 = vdwg.mxu0
  %4159 = vmatprep.subr.bf16.mxu0 %v2891
  %4160 = vmatpush1.bf16.msra.mxu0 %v2890
  %4161 = vmatprep.subr.bf16.mxu0 %v2893
  %4162 = vmatpush1.bf16.msra.mxu0 %v2892
  %4163 = vmatprep.subr.bf16.mxu0 %v2895
  %4164 = vmatpush1.bf16.msra.mxu0 %v2894
  %4165 = vmatprep.subr.bf16.mxu0 %v2897
  %4166 = vmatpush1.bf16.msra.mxu0 %v2896
  %4167 = vmatprep.subr.bf16.mxu0 %v2899
  %4168 = vmatpush1.bf16.msra.mxu0 %v2898
  %4169 = vmatprep.subr.bf16.mxu0 %v2901
  %4170 = vmatpush1.bf16.msra.mxu0 %v2900
  %4171 = vmatprep.subr.bf16.mxu0 %v2903
  %4172 = vmatpush1.bf16.msra.mxu0 %v2902
  %4173 = vmatprep.subr.bf16.mxu0 %v2905
  %4174 = vmatpush1.bf16.msra.mxu0 %v2904
  %4175 = vmatprep.subr.bf16.mxu0 %v2907
  %4176 = vmatpush1.bf16.msra.mxu0 %v2906
  %4177 = vmatprep.subr.bf16.mxu0 %v2909
  %4178 = vmatpush1.bf16.msra.mxu0 %v2908
  %4179 = vmatprep.subr.bf16.mxu0 %v2911
  %4180 = vmatpush1.bf16.msra.mxu0 %v2910
  %4181 = vmatprep.subr.bf16.mxu0 %v2913
  %4182 = vmatpush1.bf16.msra.mxu0 %v2912
  %4183 = vmatprep.subr.bf16.mxu0 %v2915
  %4184 = vmatpush1.bf16.msra.mxu0 %v2914
  %4185 = vmatprep.subr.bf16.mxu0 %v2917
  %4186 = vmatpush1.bf16.msra.mxu0 %v2916
  %4187 = vmatprep.subr.bf16.mxu0 %v2919
  %4188 = vmatpush1.bf16.msra.mxu0 %v2918
  %4189 = vmatprep.subr.bf16.mxu0 %v2921
  %4190 = vmatpush1.bf16.msra.mxu0 %v2920
  %4191 = vmatprep.mubr.bf16.mxu0 %v701
  %4192 = vmatmul.mubr.bf16.gmra.mrb[0].mxu0 %v700
  %v4193 = vpop.f32.mrb[0].mxu0
  %v4194 = vadd.f32 %v4153, %v4193
  %v4195 = vpop.f32.mrb[0].mxu0
  %v4196 = vadd.f32 %v4155, %v4195
  %v4197 = vpop.f32.mrb[0].mxu0
  %v4198 = vpop.f32.mrb[0].mxu0
  %4199 = vdwg.mxu0
  %4200 = vmatprep.subr.bf16.mxu0 %v2923
  %4201 = vmatpush1.bf16.msra.mxu0 %v2922
  %4202 = vmatprep.subr.bf16.mxu0 %v2925
  %4203 = vmatpush1.bf16.msra.mxu0 %v2924
  %4204 = vmatprep.subr.bf16.mxu0 %v2927
  %4205 = vmatpush1.bf16.msra.mxu0 %v2926
  %4206 = vmatprep.subr.bf16.mxu0 %v2929
  %4207 = vmatpush1.bf16.msra.mxu0 %v2928
  %4208 = vmatprep.subr.bf16.mxu0 %v2931
  %4209 = vmatpush1.bf16.msra.mxu0 %v2930
  %4210 = vmatprep.subr.bf16.mxu0 %v2933
  %4211 = vmatpush1.bf16.msra.mxu0 %v2932
  %4212 = vmatprep.subr.bf16.mxu0 %v2935
  %4213 = vmatpush1.bf16.msra.mxu0 %v2934
  %4214 = vmatprep.subr.bf16.mxu0 %v2937
  %4215 = vmatpush1.bf16.msra.mxu0 %v2936
  %4216 = vmatprep.subr.bf16.mxu0 %v2939
  %4217 = vmatpush1.bf16.msra.mxu0 %v2938
  %4218 = vmatprep.subr.bf16.mxu0 %v2941
  %4219 = vmatpush1.bf16.msra.mxu0 %v2940
  %4220 = vmatprep.subr.bf16.mxu0 %v2943
  %4221 = vmatpush1.bf16.msra.mxu0 %v2942
  %4222 = vmatprep.subr.bf16.mxu0 %v2945
  %4223 = vmatpush1.bf16.msra.mxu0 %v2944
  %4224 = vmatprep.subr.bf16.mxu0 %v2947
  %4225 = vmatpush1.bf16.msra.mxu0 %v2946
  %4226 = vmatprep.subr.bf16.mxu0 %v2949
  %4227 = vmatpush1.bf16.msra.mxu0 %v2948
  %4228 = vmatprep.subr.bf16.mxu0 %v2951
  %4229 = vmatpush1.bf16.msra.mxu0 %v2950
  %4230 = vmatprep.subr.bf16.mxu0 %v2953
  %4231 = vmatpush1.bf16.msra.mxu0 %v2952
  %4232 = vmatprep.mubr.bf16.mxu0 %v703
  %4233 = vmatmul.mubr.bf16.gmra.mrb[0].mxu0 %v702
  %v4234 = vpop.f32.mrb[0].mxu0
  %v4235 = vadd.f32 %v4194, %v4234
  %v4236 = vpop.f32.mrb[0].mxu0
  %v4237 = vadd.f32 %v4196, %v4236
  %v4238 = vpop.f32.mrb[0].mxu0
  %v4239 = vpop.f32.mrb[0].mxu0
  %4240 = vdwg.mxu0
  %4241 = vmatprep.subr.bf16.mxu0 %v2955
  %4242 = vmatpush1.bf16.msra.mxu0 %v2954
  %4243 = vmatprep.subr.bf16.mxu0 %v2957
  %4244 = vmatpush1.bf16.msra.mxu0 %v2956
  %4245 = vmatprep.subr.bf16.mxu0 %v2959
  %4246 = vmatpush1.bf16.msra.mxu0 %v2958
  %4247 = vmatprep.subr.bf16.mxu0 %v2961
  %4248 = vmatpush1.bf16.msra.mxu0 %v2960
  %4249 = vmatprep.subr.bf16.mxu0 %v2963
  %4250 = vmatpush1.bf16.msra.mxu0 %v2962
  %4251 = vmatprep.subr.bf16.mxu0 %v2965
  %4252 = vmatpush1.bf16.msra.mxu0 %v2964
  %4253 = vmatprep.subr.bf16.mxu0 %v2967
  %4254 = vmatpush1.bf16.msra.mxu0 %v2966
  %4255 = vmatprep.subr.bf16.mxu0 %v2969
  %4256 = vmatpush1.bf16.msra.mxu0 %v2968
  %4257 = vmatprep.subr.bf16.mxu0 %v2971
  %4258 = vmatpush1.bf16.msra.mxu0 %v2970
  %4259 = vmatprep.subr.bf16.mxu0 %v2973
  %4260 = vmatpush1.bf16.msra.mxu0 %v2972
  %4261 = vmatprep.subr.bf16.mxu0 %v2975
  %4262 = vmatpush1.bf16.msra.mxu0 %v2974
  %4263 = vmatprep.subr.bf16.mxu0 %v2977
  %4264 = vmatpush1.bf16.msra.mxu0 %v2976
  %4265 = vmatprep.subr.bf16.mxu0 %v2979
  %4266 = vmatpush1.bf16.msra.mxu0 %v2978
  %4267 = vmatprep.subr.bf16.mxu0 %v2981
  %4268 = vmatpush1.bf16.msra.mxu0 %v2980
  %4269 = vmatprep.subr.bf16.mxu0 %v2983
  %4270 = vmatpush1.bf16.msra.mxu0 %v2982
  %4271 = vmatprep.subr.bf16.mxu0 %v2985
  %4272 = vmatpush1.bf16.msra.mxu0 %v2984
  %4273 = vmatprep.mubr.bf16.mxu0 %v705
  %4274 = vmatmul.mubr.bf16.gmra.mrb[0].mxu0 %v704
  %v4275 = vpop.f32.mrb[0].mxu0
  %v4276 = vadd.f32 %v4235, %v4275
  %v4277 = vpop.f32.mrb[0].mxu0
  %v4278 = vadd.f32 %v4237, %v4277
  %v4279 = vpop.f32.mrb[0].mxu0
  %v4280 = vpop.f32.mrb[0].mxu0
  %4281 = vdwg.mxu0
  %4282 = vmatprep.subr.bf16.mxu0 %v2987
  %4283 = vmatpush1.bf16.msra.mxu0 %v2986
  %4284 = vmatprep.subr.bf16.mxu0 %v2989
  %4285 = vmatpush1.bf16.msra.mxu0 %v2988
  %4286 = vmatprep.subr.bf16.mxu0 %v2991
  %4287 = vmatpush1.bf16.msra.mxu0 %v2990
  %4288 = vmatprep.subr.bf16.mxu0 %v2993
  %4289 = vmatpush1.bf16.msra.mxu0 %v2992
  %4290 = vmatprep.subr.bf16.mxu0 %v2995
  %4291 = vmatpush1.bf16.msra.mxu0 %v2994
  %4292 = vmatprep.subr.bf16.mxu0 %v2997
  %4293 = vmatpush1.bf16.msra.mxu0 %v2996
  %4294 = vmatprep.subr.bf16.mxu0 %v2999
  %4295 = vmatpush1.bf16.msra.mxu0 %v2998
  %4296 = vmatprep.subr.bf16.mxu0 %v3001
  %4297 = vmatpush1.bf16.msra.mxu0 %v3000
  %4298 = vmatprep.subr.bf16.mxu0 %v3003
  %4299 = vmatpush1.bf16.msra.mxu0 %v3002
  %4300 = vmatprep.subr.bf16.mxu0 %v3005
  %4301 = vmatpush1.bf16.msra.mxu0 %v3004
  %4302 = vmatprep.subr.bf16.mxu0 %v3007
  %4303 = vmatpush1.bf16.msra.mxu0 %v3006
  %4304 = vmatprep.subr.bf16.mxu0 %v3009
  %4305 = vmatpush1.bf16.msra.mxu0 %v3008
  %4306 = vmatprep.subr.bf16.mxu0 %v3011
  %4307 = vmatpush1.bf16.msra.mxu0 %v3010
  %4308 = vmatprep.subr.bf16.mxu0 %v3013
  %4309 = vmatpush1.bf16.msra.mxu0 %v3012
  %4310 = vmatprep.subr.bf16.mxu0 %v3015
  %4311 = vmatpush1.bf16.msra.mxu0 %v3014
  %4312 = vmatprep.subr.bf16.mxu0 %v3017
  %4313 = vmatpush1.bf16.msra.mxu0 %v3016
  %4314 = vmatprep.mubr.bf16.mxu0 %v707
  %4315 = vmatmul.mubr.bf16.gmra.mrb[0].mxu0 %v706
  %v4316 = vpop.f32.mrb[0].mxu0
  %v4317 = vadd.f32 %v4276, %v4316
  %v4318 = vpop.f32.mrb[0].mxu0
  %v4319 = vadd.f32 %v4278, %v4318
  %v4320 = vpop.f32.mrb[0].mxu0
  %v4321 = vpop.f32.mrb[0].mxu0
  %4322 = vdwg.mxu0
  %4323 = vmatprep.subr.bf16.mxu0 %v3019
  %4324 = vmatpush1.bf16.msra.mxu0 %v3018
  %4325 = vmatprep.subr.bf16.mxu0 %v3021
  %4326 = vmatpush1.bf16.msra.mxu0 %v3020
  %4327 = vmatprep.subr.bf16.mxu0 %v3023
  %4328 = vmatpush1.bf16.msra.mxu0 %v3022
  %4329 = vmatprep.subr.bf16.mxu0 %v3025
  %4330 = vmatpush1.bf16.msra.mxu0 %v3024
  %4331 = vmatprep.subr.bf16.mxu0 %v3027
  %4332 = vmatpush1.bf16.msra.mxu0 %v3026
  %4333 = vmatprep.subr.bf16.mxu0 %v3029
  %4334 = vmatpush1.bf16.msra.mxu0 %v3028
  %4335 = vmatprep.subr.bf16.mxu0 %v3031
  %4336 = vmatpush1.bf16.msra.mxu0 %v3030
  %4337 = vmatprep.subr.bf16.mxu0 %v3033
  %4338 = vmatpush1.bf16.msra.mxu0 %v3032
  %4339 = vmatprep.subr.bf16.mxu0 %v3035
  %4340 = vmatpush1.bf16.msra.mxu0 %v3034
  %4341 = vmatprep.subr.bf16.mxu0 %v3037
  %4342 = vmatpush1.bf16.msra.mxu0 %v3036
  %4343 = vmatprep.subr.bf16.mxu0 %v3039
  %4344 = vmatpush1.bf16.msra.mxu0 %v3038
  %4345 = vmatprep.subr.bf16.mxu0 %v3041
  %4346 = vmatpush1.bf16.msra.mxu0 %v3040
  %4347 = vmatprep.subr.bf16.mxu0 %v3043
  %4348 = vmatpush1.bf16.msra.mxu0 %v3042
  %4349 = vmatprep.subr.bf16.mxu0 %v3045
  %4350 = vmatpush1.bf16.msra.mxu0 %v3044
  %4351 = vmatprep.subr.bf16.mxu0 %v3047
  %4352 = vmatpush1.bf16.msra.mxu0 %v3046
  %4353 = vmatprep.subr.bf16.mxu0 %v3049
  %4354 = vmatpush1.bf16.msra.mxu0 %v3048
  %4355 = vmatprep.mubr.bf16.mxu0 %v709
  %4356 = vmatmul.mubr.bf16.gmra.mrb[0].mxu0 %v708
  %v4357 = vpop.f32.mrb[0].mxu0
  %v4358 = vadd.f32 %v4317, %v4357
  %v4359 = vpop.f32.mrb[0].mxu0
  %v4360 = vadd.f32 %v4319, %v4359
  %v4361 = vpop.f32.mrb[0].mxu0
  %v4362 = vpop.f32.mrb[0].mxu0
  %4363 = vdwg.mxu0
  %v4364 = vmax.f32 %v4358, 0.0
  %v4365 = vmax.f32 %v4360, 0.0
  %v4366 = vpack.c.bf16 %v4364, %v4364
  %v4367 = vpack.c.bf16 %v4365, %v4365
  %v4370 = vunpack.c.l.b16 %v4366
  %v4371 = vunpack.c.l.b16 %v4367
  %v4372 = vpack.c.b16 %v4371, %v4370
  %4374 = vst [vmem:[%s3] sm:$0xff] %v4372
  // Predicated region
  $region14: #{cnn_forward.10} parent=0 // pred_check
    _
  $region15: #{cnn_forward.10} parent=0 // pred_check_branch
    %4376 = sbr.rel (0) target = $region17
  $region16: #{cnn_forward.10} parent=0 // pred_region
    _
  $region17: #{cnn_forward.10} parent=0 // pred_fallthru
    _
  // Predicated region
  $region18: #{cnn_forward.10} parent=0 // pred_check
    _
  $region19: #{cnn_forward.10} parent=0 // pred_check_branch
    %4378 = sbr.rel (0) target = $region21
  $region20: #{cnn_forward.10} parent=0 // pred_region
    _
  $region21: #{cnn_forward.10} parent=0 // pred_fallthru
    _

</llo_original>
